<compile_context>
chip_gen: v7x
topology: tpu7x:2x2x1
jax: 0.10.0
libtpu: 0.0.40
codegen_flags: <defaults>
</compile_context>

<pallas_src>
import functools

import jax
import jax.numpy as jnp
from jax.experimental import pallas as pl
from jax.experimental.pallas import tpu as pltpu

EPS = 1e-5


def _bn_train(z, gamma, beta):
    """Training-mode BatchNorm over rows of an (M, C) matrix, single-pass stats."""
    inv_m = 1.0 / float(z.shape[0])
    mean = jnp.sum(z, axis=0, keepdims=True) * inv_m
    var = jnp.maximum(jnp.sum(z * z, axis=0, keepdims=True) * inv_m - mean * mean, 0.0)
    scale = gamma * jax.lax.rsqrt(var + EPS)
    shift = beta - scale * mean
    return z * scale + shift


def _exit_flow_kernel(x_ref,
                      w1a_ref, w1b_ref, g1_ref, b1_ref,
                      w2a_ref, w2b_ref, g2_ref, b2_ref,
                      ws_ref, gs_ref, bbs_ref,
                      w3a_ref, w3b_ref, g3_ref, b3_ref,
                      w4a_ref, w4b_ref, g4_ref, b4_ref,
                      o_ref,
                      padA, padB, padC, padD, padE,
                      *, N, H, W, cin, c1, c2, c3):
    f32 = jnp.float32
    bf16 = jnp.bfloat16
    Ho = H // 2
    Wo = W // 2

    def fill_halo(ref, h, w, c, val):
        # Fill only the halo (2 rows + 2 columns); interior was already written.
        ref[:, 0:1, :, :] = jnp.full((N, 1, w + 2, c), val, f32)
        ref[:, h + 1:h + 2, :, :] = jnp.full((N, 1, w + 2, c), val, f32)
        ref[:, 1:h + 1, 0:1, :] = jnp.full((N, h, 1, c), val, f32)
        ref[:, 1:h + 1, w + 1:w + 2, :] = jnp.full((N, h, 1, c), val, f32)

    def conv3x3(pad_ref, w_ref, h, w, ci, co):
        # Dense 3x3 conv (pad=1, stride=1) over a zero-halo scratch: only 3
        # sublane(kw)-shifted reads; kh taps are free leading-dim slices.
        acc = jnp.zeros((N * h * w, co), f32)
        for kw in range(3):
            slab = pad_ref[:, :, kw:kw + w, :]                       # (N, h+2, w, ci)
            for kh in range(3):
                win = slab[:, kh:kh + h].reshape(N * h * w, ci)      # free H slice
                acc = acc + jnp.dot(win.astype(bf16), w_ref[kh, kw],
                                    preferred_element_type=f32)
        return acc                                                    # (N*h*w, co) f32

    def dot1x1(z, w_ref):
        return jnp.dot(z.astype(bf16), w_ref[...], preferred_element_type=f32)

    # ---------------- conv1_residual ----------------
    # ReLU applied once, written to the interior of the zero-halo scratch.
    padA[:, 1:H + 1, 1:W + 1, :] = jnp.maximum(x_ref[...], 0.0)
    fill_halo(padA, H, W, cin, 0.0)
    r = conv3x3(padA, w1a_ref, H, W, cin, cin)                        # (Mi, cin)
    r = dot1x1(r, w1b_ref)                                            # 1x1 -> (Mi, c1)
    r = jnp.maximum(_bn_train(r, g1_ref[...], b1_ref[...]), 0.0)      # BN + ReLU

    padB[:, 1:H + 1, 1:W + 1, :] = r.reshape(N, H, W, c1)
    fill_halo(padB, H, W, c1, 0.0)
    r = conv3x3(padB, w2a_ref, H, W, c1, c1)
    r = dot1x1(r, w2b_ref)
    r = _bn_train(r, g2_ref[...], b2_ref[...])                        # (Mi, c1), no ReLU

    # MaxPool2d(3, stride=2, padding=1): -inf halo scratch, then direct stride-2
    # window max (3 sublane-strided reads, free leading-dim row subsample).
    padC[:, 1:H + 1, 1:W + 1, :] = r.reshape(N, H, W, c1)
    fill_halo(padC, H, W, c1, -jnp.inf)
    m = None
    for kw in range(3):
        slab = padC[:, :, pl.ds(kw, Wo, stride=2), :]                 # (N, H+2, Wo, c1)
        for kh in range(3):
            tap = slab[:, kh:kh + 2 * Ho]                             # rows kh .. kh+H-1
            tap = tap.reshape(N, Ho, 2, Wo, c1)[:, :, 0]              # rows kh, kh+2, ...
            m = tap if m is None else jnp.maximum(m, tap)
    r_pool = m.reshape(N * Ho * Wo, c1)                               # (Mo, c1)

    # ---------------- conv1_shortcut: 1x1 conv stride 2 -> BN ----------------
    # The conv bias is dropped: training-mode BN subtracts the batch mean, which
    # cancels a per-channel constant bias exactly.
    x_w = x_ref[:, :, pl.ds(0, Wo, stride=2), :]                      # even W cols
    xs = x_w.reshape(N, Ho, 2, Wo, cin)[:, :, 0]                      # even H rows
    sc = dot1x1(xs.reshape(N * Ho * Wo, cin), ws_ref)                 # (Mo, c1)
    sc = _bn_train(sc, gs_ref[...], bbs_ref[...])

    y = r_pool + sc                                                   # residual add

    # ---------------- conv2 ----------------
    padD[:, 1:Ho + 1, 1:Wo + 1, :] = y.reshape(N, Ho, Wo, c1)
    fill_halo(padD, Ho, Wo, c1, 0.0)
    y = conv3x3(padD, w3a_ref, Ho, Wo, c1, c1)
    y = dot1x1(y, w3b_ref)
    y = jnp.maximum(_bn_train(y, g3_ref[...], b3_ref[...]), 0.0)      # (Mo, c2)

    padE[:, 1:Ho + 1, 1:Wo + 1, :] = y.reshape(N, Ho, Wo, c2)
    fill_halo(padE, Ho, Wo, c2, 0.0)
    y = conv3x3(padE, w4a_ref, Ho, Wo, c2, c2)
    y = dot1x1(y, w4b_ref)
    y = jnp.maximum(_bn_train(y, g4_ref[...], b4_ref[...]), 0.0)      # (Mo, c3)

    # ---------------- AdaptiveAvgPool2d((1,1)) ----------------
    o_ref[...] = jnp.mean(y.reshape(N, Ho * Wo, c3), axis=1)          # (N, c3)


def exit_flow_forward(x_nchw, p):
    x = jnp.transpose(x_nchw, (0, 2, 3, 1)).astype(jnp.float32)       # NCHW -> NHWC (boundary)
    N, H, W, cin = x.shape
    assert H % 2 == 0 and W % 2 == 0, "even spatial dims assumed"
    c1 = p["w1b"].shape[-1]
    c2 = p["w3b"].shape[-1]
    c3 = p["w4b"].shape[-1]
    Ho, Wo = H // 2, W // 2

    bf = lambda v: v.astype(jnp.bfloat16)                             # bf16 MXU operands
    row = lambda v: v.reshape(1, -1).astype(jnp.float32)              # BN params, f32

    kern = functools.partial(_exit_flow_kernel, N=N, H=H, W=W,
                             cin=cin, c1=c1, c2=c2, c3=c3)
    out2d = pl.pallas_call(
        kern,
        out_shape=jax.ShapeDtypeStruct((N, c3), jnp.float32),
        scratch_shapes=[
            pltpu.VMEM((N, H + 2, W + 2, cin), jnp.float32),          # zero-halo relu(x)
            pltpu.VMEM((N, H + 2, W + 2, c1), jnp.float32),           # zero-halo sepconv1 out
            pltpu.VMEM((N, H + 2, W + 2, c1), jnp.float32),           # -inf-halo maxpool input
            pltpu.VMEM((N, Ho + 2, Wo + 2, c1), jnp.float32),         # zero-halo residual sum
            pltpu.VMEM((N, Ho + 2, Wo + 2, c2), jnp.float32),         # zero-halo sepconv3 out
        ],
        compiler_params=pltpu.CompilerParams(vmem_limit_bytes=32 * 1024 * 1024),
    )(x,
      bf(p["w1a"]), bf(p["w1b"]), row(p["g1"]), row(p["b1"]),
      bf(p["w2a"]), bf(p["w2b"]), row(p["g2"]), row(p["b2"]),
      bf(p["ws"]), row(p["gs"]), row(p["bbs"]),
      bf(p["w3a"]), bf(p["w3b"]), row(p["g3"]), row(p["b3"]),
      bf(p["w4a"]), bf(p["w4b"]), row(p["g4"]), row(p["b4"]))

    return out2d.reshape(N, c3, 1, 1)                                 # (N, C, 1, 1) like PyTorch


def init_params(key, cin, c1, c2, c3):
    ks = jax.random.split(key, 20)

    def conv_w(k, shape):
        fan_in = shape[0] * shape[1] * shape[2] if len(shape) == 4 else shape[0]
        return jax.random.normal(k, shape, jnp.float32) / jnp.sqrt(float(fan_in))

    def bn(kg, kb, c):
        g = 1.0 + 0.1 * jax.random.normal(kg, (c,), jnp.float32)
        b = 0.1 * jax.random.normal(kb, (c,), jnp.float32)
        return g, b

    p = {}
    p["w1a"] = conv_w(ks[0], (3, 3, cin, cin))
    p["w1b"] = conv_w(ks[1], (cin, c1))
    p["g1"], p["b1"] = bn(ks[2], ks[3], c1)
    p["w2a"] = conv_w(ks[4], (3, 3, c1, c1))
    p["w2b"] = conv_w(ks[5], (c1, c1))
    p["g2"], p["b2"] = bn(ks[6], ks[7], c1)
    p["ws"] = conv_w(ks[8], (cin, c1))
    # Shortcut conv bias exists in the PyTorch module but is exactly canceled by the
    # training-mode BatchNorm mean subtraction that follows, so it is not passed to
    # the kernel (dead compute).
    p["bs"] = 0.1 * jax.random.normal(ks[9], (c1,), jnp.float32)
    p["gs"], p["bbs"] = bn(ks[10], ks[11], c1)
    p["w3a"] = conv_w(ks[12], (3, 3, c1, c1))
    p["w3b"] = conv_w(ks[13], (c1, c2))
    p["g3"], p["b3"] = bn(ks[14], ks[15], c2)
    p["w4a"] = conv_w(ks[16], (3, 3, c2, c2))
    p["w4b"] = conv_w(ks[17], (c2, c3))
    p["g4"], p["b4"] = bn(ks[18], ks[19], c3)
    return p


if __name__ == "__main__":
    # Scaled-down channel counts (728/1024/1536/2048 -> 8/16/24/32), small spatial.
    CIN, C1, C2, C3 = 8, 16, 24, 32
    N, H, W = 2, 8, 8

    key = jax.random.PRNGKey(0)
    k_x, k_p = jax.random.split(key)
    x_nchw = jax.random.normal(k_x, (N, CIN, H, W), jnp.float32)      # PyTorch NCHW input
    params = init_params(k_p, CIN, C1, C2, C3)

    out = exit_flow_forward(x_nchw, params)
    out = jax.block_until_ready(out)
    assert out.shape == (N, C3, 1, 1)
    assert bool(jnp.all(jnp.isfinite(out)))
    print("KERNEL_OK")
</pallas_src>

<mosaic_0001>
module attributes {stable_mosaic.version = 11 : i64} {
  func.func @_exit_flow_kernel(%arg0: memref<2x8x8x8xf32, #tpu.memory_space<vmem>>, %arg1: memref<3x3x8x8xbf16, #tpu.memory_space<vmem>>, %arg2: memref<8x16xbf16, #tpu.memory_space<vmem>>, %arg3: memref<1x16xf32, #tpu.memory_space<vmem>>, %arg4: memref<1x16xf32, #tpu.memory_space<vmem>>, %arg5: memref<3x3x16x16xbf16, #tpu.memory_space<vmem>>, %arg6: memref<16x16xbf16, #tpu.memory_space<vmem>>, %arg7: memref<1x16xf32, #tpu.memory_space<vmem>>, %arg8: memref<1x16xf32, #tpu.memory_space<vmem>>, %arg9: memref<8x16xbf16, #tpu.memory_space<vmem>>, %arg10: memref<1x16xf32, #tpu.memory_space<vmem>>, %arg11: memref<1x16xf32, #tpu.memory_space<vmem>>, %arg12: memref<3x3x16x16xbf16, #tpu.memory_space<vmem>>, %arg13: memref<16x24xbf16, #tpu.memory_space<vmem>>, %arg14: memref<1x24xf32, #tpu.memory_space<vmem>>, %arg15: memref<1x24xf32, #tpu.memory_space<vmem>>, %arg16: memref<3x3x24x24xbf16, #tpu.memory_space<vmem>>, %arg17: memref<24x32xbf16, #tpu.memory_space<vmem>>, %arg18: memref<1x32xf32, #tpu.memory_space<vmem>>, %arg19: memref<1x32xf32, #tpu.memory_space<vmem>>, %arg20: memref<2x32xf32, #tpu.memory_space<vmem>>, %arg21: memref<2x10x10x8xf32, #tpu.memory_space<vmem>>, %arg22: memref<2x10x10x16xf32, #tpu.memory_space<vmem>>, %arg23: memref<2x10x10x16xf32, #tpu.memory_space<vmem>>, %arg24: memref<2x6x6x16xf32, #tpu.memory_space<vmem>>, %arg25: memref<2x6x6x24xf32, #tpu.memory_space<vmem>>) attributes {dimension_semantics = [], scalar_prefetch = 0 : i64, scratch_operands = 5 : i64, tpu.core_type = #tpu.core_type<tc>} {
    %c0 = arith.constant 0 : index
    %c0_0 = arith.constant 0 : index
    %c0_1 = arith.constant 0 : index
    %c0_2 = arith.constant 0 : index
    %0 = vector.load %arg0[%c0, %c0_0, %c0_1, %c0_2] : memref<2x8x8x8xf32, #tpu.memory_space<vmem>>, vector<2x8x8x8xf32>
    %cst = arith.constant 0.000000e+00 : f32
    %1 = vector.broadcast %cst : f32 to vector<2x8x8x8xf32>
    %2 = arith.maximumf %0, %1 : vector<2x8x8x8xf32>
    %c0_3 = arith.constant 0 : index
    %c1 = arith.constant 1 : index
    %c1_4 = arith.constant 1 : index
    %c0_5 = arith.constant 0 : index
    %3 = vector.load %arg21[%c0_3, %c1, %c1_4, %c0_5] : memref<2x10x10x8xf32, #tpu.memory_space<vmem>>, vector<2x8x8x8xf32>
    tpu.vector_store %arg21[%c0_3, %c1, %c1_4, %c0_5], %2 {strides = array<i32>} : memref<2x10x10x8xf32, #tpu.memory_space<vmem>>, vector<2x8x8x8xf32>,
    %cst_6 = arith.constant 0.000000e+00 : f32
    %4 = vector.broadcast %cst_6 : f32 to vector<2x1x10x8xf32>
    %c0_7 = arith.constant 0 : index
    %c0_8 = arith.constant 0 : index
    %c0_9 = arith.constant 0 : index
    %c0_10 = arith.constant 0 : index
    %5 = vector.load %arg21[%c0_7, %c0_8, %c0_9, %c0_10] : memref<2x10x10x8xf32, #tpu.memory_space<vmem>>, vector<2x1x10x8xf32>
    tpu.vector_store %arg21[%c0_7, %c0_8, %c0_9, %c0_10], %4 {strides = array<i32>} : memref<2x10x10x8xf32, #tpu.memory_space<vmem>>, vector<2x1x10x8xf32>,
    %cst_11 = arith.constant 0.000000e+00 : f32
    %6 = vector.broadcast %cst_11 : f32 to vector<2x1x10x8xf32>
    %c0_12 = arith.constant 0 : index
    %c9 = arith.constant 9 : index
    %c0_13 = arith.constant 0 : index
    %c0_14 = arith.constant 0 : index
    %7 = vector.load %arg21[%c0_12, %c9, %c0_13, %c0_14] : memref<2x10x10x8xf32, #tpu.memory_space<vmem>>, vector<2x1x10x8xf32>
    tpu.vector_store %arg21[%c0_12, %c9, %c0_13, %c0_14], %6 {strides = array<i32>} : memref<2x10x10x8xf32, #tpu.memory_space<vmem>>, vector<2x1x10x8xf32>,
    %cst_15 = arith.constant 0.000000e+00 : f32
    %8 = vector.broadcast %cst_15 : f32 to vector<2x8x1x8xf32>
    %c0_16 = arith.constant 0 : index
    %c1_17 = arith.constant 1 : index
    %c0_18 = arith.constant 0 : index
    %c0_19 = arith.constant 0 : index
    %9 = vector.load %arg21[%c0_16, %c1_17, %c0_18, %c0_19] : memref<2x10x10x8xf32, #tpu.memory_space<vmem>>, vector<2x8x1x8xf32>
    tpu.vector_store %arg21[%c0_16, %c1_17, %c0_18, %c0_19], %8 {strides = array<i32>} : memref<2x10x10x8xf32, #tpu.memory_space<vmem>>, vector<2x8x1x8xf32>,
    %cst_20 = arith.constant 0.000000e+00 : f32
    %10 = vector.broadcast %cst_20 : f32 to vector<2x8x1x8xf32>
    %c0_21 = arith.constant 0 : index
    %c1_22 = arith.constant 1 : index
    %c9_23 = arith.constant 9 : index
    %c0_24 = arith.constant 0 : index
    %11 = vector.load %arg21[%c0_21, %c1_22, %c9_23, %c0_24] : memref<2x10x10x8xf32, #tpu.memory_space<vmem>>, vector<2x8x1x8xf32>
    tpu.vector_store %arg21[%c0_21, %c1_22, %c9_23, %c0_24], %10 {strides = array<i32>} : memref<2x10x10x8xf32, #tpu.memory_space<vmem>>, vector<2x8x1x8xf32>,
    %cst_25 = arith.constant 0.000000e+00 : f32
    %12 = vector.broadcast %cst_25 : f32 to vector<128x8xf32>
    %c0_26 = arith.constant 0 : index
    %c0_27 = arith.constant 0 : index
    %c0_28 = arith.constant 0 : index
    %c0_29 = arith.constant 0 : index
    %13 = vector.load %arg21[%c0_26, %c0_27, %c0_28, %c0_29] : memref<2x10x10x8xf32, #tpu.memory_space<vmem>>, vector<2x10x8x8xf32>
    %14 = vector.extract_strided_slice %13 {offsets = [0, 0, 0, 0], sizes = [2, 8, 8, 8], strides = [1, 1, 1, 1]} : vector<2x10x8x8xf32> to vector<2x8x8x8xf32>
    %15 = vector.shape_cast %14 : vector<2x8x8x8xf32> to vector<128x8xf32>
    %16 = arith.truncf %15 : vector<128x8xf32> to vector<128x8xbf16>
    %c0_30 = arith.constant 0 : index
    %c0_31 = arith.constant 0 : index
    %c0_32 = arith.constant 0 : index
    %c0_33 = arith.constant 0 : index
    %17 = vector.load %arg1[%c0_30, %c0_31, %c0_32, %c0_33] : memref<3x3x8x8xbf16, #tpu.memory_space<vmem>>, vector<1x1x8x8xbf16>
    %18 = vector.shape_cast %17 : vector<1x1x8x8xbf16> to vector<8x8xbf16>
    %cst_34 = arith.constant dense<0.000000e+00> : vector<128x8xf32>
    %19 = tpu.matmul %16, %18, %cst_34 {dimension_numbers = #tpu.dot_dimension_numbers<[1], [0], [0], [1], [0, 0, 1, 1], [], []>} : vector<128x8xbf16>, vector<8x8xbf16>, vector<128x8xf32> -> vector<128x8xf32>
    %20 = arith.addf %12, %19 : vector<128x8xf32>
    %21 = vector.extract_strided_slice %13 {offsets = [0, 1, 0, 0], sizes = [2, 8, 8, 8], strides = [1, 1, 1, 1]} : vector<2x10x8x8xf32> to vector<2x8x8x8xf32>
    %22 = vector.shape_cast %21 : vector<2x8x8x8xf32> to vector<128x8xf32>
    %23 = arith.truncf %22 : vector<128x8xf32> to vector<128x8xbf16>
    %c1_35 = arith.constant 1 : index
    %c0_36 = arith.constant 0 : index
    %c0_37 = arith.constant 0 : index
    %c0_38 = arith.constant 0 : index
    %24 = vector.load %arg1[%c1_35, %c0_36, %c0_37, %c0_38] : memref<3x3x8x8xbf16, #tpu.memory_space<vmem>>, vector<1x1x8x8xbf16>
    %25 = vector.shape_cast %24 : vector<1x1x8x8xbf16> to vector<8x8xbf16>
    %cst_39 = arith.constant dense<0.000000e+00> : vector<128x8xf32>
    %26 = tpu.matmul %23, %25, %cst_39 {dimension_numbers = #tpu.dot_dimension_numbers<[1], [0], [0], [1], [0, 0, 1, 1], [], []>} : vector<128x8xbf16>, vector<8x8xbf16>, vector<128x8xf32> -> vector<128x8xf32>
    %27 = arith.addf %20, %26 : vector<128x8xf32>
    %28 = vector.extract_strided_slice %13 {offsets = [0, 2, 0, 0], sizes = [2, 8, 8, 8], strides = [1, 1, 1, 1]} : vector<2x10x8x8xf32> to vector<2x8x8x8xf32>
    %29 = vector.shape_cast %28 : vector<2x8x8x8xf32> to vector<128x8xf32>
    %30 = arith.truncf %29 : vector<128x8xf32> to vector<128x8xbf16>
    %c2 = arith.constant 2 : index
    %c0_40 = arith.constant 0 : index
    %c0_41 = arith.constant 0 : index
    %c0_42 = arith.constant 0 : index
    %31 = vector.load %arg1[%c2, %c0_40, %c0_41, %c0_42] : memref<3x3x8x8xbf16, #tpu.memory_space<vmem>>, vector<1x1x8x8xbf16>
    %32 = vector.shape_cast %31 : vector<1x1x8x8xbf16> to vector<8x8xbf16>
    %cst_43 = arith.constant dense<0.000000e+00> : vector<128x8xf32>
    %33 = tpu.matmul %30, %32, %cst_43 {dimension_numbers = #tpu.dot_dimension_numbers<[1], [0], [0], [1], [0, 0, 1, 1], [], []>} : vector<128x8xbf16>, vector<8x8xbf16>, vector<128x8xf32> -> vector<128x8xf32>
    %34 = arith.addf %27, %33 : vector<128x8xf32>
    %c0_44 = arith.constant 0 : index
    %c0_45 = arith.constant 0 : index
    %c1_46 = arith.constant 1 : index
    %c0_47 = arith.constant 0 : index
    %35 = vector.load %arg21[%c0_44, %c0_45, %c1_46, %c0_47] : memref<2x10x10x8xf32, #tpu.memory_space<vmem>>, vector<2x10x8x8xf32>
    %36 = vector.extract_strided_slice %35 {offsets = [0, 0, 0, 0], sizes = [2, 8, 8, 8], strides = [1, 1, 1, 1]} : vector<2x10x8x8xf32> to vector<2x8x8x8xf32>
    %37 = vector.shape_cast %36 : vector<2x8x8x8xf32> to vector<128x8xf32>
    %38 = arith.truncf %37 : vector<128x8xf32> to vector<128x8xbf16>
    %c0_48 = arith.constant 0 : index
    %c1_49 = arith.constant 1 : index
    %c0_50 = arith.constant 0 : index
    %c0_51 = arith.constant 0 : index
    %39 = vector.load %arg1[%c0_48, %c1_49, %c0_50, %c0_51] : memref<3x3x8x8xbf16, #tpu.memory_space<vmem>>, vector<1x1x8x8xbf16>
    %40 = vector.shape_cast %39 : vector<1x1x8x8xbf16> to vector<8x8xbf16>
    %cst_52 = arith.constant dense<0.000000e+00> : vector<128x8xf32>
    %41 = tpu.matmul %38, %40, %cst_52 {dimension_numbers = #tpu.dot_dimension_numbers<[1], [0], [0], [1], [0, 0, 1, 1], [], []>} : vector<128x8xbf16>, vector<8x8xbf16>, vector<128x8xf32> -> vector<128x8xf32>
    %42 = arith.addf %34, %41 : vector<128x8xf32>
    %43 = vector.extract_strided_slice %35 {offsets = [0, 1, 0, 0], sizes = [2, 8, 8, 8], strides = [1, 1, 1, 1]} : vector<2x10x8x8xf32> to vector<2x8x8x8xf32>
    %44 = vector.shape_cast %43 : vector<2x8x8x8xf32> to vector<128x8xf32>
    %45 = arith.truncf %44 : vector<128x8xf32> to vector<128x8xbf16>
    %c1_53 = arith.constant 1 : index
    %c1_54 = arith.constant 1 : index
    %c0_55 = arith.constant 0 : index
    %c0_56 = arith.constant 0 : index
    %46 = vector.load %arg1[%c1_53, %c1_54, %c0_55, %c0_56] : memref<3x3x8x8xbf16, #tpu.memory_space<vmem>>, vector<1x1x8x8xbf16>
    %47 = vector.shape_cast %46 : vector<1x1x8x8xbf16> to vector<8x8xbf16>
    %cst_57 = arith.constant dense<0.000000e+00> : vector<128x8xf32>
    %48 = tpu.matmul %45, %47, %cst_57 {dimension_numbers = #tpu.dot_dimension_numbers<[1], [0], [0], [1], [0, 0, 1, 1], [], []>} : vector<128x8xbf16>, vector<8x8xbf16>, vector<128x8xf32> -> vector<128x8xf32>
    %49 = arith.addf %42, %48 : vector<128x8xf32>
    %50 = vector.extract_strided_slice %35 {offsets = [0, 2, 0, 0], sizes = [2, 8, 8, 8], strides = [1, 1, 1, 1]} : vector<2x10x8x8xf32> to vector<2x8x8x8xf32>
    %51 = vector.shape_cast %50 : vector<2x8x8x8xf32> to vector<128x8xf32>
    %52 = arith.truncf %51 : vector<128x8xf32> to vector<128x8xbf16>
    %c2_58 = arith.constant 2 : index
    %c1_59 = arith.constant 1 : index
    %c0_60 = arith.constant 0 : index
    %c0_61 = arith.constant 0 : index
    %53 = vector.load %arg1[%c2_58, %c1_59, %c0_60, %c0_61] : memref<3x3x8x8xbf16, #tpu.memory_space<vmem>>, vector<1x1x8x8xbf16>
    %54 = vector.shape_cast %53 : vector<1x1x8x8xbf16> to vector<8x8xbf16>
    %cst_62 = arith.constant dense<0.000000e+00> : vector<128x8xf32>
    %55 = tpu.matmul %52, %54, %cst_62 {dimension_numbers = #tpu.dot_dimension_numbers<[1], [0], [0], [1], [0, 0, 1, 1], [], []>} : vector<128x8xbf16>, vector<8x8xbf16>, vector<128x8xf32> -> vector<128x8xf32>
    %56 = arith.addf %49, %55 : vector<128x8xf32>
    %c0_63 = arith.constant 0 : index
    %c0_64 = arith.constant 0 : index
    %c2_65 = arith.constant 2 : index
    %c0_66 = arith.constant 0 : index
    %57 = vector.load %arg21[%c0_63, %c0_64, %c2_65, %c0_66] : memref<2x10x10x8xf32, #tpu.memory_space<vmem>>, vector<2x10x8x8xf32>
    %58 = vector.extract_strided_slice %57 {offsets = [0, 0, 0, 0], sizes = [2, 8, 8, 8], strides = [1, 1, 1, 1]} : vector<2x10x8x8xf32> to vector<2x8x8x8xf32>
    %59 = vector.shape_cast %58 : vector<2x8x8x8xf32> to vector<128x8xf32>
    %60 = arith.truncf %59 : vector<128x8xf32> to vector<128x8xbf16>
    %c0_67 = arith.constant 0 : index
    %c2_68 = arith.constant 2 : index
    %c0_69 = arith.constant 0 : index
    %c0_70 = arith.constant 0 : index
    %61 = vector.load %arg1[%c0_67, %c2_68, %c0_69, %c0_70] : memref<3x3x8x8xbf16, #tpu.memory_space<vmem>>, vector<1x1x8x8xbf16>
    %62 = vector.shape_cast %61 : vector<1x1x8x8xbf16> to vector<8x8xbf16>
    %cst_71 = arith.constant dense<0.000000e+00> : vector<128x8xf32>
    %63 = tpu.matmul %60, %62, %cst_71 {dimension_numbers = #tpu.dot_dimension_numbers<[1], [0], [0], [1], [0, 0, 1, 1], [], []>} : vector<128x8xbf16>, vector<8x8xbf16>, vector<128x8xf32> -> vector<128x8xf32>
    %64 = arith.addf %56, %63 : vector<128x8xf32>
    %65 = vector.extract_strided_slice %57 {offsets = [0, 1, 0, 0], sizes = [2, 8, 8, 8], strides = [1, 1, 1, 1]} : vector<2x10x8x8xf32> to vector<2x8x8x8xf32>
    %66 = vector.shape_cast %65 : vector<2x8x8x8xf32> to vector<128x8xf32>
    %67 = arith.truncf %66 : vector<128x8xf32> to vector<128x8xbf16>
    %c1_72 = arith.constant 1 : index
    %c2_73 = arith.constant 2 : index
    %c0_74 = arith.constant 0 : index
    %c0_75 = arith.constant 0 : index
    %68 = vector.load %arg1[%c1_72, %c2_73, %c0_74, %c0_75] : memref<3x3x8x8xbf16, #tpu.memory_space<vmem>>, vector<1x1x8x8xbf16>
    %69 = vector.shape_cast %68 : vector<1x1x8x8xbf16> to vector<8x8xbf16>
    %cst_76 = arith.constant dense<0.000000e+00> : vector<128x8xf32>
    %70 = tpu.matmul %67, %69, %cst_76 {dimension_numbers = #tpu.dot_dimension_numbers<[1], [0], [0], [1], [0, 0, 1, 1], [], []>} : vector<128x8xbf16>, vector<8x8xbf16>, vector<128x8xf32> -> vector<128x8xf32>
    %71 = arith.addf %64, %70 : vector<128x8xf32>
    %72 = vector.extract_strided_slice %57 {offsets = [0, 2, 0, 0], sizes = [2, 8, 8, 8], strides = [1, 1, 1, 1]} : vector<2x10x8x8xf32> to vector<2x8x8x8xf32>
    %73 = vector.shape_cast %72 : vector<2x8x8x8xf32> to vector<128x8xf32>
    %74 = arith.truncf %73 : vector<128x8xf32> to vector<128x8xbf16>
    %c2_77 = arith.constant 2 : index
    %c2_78 = arith.constant 2 : index
    %c0_79 = arith.constant 0 : index
    %c0_80 = arith.constant 0 : index
    %75 = vector.load %arg1[%c2_77, %c2_78, %c0_79, %c0_80] : memref<3x3x8x8xbf16, #tpu.memory_space<vmem>>, vector<1x1x8x8xbf16>
    %76 = vector.shape_cast %75 : vector<1x1x8x8xbf16> to vector<8x8xbf16>
    %cst_81 = arith.constant dense<0.000000e+00> : vector<128x8xf32>
    %77 = tpu.matmul %74, %76, %cst_81 {dimension_numbers = #tpu.dot_dimension_numbers<[1], [0], [0], [1], [0, 0, 1, 1], [], []>} : vector<128x8xbf16>, vector<8x8xbf16>, vector<128x8xf32> -> vector<128x8xf32>
    %78 = arith.addf %71, %77 : vector<128x8xf32>
    %79 = arith.truncf %78 : vector<128x8xf32> to vector<128x8xbf16>
    %c0_82 = arith.constant 0 : index
    %c0_83 = arith.constant 0 : index
    %80 = vector.load %arg2[%c0_82, %c0_83] : memref<8x16xbf16, #tpu.memory_space<vmem>>, vector<8x16xbf16>
    %cst_84 = arith.constant dense<0.000000e+00> : vector<128x16xf32>
    %81 = tpu.matmul %79, %80, %cst_84 {dimension_numbers = #tpu.dot_dimension_numbers<[1], [0], [0], [1], [0, 0, 1, 1], [], []>} : vector<128x8xbf16>, vector<8x16xbf16>, vector<128x16xf32> -> vector<128x16xf32>
    %c0_85 = arith.constant 0 : index
    %c0_86 = arith.constant 0 : index
    %82 = vector.load %arg3[%c0_85, %c0_86] : memref<1x16xf32, #tpu.memory_space<vmem>>, vector<1x16xf32>
    %c0_87 = arith.constant 0 : index
    %c0_88 = arith.constant 0 : index
    %83 = vector.load %arg4[%c0_87, %c0_88] : memref<1x16xf32, #tpu.memory_space<vmem>>, vector<1x16xf32>
    %cst_89 = arith.constant dense<0.000000e+00> : vector<16xf32>
    %84 = vector.multi_reduction <add>, %81, %cst_89 [0] : vector<128x16xf32> to vector<16xf32>
    %85 = vector.shape_cast %84 : vector<16xf32> to vector<1x16xf32>
    %cst_90 = arith.constant 7.812500e-03 : f32
    %86 = vector.broadcast %cst_90 : f32 to vector<1x16xf32>
    %87 = arith.mulf %85, %86 : vector<1x16xf32>
    %88 = arith.mulf %81, %81 : vector<128x16xf32>
    %cst_91 = arith.constant dense<0.000000e+00> : vector<16xf32>
    %89 = vector.multi_reduction <add>, %88, %cst_91 [0] : vector<128x16xf32> to vector<16xf32>
    %90 = vector.shape_cast %89 : vector<16xf32> to vector<1x16xf32>
    %cst_92 = arith.constant 7.812500e-03 : f32
    %91 = vector.broadcast %cst_92 : f32 to vector<1x16xf32>
    %92 = arith.mulf %90, %91 : vector<1x16xf32>
    %93 = arith.mulf %87, %87 : vector<1x16xf32>
    %94 = arith.subf %92, %93 : vector<1x16xf32>
    %cst_93 = arith.constant 0.000000e+00 : f32
    %95 = vector.broadcast %cst_93 : f32 to vector<1x16xf32>
    %96 = arith.maximumf %94, %95 : vector<1x16xf32>
    %cst_94 = arith.constant 9.99999974E-6 : f32
    %97 = vector.broadcast %cst_94 : f32 to vector<1x16xf32>
    %98 = arith.addf %96, %97 : vector<1x16xf32>
    %99 = math.rsqrt %98 : vector<1x16xf32>
    %100 = arith.mulf %82, %99 : vector<1x16xf32>
    %101 = arith.mulf %100, %87 : vector<1x16xf32>
    %102 = arith.subf %83, %101 : vector<1x16xf32>
    %103 = vector.broadcast %100 : vector<1x16xf32> to vector<128x16xf32>
    %104 = arith.mulf %81, %103 : vector<128x16xf32>
    %105 = vector.broadcast %102 : vector<1x16xf32> to vector<128x16xf32>
    %106 = arith.addf %104, %105 : vector<128x16xf32>
    %cst_95 = arith.constant 0.000000e+00 : f32
    %107 = vector.broadcast %cst_95 : f32 to vector<128x16xf32>
    %108 = arith.maximumf %106, %107 : vector<128x16xf32>
    %109 = vector.shape_cast %108 : vector<128x16xf32> to vector<2x8x8x16xf32>
    %c0_96 = arith.constant 0 : index
    %c1_97 = arith.constant 1 : index
    %c1_98 = arith.constant 1 : index
    %c0_99 = arith.constant 0 : index
    %110 = vector.load %arg22[%c0_96, %c1_97, %c1_98, %c0_99] : memref<2x10x10x16xf32, #tpu.memory_space<vmem>>, vector<2x8x8x16xf32>
    tpu.vector_store %arg22[%c0_96, %c1_97, %c1_98, %c0_99], %109 {strides = array<i32>} : memref<2x10x10x16xf32, #tpu.memory_space<vmem>>, vector<2x8x8x16xf32>,
    %cst_100 = arith.constant 0.000000e+00 : f32
    %111 = vector.broadcast %cst_100 : f32 to vector<2x1x10x16xf32>
    %c0_101 = arith.constant 0 : index
    %c0_102 = arith.constant 0 : index
    %c0_103 = arith.constant 0 : index
    %c0_104 = arith.constant 0 : index
    %112 = vector.load %arg22[%c0_101, %c0_102, %c0_103, %c0_104] : memref<2x10x10x16xf32, #tpu.memory_space<vmem>>, vector<2x1x10x16xf32>
    tpu.vector_store %arg22[%c0_101, %c0_102, %c0_103, %c0_104], %111 {strides = array<i32>} : memref<2x10x10x16xf32, #tpu.memory_space<vmem>>, vector<2x1x10x16xf32>,
    %cst_105 = arith.constant 0.000000e+00 : f32
    %113 = vector.broadcast %cst_105 : f32 to vector<2x1x10x16xf32>
    %c0_106 = arith.constant 0 : index
    %c9_107 = arith.constant 9 : index
    %c0_108 = arith.constant 0 : index
    %c0_109 = arith.constant 0 : index
    %114 = vector.load %arg22[%c0_106, %c9_107, %c0_108, %c0_109] : memref<2x10x10x16xf32, #tpu.memory_space<vmem>>, vector<2x1x10x16xf32>
    tpu.vector_store %arg22[%c0_106, %c9_107, %c0_108, %c0_109], %113 {strides = array<i32>} : memref<2x10x10x16xf32, #tpu.memory_space<vmem>>, vector<2x1x10x16xf32>,
    %cst_110 = arith.constant 0.000000e+00 : f32
    %115 = vector.broadcast %cst_110 : f32 to vector<2x8x1x16xf32>
    %c0_111 = arith.constant 0 : index
    %c1_112 = arith.constant 1 : index
    %c0_113 = arith.constant 0 : index
    %c0_114 = arith.constant 0 : index
    %116 = vector.load %arg22[%c0_111, %c1_112, %c0_113, %c0_114] : memref<2x10x10x16xf32, #tpu.memory_space<vmem>>, vector<2x8x1x16xf32>
    tpu.vector_store %arg22[%c0_111, %c1_112, %c0_113, %c0_114], %115 {strides = array<i32>} : memref<2x10x10x16xf32, #tpu.memory_space<vmem>>, vector<2x8x1x16xf32>,
    %cst_115 = arith.constant 0.000000e+00 : f32
    %117 = vector.broadcast %cst_115 : f32 to vector<2x8x1x16xf32>
    %c0_116 = arith.constant 0 : index
    %c1_117 = arith.constant 1 : index
    %c9_118 = arith.constant 9 : index
    %c0_119 = arith.constant 0 : index
    %118 = vector.load %arg22[%c0_116, %c1_117, %c9_118, %c0_119] : memref<2x10x10x16xf32, #tpu.memory_space<vmem>>, vector<2x8x1x16xf32>
    tpu.vector_store %arg22[%c0_116, %c1_117, %c9_118, %c0_119], %117 {strides = array<i32>} : memref<2x10x10x16xf32, #tpu.memory_space<vmem>>, vector<2x8x1x16xf32>,
    %cst_120 = arith.constant 0.000000e+00 : f32
    %119 = vector.broadcast %cst_120 : f32 to vector<128x16xf32>
    %c0_121 = arith.constant 0 : index
    %c0_122 = arith.constant 0 : index
    %c0_123 = arith.constant 0 : index
    %c0_124 = arith.constant 0 : index
    %120 = vector.load %arg22[%c0_121, %c0_122, %c0_123, %c0_124] : memref<2x10x10x16xf32, #tpu.memory_space<vmem>>, vector<2x10x8x16xf32>
    %121 = vector.extract_strided_slice %120 {offsets = [0, 0, 0, 0], sizes = [2, 8, 8, 16], strides = [1, 1, 1, 1]} : vector<2x10x8x16xf32> to vector<2x8x8x16xf32>
    %122 = vector.shape_cast %121 : vector<2x8x8x16xf32> to vector<128x16xf32>
    %123 = arith.truncf %122 : vector<128x16xf32> to vector<128x16xbf16>
    %c0_125 = arith.constant 0 : index
    %c0_126 = arith.constant 0 : index
    %c0_127 = arith.constant 0 : index
    %c0_128 = arith.constant 0 : index
    %124 = vector.load %arg5[%c0_125, %c0_126, %c0_127, %c0_128] : memref<3x3x16x16xbf16, #tpu.memory_space<vmem>>, vector<1x1x16x16xbf16>
    %125 = vector.shape_cast %124 : vector<1x1x16x16xbf16> to vector<16x16xbf16>
    %cst_129 = arith.constant dense<0.000000e+00> : vector<128x16xf32>
    %126 = tpu.matmul %123, %125, %cst_129 {dimension_numbers = #tpu.dot_dimension_numbers<[1], [0], [0], [1], [0, 0, 1, 1], [], []>} : vector<128x16xbf16>, vector<16x16xbf16>, vector<128x16xf32> -> vector<128x16xf32>
    %127 = arith.addf %119, %126 : vector<128x16xf32>
    %128 = vector.extract_strided_slice %120 {offsets = [0, 1, 0, 0], sizes = [2, 8, 8, 16], strides = [1, 1, 1, 1]} : vector<2x10x8x16xf32> to vector<2x8x8x16xf32>
    %129 = vector.shape_cast %128 : vector<2x8x8x16xf32> to vector<128x16xf32>
    %130 = arith.truncf %129 : vector<128x16xf32> to vector<128x16xbf16>
    %c1_130 = arith.constant 1 : index
    %c0_131 = arith.constant 0 : index
    %c0_132 = arith.constant 0 : index
    %c0_133 = arith.constant 0 : index
    %131 = vector.load %arg5[%c1_130, %c0_131, %c0_132, %c0_133] : memref<3x3x16x16xbf16, #tpu.memory_space<vmem>>, vector<1x1x16x16xbf16>
    %132 = vector.shape_cast %131 : vector<1x1x16x16xbf16> to vector<16x16xbf16>
    %cst_134 = arith.constant dense<0.000000e+00> : vector<128x16xf32>
    %133 = tpu.matmul %130, %132, %cst_134 {dimension_numbers = #tpu.dot_dimension_numbers<[1], [0], [0], [1], [0, 0, 1, 1], [], []>} : vector<128x16xbf16>, vector<16x16xbf16>, vector<128x16xf32> -> vector<128x16xf32>
    %134 = arith.addf %127, %133 : vector<128x16xf32>
    %135 = vector.extract_strided_slice %120 {offsets = [0, 2, 0, 0], sizes = [2, 8, 8, 16], strides = [1, 1, 1, 1]} : vector<2x10x8x16xf32> to vector<2x8x8x16xf32>
    %136 = vector.shape_cast %135 : vector<2x8x8x16xf32> to vector<128x16xf32>
    %137 = arith.truncf %136 : vector<128x16xf32> to vector<128x16xbf16>
    %c2_135 = arith.constant 2 : index
    %c0_136 = arith.constant 0 : index
    %c0_137 = arith.constant 0 : index
    %c0_138 = arith.constant 0 : index
    %138 = vector.load %arg5[%c2_135, %c0_136, %c0_137, %c0_138] : memref<3x3x16x16xbf16, #tpu.memory_space<vmem>>, vector<1x1x16x16xbf16>
    %139 = vector.shape_cast %138 : vector<1x1x16x16xbf16> to vector<16x16xbf16>
    %cst_139 = arith.constant dense<0.000000e+00> : vector<128x16xf32>
    %140 = tpu.matmul %137, %139, %cst_139 {dimension_numbers = #tpu.dot_dimension_numbers<[1], [0], [0], [1], [0, 0, 1, 1], [], []>} : vector<128x16xbf16>, vector<16x16xbf16>, vector<128x16xf32> -> vector<128x16xf32>
    %141 = arith.addf %134, %140 : vector<128x16xf32>
    %c0_140 = arith.constant 0 : index
    %c0_141 = arith.constant 0 : index
    %c1_142 = arith.constant 1 : index
    %c0_143 = arith.constant 0 : index
    %142 = vector.load %arg22[%c0_140, %c0_141, %c1_142, %c0_143] : memref<2x10x10x16xf32, #tpu.memory_space<vmem>>, vector<2x10x8x16xf32>
    %143 = vector.extract_strided_slice %142 {offsets = [0, 0, 0, 0], sizes = [2, 8, 8, 16], strides = [1, 1, 1, 1]} : vector<2x10x8x16xf32> to vector<2x8x8x16xf32>
    %144 = vector.shape_cast %143 : vector<2x8x8x16xf32> to vector<128x16xf32>
    %145 = arith.truncf %144 : vector<128x16xf32> to vector<128x16xbf16>
    %c0_144 = arith.constant 0 : index
    %c1_145 = arith.constant 1 : index
    %c0_146 = arith.constant 0 : index
    %c0_147 = arith.constant 0 : index
    %146 = vector.load %arg5[%c0_144, %c1_145, %c0_146, %c0_147] : memref<3x3x16x16xbf16, #tpu.memory_space<vmem>>, vector<1x1x16x16xbf16>
    %147 = vector.shape_cast %146 : vector<1x1x16x16xbf16> to vector<16x16xbf16>
    %cst_148 = arith.constant dense<0.000000e+00> : vector<128x16xf32>
    %148 = tpu.matmul %145, %147, %cst_148 {dimension_numbers = #tpu.dot_dimension_numbers<[1], [0], [0], [1], [0, 0, 1, 1], [], []>} : vector<128x16xbf16>, vector<16x16xbf16>, vector<128x16xf32> -> vector<128x16xf32>
    %149 = arith.addf %141, %148 : vector<128x16xf32>
    %150 = vector.extract_strided_slice %142 {offsets = [0, 1, 0, 0], sizes = [2, 8, 8, 16], strides = [1, 1, 1, 1]} : vector<2x10x8x16xf32> to vector<2x8x8x16xf32>
    %151 = vector.shape_cast %150 : vector<2x8x8x16xf32> to vector<128x16xf32>
    %152 = arith.truncf %151 : vector<128x16xf32> to vector<128x16xbf16>
    %c1_149 = arith.constant 1 : index
    %c1_150 = arith.constant 1 : index
    %c0_151 = arith.constant 0 : index
    %c0_152 = arith.constant 0 : index
    %153 = vector.load %arg5[%c1_149, %c1_150, %c0_151, %c0_152] : memref<3x3x16x16xbf16, #tpu.memory_space<vmem>>, vector<1x1x16x16xbf16>
    %154 = vector.shape_cast %153 : vector<1x1x16x16xbf16> to vector<16x16xbf16>
    %cst_153 = arith.constant dense<0.000000e+00> : vector<128x16xf32>
    %155 = tpu.matmul %152, %154, %cst_153 {dimension_numbers = #tpu.dot_dimension_numbers<[1], [0], [0], [1], [0, 0, 1, 1], [], []>} : vector<128x16xbf16>, vector<16x16xbf16>, vector<128x16xf32> -> vector<128x16xf32>
    %156 = arith.addf %149, %155 : vector<128x16xf32>
    %157 = vector.extract_strided_slice %142 {offsets = [0, 2, 0, 0], sizes = [2, 8, 8, 16], strides = [1, 1, 1, 1]} : vector<2x10x8x16xf32> to vector<2x8x8x16xf32>
    %158 = vector.shape_cast %157 : vector<2x8x8x16xf32> to vector<128x16xf32>
    %159 = arith.truncf %158 : vector<128x16xf32> to vector<128x16xbf16>
    %c2_154 = arith.constant 2 : index
    %c1_155 = arith.constant 1 : index
    %c0_156 = arith.constant 0 : index
    %c0_157 = arith.constant 0 : index
    %160 = vector.load %arg5[%c2_154, %c1_155, %c0_156, %c0_157] : memref<3x3x16x16xbf16, #tpu.memory_space<vmem>>, vector<1x1x16x16xbf16>
    %161 = vector.shape_cast %160 : vector<1x1x16x16xbf16> to vector<16x16xbf16>
    %cst_158 = arith.constant dense<0.000000e+00> : vector<128x16xf32>
    %162 = tpu.matmul %159, %161, %cst_158 {dimension_numbers = #tpu.dot_dimension_numbers<[1], [0], [0], [1], [0, 0, 1, 1], [], []>} : vector<128x16xbf16>, vector<16x16xbf16>, vector<128x16xf32> -> vector<128x16xf32>
    %163 = arith.addf %156, %162 : vector<128x16xf32>
    %c0_159 = arith.constant 0 : index
    %c0_160 = arith.constant 0 : index
    %c2_161 = arith.constant 2 : index
    %c0_162 = arith.constant 0 : index
    %164 = vector.load %arg22[%c0_159, %c0_160, %c2_161, %c0_162] : memref<2x10x10x16xf32, #tpu.memory_space<vmem>>, vector<2x10x8x16xf32>
    %165 = vector.extract_strided_slice %164 {offsets = [0, 0, 0, 0], sizes = [2, 8, 8, 16], strides = [1, 1, 1, 1]} : vector<2x10x8x16xf32> to vector<2x8x8x16xf32>
    %166 = vector.shape_cast %165 : vector<2x8x8x16xf32> to vector<128x16xf32>
    %167 = arith.truncf %166 : vector<128x16xf32> to vector<128x16xbf16>
    %c0_163 = arith.constant 0 : index
    %c2_164 = arith.constant 2 : index
    %c0_165 = arith.constant 0 : index
    %c0_166 = arith.constant 0 : index
    %168 = vector.load %arg5[%c0_163, %c2_164, %c0_165, %c0_166] : memref<3x3x16x16xbf16, #tpu.memory_space<vmem>>, vector<1x1x16x16xbf16>
    %169 = vector.shape_cast %168 : vector<1x1x16x16xbf16> to vector<16x16xbf16>
    %cst_167 = arith.constant dense<0.000000e+00> : vector<128x16xf32>
    %170 = tpu.matmul %167, %169, %cst_167 {dimension_numbers = #tpu.dot_dimension_numbers<[1], [0], [0], [1], [0, 0, 1, 1], [], []>} : vector<128x16xbf16>, vector<16x16xbf16>, vector<128x16xf32> -> vector<128x16xf32>
    %171 = arith.addf %163, %170 : vector<128x16xf32>
    %172 = vector.extract_strided_slice %164 {offsets = [0, 1, 0, 0], sizes = [2, 8, 8, 16], strides = [1, 1, 1, 1]} : vector<2x10x8x16xf32> to vector<2x8x8x16xf32>
    %173 = vector.shape_cast %172 : vector<2x8x8x16xf32> to vector<128x16xf32>
    %174 = arith.truncf %173 : vector<128x16xf32> to vector<128x16xbf16>
    %c1_168 = arith.constant 1 : index
    %c2_169 = arith.constant 2 : index
    %c0_170 = arith.constant 0 : index
    %c0_171 = arith.constant 0 : index
    %175 = vector.load %arg5[%c1_168, %c2_169, %c0_170, %c0_171] : memref<3x3x16x16xbf16, #tpu.memory_space<vmem>>, vector<1x1x16x16xbf16>
    %176 = vector.shape_cast %175 : vector<1x1x16x16xbf16> to vector<16x16xbf16>
    %cst_172 = arith.constant dense<0.000000e+00> : vector<128x16xf32>
    %177 = tpu.matmul %174, %176, %cst_172 {dimension_numbers = #tpu.dot_dimension_numbers<[1], [0], [0], [1], [0, 0, 1, 1], [], []>} : vector<128x16xbf16>, vector<16x16xbf16>, vector<128x16xf32> -> vector<128x16xf32>
    %178 = arith.addf %171, %177 : vector<128x16xf32>
    %179 = vector.extract_strided_slice %164 {offsets = [0, 2, 0, 0], sizes = [2, 8, 8, 16], strides = [1, 1, 1, 1]} : vector<2x10x8x16xf32> to vector<2x8x8x16xf32>
    %180 = vector.shape_cast %179 : vector<2x8x8x16xf32> to vector<128x16xf32>
    %181 = arith.truncf %180 : vector<128x16xf32> to vector<128x16xbf16>
    %c2_173 = arith.constant 2 : index
    %c2_174 = arith.constant 2 : index
    %c0_175 = arith.constant 0 : index
    %c0_176 = arith.constant 0 : index
    %182 = vector.load %arg5[%c2_173, %c2_174, %c0_175, %c0_176] : memref<3x3x16x16xbf16, #tpu.memory_space<vmem>>, vector<1x1x16x16xbf16>
    %183 = vector.shape_cast %182 : vector<1x1x16x16xbf16> to vector<16x16xbf16>
    %cst_177 = arith.constant dense<0.000000e+00> : vector<128x16xf32>
    %184 = tpu.matmul %181, %183, %cst_177 {dimension_numbers = #tpu.dot_dimension_numbers<[1], [0], [0], [1], [0, 0, 1, 1], [], []>} : vector<128x16xbf16>, vector<16x16xbf16>, vector<128x16xf32> -> vector<128x16xf32>
    %185 = arith.addf %178, %184 : vector<128x16xf32>
    %186 = arith.truncf %185 : vector<128x16xf32> to vector<128x16xbf16>
    %c0_178 = arith.constant 0 : index
    %c0_179 = arith.constant 0 : index
    %187 = vector.load %arg6[%c0_178, %c0_179] : memref<16x16xbf16, #tpu.memory_space<vmem>>, vector<16x16xbf16>
    %cst_180 = arith.constant dense<0.000000e+00> : vector<128x16xf32>
    %188 = tpu.matmul %186, %187, %cst_180 {dimension_numbers = #tpu.dot_dimension_numbers<[1], [0], [0], [1], [0, 0, 1, 1], [], []>} : vector<128x16xbf16>, vector<16x16xbf16>, vector<128x16xf32> -> vector<128x16xf32>
    %c0_181 = arith.constant 0 : index
    %c0_182 = arith.constant 0 : index
    %189 = vector.load %arg7[%c0_181, %c0_182] : memref<1x16xf32, #tpu.memory_space<vmem>>, vector<1x16xf32>
    %c0_183 = arith.constant 0 : index
    %c0_184 = arith.constant 0 : index
    %190 = vector.load %arg8[%c0_183, %c0_184] : memref<1x16xf32, #tpu.memory_space<vmem>>, vector<1x16xf32>
    %cst_185 = arith.constant dense<0.000000e+00> : vector<16xf32>
    %191 = vector.multi_reduction <add>, %188, %cst_185 [0] : vector<128x16xf32> to vector<16xf32>
    %192 = vector.shape_cast %191 : vector<16xf32> to vector<1x16xf32>
    %cst_186 = arith.constant 7.812500e-03 : f32
    %193 = vector.broadcast %cst_186 : f32 to vector<1x16xf32>
    %194 = arith.mulf %192, %193 : vector<1x16xf32>
    %195 = arith.mulf %188, %188 : vector<128x16xf32>
    %cst_187 = arith.constant dense<0.000000e+00> : vector<16xf32>
    %196 = vector.multi_reduction <add>, %195, %cst_187 [0] : vector<128x16xf32> to vector<16xf32>
    %197 = vector.shape_cast %196 : vector<16xf32> to vector<1x16xf32>
    %cst_188 = arith.constant 7.812500e-03 : f32
    %198 = vector.broadcast %cst_188 : f32 to vector<1x16xf32>
    %199 = arith.mulf %197, %198 : vector<1x16xf32>
    %200 = arith.mulf %194, %194 : vector<1x16xf32>
    %201 = arith.subf %199, %200 : vector<1x16xf32>
    %cst_189 = arith.constant 0.000000e+00 : f32
    %202 = vector.broadcast %cst_189 : f32 to vector<1x16xf32>
    %203 = arith.maximumf %201, %202 : vector<1x16xf32>
    %cst_190 = arith.constant 9.99999974E-6 : f32
    %204 = vector.broadcast %cst_190 : f32 to vector<1x16xf32>
    %205 = arith.addf %203, %204 : vector<1x16xf32>
    %206 = math.rsqrt %205 : vector<1x16xf32>
    %207 = arith.mulf %189, %206 : vector<1x16xf32>
    %208 = arith.mulf %207, %194 : vector<1x16xf32>
    %209 = arith.subf %190, %208 : vector<1x16xf32>
    %210 = vector.broadcast %207 : vector<1x16xf32> to vector<128x16xf32>
    %211 = arith.mulf %188, %210 : vector<128x16xf32>
    %212 = vector.broadcast %209 : vector<1x16xf32> to vector<128x16xf32>
    %213 = arith.addf %211, %212 : vector<128x16xf32>
    %214 = vector.shape_cast %213 : vector<128x16xf32> to vector<2x8x8x16xf32>
    %c0_191 = arith.constant 0 : index
    %c1_192 = arith.constant 1 : index
    %c1_193 = arith.constant 1 : index
    %c0_194 = arith.constant 0 : index
    %215 = vector.load %arg23[%c0_191, %c1_192, %c1_193, %c0_194] : memref<2x10x10x16xf32, #tpu.memory_space<vmem>>, vector<2x8x8x16xf32>
    tpu.vector_store %arg23[%c0_191, %c1_192, %c1_193, %c0_194], %214 {strides = array<i32>} : memref<2x10x10x16xf32, #tpu.memory_space<vmem>>, vector<2x8x8x16xf32>,
    %cst_195 = arith.constant 0xFF800000 : f32
    %216 = vector.broadcast %cst_195 : f32 to vector<2x1x10x16xf32>
    %c0_196 = arith.constant 0 : index
    %c0_197 = arith.constant 0 : index
    %c0_198 = arith.constant 0 : index
    %c0_199 = arith.constant 0 : index
    %217 = vector.load %arg23[%c0_196, %c0_197, %c0_198, %c0_199] : memref<2x10x10x16xf32, #tpu.memory_space<vmem>>, vector<2x1x10x16xf32>
    tpu.vector_store %arg23[%c0_196, %c0_197, %c0_198, %c0_199], %216 {strides = array<i32>} : memref<2x10x10x16xf32, #tpu.memory_space<vmem>>, vector<2x1x10x16xf32>,
    %cst_200 = arith.constant 0xFF800000 : f32
    %218 = vector.broadcast %cst_200 : f32 to vector<2x1x10x16xf32>
    %c0_201 = arith.constant 0 : index
    %c9_202 = arith.constant 9 : index
    %c0_203 = arith.constant 0 : index
    %c0_204 = arith.constant 0 : index
    %219 = vector.load %arg23[%c0_201, %c9_202, %c0_203, %c0_204] : memref<2x10x10x16xf32, #tpu.memory_space<vmem>>, vector<2x1x10x16xf32>
    tpu.vector_store %arg23[%c0_201, %c9_202, %c0_203, %c0_204], %218 {strides = array<i32>} : memref<2x10x10x16xf32, #tpu.memory_space<vmem>>, vector<2x1x10x16xf32>,
    %cst_205 = arith.constant 0xFF800000 : f32
    %220 = vector.broadcast %cst_205 : f32 to vector<2x8x1x16xf32>
    %c0_206 = arith.constant 0 : index
    %c1_207 = arith.constant 1 : index
    %c0_208 = arith.constant 0 : index
    %c0_209 = arith.constant 0 : index
    %221 = vector.load %arg23[%c0_206, %c1_207, %c0_208, %c0_209] : memref<2x10x10x16xf32, #tpu.memory_space<vmem>>, vector<2x8x1x16xf32>
    tpu.vector_store %arg23[%c0_206, %c1_207, %c0_208, %c0_209], %220 {strides = array<i32>} : memref<2x10x10x16xf32, #tpu.memory_space<vmem>>, vector<2x8x1x16xf32>,
    %cst_210 = arith.constant 0xFF800000 : f32
    %222 = vector.broadcast %cst_210 : f32 to vector<2x8x1x16xf32>
    %c0_211 = arith.constant 0 : index
    %c1_212 = arith.constant 1 : index
    %c9_213 = arith.constant 9 : index
    %c0_214 = arith.constant 0 : index
    %223 = vector.load %arg23[%c0_211, %c1_212, %c9_213, %c0_214] : memref<2x10x10x16xf32, #tpu.memory_space<vmem>>, vector<2x8x1x16xf32>
    tpu.vector_store %arg23[%c0_211, %c1_212, %c9_213, %c0_214], %222 {strides = array<i32>} : memref<2x10x10x16xf32, #tpu.memory_space<vmem>>, vector<2x8x1x16xf32>,
    %c0_215 = arith.constant 0 : index
    %c0_216 = arith.constant 0 : index
    %c0_217 = arith.constant 0 : index
    %c0_218 = arith.constant 0 : index
    %224 = tpu.strided_load %arg23[%c0_215, %c0_216, %c0_217, %c0_218] {strides = array<i32: 1, 1, 2, 1>} : memref<2x10x10x16xf32, #tpu.memory_space<vmem>>, vector<2x10x4x16xf32>
    %225 = vector.extract_strided_slice %224 {offsets = [0, 0, 0, 0], sizes = [2, 8, 4, 16], strides = [1, 1, 1, 1]} : vector<2x10x4x16xf32> to vector<2x8x4x16xf32>
    %226 = vector.shape_cast %225 : vector<2x8x4x16xf32> to vector<2x4x2x4x16xf32>
    %227 = vector.extract_strided_slice %226 {offsets = [0, 0, 0, 0, 0], sizes = [2, 4, 1, 4, 16], strides = [1, 1, 1, 1, 1]} : vector<2x4x2x4x16xf32> to vector<2x4x1x4x16xf32>
    %228 = vector.shape_cast %227 : vector<2x4x1x4x16xf32> to vector<2x4x4x16xf32>
    %229 = vector.extract_strided_slice %224 {offsets = [0, 1, 0, 0], sizes = [2, 8, 4, 16], strides = [1, 1, 1, 1]} : vector<2x10x4x16xf32> to vector<2x8x4x16xf32>
    %230 = vector.shape_cast %229 : vector<2x8x4x16xf32> to vector<2x4x2x4x16xf32>
    %231 = vector.extract_strided_slice %230 {offsets = [0, 0, 0, 0, 0], sizes = [2, 4, 1, 4, 16], strides = [1, 1, 1, 1, 1]} : vector<2x4x2x4x16xf32> to vector<2x4x1x4x16xf32>
    %232 = vector.shape_cast %231 : vector<2x4x1x4x16xf32> to vector<2x4x4x16xf32>
    %233 = arith.maximumf %228, %232 : vector<2x4x4x16xf32>
    %234 = vector.extract_strided_slice %224 {offsets = [0, 2, 0, 0], sizes = [2, 8, 4, 16], strides = [1, 1, 1, 1]} : vector<2x10x4x16xf32> to vector<2x8x4x16xf32>
    %235 = vector.shape_cast %234 : vector<2x8x4x16xf32> to vector<2x4x2x4x16xf32>
    %236 = vector.extract_strided_slice %235 {offsets = [0, 0, 0, 0, 0], sizes = [2, 4, 1, 4, 16], strides = [1, 1, 1, 1, 1]} : vector<2x4x2x4x16xf32> to vector<2x4x1x4x16xf32>
    %237 = vector.shape_cast %236 : vector<2x4x1x4x16xf32> to vector<2x4x4x16xf32>
    %238 = arith.maximumf %233, %237 : vector<2x4x4x16xf32>
    %c0_219 = arith.constant 0 : index
    %c0_220 = arith.constant 0 : index
    %c1_221 = arith.constant 1 : index
    %c0_222 = arith.constant 0 : index
    %239 = tpu.strided_load %arg23[%c0_219, %c0_220, %c1_221, %c0_222] {strides = array<i32: 1, 1, 2, 1>} : memref<2x10x10x16xf32, #tpu.memory_space<vmem>>, vector<2x10x4x16xf32>
    %240 = vector.extract_strided_slice %239 {offsets = [0, 0, 0, 0], sizes = [2, 8, 4, 16], strides = [1, 1, 1, 1]} : vector<2x10x4x16xf32> to vector<2x8x4x16xf32>
    %241 = vector.shape_cast %240 : vector<2x8x4x16xf32> to vector<2x4x2x4x16xf32>
    %242 = vector.extract_strided_slice %241 {offsets = [0, 0, 0, 0, 0], sizes = [2, 4, 1, 4, 16], strides = [1, 1, 1, 1, 1]} : vector<2x4x2x4x16xf32> to vector<2x4x1x4x16xf32>
    %243 = vector.shape_cast %242 : vector<2x4x1x4x16xf32> to vector<2x4x4x16xf32>
    %244 = arith.maximumf %238, %243 : vector<2x4x4x16xf32>
    %245 = vector.extract_strided_slice %239 {offsets = [0, 1, 0, 0], sizes = [2, 8, 4, 16], strides = [1, 1, 1, 1]} : vector<2x10x4x16xf32> to vector<2x8x4x16xf32>
    %246 = vector.shape_cast %245 : vector<2x8x4x16xf32> to vector<2x4x2x4x16xf32>
    %247 = vector.extract_strided_slice %246 {offsets = [0, 0, 0, 0, 0], sizes = [2, 4, 1, 4, 16], strides = [1, 1, 1, 1, 1]} : vector<2x4x2x4x16xf32> to vector<2x4x1x4x16xf32>
    %248 = vector.shape_cast %247 : vector<2x4x1x4x16xf32> to vector<2x4x4x16xf32>
    %249 = arith.maximumf %244, %248 : vector<2x4x4x16xf32>
    %250 = vector.extract_strided_slice %239 {offsets = [0, 2, 0, 0], sizes = [2, 8, 4, 16], strides = [1, 1, 1, 1]} : vector<2x10x4x16xf32> to vector<2x8x4x16xf32>
    %251 = vector.shape_cast %250 : vector<2x8x4x16xf32> to vector<2x4x2x4x16xf32>
    %252 = vector.extract_strided_slice %251 {offsets = [0, 0, 0, 0, 0], sizes = [2, 4, 1, 4, 16], strides = [1, 1, 1, 1, 1]} : vector<2x4x2x4x16xf32> to vector<2x4x1x4x16xf32>
    %253 = vector.shape_cast %252 : vector<2x4x1x4x16xf32> to vector<2x4x4x16xf32>
    %254 = arith.maximumf %249, %253 : vector<2x4x4x16xf32>
    %c0_223 = arith.constant 0 : index
    %c0_224 = arith.constant 0 : index
    %c2_225 = arith.constant 2 : index
    %c0_226 = arith.constant 0 : index
    %255 = tpu.strided_load %arg23[%c0_223, %c0_224, %c2_225, %c0_226] {strides = array<i32: 1, 1, 2, 1>} : memref<2x10x10x16xf32, #tpu.memory_space<vmem>>, vector<2x10x4x16xf32>
    %256 = vector.extract_strided_slice %255 {offsets = [0, 0, 0, 0], sizes = [2, 8, 4, 16], strides = [1, 1, 1, 1]} : vector<2x10x4x16xf32> to vector<2x8x4x16xf32>
    %257 = vector.shape_cast %256 : vector<2x8x4x16xf32> to vector<2x4x2x4x16xf32>
    %258 = vector.extract_strided_slice %257 {offsets = [0, 0, 0, 0, 0], sizes = [2, 4, 1, 4, 16], strides = [1, 1, 1, 1, 1]} : vector<2x4x2x4x16xf32> to vector<2x4x1x4x16xf32>
    %259 = vector.shape_cast %258 : vector<2x4x1x4x16xf32> to vector<2x4x4x16xf32>
    %260 = arith.maximumf %254, %259 : vector<2x4x4x16xf32>
    %261 = vector.extract_strided_slice %255 {offsets = [0, 1, 0, 0], sizes = [2, 8, 4, 16], strides = [1, 1, 1, 1]} : vector<2x10x4x16xf32> to vector<2x8x4x16xf32>
    %262 = vector.shape_cast %261 : vector<2x8x4x16xf32> to vector<2x4x2x4x16xf32>
    %263 = vector.extract_strided_slice %262 {offsets = [0, 0, 0, 0, 0], sizes = [2, 4, 1, 4, 16], strides = [1, 1, 1, 1, 1]} : vector<2x4x2x4x16xf32> to vector<2x4x1x4x16xf32>
    %264 = vector.shape_cast %263 : vector<2x4x1x4x16xf32> to vector<2x4x4x16xf32>
    %265 = arith.maximumf %260, %264 : vector<2x4x4x16xf32>
    %266 = vector.extract_strided_slice %255 {offsets = [0, 2, 0, 0], sizes = [2, 8, 4, 16], strides = [1, 1, 1, 1]} : vector<2x10x4x16xf32> to vector<2x8x4x16xf32>
    %267 = vector.shape_cast %266 : vector<2x8x4x16xf32> to vector<2x4x2x4x16xf32>
    %268 = vector.extract_strided_slice %267 {offsets = [0, 0, 0, 0, 0], sizes = [2, 4, 1, 4, 16], strides = [1, 1, 1, 1, 1]} : vector<2x4x2x4x16xf32> to vector<2x4x1x4x16xf32>
    %269 = vector.shape_cast %268 : vector<2x4x1x4x16xf32> to vector<2x4x4x16xf32>
    %270 = arith.maximumf %265, %269 : vector<2x4x4x16xf32>
    %271 = vector.shape_cast %270 : vector<2x4x4x16xf32> to vector<32x16xf32>
    %c0_227 = arith.constant 0 : index
    %c0_228 = arith.constant 0 : index
    %c0_229 = arith.constant 0 : index
    %c0_230 = arith.constant 0 : index
    %272 = tpu.strided_load %arg0[%c0_227, %c0_228, %c0_229, %c0_230] {strides = array<i32: 1, 1, 2, 1>} : memref<2x8x8x8xf32, #tpu.memory_space<vmem>>, vector<2x8x4x8xf32>
    %273 = vector.shape_cast %272 : vector<2x8x4x8xf32> to vector<2x4x2x4x8xf32>
    %274 = vector.extract_strided_slice %273 {offsets = [0, 0, 0, 0, 0], sizes = [2, 4, 1, 4, 8], strides = [1, 1, 1, 1, 1]} : vector<2x4x2x4x8xf32> to vector<2x4x1x4x8xf32>
    %275 = vector.shape_cast %274 : vector<2x4x1x4x8xf32> to vector<2x4x4x8xf32>
    %276 = vector.shape_cast %275 : vector<2x4x4x8xf32> to vector<32x8xf32>
    %277 = arith.truncf %276 : vector<32x8xf32> to vector<32x8xbf16>
    %c0_231 = arith.constant 0 : index
    %c0_232 = arith.constant 0 : index
    %278 = vector.load %arg9[%c0_231, %c0_232] : memref<8x16xbf16, #tpu.memory_space<vmem>>, vector<8x16xbf16>
    %cst_233 = arith.constant dense<0.000000e+00> : vector<32x16xf32>
    %279 = tpu.matmul %277, %278, %cst_233 {dimension_numbers = #tpu.dot_dimension_numbers<[1], [0], [0], [1], [0, 0, 1, 1], [], []>} : vector<32x8xbf16>, vector<8x16xbf16>, vector<32x16xf32> -> vector<32x16xf32>
    %c0_234 = arith.constant 0 : index
    %c0_235 = arith.constant 0 : index
    %280 = vector.load %arg10[%c0_234, %c0_235] : memref<1x16xf32, #tpu.memory_space<vmem>>, vector<1x16xf32>
    %c0_236 = arith.constant 0 : index
    %c0_237 = arith.constant 0 : index
    %281 = vector.load %arg11[%c0_236, %c0_237] : memref<1x16xf32, #tpu.memory_space<vmem>>, vector<1x16xf32>
    %cst_238 = arith.constant dense<0.000000e+00> : vector<16xf32>
    %282 = vector.multi_reduction <add>, %279, %cst_238 [0] : vector<32x16xf32> to vector<16xf32>
    %283 = vector.shape_cast %282 : vector<16xf32> to vector<1x16xf32>
    %cst_239 = arith.constant 3.125000e-02 : f32
    %284 = vector.broadcast %cst_239 : f32 to vector<1x16xf32>
    %285 = arith.mulf %283, %284 : vector<1x16xf32>
    %286 = arith.mulf %279, %279 : vector<32x16xf32>
    %cst_240 = arith.constant dense<0.000000e+00> : vector<16xf32>
    %287 = vector.multi_reduction <add>, %286, %cst_240 [0] : vector<32x16xf32> to vector<16xf32>
    %288 = vector.shape_cast %287 : vector<16xf32> to vector<1x16xf32>
    %cst_241 = arith.constant 3.125000e-02 : f32
    %289 = vector.broadcast %cst_241 : f32 to vector<1x16xf32>
    %290 = arith.mulf %288, %289 : vector<1x16xf32>
    %291 = arith.mulf %285, %285 : vector<1x16xf32>
    %292 = arith.subf %290, %291 : vector<1x16xf32>
    %cst_242 = arith.constant 0.000000e+00 : f32
    %293 = vector.broadcast %cst_242 : f32 to vector<1x16xf32>
    %294 = arith.maximumf %292, %293 : vector<1x16xf32>
    %cst_243 = arith.constant 9.99999974E-6 : f32
    %295 = vector.broadcast %cst_243 : f32 to vector<1x16xf32>
    %296 = arith.addf %294, %295 : vector<1x16xf32>
    %297 = math.rsqrt %296 : vector<1x16xf32>
    %298 = arith.mulf %280, %297 : vector<1x16xf32>
    %299 = arith.mulf %298, %285 : vector<1x16xf32>
    %300 = arith.subf %281, %299 : vector<1x16xf32>
    %301 = vector.broadcast %298 : vector<1x16xf32> to vector<32x16xf32>
    %302 = arith.mulf %279, %301 : vector<32x16xf32>
    %303 = vector.broadcast %300 : vector<1x16xf32> to vector<32x16xf32>
    %304 = arith.addf %302, %303 : vector<32x16xf32>
    %305 = arith.addf %271, %304 : vector<32x16xf32>
    %306 = vector.shape_cast %305 : vector<32x16xf32> to vector<2x4x4x16xf32>
    %c0_244 = arith.constant 0 : index
    %c1_245 = arith.constant 1 : index
    %c1_246 = arith.constant 1 : index
    %c0_247 = arith.constant 0 : index
    %307 = vector.load %arg24[%c0_244, %c1_245, %c1_246, %c0_247] : memref<2x6x6x16xf32, #tpu.memory_space<vmem>>, vector<2x4x4x16xf32>
    tpu.vector_store %arg24[%c0_244, %c1_245, %c1_246, %c0_247], %306 {strides = array<i32>} : memref<2x6x6x16xf32, #tpu.memory_space<vmem>>, vector<2x4x4x16xf32>,
    %cst_248 = arith.constant 0.000000e+00 : f32
    %308 = vector.broadcast %cst_248 : f32 to vector<2x1x6x16xf32>
    %c0_249 = arith.constant 0 : index
    %c0_250 = arith.constant 0 : index
    %c0_251 = arith.constant 0 : index
    %c0_252 = arith.constant 0 : index
    %309 = vector.load %arg24[%c0_249, %c0_250, %c0_251, %c0_252] : memref<2x6x6x16xf32, #tpu.memory_space<vmem>>, vector<2x1x6x16xf32>
    tpu.vector_store %arg24[%c0_249, %c0_250, %c0_251, %c0_252], %308 {strides = array<i32>} : memref<2x6x6x16xf32, #tpu.memory_space<vmem>>, vector<2x1x6x16xf32>,
    %cst_253 = arith.constant 0.000000e+00 : f32
    %310 = vector.broadcast %cst_253 : f32 to vector<2x1x6x16xf32>
    %c0_254 = arith.constant 0 : index
    %c5 = arith.constant 5 : index
    %c0_255 = arith.constant 0 : index
    %c0_256 = arith.constant 0 : index
    %311 = vector.load %arg24[%c0_254, %c5, %c0_255, %c0_256] : memref<2x6x6x16xf32, #tpu.memory_space<vmem>>, vector<2x1x6x16xf32>
    tpu.vector_store %arg24[%c0_254, %c5, %c0_255, %c0_256], %310 {strides = array<i32>} : memref<2x6x6x16xf32, #tpu.memory_space<vmem>>, vector<2x1x6x16xf32>,
    %cst_257 = arith.constant 0.000000e+00 : f32
    %312 = vector.broadcast %cst_257 : f32 to vector<2x4x1x16xf32>
    %c0_258 = arith.constant 0 : index
    %c1_259 = arith.constant 1 : index
    %c0_260 = arith.constant 0 : index
    %c0_261 = arith.constant 0 : index
    %313 = vector.load %arg24[%c0_258, %c1_259, %c0_260, %c0_261] : memref<2x6x6x16xf32, #tpu.memory_space<vmem>>, vector<2x4x1x16xf32>
    tpu.vector_store %arg24[%c0_258, %c1_259, %c0_260, %c0_261], %312 {strides = array<i32>} : memref<2x6x6x16xf32, #tpu.memory_space<vmem>>, vector<2x4x1x16xf32>,
    %cst_262 = arith.constant 0.000000e+00 : f32
    %314 = vector.broadcast %cst_262 : f32 to vector<2x4x1x16xf32>
    %c0_263 = arith.constant 0 : index
    %c1_264 = arith.constant 1 : index
    %c5_265 = arith.constant 5 : index
    %c0_266 = arith.constant 0 : index
    %315 = vector.load %arg24[%c0_263, %c1_264, %c5_265, %c0_266] : memref<2x6x6x16xf32, #tpu.memory_space<vmem>>, vector<2x4x1x16xf32>
    tpu.vector_store %arg24[%c0_263, %c1_264, %c5_265, %c0_266], %314 {strides = array<i32>} : memref<2x6x6x16xf32, #tpu.memory_space<vmem>>, vector<2x4x1x16xf32>,
    %cst_267 = arith.constant 0.000000e+00 : f32
    %316 = vector.broadcast %cst_267 : f32 to vector<32x16xf32>
    %c0_268 = arith.constant 0 : index
    %c0_269 = arith.constant 0 : index
    %c0_270 = arith.constant 0 : index
    %c0_271 = arith.constant 0 : index
    %317 = vector.load %arg24[%c0_268, %c0_269, %c0_270, %c0_271] : memref<2x6x6x16xf32, #tpu.memory_space<vmem>>, vector<2x6x4x16xf32>
    %318 = vector.extract_strided_slice %317 {offsets = [0, 0, 0, 0], sizes = [2, 4, 4, 16], strides = [1, 1, 1, 1]} : vector<2x6x4x16xf32> to vector<2x4x4x16xf32>
    %319 = vector.shape_cast %318 : vector<2x4x4x16xf32> to vector<32x16xf32>
    %320 = arith.truncf %319 : vector<32x16xf32> to vector<32x16xbf16>
    %c0_272 = arith.constant 0 : index
    %c0_273 = arith.constant 0 : index
    %c0_274 = arith.constant 0 : index
    %c0_275 = arith.constant 0 : index
    %321 = vector.load %arg12[%c0_272, %c0_273, %c0_274, %c0_275] : memref<3x3x16x16xbf16, #tpu.memory_space<vmem>>, vector<1x1x16x16xbf16>
    %322 = vector.shape_cast %321 : vector<1x1x16x16xbf16> to vector<16x16xbf16>
    %cst_276 = arith.constant dense<0.000000e+00> : vector<32x16xf32>
    %323 = tpu.matmul %320, %322, %cst_276 {dimension_numbers = #tpu.dot_dimension_numbers<[1], [0], [0], [1], [0, 0, 1, 1], [], []>} : vector<32x16xbf16>, vector<16x16xbf16>, vector<32x16xf32> -> vector<32x16xf32>
    %324 = arith.addf %316, %323 : vector<32x16xf32>
    %325 = vector.extract_strided_slice %317 {offsets = [0, 1, 0, 0], sizes = [2, 4, 4, 16], strides = [1, 1, 1, 1]} : vector<2x6x4x16xf32> to vector<2x4x4x16xf32>
    %326 = vector.shape_cast %325 : vector<2x4x4x16xf32> to vector<32x16xf32>
    %327 = arith.truncf %326 : vector<32x16xf32> to vector<32x16xbf16>
    %c1_277 = arith.constant 1 : index
    %c0_278 = arith.constant 0 : index
    %c0_279 = arith.constant 0 : index
    %c0_280 = arith.constant 0 : index
    %328 = vector.load %arg12[%c1_277, %c0_278, %c0_279, %c0_280] : memref<3x3x16x16xbf16, #tpu.memory_space<vmem>>, vector<1x1x16x16xbf16>
    %329 = vector.shape_cast %328 : vector<1x1x16x16xbf16> to vector<16x16xbf16>
    %cst_281 = arith.constant dense<0.000000e+00> : vector<32x16xf32>
    %330 = tpu.matmul %327, %329, %cst_281 {dimension_numbers = #tpu.dot_dimension_numbers<[1], [0], [0], [1], [0, 0, 1, 1], [], []>} : vector<32x16xbf16>, vector<16x16xbf16>, vector<32x16xf32> -> vector<32x16xf32>
    %331 = arith.addf %324, %330 : vector<32x16xf32>
    %332 = vector.extract_strided_slice %317 {offsets = [0, 2, 0, 0], sizes = [2, 4, 4, 16], strides = [1, 1, 1, 1]} : vector<2x6x4x16xf32> to vector<2x4x4x16xf32>
    %333 = vector.shape_cast %332 : vector<2x4x4x16xf32> to vector<32x16xf32>
    %334 = arith.truncf %333 : vector<32x16xf32> to vector<32x16xbf16>
    %c2_282 = arith.constant 2 : index
    %c0_283 = arith.constant 0 : index
    %c0_284 = arith.constant 0 : index
    %c0_285 = arith.constant 0 : index
    %335 = vector.load %arg12[%c2_282, %c0_283, %c0_284, %c0_285] : memref<3x3x16x16xbf16, #tpu.memory_space<vmem>>, vector<1x1x16x16xbf16>
    %336 = vector.shape_cast %335 : vector<1x1x16x16xbf16> to vector<16x16xbf16>
    %cst_286 = arith.constant dense<0.000000e+00> : vector<32x16xf32>
    %337 = tpu.matmul %334, %336, %cst_286 {dimension_numbers = #tpu.dot_dimension_numbers<[1], [0], [0], [1], [0, 0, 1, 1], [], []>} : vector<32x16xbf16>, vector<16x16xbf16>, vector<32x16xf32> -> vector<32x16xf32>
    %338 = arith.addf %331, %337 : vector<32x16xf32>
    %c0_287 = arith.constant 0 : index
    %c0_288 = arith.constant 0 : index
    %c1_289 = arith.constant 1 : index
    %c0_290 = arith.constant 0 : index
    %339 = vector.load %arg24[%c0_287, %c0_288, %c1_289, %c0_290] : memref<2x6x6x16xf32, #tpu.memory_space<vmem>>, vector<2x6x4x16xf32>
    %340 = vector.extract_strided_slice %339 {offsets = [0, 0, 0, 0], sizes = [2, 4, 4, 16], strides = [1, 1, 1, 1]} : vector<2x6x4x16xf32> to vector<2x4x4x16xf32>
    %341 = vector.shape_cast %340 : vector<2x4x4x16xf32> to vector<32x16xf32>
    %342 = arith.truncf %341 : vector<32x16xf32> to vector<32x16xbf16>
    %c0_291 = arith.constant 0 : index
    %c1_292 = arith.constant 1 : index
    %c0_293 = arith.constant 0 : index
    %c0_294 = arith.constant 0 : index
    %343 = vector.load %arg12[%c0_291, %c1_292, %c0_293, %c0_294] : memref<3x3x16x16xbf16, #tpu.memory_space<vmem>>, vector<1x1x16x16xbf16>
    %344 = vector.shape_cast %343 : vector<1x1x16x16xbf16> to vector<16x16xbf16>
    %cst_295 = arith.constant dense<0.000000e+00> : vector<32x16xf32>
    %345 = tpu.matmul %342, %344, %cst_295 {dimension_numbers = #tpu.dot_dimension_numbers<[1], [0], [0], [1], [0, 0, 1, 1], [], []>} : vector<32x16xbf16>, vector<16x16xbf16>, vector<32x16xf32> -> vector<32x16xf32>
    %346 = arith.addf %338, %345 : vector<32x16xf32>
    %347 = vector.extract_strided_slice %339 {offsets = [0, 1, 0, 0], sizes = [2, 4, 4, 16], strides = [1, 1, 1, 1]} : vector<2x6x4x16xf32> to vector<2x4x4x16xf32>
    %348 = vector.shape_cast %347 : vector<2x4x4x16xf32> to vector<32x16xf32>
    %349 = arith.truncf %348 : vector<32x16xf32> to vector<32x16xbf16>
    %c1_296 = arith.constant 1 : index
    %c1_297 = arith.constant 1 : index
    %c0_298 = arith.constant 0 : index
    %c0_299 = arith.constant 0 : index
    %350 = vector.load %arg12[%c1_296, %c1_297, %c0_298, %c0_299] : memref<3x3x16x16xbf16, #tpu.memory_space<vmem>>, vector<1x1x16x16xbf16>
    %351 = vector.shape_cast %350 : vector<1x1x16x16xbf16> to vector<16x16xbf16>
    %cst_300 = arith.constant dense<0.000000e+00> : vector<32x16xf32>
    %352 = tpu.matmul %349, %351, %cst_300 {dimension_numbers = #tpu.dot_dimension_numbers<[1], [0], [0], [1], [0, 0, 1, 1], [], []>} : vector<32x16xbf16>, vector<16x16xbf16>, vector<32x16xf32> -> vector<32x16xf32>
    %353 = arith.addf %346, %352 : vector<32x16xf32>
    %354 = vector.extract_strided_slice %339 {offsets = [0, 2, 0, 0], sizes = [2, 4, 4, 16], strides = [1, 1, 1, 1]} : vector<2x6x4x16xf32> to vector<2x4x4x16xf32>
    %355 = vector.shape_cast %354 : vector<2x4x4x16xf32> to vector<32x16xf32>
    %356 = arith.truncf %355 : vector<32x16xf32> to vector<32x16xbf16>
    %c2_301 = arith.constant 2 : index
    %c1_302 = arith.constant 1 : index
    %c0_303 = arith.constant 0 : index
    %c0_304 = arith.constant 0 : index
    %357 = vector.load %arg12[%c2_301, %c1_302, %c0_303, %c0_304] : memref<3x3x16x16xbf16, #tpu.memory_space<vmem>>, vector<1x1x16x16xbf16>
    %358 = vector.shape_cast %357 : vector<1x1x16x16xbf16> to vector<16x16xbf16>
    %cst_305 = arith.constant dense<0.000000e+00> : vector<32x16xf32>
    %359 = tpu.matmul %356, %358, %cst_305 {dimension_numbers = #tpu.dot_dimension_numbers<[1], [0], [0], [1], [0, 0, 1, 1], [], []>} : vector<32x16xbf16>, vector<16x16xbf16>, vector<32x16xf32> -> vector<32x16xf32>
    %360 = arith.addf %353, %359 : vector<32x16xf32>
    %c0_306 = arith.constant 0 : index
    %c0_307 = arith.constant 0 : index
    %c2_308 = arith.constant 2 : index
    %c0_309 = arith.constant 0 : index
    %361 = vector.load %arg24[%c0_306, %c0_307, %c2_308, %c0_309] : memref<2x6x6x16xf32, #tpu.memory_space<vmem>>, vector<2x6x4x16xf32>
    %362 = vector.extract_strided_slice %361 {offsets = [0, 0, 0, 0], sizes = [2, 4, 4, 16], strides = [1, 1, 1, 1]} : vector<2x6x4x16xf32> to vector<2x4x4x16xf32>
    %363 = vector.shape_cast %362 : vector<2x4x4x16xf32> to vector<32x16xf32>
    %364 = arith.truncf %363 : vector<32x16xf32> to vector<32x16xbf16>
    %c0_310 = arith.constant 0 : index
    %c2_311 = arith.constant 2 : index
    %c0_312 = arith.constant 0 : index
    %c0_313 = arith.constant 0 : index
    %365 = vector.load %arg12[%c0_310, %c2_311, %c0_312, %c0_313] : memref<3x3x16x16xbf16, #tpu.memory_space<vmem>>, vector<1x1x16x16xbf16>
    %366 = vector.shape_cast %365 : vector<1x1x16x16xbf16> to vector<16x16xbf16>
    %cst_314 = arith.constant dense<0.000000e+00> : vector<32x16xf32>
    %367 = tpu.matmul %364, %366, %cst_314 {dimension_numbers = #tpu.dot_dimension_numbers<[1], [0], [0], [1], [0, 0, 1, 1], [], []>} : vector<32x16xbf16>, vector<16x16xbf16>, vector<32x16xf32> -> vector<32x16xf32>
    %368 = arith.addf %360, %367 : vector<32x16xf32>
    %369 = vector.extract_strided_slice %361 {offsets = [0, 1, 0, 0], sizes = [2, 4, 4, 16], strides = [1, 1, 1, 1]} : vector<2x6x4x16xf32> to vector<2x4x4x16xf32>
    %370 = vector.shape_cast %369 : vector<2x4x4x16xf32> to vector<32x16xf32>
    %371 = arith.truncf %370 : vector<32x16xf32> to vector<32x16xbf16>
    %c1_315 = arith.constant 1 : index
    %c2_316 = arith.constant 2 : index
    %c0_317 = arith.constant 0 : index
    %c0_318 = arith.constant 0 : index
    %372 = vector.load %arg12[%c1_315, %c2_316, %c0_317, %c0_318] : memref<3x3x16x16xbf16, #tpu.memory_space<vmem>>, vector<1x1x16x16xbf16>
    %373 = vector.shape_cast %372 : vector<1x1x16x16xbf16> to vector<16x16xbf16>
    %cst_319 = arith.constant dense<0.000000e+00> : vector<32x16xf32>
    %374 = tpu.matmul %371, %373, %cst_319 {dimension_numbers = #tpu.dot_dimension_numbers<[1], [0], [0], [1], [0, 0, 1, 1], [], []>} : vector<32x16xbf16>, vector<16x16xbf16>, vector<32x16xf32> -> vector<32x16xf32>
    %375 = arith.addf %368, %374 : vector<32x16xf32>
    %376 = vector.extract_strided_slice %361 {offsets = [0, 2, 0, 0], sizes = [2, 4, 4, 16], strides = [1, 1, 1, 1]} : vector<2x6x4x16xf32> to vector<2x4x4x16xf32>
    %377 = vector.shape_cast %376 : vector<2x4x4x16xf32> to vector<32x16xf32>
    %378 = arith.truncf %377 : vector<32x16xf32> to vector<32x16xbf16>
    %c2_320 = arith.constant 2 : index
    %c2_321 = arith.constant 2 : index
    %c0_322 = arith.constant 0 : index
    %c0_323 = arith.constant 0 : index
    %379 = vector.load %arg12[%c2_320, %c2_321, %c0_322, %c0_323] : memref<3x3x16x16xbf16, #tpu.memory_space<vmem>>, vector<1x1x16x16xbf16>
    %380 = vector.shape_cast %379 : vector<1x1x16x16xbf16> to vector<16x16xbf16>
    %cst_324 = arith.constant dense<0.000000e+00> : vector<32x16xf32>
    %381 = tpu.matmul %378, %380, %cst_324 {dimension_numbers = #tpu.dot_dimension_numbers<[1], [0], [0], [1], [0, 0, 1, 1], [], []>} : vector<32x16xbf16>, vector<16x16xbf16>, vector<32x16xf32> -> vector<32x16xf32>
    %382 = arith.addf %375, %381 : vector<32x16xf32>
    %383 = arith.truncf %382 : vector<32x16xf32> to vector<32x16xbf16>
    %c0_325 = arith.constant 0 : index
    %c0_326 = arith.constant 0 : index
    %384 = vector.load %arg13[%c0_325, %c0_326] : memref<16x24xbf16, #tpu.memory_space<vmem>>, vector<16x24xbf16>
    %cst_327 = arith.constant dense<0.000000e+00> : vector<32x24xf32>
    %385 = tpu.matmul %383, %384, %cst_327 {dimension_numbers = #tpu.dot_dimension_numbers<[1], [0], [0], [1], [0, 0, 1, 1], [], []>} : vector<32x16xbf16>, vector<16x24xbf16>, vector<32x24xf32> -> vector<32x24xf32>
    %c0_328 = arith.constant 0 : index
    %c0_329 = arith.constant 0 : index
    %386 = vector.load %arg14[%c0_328, %c0_329] : memref<1x24xf32, #tpu.memory_space<vmem>>, vector<1x24xf32>
    %c0_330 = arith.constant 0 : index
    %c0_331 = arith.constant 0 : index
    %387 = vector.load %arg15[%c0_330, %c0_331] : memref<1x24xf32, #tpu.memory_space<vmem>>, vector<1x24xf32>
    %cst_332 = arith.constant dense<0.000000e+00> : vector<24xf32>
    %388 = vector.multi_reduction <add>, %385, %cst_332 [0] : vector<32x24xf32> to vector<24xf32>
    %389 = vector.shape_cast %388 : vector<24xf32> to vector<1x24xf32>
    %cst_333 = arith.constant 3.125000e-02 : f32
    %390 = vector.broadcast %cst_333 : f32 to vector<1x24xf32>
    %391 = arith.mulf %389, %390 : vector<1x24xf32>
    %392 = arith.mulf %385, %385 : vector<32x24xf32>
    %cst_334 = arith.constant dense<0.000000e+00> : vector<24xf32>
    %393 = vector.multi_reduction <add>, %392, %cst_334 [0] : vector<32x24xf32> to vector<24xf32>
    %394 = vector.shape_cast %393 : vector<24xf32> to vector<1x24xf32>
    %cst_335 = arith.constant 3.125000e-02 : f32
    %395 = vector.broadcast %cst_335 : f32 to vector<1x24xf32>
    %396 = arith.mulf %394, %395 : vector<1x24xf32>
    %397 = arith.mulf %391, %391 : vector<1x24xf32>
    %398 = arith.subf %396, %397 : vector<1x24xf32>
    %cst_336 = arith.constant 0.000000e+00 : f32
    %399 = vector.broadcast %cst_336 : f32 to vector<1x24xf32>
    %400 = arith.maximumf %398, %399 : vector<1x24xf32>
    %cst_337 = arith.constant 9.99999974E-6 : f32
    %401 = vector.broadcast %cst_337 : f32 to vector<1x24xf32>
    %402 = arith.addf %400, %401 : vector<1x24xf32>
    %403 = math.rsqrt %402 : vector<1x24xf32>
    %404 = arith.mulf %386, %403 : vector<1x24xf32>
    %405 = arith.mulf %404, %391 : vector<1x24xf32>
    %406 = arith.subf %387, %405 : vector<1x24xf32>
    %407 = vector.broadcast %404 : vector<1x24xf32> to vector<32x24xf32>
    %408 = arith.mulf %385, %407 : vector<32x24xf32>
    %409 = vector.broadcast %406 : vector<1x24xf32> to vector<32x24xf32>
    %410 = arith.addf %408, %409 : vector<32x24xf32>
    %cst_338 = arith.constant 0.000000e+00 : f32
    %411 = vector.broadcast %cst_338 : f32 to vector<32x24xf32>
    %412 = arith.maximumf %410, %411 : vector<32x24xf32>
    %413 = vector.shape_cast %412 : vector<32x24xf32> to vector<2x4x4x24xf32>
    %c0_339 = arith.constant 0 : index
    %c1_340 = arith.constant 1 : index
    %c1_341 = arith.constant 1 : index
    %c0_342 = arith.constant 0 : index
    %414 = vector.load %arg25[%c0_339, %c1_340, %c1_341, %c0_342] : memref<2x6x6x24xf32, #tpu.memory_space<vmem>>, vector<2x4x4x24xf32>
    tpu.vector_store %arg25[%c0_339, %c1_340, %c1_341, %c0_342], %413 {strides = array<i32>} : memref<2x6x6x24xf32, #tpu.memory_space<vmem>>, vector<2x4x4x24xf32>,
    %cst_343 = arith.constant 0.000000e+00 : f32
    %415 = vector.broadcast %cst_343 : f32 to vector<2x1x6x24xf32>
    %c0_344 = arith.constant 0 : index
    %c0_345 = arith.constant 0 : index
    %c0_346 = arith.constant 0 : index
    %c0_347 = arith.constant 0 : index
    %416 = vector.load %arg25[%c0_344, %c0_345, %c0_346, %c0_347] : memref<2x6x6x24xf32, #tpu.memory_space<vmem>>, vector<2x1x6x24xf32>
    tpu.vector_store %arg25[%c0_344, %c0_345, %c0_346, %c0_347], %415 {strides = array<i32>} : memref<2x6x6x24xf32, #tpu.memory_space<vmem>>, vector<2x1x6x24xf32>,
    %cst_348 = arith.constant 0.000000e+00 : f32
    %417 = vector.broadcast %cst_348 : f32 to vector<2x1x6x24xf32>
    %c0_349 = arith.constant 0 : index
    %c5_350 = arith.constant 5 : index
    %c0_351 = arith.constant 0 : index
    %c0_352 = arith.constant 0 : index
    %418 = vector.load %arg25[%c0_349, %c5_350, %c0_351, %c0_352] : memref<2x6x6x24xf32, #tpu.memory_space<vmem>>, vector<2x1x6x24xf32>
    tpu.vector_store %arg25[%c0_349, %c5_350, %c0_351, %c0_352], %417 {strides = array<i32>} : memref<2x6x6x24xf32, #tpu.memory_space<vmem>>, vector<2x1x6x24xf32>,
    %cst_353 = arith.constant 0.000000e+00 : f32
    %419 = vector.broadcast %cst_353 : f32 to vector<2x4x1x24xf32>
    %c0_354 = arith.constant 0 : index
    %c1_355 = arith.constant 1 : index
    %c0_356 = arith.constant 0 : index
    %c0_357 = arith.constant 0 : index
    %420 = vector.load %arg25[%c0_354, %c1_355, %c0_356, %c0_357] : memref<2x6x6x24xf32, #tpu.memory_space<vmem>>, vector<2x4x1x24xf32>
    tpu.vector_store %arg25[%c0_354, %c1_355, %c0_356, %c0_357], %419 {strides = array<i32>} : memref<2x6x6x24xf32, #tpu.memory_space<vmem>>, vector<2x4x1x24xf32>,
    %cst_358 = arith.constant 0.000000e+00 : f32
    %421 = vector.broadcast %cst_358 : f32 to vector<2x4x1x24xf32>
    %c0_359 = arith.constant 0 : index
    %c1_360 = arith.constant 1 : index
    %c5_361 = arith.constant 5 : index
    %c0_362 = arith.constant 0 : index
    %422 = vector.load %arg25[%c0_359, %c1_360, %c5_361, %c0_362] : memref<2x6x6x24xf32, #tpu.memory_space<vmem>>, vector<2x4x1x24xf32>
    tpu.vector_store %arg25[%c0_359, %c1_360, %c5_361, %c0_362], %421 {strides = array<i32>} : memref<2x6x6x24xf32, #tpu.memory_space<vmem>>, vector<2x4x1x24xf32>,
    %cst_363 = arith.constant 0.000000e+00 : f32
    %423 = vector.broadcast %cst_363 : f32 to vector<32x24xf32>
    %c0_364 = arith.constant 0 : index
    %c0_365 = arith.constant 0 : index
    %c0_366 = arith.constant 0 : index
    %c0_367 = arith.constant 0 : index
    %424 = vector.load %arg25[%c0_364, %c0_365, %c0_366, %c0_367] : memref<2x6x6x24xf32, #tpu.memory_space<vmem>>, vector<2x6x4x24xf32>
    %425 = vector.extract_strided_slice %424 {offsets = [0, 0, 0, 0], sizes = [2, 4, 4, 24], strides = [1, 1, 1, 1]} : vector<2x6x4x24xf32> to vector<2x4x4x24xf32>
    %426 = vector.shape_cast %425 : vector<2x4x4x24xf32> to vector<32x24xf32>
    %427 = arith.truncf %426 : vector<32x24xf32> to vector<32x24xbf16>
    %c0_368 = arith.constant 0 : index
    %c0_369 = arith.constant 0 : index
    %c0_370 = arith.constant 0 : index
    %c0_371 = arith.constant 0 : index
    %428 = vector.load %arg16[%c0_368, %c0_369, %c0_370, %c0_371] : memref<3x3x24x24xbf16, #tpu.memory_space<vmem>>, vector<1x1x24x24xbf16>
    %429 = vector.shape_cast %428 : vector<1x1x24x24xbf16> to vector<24x24xbf16>
    %cst_372 = arith.constant dense<0.000000e+00> : vector<32x24xf32>
    %430 = tpu.matmul %427, %429, %cst_372 {dimension_numbers = #tpu.dot_dimension_numbers<[1], [0], [0], [1], [0, 0, 1, 1], [], []>} : vector<32x24xbf16>, vector<24x24xbf16>, vector<32x24xf32> -> vector<32x24xf32>
    %431 = arith.addf %423, %430 : vector<32x24xf32>
    %432 = vector.extract_strided_slice %424 {offsets = [0, 1, 0, 0], sizes = [2, 4, 4, 24], strides = [1, 1, 1, 1]} : vector<2x6x4x24xf32> to vector<2x4x4x24xf32>
    %433 = vector.shape_cast %432 : vector<2x4x4x24xf32> to vector<32x24xf32>
    %434 = arith.truncf %433 : vector<32x24xf32> to vector<32x24xbf16>
    %c1_373 = arith.constant 1 : index
    %c0_374 = arith.constant 0 : index
    %c0_375 = arith.constant 0 : index
    %c0_376 = arith.constant 0 : index
    %435 = vector.load %arg16[%c1_373, %c0_374, %c0_375, %c0_376] : memref<3x3x24x24xbf16, #tpu.memory_space<vmem>>, vector<1x1x24x24xbf16>
    %436 = vector.shape_cast %435 : vector<1x1x24x24xbf16> to vector<24x24xbf16>
    %cst_377 = arith.constant dense<0.000000e+00> : vector<32x24xf32>
    %437 = tpu.matmul %434, %436, %cst_377 {dimension_numbers = #tpu.dot_dimension_numbers<[1], [0], [0], [1], [0, 0, 1, 1], [], []>} : vector<32x24xbf16>, vector<24x24xbf16>, vector<32x24xf32> -> vector<32x24xf32>
    %438 = arith.addf %431, %437 : vector<32x24xf32>
    %439 = vector.extract_strided_slice %424 {offsets = [0, 2, 0, 0], sizes = [2, 4, 4, 24], strides = [1, 1, 1, 1]} : vector<2x6x4x24xf32> to vector<2x4x4x24xf32>
    %440 = vector.shape_cast %439 : vector<2x4x4x24xf32> to vector<32x24xf32>
    %441 = arith.truncf %440 : vector<32x24xf32> to vector<32x24xbf16>
    %c2_378 = arith.constant 2 : index
    %c0_379 = arith.constant 0 : index
    %c0_380 = arith.constant 0 : index
    %c0_381 = arith.constant 0 : index
    %442 = vector.load %arg16[%c2_378, %c0_379, %c0_380, %c0_381] : memref<3x3x24x24xbf16, #tpu.memory_space<vmem>>, vector<1x1x24x24xbf16>
    %443 = vector.shape_cast %442 : vector<1x1x24x24xbf16> to vector<24x24xbf16>
    %cst_382 = arith.constant dense<0.000000e+00> : vector<32x24xf32>
    %444 = tpu.matmul %441, %443, %cst_382 {dimension_numbers = #tpu.dot_dimension_numbers<[1], [0], [0], [1], [0, 0, 1, 1], [], []>} : vector<32x24xbf16>, vector<24x24xbf16>, vector<32x24xf32> -> vector<32x24xf32>
    %445 = arith.addf %438, %444 : vector<32x24xf32>
    %c0_383 = arith.constant 0 : index
    %c0_384 = arith.constant 0 : index
    %c1_385 = arith.constant 1 : index
    %c0_386 = arith.constant 0 : index
    %446 = vector.load %arg25[%c0_383, %c0_384, %c1_385, %c0_386] : memref<2x6x6x24xf32, #tpu.memory_space<vmem>>, vector<2x6x4x24xf32>
    %447 = vector.extract_strided_slice %446 {offsets = [0, 0, 0, 0], sizes = [2, 4, 4, 24], strides = [1, 1, 1, 1]} : vector<2x6x4x24xf32> to vector<2x4x4x24xf32>
    %448 = vector.shape_cast %447 : vector<2x4x4x24xf32> to vector<32x24xf32>
    %449 = arith.truncf %448 : vector<32x24xf32> to vector<32x24xbf16>
    %c0_387 = arith.constant 0 : index
    %c1_388 = arith.constant 1 : index
    %c0_389 = arith.constant 0 : index
    %c0_390 = arith.constant 0 : index
    %450 = vector.load %arg16[%c0_387, %c1_388, %c0_389, %c0_390] : memref<3x3x24x24xbf16, #tpu.memory_space<vmem>>, vector<1x1x24x24xbf16>
    %451 = vector.shape_cast %450 : vector<1x1x24x24xbf16> to vector<24x24xbf16>
    %cst_391 = arith.constant dense<0.000000e+00> : vector<32x24xf32>
    %452 = tpu.matmul %449, %451, %cst_391 {dimension_numbers = #tpu.dot_dimension_numbers<[1], [0], [0], [1], [0, 0, 1, 1], [], []>} : vector<32x24xbf16>, vector<24x24xbf16>, vector<32x24xf32> -> vector<32x24xf32>
    %453 = arith.addf %445, %452 : vector<32x24xf32>
    %454 = vector.extract_strided_slice %446 {offsets = [0, 1, 0, 0], sizes = [2, 4, 4, 24], strides = [1, 1, 1, 1]} : vector<2x6x4x24xf32> to vector<2x4x4x24xf32>
    %455 = vector.shape_cast %454 : vector<2x4x4x24xf32> to vector<32x24xf32>
    %456 = arith.truncf %455 : vector<32x24xf32> to vector<32x24xbf16>
    %c1_392 = arith.constant 1 : index
    %c1_393 = arith.constant 1 : index
    %c0_394 = arith.constant 0 : index
    %c0_395 = arith.constant 0 : index
    %457 = vector.load %arg16[%c1_392, %c1_393, %c0_394, %c0_395] : memref<3x3x24x24xbf16, #tpu.memory_space<vmem>>, vector<1x1x24x24xbf16>
    %458 = vector.shape_cast %457 : vector<1x1x24x24xbf16> to vector<24x24xbf16>
    %cst_396 = arith.constant dense<0.000000e+00> : vector<32x24xf32>
    %459 = tpu.matmul %456, %458, %cst_396 {dimension_numbers = #tpu.dot_dimension_numbers<[1], [0], [0], [1], [0, 0, 1, 1], [], []>} : vector<32x24xbf16>, vector<24x24xbf16>, vector<32x24xf32> -> vector<32x24xf32>
    %460 = arith.addf %453, %459 : vector<32x24xf32>
    %461 = vector.extract_strided_slice %446 {offsets = [0, 2, 0, 0], sizes = [2, 4, 4, 24], strides = [1, 1, 1, 1]} : vector<2x6x4x24xf32> to vector<2x4x4x24xf32>
    %462 = vector.shape_cast %461 : vector<2x4x4x24xf32> to vector<32x24xf32>
    %463 = arith.truncf %462 : vector<32x24xf32> to vector<32x24xbf16>
    %c2_397 = arith.constant 2 : index
    %c1_398 = arith.constant 1 : index
    %c0_399 = arith.constant 0 : index
    %c0_400 = arith.constant 0 : index
    %464 = vector.load %arg16[%c2_397, %c1_398, %c0_399, %c0_400] : memref<3x3x24x24xbf16, #tpu.memory_space<vmem>>, vector<1x1x24x24xbf16>
    %465 = vector.shape_cast %464 : vector<1x1x24x24xbf16> to vector<24x24xbf16>
    %cst_401 = arith.constant dense<0.000000e+00> : vector<32x24xf32>
    %466 = tpu.matmul %463, %465, %cst_401 {dimension_numbers = #tpu.dot_dimension_numbers<[1], [0], [0], [1], [0, 0, 1, 1], [], []>} : vector<32x24xbf16>, vector<24x24xbf16>, vector<32x24xf32> -> vector<32x24xf32>
    %467 = arith.addf %460, %466 : vector<32x24xf32>
    %c0_402 = arith.constant 0 : index
    %c0_403 = arith.constant 0 : index
    %c2_404 = arith.constant 2 : index
    %c0_405 = arith.constant 0 : index
    %468 = vector.load %arg25[%c0_402, %c0_403, %c2_404, %c0_405] : memref<2x6x6x24xf32, #tpu.memory_space<vmem>>, vector<2x6x4x24xf32>
    %469 = vector.extract_strided_slice %468 {offsets = [0, 0, 0, 0], sizes = [2, 4, 4, 24], strides = [1, 1, 1, 1]} : vector<2x6x4x24xf32> to vector<2x4x4x24xf32>
    %470 = vector.shape_cast %469 : vector<2x4x4x24xf32> to vector<32x24xf32>
    %471 = arith.truncf %470 : vector<32x24xf32> to vector<32x24xbf16>
    %c0_406 = arith.constant 0 : index
    %c2_407 = arith.constant 2 : index
    %c0_408 = arith.constant 0 : index
    %c0_409 = arith.constant 0 : index
    %472 = vector.load %arg16[%c0_406, %c2_407, %c0_408, %c0_409] : memref<3x3x24x24xbf16, #tpu.memory_space<vmem>>, vector<1x1x24x24xbf16>
    %473 = vector.shape_cast %472 : vector<1x1x24x24xbf16> to vector<24x24xbf16>
    %cst_410 = arith.constant dense<0.000000e+00> : vector<32x24xf32>
    %474 = tpu.matmul %471, %473, %cst_410 {dimension_numbers = #tpu.dot_dimension_numbers<[1], [0], [0], [1], [0, 0, 1, 1], [], []>} : vector<32x24xbf16>, vector<24x24xbf16>, vector<32x24xf32> -> vector<32x24xf32>
    %475 = arith.addf %467, %474 : vector<32x24xf32>
    %476 = vector.extract_strided_slice %468 {offsets = [0, 1, 0, 0], sizes = [2, 4, 4, 24], strides = [1, 1, 1, 1]} : vector<2x6x4x24xf32> to vector<2x4x4x24xf32>
    %477 = vector.shape_cast %476 : vector<2x4x4x24xf32> to vector<32x24xf32>
    %478 = arith.truncf %477 : vector<32x24xf32> to vector<32x24xbf16>
    %c1_411 = arith.constant 1 : index
    %c2_412 = arith.constant 2 : index
    %c0_413 = arith.constant 0 : index
    %c0_414 = arith.constant 0 : index
    %479 = vector.load %arg16[%c1_411, %c2_412, %c0_413, %c0_414] : memref<3x3x24x24xbf16, #tpu.memory_space<vmem>>, vector<1x1x24x24xbf16>
    %480 = vector.shape_cast %479 : vector<1x1x24x24xbf16> to vector<24x24xbf16>
    %cst_415 = arith.constant dense<0.000000e+00> : vector<32x24xf32>
    %481 = tpu.matmul %478, %480, %cst_415 {dimension_numbers = #tpu.dot_dimension_numbers<[1], [0], [0], [1], [0, 0, 1, 1], [], []>} : vector<32x24xbf16>, vector<24x24xbf16>, vector<32x24xf32> -> vector<32x24xf32>
    %482 = arith.addf %475, %481 : vector<32x24xf32>
    %483 = vector.extract_strided_slice %468 {offsets = [0, 2, 0, 0], sizes = [2, 4, 4, 24], strides = [1, 1, 1, 1]} : vector<2x6x4x24xf32> to vector<2x4x4x24xf32>
    %484 = vector.shape_cast %483 : vector<2x4x4x24xf32> to vector<32x24xf32>
    %485 = arith.truncf %484 : vector<32x24xf32> to vector<32x24xbf16>
    %c2_416 = arith.constant 2 : index
    %c2_417 = arith.constant 2 : index
    %c0_418 = arith.constant 0 : index
    %c0_419 = arith.constant 0 : index
    %486 = vector.load %arg16[%c2_416, %c2_417, %c0_418, %c0_419] : memref<3x3x24x24xbf16, #tpu.memory_space<vmem>>, vector<1x1x24x24xbf16>
    %487 = vector.shape_cast %486 : vector<1x1x24x24xbf16> to vector<24x24xbf16>
    %cst_420 = arith.constant dense<0.000000e+00> : vector<32x24xf32>
    %488 = tpu.matmul %485, %487, %cst_420 {dimension_numbers = #tpu.dot_dimension_numbers<[1], [0], [0], [1], [0, 0, 1, 1], [], []>} : vector<32x24xbf16>, vector<24x24xbf16>, vector<32x24xf32> -> vector<32x24xf32>
    %489 = arith.addf %482, %488 : vector<32x24xf32>
    %490 = arith.truncf %489 : vector<32x24xf32> to vector<32x24xbf16>
    %c0_421 = arith.constant 0 : index
    %c0_422 = arith.constant 0 : index
    %491 = vector.load %arg17[%c0_421, %c0_422] : memref<24x32xbf16, #tpu.memory_space<vmem>>, vector<24x32xbf16>
    %cst_423 = arith.constant dense<0.000000e+00> : vector<32x32xf32>
    %492 = tpu.matmul %490, %491, %cst_423 {dimension_numbers = #tpu.dot_dimension_numbers<[1], [0], [0], [1], [0, 0, 1, 1], [], []>} : vector<32x24xbf16>, vector<24x32xbf16>, vector<32x32xf32> -> vector<32x32xf32>
    %c0_424 = arith.constant 0 : index
    %c0_425 = arith.constant 0 : index
    %493 = vector.load %arg18[%c0_424, %c0_425] : memref<1x32xf32, #tpu.memory_space<vmem>>, vector<1x32xf32>
    %c0_426 = arith.constant 0 : index
    %c0_427 = arith.constant 0 : index
    %494 = vector.load %arg19[%c0_426, %c0_427] : memref<1x32xf32, #tpu.memory_space<vmem>>, vector<1x32xf32>
    %cst_428 = arith.constant dense<0.000000e+00> : vector<32xf32>
    %495 = vector.multi_reduction <add>, %492, %cst_428 [0] : vector<32x32xf32> to vector<32xf32>
    %496 = vector.shape_cast %495 : vector<32xf32> to vector<1x32xf32>
    %cst_429 = arith.constant 3.125000e-02 : f32
    %497 = vector.broadcast %cst_429 : f32 to vector<1x32xf32>
    %498 = arith.mulf %496, %497 : vector<1x32xf32>
    %499 = arith.mulf %492, %492 : vector<32x32xf32>
    %cst_430 = arith.constant dense<0.000000e+00> : vector<32xf32>
    %500 = vector.multi_reduction <add>, %499, %cst_430 [0] : vector<32x32xf32> to vector<32xf32>
    %501 = vector.shape_cast %500 : vector<32xf32> to vector<1x32xf32>
    %cst_431 = arith.constant 3.125000e-02 : f32
    %502 = vector.broadcast %cst_431 : f32 to vector<1x32xf32>
    %503 = arith.mulf %501, %502 : vector<1x32xf32>
    %504 = arith.mulf %498, %498 : vector<1x32xf32>
    %505 = arith.subf %503, %504 : vector<1x32xf32>
    %cst_432 = arith.constant 0.000000e+00 : f32
    %506 = vector.broadcast %cst_432 : f32 to vector<1x32xf32>
    %507 = arith.maximumf %505, %506 : vector<1x32xf32>
    %cst_433 = arith.constant 9.99999974E-6 : f32
    %508 = vector.broadcast %cst_433 : f32 to vector<1x32xf32>
    %509 = arith.addf %507, %508 : vector<1x32xf32>
    %510 = math.rsqrt %509 : vector<1x32xf32>
    %511 = arith.mulf %493, %510 : vector<1x32xf32>
    %512 = arith.mulf %511, %498 : vector<1x32xf32>
    %513 = arith.subf %494, %512 : vector<1x32xf32>
    %514 = vector.broadcast %511 : vector<1x32xf32> to vector<32x32xf32>
    %515 = arith.mulf %492, %514 : vector<32x32xf32>
    %516 = vector.broadcast %513 : vector<1x32xf32> to vector<32x32xf32>
    %517 = arith.addf %515, %516 : vector<32x32xf32>
    %cst_434 = arith.constant 0.000000e+00 : f32
    %518 = vector.broadcast %cst_434 : f32 to vector<32x32xf32>
    %519 = arith.maximumf %517, %518 : vector<32x32xf32>
    %520 = vector.shape_cast %519 : vector<32x32xf32> to vector<2x16x32xf32>
    %cst_435 = arith.constant dense<0.000000e+00> : vector<2x32xf32>
    %521 = vector.multi_reduction <add>, %520, %cst_435 [1] : vector<2x16x32xf32> to vector<2x32xf32>
    %cst_436 = arith.constant 1.600000e+01 : f32
    %522 = vector.broadcast %cst_436 : f32 to vector<2x32xf32>
    %523 = arith.divf %521, %522 : vector<2x32xf32>
    %c0_437 = arith.constant 0 : index
    %c0_438 = arith.constant 0 : index
    %524 = vector.load %arg20[%c0_437, %c0_438] : memref<2x32xf32, #tpu.memory_space<vmem>>, vector<2x32xf32>
    tpu.vector_store %arg20[%c0_437, %c0_438], %523 {strides = array<i32>} : memref<2x32xf32, #tpu.memory_space<vmem>>, vector<2x32xf32>,
    return
  }
}

</mosaic_0001>

<llo_original>
// kernel: tpu_custom_call.1
$region0: #{tpu_custom_call.1}
  #allocation0 [shape = 'u32[]', space=smem, size = 0x4, offset = 0x4, fixed_abs, tag = 'smem constant byte address 0x4 - core index']
  #allocation1 [shape = 'u32[144,128]{1,0:T(1,128)}', space=vmem, size = 0x12000, scoped, tag = 'internal scratch']
  #allocation2 [shape = 'f32[2,10,10,8]{3,2,1,0:T(8,128)}', space=vmem, size = 0x28000, scoped, tag = 'scratch operand']
  #allocation3 [shape = 'f32[2,10,10,16]{3,2,1,0:T(8,128)}', space=vmem, size = 0x28000, scoped, tag = 'scratch operand']
  #allocation4 [shape = 'f32[2,10,10,16]{3,2,1,0:T(8,128)}', space=vmem, size = 0x28000, scoped, tag = 'scratch operand']
  #allocation5 [shape = 'f32[2,6,6,16]{3,2,1,0:T(8,128)}', space=vmem, size = 0xc000, scoped, tag = 'scratch operand']
  #allocation6 [shape = 'f32[2,6,6,24]{3,2,1,0:T(8,128)}', space=vmem, size = 0xc000, scoped, tag = 'scratch operand']
  %s0 = inlined_call_operand.hbm [shape: f32[2,8,8,8], index: 0, kind: input, shape index: {}]
  %s1 = inlined_call_operand.hbm [shape: bf16[3,3,8,8], index: 1, kind: input, shape index: {}]
  %s2 = inlined_call_operand.hbm [shape: bf16[8,16], index: 2, kind: input, shape index: {}]
  %s3 = inlined_call_operand.vmem [shape: f32[1,16], index: 3, kind: input, shape index: {}]
  %s4 = inlined_call_operand.vmem [shape: f32[1,16], index: 4, kind: input, shape index: {}]
  %s5 = inlined_call_operand.hbm [shape: bf16[3,3,16,16], index: 5, kind: input, shape index: {}]
  %s6 = inlined_call_operand.vmem [shape: bf16[16,16], index: 6, kind: input, shape index: {}]
  %s7 = inlined_call_operand.hbm [shape: f32[1,16], index: 7, kind: input, shape index: {}]
  %s8 = inlined_call_operand.hbm [shape: f32[1,16], index: 8, kind: input, shape index: {}]
  %s9 = inlined_call_operand.vmem [shape: bf16[8,16], index: 9, kind: input, shape index: {}]
  %s10 = inlined_call_operand.vmem [shape: f32[1,16], index: 10, kind: input, shape index: {}]
  %s11 = inlined_call_operand.vmem [shape: f32[1,16], index: 11, kind: input, shape index: {}]
  %s12 = inlined_call_operand.hbm [shape: bf16[3,3,16,16], index: 12, kind: input, shape index: {}]
  %s13 = inlined_call_operand.vmem [shape: bf16[16,24], index: 13, kind: input, shape index: {}]
  %s14 = inlined_call_operand.vmem [shape: f32[1,24], index: 14, kind: input, shape index: {}]
  %s15 = inlined_call_operand.vmem [shape: f32[1,24], index: 15, kind: input, shape index: {}]
  %s16 = inlined_call_operand.hbm [shape: bf16[3,3,24,24], index: 16, kind: input, shape index: {}]
  %s17 = inlined_call_operand.vmem [shape: bf16[24,32], index: 17, kind: input, shape index: {}]
  %s18 = inlined_call_operand.vmem [shape: f32[1,32], index: 18, kind: input, shape index: {}]
  %s19 = inlined_call_operand.vmem [shape: f32[1,32], index: 19, kind: input, shape index: {}]
  %s20 = inlined_call_operand.hbm [shape: f32[2,32], index: 20, kind: output, shape index: {}]
  %s21 = sld [smem:[#allocation0]]
  $region122: #{tpu_custom_call.1} parent=0
    _
  %s23 = ssub.s32 1, %s21
  %s24 = scalar_select 0, %s23, %s21
  $region1: #{tpu_custom_call.1} parent=0
    #allocation7 [shape = 'u8[65536]{0}', space=vmem, size = 0x10000, scoped, tag = 'input window, operand 0, single buffered']
    #allocation8 [shape = 's32[1]{0}', space=sflag, size = 0x4, scoped, tag = 'scoped memory for tpu_custom_call.1']
    #allocation9 [shape = 's32[1]{0}', space=sflag, size = 0x4, scoped, tag = 'scoped memory for tpu_custom_call.1']
    #allocation10 [shape = 'u8[18432]{0}', space=vmem, size = 0x4800, scoped, tag = 'input window, operand 1, single buffered']
    #allocation11 [shape = 's32[1]{0}', space=sflag, size = 0x4, scoped, tag = 'scoped memory for tpu_custom_call.1']
    #allocation12 [shape = 'u8[2048]{0}', space=vmem, size = 0x800, scoped, tag = 'input window, operand 2, single buffered']
    #allocation13 [shape = 'u8[36864]{0}', space=vmem, size = 0x9000, scoped, tag = 'input window, operand 5, single buffered']
    #allocation14 [shape = 's32[1]{0}', space=sflag, size = 0x4, scoped, tag = 'scoped memory for tpu_custom_call.1']
    #allocation15 [shape = 'u8[512]{0}', space=vmem, size = 0x400, scoped, tag = 'input window, operand 7, single buffered']
    #allocation16 [shape = 'u8[512]{0}', space=vmem, size = 0x400, scoped, tag = 'input window, operand 8, single buffered']
    #allocation17 [shape = 's32[1]{0}', space=sflag, size = 0x4, scoped, tag = 'scoped memory for tpu_custom_call.1']
    #allocation18 [shape = 'u8[36864]{0}', space=vmem, size = 0x9000, scoped, tag = 'input window, operand 12, single buffered']
    #allocation19 [shape = 'u8[55296]{0}', space=vmem, size = 0xd800, scoped, tag = 'input window, operand 16, single buffered']
    #allocation20 [shape = 's32[1]{0}', space=sflag, size = 0x4, scoped, tag = 'scoped memory for tpu_custom_call.1']
    #allocation21 [shape = 'u8[1024]{0}', space=vmem, size = 0x400, scoped, tag = 'output window, operand 0, single buffered']
    %25 = vsyncpa [#allocation8], 0
    %26 = vsyncpa [#allocation11], 0
    %27 = vsyncpa [#allocation14], 0
    %28 = vsyncpa [#allocation17], 0
    %29 = vsyncpa [#allocation20], 0
    %30 = vsyncpa [#allocation9], 0
    // Predicated region
    $region2: #{tpu_custom_call.1} parent=1 // pred_check
      _
    $region3: #{tpu_custom_call.1} parent=1 // pred_check_branch
      %32 = sbr.rel (0) target = $region5
    $region4: #{tpu_custom_call.1} parent=1 // pred_region
      %s34 = ssub.s32 2048, 2048
      %35 = vsyncadd [#allocation8], %s34
      %s36 = sshll.u32 [#allocation7], 4
      %s37 = int_to_ptr.vmem [resolvable:$true] %s36
      %42 = dma.hbm_to_vmem [thread:$0]  %s0, 2048, %s37, [#allocation8], 128, 128, 8
    $region5: #{tpu_custom_call.1} parent=1 // pred_fallthru
      _
    // Predicated region
    $region6: #{tpu_custom_call.1} parent=1 // pred_check
      _
    $region7: #{tpu_custom_call.1} parent=1 // pred_check_branch
      %44 = sbr.rel (0) target = $region9
    $region8: #{tpu_custom_call.1} parent=1 // pred_region
      %s46 = ssub.s32 576, 576
      %47 = vsyncadd [#allocation11], %s46
      %s48 = sshll.u32 [#allocation10], 4
      %s49 = int_to_ptr.vmem [resolvable:$true] %s48
      %54 = dma.hbm_to_vmem [thread:$0]  %s1, 576, %s49, [#allocation11], 64, 64, 4
    $region9: #{tpu_custom_call.1} parent=1 // pred_fallthru
      _
    // Predicated region
    $region10: #{tpu_custom_call.1} parent=1 // pred_check
      _
    $region11: #{tpu_custom_call.1} parent=1 // pred_check_branch
      %56 = sbr.rel (0) target = $region13
    $region12: #{tpu_custom_call.1} parent=1 // pred_region
      %s58 = ssub.s32 64, 64
      %59 = vsyncadd [#allocation11], %s58
      %s61 = sshll.u32 [#allocation12], 4
      %s62 = int_to_ptr.vmem [resolvable:$true] %s61
      %64 = dma.hbm_to_vmem [thread:$0]  %s2, 64, %s62, [#allocation11]
    $region13: #{tpu_custom_call.1} parent=1 // pred_fallthru
      _
    // Predicated region
    $region14: #{tpu_custom_call.1} parent=1 // pred_check
      _
    $region15: #{tpu_custom_call.1} parent=1 // pred_check_branch
      %66 = sbr.rel (0) target = $region17
    $region16: #{tpu_custom_call.1} parent=1 // pred_region
      _
    $region17: #{tpu_custom_call.1} parent=1 // pred_fallthru
      _
    // Predicated region
    $region18: #{tpu_custom_call.1} parent=1 // pred_check
      _
    $region19: #{tpu_custom_call.1} parent=1 // pred_check_branch
      %68 = sbr.rel (0) target = $region21
    $region20: #{tpu_custom_call.1} parent=1 // pred_region
      _
    $region21: #{tpu_custom_call.1} parent=1 // pred_fallthru
      _
    // Predicated region
    $region22: #{tpu_custom_call.1} parent=1 // pred_check
      _
    $region23: #{tpu_custom_call.1} parent=1 // pred_check_branch
      %70 = sbr.rel (0) target = $region25
    $region24: #{tpu_custom_call.1} parent=1 // pred_region
      %s72 = ssub.s32 1152, 1152
      %73 = vsyncadd [#allocation14], %s72
      %s74 = sshll.u32 [#allocation13], 4
      %s75 = int_to_ptr.vmem [resolvable:$true] %s74
      %80 = dma.hbm_to_vmem [thread:$0]  %s5, 1152, %s75, [#allocation14], 64, 64, 4
    $region25: #{tpu_custom_call.1} parent=1 // pred_fallthru
      _
    // Predicated region
    $region26: #{tpu_custom_call.1} parent=1 // pred_check
      _
    $region27: #{tpu_custom_call.1} parent=1 // pred_check_branch
      %82 = sbr.rel (0) target = $region29
    $region28: #{tpu_custom_call.1} parent=1 // pred_region
      _
    $region29: #{tpu_custom_call.1} parent=1 // pred_fallthru
      _
    // Predicated region
    $region30: #{tpu_custom_call.1} parent=1 // pred_check
      _
    $region31: #{tpu_custom_call.1} parent=1 // pred_check_branch
      %84 = sbr.rel (0) target = $region33
    $region32: #{tpu_custom_call.1} parent=1 // pred_region
      %s86 = ssub.s32 16, 16
      %87 = vsyncadd [#allocation14], %s86
      %s89 = sshll.u32 [#allocation15], 4
      %s90 = int_to_ptr.vmem [resolvable:$true] %s89
      %92 = dma.hbm_to_vmem [thread:$0]  %s7, 16, %s90, [#allocation14]
    $region33: #{tpu_custom_call.1} parent=1 // pred_fallthru
      _
    // Predicated region
    $region34: #{tpu_custom_call.1} parent=1 // pred_check
      _
    $region35: #{tpu_custom_call.1} parent=1 // pred_check_branch
      %94 = sbr.rel (0) target = $region37
    $region36: #{tpu_custom_call.1} parent=1 // pred_region
      %s96 = ssub.s32 16, 16
      %97 = vsyncadd [#allocation17], %s96
      %s99 = sshll.u32 [#allocation16], 4
      %s100 = int_to_ptr.vmem [resolvable:$true] %s99
      %102 = dma.hbm_to_vmem [thread:$0]  %s8, 16, %s100, [#allocation17]
    $region37: #{tpu_custom_call.1} parent=1 // pred_fallthru
      _
    // Predicated region
    $region38: #{tpu_custom_call.1} parent=1 // pred_check
      _
    $region39: #{tpu_custom_call.1} parent=1 // pred_check_branch
      %104 = sbr.rel (0) target = $region41
    $region40: #{tpu_custom_call.1} parent=1 // pred_region
      _
    $region41: #{tpu_custom_call.1} parent=1 // pred_fallthru
      _
    // Predicated region
    $region42: #{tpu_custom_call.1} parent=1 // pred_check
      _
    $region43: #{tpu_custom_call.1} parent=1 // pred_check_branch
      %106 = sbr.rel (0) target = $region45
    $region44: #{tpu_custom_call.1} parent=1 // pred_region
      _
    $region45: #{tpu_custom_call.1} parent=1 // pred_fallthru
      _
    // Predicated region
    $region46: #{tpu_custom_call.1} parent=1 // pred_check
      _
    $region47: #{tpu_custom_call.1} parent=1 // pred_check_branch
      %108 = sbr.rel (0) target = $region49
    $region48: #{tpu_custom_call.1} parent=1 // pred_region
      _
    $region49: #{tpu_custom_call.1} parent=1 // pred_fallthru
      _
    // Predicated region
    $region50: #{tpu_custom_call.1} parent=1 // pred_check
      _
    $region51: #{tpu_custom_call.1} parent=1 // pred_check_branch
      %110 = sbr.rel (0) target = $region53
    $region52: #{tpu_custom_call.1} parent=1 // pred_region
      %s112 = ssub.s32 1152, 1152
      %113 = vsyncadd [#allocation17], %s112
      %s114 = sshll.u32 [#allocation18], 4
      %s115 = int_to_ptr.vmem [resolvable:$true] %s114
      %120 = dma.hbm_to_vmem [thread:$0]  %s12, 1152, %s115, [#allocation17], 64, 64, 4
    $region53: #{tpu_custom_call.1} parent=1 // pred_fallthru
      _
    // Predicated region
    $region54: #{tpu_custom_call.1} parent=1 // pred_check
      _
    $region55: #{tpu_custom_call.1} parent=1 // pred_check_branch
      %122 = sbr.rel (0) target = $region57
    $region56: #{tpu_custom_call.1} parent=1 // pred_region
      _
    $region57: #{tpu_custom_call.1} parent=1 // pred_fallthru
      _
    // Predicated region
    $region58: #{tpu_custom_call.1} parent=1 // pred_check
      _
    $region59: #{tpu_custom_call.1} parent=1 // pred_check_branch
      %124 = sbr.rel (0) target = $region61
    $region60: #{tpu_custom_call.1} parent=1 // pred_region
      _
    $region61: #{tpu_custom_call.1} parent=1 // pred_fallthru
      _
    // Predicated region
    $region62: #{tpu_custom_call.1} parent=1 // pred_check
      _
    $region63: #{tpu_custom_call.1} parent=1 // pred_check_branch
      %126 = sbr.rel (0) target = $region65
    $region64: #{tpu_custom_call.1} parent=1 // pred_region
      _
    $region65: #{tpu_custom_call.1} parent=1 // pred_fallthru
      _
    // Predicated region
    $region66: #{tpu_custom_call.1} parent=1 // pred_check
      _
    $region67: #{tpu_custom_call.1} parent=1 // pred_check_branch
      %128 = sbr.rel (0) target = $region69
    $region68: #{tpu_custom_call.1} parent=1 // pred_region
      %s130 = ssub.s32 1728, 1728
      %131 = vsyncadd [#allocation20], %s130
      %s132 = sshll.u32 [#allocation19], 4
      %s133 = int_to_ptr.vmem [resolvable:$true] %s132
      %138 = dma.hbm_to_vmem [thread:$0]  %s16, 1728, %s133, [#allocation20], 64, 64, 4
    $region69: #{tpu_custom_call.1} parent=1 // pred_fallthru
      _
    // Predicated region
    $region70: #{tpu_custom_call.1} parent=1 // pred_check
      _
    $region71: #{tpu_custom_call.1} parent=1 // pred_check_branch
      %140 = sbr.rel (0) target = $region73
    $region72: #{tpu_custom_call.1} parent=1 // pred_region
      _
    $region73: #{tpu_custom_call.1} parent=1 // pred_fallthru
      _
    // Predicated region
    $region74: #{tpu_custom_call.1} parent=1 // pred_check
      _
    $region75: #{tpu_custom_call.1} parent=1 // pred_check_branch
      %142 = sbr.rel (0) target = $region77
    $region76: #{tpu_custom_call.1} parent=1 // pred_region
      _
    $region77: #{tpu_custom_call.1} parent=1 // pred_fallthru
      _
    // Predicated region
    $region78: #{tpu_custom_call.1} parent=1 // pred_check
      _
    $region79: #{tpu_custom_call.1} parent=1 // pred_check_branch
      %144 = sbr.rel (0) target = $region81
    $region80: #{tpu_custom_call.1} parent=1 // pred_region
      _
    $region81: #{tpu_custom_call.1} parent=1 // pred_fallthru
      _
    // Predicated region
    $region82: #{tpu_custom_call.1} parent=1 // pred_check
      _
    $region83: #{tpu_custom_call.1} parent=1 // pred_check_branch
      %146 = sbr.rel (0) target = $region85
    $region84: #{tpu_custom_call.1} parent=1 // pred_region
      %147 = dma.done [#allocation8], 2048
    $region85: #{tpu_custom_call.1} parent=1 // pred_fallthru
      _
    // Predicated region
    $region86: #{tpu_custom_call.1} parent=1 // pred_check
      _
    $region87: #{tpu_custom_call.1} parent=1 // pred_check_branch
      %149 = sbr.rel (0) target = $region89
    $region88: #{tpu_custom_call.1} parent=1 // pred_region
      %150 = dma.done [#allocation11], 576
    $region89: #{tpu_custom_call.1} parent=1 // pred_fallthru
      _
    // Predicated region
    $region90: #{tpu_custom_call.1} parent=1 // pred_check
      _
    $region91: #{tpu_custom_call.1} parent=1 // pred_check_branch
      %152 = sbr.rel (0) target = $region93
    $region92: #{tpu_custom_call.1} parent=1 // pred_region
      %153 = dma.done [#allocation11], 64
    $region93: #{tpu_custom_call.1} parent=1 // pred_fallthru
      _
    // Predicated region
    $region94: #{tpu_custom_call.1} parent=1 // pred_check
      _
    $region95: #{tpu_custom_call.1} parent=1 // pred_check_branch
      %155 = sbr.rel (0) target = $region97
    $region96: #{tpu_custom_call.1} parent=1 // pred_region
      %156 = dma.done [#allocation14], 1152
    $region97: #{tpu_custom_call.1} parent=1 // pred_fallthru
      _
    // Predicated region
    $region98: #{tpu_custom_call.1} parent=1 // pred_check
      _
    $region99: #{tpu_custom_call.1} parent=1 // pred_check_branch
      %158 = sbr.rel (0) target = $region101
    $region100: #{tpu_custom_call.1} parent=1 // pred_region
      %159 = dma.done [#allocation14], 16
    $region101: #{tpu_custom_call.1} parent=1 // pred_fallthru
      _
    // Predicated region
    $region102: #{tpu_custom_call.1} parent=1 // pred_check
      _
    $region103: #{tpu_custom_call.1} parent=1 // pred_check_branch
      %161 = sbr.rel (0) target = $region105
    $region104: #{tpu_custom_call.1} parent=1 // pred_region
      %162 = dma.done [#allocation17], 16
    $region105: #{tpu_custom_call.1} parent=1 // pred_fallthru
      _
    // Predicated region
    $region106: #{tpu_custom_call.1} parent=1 // pred_check
      _
    $region107: #{tpu_custom_call.1} parent=1 // pred_check_branch
      %164 = sbr.rel (0) target = $region109
    $region108: #{tpu_custom_call.1} parent=1 // pred_region
      %165 = dma.done [#allocation17], 1152
    $region109: #{tpu_custom_call.1} parent=1 // pred_fallthru
      _
    // Predicated region
    $region110: #{tpu_custom_call.1} parent=1 // pred_check
      _
    $region111: #{tpu_custom_call.1} parent=1 // pred_check_branch
      %167 = sbr.rel (0) target = $region113
    $region112: #{tpu_custom_call.1} parent=1 // pred_region
      %168 = dma.done [#allocation20], 1728
    $region113: #{tpu_custom_call.1} parent=1 // pred_fallthru
      _
    %v170 = vld [vmem:[#allocation7] sm:$0xff]
    %v171 = vld [vmem:[#allocation7 + $0x8] sm:$0xff]
    %v172 = vld [vmem:[#allocation7 + $0x10] sm:$0xff]
    %v173 = vld [vmem:[#allocation7 + $0x18] sm:$0xff]
    %v174 = vld [vmem:[#allocation7 + $0x20] sm:$0xff]
    %v175 = vld [vmem:[#allocation7 + $0x28] sm:$0xff]
    %v176 = vld [vmem:[#allocation7 + $0x30] sm:$0xff]
    %v177 = vld [vmem:[#allocation7 + $0x38] sm:$0xff]
    %v178 = vld [vmem:[#allocation7 + $0x40] sm:$0xff]
    %v179 = vld [vmem:[#allocation7 + $0x48] sm:$0xff]
    %v180 = vld [vmem:[#allocation7 + $0x50] sm:$0xff]
    %v181 = vld [vmem:[#allocation7 + $0x58] sm:$0xff]
    %v182 = vld [vmem:[#allocation7 + $0x60] sm:$0xff]
    %v183 = vld [vmem:[#allocation7 + $0x68] sm:$0xff]
    %v184 = vld [vmem:[#allocation7 + $0x70] sm:$0xff]
    %v185 = vld [vmem:[#allocation7 + $0x78] sm:$0xff]
    %v186 = vmax.f32 %v170, 0.0
    %v187 = vmax.f32 %v171, 0.0
    %v188 = vmax.f32 %v172, 0.0
    %v189 = vmax.f32 %v173, 0.0
    %v190 = vmax.f32 %v174, 0.0
    %v191 = vmax.f32 %v175, 0.0
    %v192 = vmax.f32 %v176, 0.0
    %v193 = vmax.f32 %v177, 0.0
    %v194 = vmax.f32 %v178, 0.0
    %v195 = vmax.f32 %v179, 0.0
    %v196 = vmax.f32 %v180, 0.0
    %v197 = vmax.f32 %v181, 0.0
    %v198 = vmax.f32 %v182, 0.0
    %v199 = vmax.f32 %v183, 0.0
    %v200 = vmax.f32 %v184, 0.0
    %v201 = vmax.f32 %v185, 0.0
    %s202 = scalar_lea.vmem [#allocation2], 16
    %vm203 = vcmask 64512
    %204 = vst.msk [vmem:[%s202 + $0x1] sm:$0xff] %vm203, %v186
    %205 = vst.msk [vmem:[%s202 + $0x11] sm:$0xff] %vm203, %v187
    %206 = vst.msk [vmem:[%s202 + $0x21] sm:$0xff] %vm203, %v188
    %207 = vst.msk [vmem:[%s202 + $0x31] sm:$0xff] %vm203, %v189
    %208 = vst.msk [vmem:[%s202 + $0x41] sm:$0xff] %vm203, %v190
    %209 = vst.msk [vmem:[%s202 + $0x51] sm:$0xff] %vm203, %v191
    %210 = vst.msk [vmem:[%s202 + $0x61] sm:$0xff] %vm203, %v192
    %211 = vst.msk [vmem:[%s202 + $0x71] sm:$0xff] %vm203, %v193
    %212 = vst.msk [vmem:[%s202 + $0xa1] sm:$0xff] %vm203, %v194
    %213 = vst.msk [vmem:[%s202 + $0xb1] sm:$0xff] %vm203, %v195
    %214 = vst.msk [vmem:[%s202 + $0xc1] sm:$0xff] %vm203, %v196
    %215 = vst.msk [vmem:[%s202 + $0xd1] sm:$0xff] %vm203, %v197
    %216 = vst.msk [vmem:[%s202 + $0xe1] sm:$0xff] %vm203, %v198
    %217 = vst.msk [vmem:[%s202 + $0xf1] sm:$0xff] %vm203, %v199
    %218 = vst.msk [vmem:[%s202 + $0x101] sm:$0xff] %vm203, %v200
    %219 = vst.msk [vmem:[%s202 + $0x111] sm:$0xff] %vm203, %v201
    %220 = vst.msk [vmem:[#allocation2] sm:$0xff] %vm203, 0.0
    %vm221 = vcmask 58368
    %222 = vst.msk [vmem:[#allocation2 + $0x8] sm:$0x3] %vm221, 0.0
    %223 = vst.msk [vmem:[#allocation2 + $0xa0] sm:$0xff] %vm203, 0.0
    %224 = vst.msk [vmem:[#allocation2 + $0xa8] sm:$0x3] %vm221, 0.0
    %s225 = scalar_lea.vmem [#allocation2], 144
    %226 = vst.msk [vmem:[%s225] sm:$0xff] %vm203, 0.0
    %227 = vst.msk [vmem:[%s225 + $0x8] sm:$0x3] %vm221, 0.0
    %228 = vst.msk [vmem:[%s225 + $0xa0] sm:$0xff] %vm203, 0.0
    %229 = vst.msk [vmem:[%s225 + $0xa8] sm:$0x3] %vm221, 0.0
    %vm230 = vcmask 57344
    %231 = vst.msk [vmem:[%s202] sm:$0x1] %vm230, 0.0
    %232 = vst.msk [vmem:[%s202 + $0x10] sm:$0x1] %vm230, 0.0
    %233 = vst.msk [vmem:[%s202 + $0x20] sm:$0x1] %vm230, 0.0
    %234 = vst.msk [vmem:[%s202 + $0x30] sm:$0x1] %vm230, 0.0
    %235 = vst.msk [vmem:[%s202 + $0x40] sm:$0x1] %vm230, 0.0
    %236 = vst.msk [vmem:[%s202 + $0x50] sm:$0x1] %vm230, 0.0
    %237 = vst.msk [vmem:[%s202 + $0x60] sm:$0x1] %vm230, 0.0
    %238 = vst.msk [vmem:[%s202 + $0x70] sm:$0x1] %vm230, 0.0
    %239 = vst.msk [vmem:[%s202 + $0xa0] sm:$0x1] %vm230, 0.0
    %240 = vst.msk [vmem:[%s202 + $0xb0] sm:$0x1] %vm230, 0.0
    %241 = vst.msk [vmem:[%s202 + $0xc0] sm:$0x1] %vm230, 0.0
    %242 = vst.msk [vmem:[%s202 + $0xd0] sm:$0x1] %vm230, 0.0
    %243 = vst.msk [vmem:[%s202 + $0xe0] sm:$0x1] %vm230, 0.0
    %244 = vst.msk [vmem:[%s202 + $0xf0] sm:$0x1] %vm230, 0.0
    %245 = vst.msk [vmem:[%s202 + $0x100] sm:$0x1] %vm230, 0.0
    %246 = vst.msk [vmem:[%s202 + $0x110] sm:$0x1] %vm230, 0.0
    %247 = vst.msk [vmem:[%s202 + $0x9] sm:$0x1] %vm230, 0.0
    %248 = vst.msk [vmem:[%s202 + $0x19] sm:$0x1] %vm230, 0.0
    %249 = vst.msk [vmem:[%s202 + $0x29] sm:$0x1] %vm230, 0.0
    %250 = vst.msk [vmem:[%s202 + $0x39] sm:$0x1] %vm230, 0.0
    %251 = vst.msk [vmem:[%s202 + $0x49] sm:$0x1] %vm230, 0.0
    %252 = vst.msk [vmem:[%s202 + $0x59] sm:$0x1] %vm230, 0.0
    %253 = vst.msk [vmem:[%s202 + $0x69] sm:$0x1] %vm230, 0.0
    %254 = vst.msk [vmem:[%s202 + $0x79] sm:$0x1] %vm230, 0.0
    %255 = vst.msk [vmem:[%s202 + $0xa9] sm:$0x1] %vm230, 0.0
    %256 = vst.msk [vmem:[%s202 + $0xb9] sm:$0x1] %vm230, 0.0
    %257 = vst.msk [vmem:[%s202 + $0xc9] sm:$0x1] %vm230, 0.0
    %258 = vst.msk [vmem:[%s202 + $0xd9] sm:$0x1] %vm230, 0.0
    %259 = vst.msk [vmem:[%s202 + $0xe9] sm:$0x1] %vm230, 0.0
    %260 = vst.msk [vmem:[%s202 + $0xf9] sm:$0x1] %vm230, 0.0
    %261 = vst.msk [vmem:[%s202 + $0x109] sm:$0x1] %vm230, 0.0
    %262 = vst.msk [vmem:[%s202 + $0x119] sm:$0x1] %vm230, 0.0
    %v263 = vld [vmem:[#allocation2] sm:$0xff]
    %v264 = vld [vmem:[#allocation2 + $0x10] sm:$0xff]
    %v265 = vld [vmem:[#allocation2 + $0x20] sm:$0xff]
    %v266 = vld [vmem:[#allocation2 + $0x30] sm:$0xff]
    %v267 = vld [vmem:[#allocation2 + $0x40] sm:$0xff]
    %v268 = vld [vmem:[#allocation2 + $0x50] sm:$0xff]
    %v269 = vld [vmem:[#allocation2 + $0x60] sm:$0xff]
    %v270 = vld [vmem:[#allocation2 + $0x70] sm:$0xff]
    %v271 = vld [vmem:[#allocation2 + $0x80] sm:$0xff]
    %v272 = vld [vmem:[#allocation2 + $0x90] sm:$0xff]
    %v273 = vld [vmem:[#allocation2 + $0xa0] sm:$0xff]
    %v274 = vld [vmem:[#allocation2 + $0xb0] sm:$0xff]
    %v275 = vld [vmem:[#allocation2 + $0xc0] sm:$0xff]
    %v276 = vld [vmem:[#allocation2 + $0xd0] sm:$0xff]
    %v277 = vld [vmem:[#allocation2 + $0xe0] sm:$0xff]
    %v278 = vld [vmem:[#allocation2 + $0xf0] sm:$0xff]
    %v279 = vld [vmem:[#allocation2 + $0x100] sm:$0xff]
    %v280 = vld [vmem:[#allocation2 + $0x110] sm:$0xff]
    %v281 = vld [vmem:[#allocation2 + $0x120] sm:$0xff]
    %v282 = vld [vmem:[#allocation2 + $0x130] sm:$0xff]
    %v283 = vpack.c.bf16 %v264, %v263
    %v284 = vpack.c.bf16 %v266, %v265
    %v285 = vpack.c.bf16 %v268, %v267
    %v286 = vpack.c.bf16 %v270, %v269
    %v287 = vpack.c.bf16 %v274, %v273
    %v288 = vpack.c.bf16 %v276, %v275
    %v289 = vpack.c.bf16 %v278, %v277
    %v290 = vpack.c.bf16 %v280, %v279
    %v291 = vld [vmem:[#allocation10] sm:$0xf]
    %v292 = vpack.c.bf16 %v265, %v264
    %v293 = vpack.c.bf16 %v267, %v266
    %v294 = vpack.c.bf16 %v269, %v268
    %v295 = vpack.c.bf16 %v271, %v270
    %v296 = vpack.c.bf16 %v275, %v274
    %v297 = vpack.c.bf16 %v277, %v276
    %v298 = vpack.c.bf16 %v279, %v278
    %v299 = vpack.c.bf16 %v281, %v280
    %s300 = scalar_lea.vmem [#allocation10], 12
    %v301 = vld [vmem:[%s300] sm:$0xf]
    %v303 = vsel %vm203, %v292, 0
    %v306 = vsel %vm203, %v293, 0
    %v309 = vsel %vm203, %v294, 0
    %v312 = vsel %vm203, %v295, 0
    %v315 = vsel %vm203, %v296, 0
    %v318 = vsel %vm203, %v297, 0
    %v321 = vsel %vm203, %v298, 0
    %v324 = vsel %vm203, %v299, 0
    %vm326 = vcmask 1043456
    %v328 = vsel %vm326, %v301, 0
    %330 = vmatprep.subr.bf16.mxu0 0
    %331 = vmatpush1.bf16.msra.mxu0 %v328
    %332 = vmatprep.subr.bf16.mxu0 0
    %333 = vmatpush1.bf16.msra.mxu0 0
    %334 = vmatprep.subr.bf16.mxu0 0
    %335 = vmatpush1.bf16.msra.mxu0 0
    %336 = vmatprep.subr.bf16.mxu0 0
    %337 = vmatpush1.bf16.msra.mxu0 0
    %338 = vmatprep.subr.bf16.mxu0 0
    %339 = vmatpush1.bf16.msra.mxu0 0
    %340 = vmatprep.subr.bf16.mxu0 0
    %341 = vmatpush1.bf16.msra.mxu0 0
    %342 = vmatprep.subr.bf16.mxu0 0
    %343 = vmatpush1.bf16.msra.mxu0 0
    %344 = vmatprep.subr.bf16.mxu0 0
    %345 = vmatpush1.bf16.msra.mxu0 0
    %346 = vmatprep.subr.bf16.mxu0 0
    %347 = vmatpush1.bf16.msra.mxu0 0
    %348 = vmatprep.subr.bf16.mxu0 0
    %349 = vmatpush1.bf16.msra.mxu0 0
    %350 = vmatprep.subr.bf16.mxu0 0
    %351 = vmatpush1.bf16.msra.mxu0 0
    %352 = vmatprep.subr.bf16.mxu0 0
    %353 = vmatpush1.bf16.msra.mxu0 0
    %354 = vmatprep.subr.bf16.mxu0 0
    %355 = vmatpush1.bf16.msra.mxu0 0
    %356 = vmatprep.subr.bf16.mxu0 0
    %357 = vmatpush1.bf16.msra.mxu0 0
    %358 = vmatprep.subr.bf16.mxu0 0
    %359 = vmatpush1.bf16.msra.mxu0 0
    %360 = vmatprep.subr.bf16.mxu0 0
    %361 = vmatpush1.bf16.msra.mxu0 0
    %362 = vmatprep.mubr.bf16.mxu0 0
    %363 = vmatmul.mubr.bf16.gmra.mrb[0].mxu0 %v303
    %v364 = vpop.f32.mrb[0].mxu0
    %v365 = vadd.f32 0.0, %v364
    %v366 = vpop.f32.mrb[0].mxu0
    %v367 = vpop.f32.mrb[0].mxu0
    %v368 = vadd.f32 0.0, %v367
    %v369 = vpop.f32.mrb[0].mxu0
    %370 = vmatprep.mubr.bf16.mxu0 0
    %371 = vmatmul.mubr.bf16.gmra.mrb[0].mxu0 %v306
    %v372 = vpop.f32.mrb[0].mxu0
    %v373 = vadd.f32 0.0, %v372
    %v374 = vpop.f32.mrb[0].mxu0
    %v375 = vpop.f32.mrb[0].mxu0
    %v376 = vadd.f32 0.0, %v375
    %v377 = vpop.f32.mrb[0].mxu0
    %378 = vmatprep.mubr.bf16.mxu0 0
    %379 = vmatmul.mubr.bf16.gmra.mrb[0].mxu0 %v309
    %v380 = vpop.f32.mrb[0].mxu0
    %v381 = vadd.f32 0.0, %v380
    %v382 = vpop.f32.mrb[0].mxu0
    %v383 = vpop.f32.mrb[0].mxu0
    %v384 = vadd.f32 0.0, %v383
    %v385 = vpop.f32.mrb[0].mxu0
    %386 = vmatprep.mubr.bf16.mxu0 0
    %387 = vmatmul.mubr.bf16.gmra.mrb[0].mxu0 %v312
    %v388 = vpop.f32.mrb[0].mxu0
    %v389 = vadd.f32 0.0, %v388
    %v390 = vpop.f32.mrb[0].mxu0
    %v391 = vpop.f32.mrb[0].mxu0
    %v392 = vadd.f32 0.0, %v391
    %v393 = vpop.f32.mrb[0].mxu0
    %394 = vmatprep.mubr.bf16.mxu0 0
    %395 = vmatmul.mubr.bf16.gmra.mrb[0].mxu0 %v315
    %v396 = vpop.f32.mrb[0].mxu0
    %v397 = vadd.f32 0.0, %v396
    %v398 = vpop.f32.mrb[0].mxu0
    %v399 = vpop.f32.mrb[0].mxu0
    %v400 = vadd.f32 0.0, %v399
    %v401 = vpop.f32.mrb[0].mxu0
    %402 = vmatprep.mubr.bf16.mxu0 0
    %403 = vmatmul.mubr.bf16.gmra.mrb[0].mxu0 %v318
    %v404 = vpop.f32.mrb[0].mxu0
    %v405 = vadd.f32 0.0, %v404
    %v406 = vpop.f32.mrb[0].mxu0
    %v407 = vpop.f32.mrb[0].mxu0
    %v408 = vadd.f32 0.0, %v407
    %v409 = vpop.f32.mrb[0].mxu0
    %410 = vmatprep.mubr.bf16.mxu0 0
    %411 = vmatmul.mubr.bf16.gmra.mrb[0].mxu0 %v321
    %v412 = vpop.f32.mrb[0].mxu0
    %v413 = vadd.f32 0.0, %v412
    %v414 = vpop.f32.mrb[0].mxu0
    %v415 = vpop.f32.mrb[0].mxu0
    %v416 = vadd.f32 0.0, %v415
    %v417 = vpop.f32.mrb[0].mxu0
    %418 = vmatprep.mubr.bf16.mxu0 0
    %419 = vmatmul.mubr.bf16.gmra.mrb[0].mxu0 %v324
    %v420 = vpop.f32.mrb[0].mxu0
    %v421 = vadd.f32 0.0, %v420
    %v422 = vpop.f32.mrb[0].mxu0
    %v423 = vpop.f32.mrb[0].mxu0
    %v424 = vadd.f32 0.0, %v423
    %v425 = vpop.f32.mrb[0].mxu0
    %426 = vdwg.mxu0
    %v428 = vsel %vm203, %v283, 0
    %v431 = vsel %vm203, %v284, 0
    %v434 = vsel %vm203, %v285, 0
    %v437 = vsel %vm203, %v286, 0
    %v440 = vsel %vm203, %v287, 0
    %v443 = vsel %vm203, %v288, 0
    %v446 = vsel %vm203, %v289, 0
    %v449 = vsel %vm203, %v290, 0
    %v452 = vsel %vm326, %v291, 0
    %454 = vmatprep.subr.bf16.mxu0 0
    %455 = vmatpush1.bf16.msra.mxu0 %v452
    %456 = vmatprep.subr.bf16.mxu0 0
    %457 = vmatpush1.bf16.msra.mxu0 0
    %458 = vmatprep.subr.bf16.mxu0 0
    %459 = vmatpush1.bf16.msra.mxu0 0
    %460 = vmatprep.subr.bf16.mxu0 0
    %461 = vmatpush1.bf16.msra.mxu0 0
    %462 = vmatprep.subr.bf16.mxu0 0
    %463 = vmatpush1.bf16.msra.mxu0 0
    %464 = vmatprep.subr.bf16.mxu0 0
    %465 = vmatpush1.bf16.msra.mxu0 0
    %466 = vmatprep.subr.bf16.mxu0 0
    %467 = vmatpush1.bf16.msra.mxu0 0
    %468 = vmatprep.subr.bf16.mxu0 0
    %469 = vmatpush1.bf16.msra.mxu0 0
    %470 = vmatprep.subr.bf16.mxu0 0
    %471 = vmatpush1.bf16.msra.mxu0 0
    %472 = vmatprep.subr.bf16.mxu0 0
    %473 = vmatpush1.bf16.msra.mxu0 0
    %474 = vmatprep.subr.bf16.mxu0 0
    %475 = vmatpush1.bf16.msra.mxu0 0
    %476 = vmatprep.subr.bf16.mxu0 0
    %477 = vmatpush1.bf16.msra.mxu0 0
    %478 = vmatprep.subr.bf16.mxu0 0
    %479 = vmatpush1.bf16.msra.mxu0 0
    %480 = vmatprep.subr.bf16.mxu0 0
    %481 = vmatpush1.bf16.msra.mxu0 0
    %482 = vmatprep.subr.bf16.mxu0 0
    %483 = vmatpush1.bf16.msra.mxu0 0
    %484 = vmatprep.subr.bf16.mxu0 0
    %485 = vmatpush1.bf16.msra.mxu0 0
    %486 = vmatprep.mubr.bf16.mxu0 0
    %487 = vmatmul.mubr.bf16.gmra.mrb[0].mxu0 %v428
    %v488 = vpop.f32.mrb[0].mxu0
    %v489 = vadd.f32 %v365, %v488
    %v490 = vpop.f32.mrb[0].mxu0
    %v491 = vpop.f32.mrb[0].mxu0
    %v492 = vadd.f32 %v368, %v491
    %v493 = vpop.f32.mrb[0].mxu0
    %494 = vmatprep.mubr.bf16.mxu0 0
    %495 = vmatmul.mubr.bf16.gmra.mrb[0].mxu0 %v431
    %v496 = vpop.f32.mrb[0].mxu0
    %v497 = vadd.f32 %v373, %v496
    %v498 = vpop.f32.mrb[0].mxu0
    %v499 = vpop.f32.mrb[0].mxu0
    %v500 = vadd.f32 %v376, %v499
    %v501 = vpop.f32.mrb[0].mxu0
    %502 = vmatprep.mubr.bf16.mxu0 0
    %503 = vmatmul.mubr.bf16.gmra.mrb[0].mxu0 %v434
    %v504 = vpop.f32.mrb[0].mxu0
    %v505 = vadd.f32 %v381, %v504
    %v506 = vpop.f32.mrb[0].mxu0
    %v507 = vpop.f32.mrb[0].mxu0
    %v508 = vadd.f32 %v384, %v507
    %v509 = vpop.f32.mrb[0].mxu0
    %510 = vmatprep.mubr.bf16.mxu0 0
    %511 = vmatmul.mubr.bf16.gmra.mrb[0].mxu0 %v437
    %v512 = vpop.f32.mrb[0].mxu0
    %v513 = vadd.f32 %v389, %v512
    %v514 = vpop.f32.mrb[0].mxu0
    %v515 = vpop.f32.mrb[0].mxu0
    %v516 = vadd.f32 %v392, %v515
    %v517 = vpop.f32.mrb[0].mxu0
    %518 = vmatprep.mubr.bf16.mxu0 0
    %519 = vmatmul.mubr.bf16.gmra.mrb[0].mxu0 %v440
    %v520 = vpop.f32.mrb[0].mxu0
    %v521 = vadd.f32 %v397, %v520
    %v522 = vpop.f32.mrb[0].mxu0
    %v523 = vpop.f32.mrb[0].mxu0
    %v524 = vadd.f32 %v400, %v523
    %v525 = vpop.f32.mrb[0].mxu0
    %526 = vmatprep.mubr.bf16.mxu0 0
    %527 = vmatmul.mubr.bf16.gmra.mrb[0].mxu0 %v443
    %v528 = vpop.f32.mrb[0].mxu0
    %v529 = vadd.f32 %v405, %v528
    %v530 = vpop.f32.mrb[0].mxu0
    %v531 = vpop.f32.mrb[0].mxu0
    %v532 = vadd.f32 %v408, %v531
    %v533 = vpop.f32.mrb[0].mxu0
    %534 = vmatprep.mubr.bf16.mxu0 0
    %535 = vmatmul.mubr.bf16.gmra.mrb[0].mxu0 %v446
    %v536 = vpop.f32.mrb[0].mxu0
    %v537 = vadd.f32 %v413, %v536
    %v538 = vpop.f32.mrb[0].mxu0
    %v539 = vpop.f32.mrb[0].mxu0
    %v540 = vadd.f32 %v416, %v539
    %v541 = vpop.f32.mrb[0].mxu0
    %542 = vmatprep.mubr.bf16.mxu0 0
    %543 = vmatmul.mubr.bf16.gmra.mrb[0].mxu0 %v449
    %v544 = vpop.f32.mrb[0].mxu0
    %v545 = vadd.f32 %v421, %v544
    %v546 = vpop.f32.mrb[0].mxu0
    %v547 = vpop.f32.mrb[0].mxu0
    %v548 = vadd.f32 %v424, %v547
    %v549 = vpop.f32.mrb[0].mxu0
    %550 = vdwg.mxu0
    %v551 = vpack.c.bf16 %v272, %v271
    %v552 = vpack.c.bf16 %v282, %v281
    %s553 = scalar_lea.vmem [#allocation10], 24
    %v554 = vld [vmem:[%s553] sm:$0xf]
    %v556 = vsel %vm203, %v551, 0
    %v559 = vsel %vm203, %v552, 0
    %v562 = vsel %vm326, %v554, 0
    %564 = vmatprep.subr.bf16.mxu0 0
    %565 = vmatpush1.bf16.msra.mxu0 %v562
    %566 = vmatprep.subr.bf16.mxu0 0
    %567 = vmatpush1.bf16.msra.mxu0 0
    %568 = vmatprep.subr.bf16.mxu0 0
    %569 = vmatpush1.bf16.msra.mxu0 0
    %570 = vmatprep.subr.bf16.mxu0 0
    %571 = vmatpush1.bf16.msra.mxu0 0
    %572 = vmatprep.subr.bf16.mxu0 0
    %573 = vmatpush1.bf16.msra.mxu0 0
    %574 = vmatprep.subr.bf16.mxu0 0
    %575 = vmatpush1.bf16.msra.mxu0 0
    %576 = vmatprep.subr.bf16.mxu0 0
    %577 = vmatpush1.bf16.msra.mxu0 0
    %578 = vmatprep.subr.bf16.mxu0 0
    %579 = vmatpush1.bf16.msra.mxu0 0
    %580 = vmatprep.subr.bf16.mxu0 0
    %581 = vmatpush1.bf16.msra.mxu0 0
    %582 = vmatprep.subr.bf16.mxu0 0
    %583 = vmatpush1.bf16.msra.mxu0 0
    %584 = vmatprep.subr.bf16.mxu0 0
    %585 = vmatpush1.bf16.msra.mxu0 0
    %586 = vmatprep.subr.bf16.mxu0 0
    %587 = vmatpush1.bf16.msra.mxu0 0
    %588 = vmatprep.subr.bf16.mxu0 0
    %589 = vmatpush1.bf16.msra.mxu0 0
    %590 = vmatprep.subr.bf16.mxu0 0
    %591 = vmatpush1.bf16.msra.mxu0 0
    %592 = vmatprep.subr.bf16.mxu0 0
    %593 = vmatpush1.bf16.msra.mxu0 0
    %594 = vmatprep.subr.bf16.mxu0 0
    %595 = vmatpush1.bf16.msra.mxu0 0
    %596 = vmatprep.mubr.bf16.mxu0 0
    %597 = vmatmul.mubr.bf16.gmra.mrb[0].mxu0 %v431
    %v598 = vpop.f32.mrb[0].mxu0
    %v599 = vadd.f32 0.0, %v598
    %v600 = vpop.f32.mrb[0].mxu0
    %v601 = vpop.f32.mrb[0].mxu0
    %v602 = vadd.f32 0.0, %v601
    %v603 = vpop.f32.mrb[0].mxu0
    %604 = vmatprep.mubr.bf16.mxu0 0
    %605 = vmatmul.mubr.bf16.gmra.mrb[0].mxu0 %v434
    %v606 = vpop.f32.mrb[0].mxu0
    %v607 = vadd.f32 0.0, %v606
    %v608 = vpop.f32.mrb[0].mxu0
    %v609 = vpop.f32.mrb[0].mxu0
    %v610 = vadd.f32 0.0, %v609
    %v611 = vpop.f32.mrb[0].mxu0
    %612 = vmatprep.mubr.bf16.mxu0 0
    %613 = vmatmul.mubr.bf16.gmra.mrb[0].mxu0 %v437
    %v614 = vpop.f32.mrb[0].mxu0
    %v615 = vadd.f32 0.0, %v614
    %v616 = vpop.f32.mrb[0].mxu0
    %v617 = vpop.f32.mrb[0].mxu0
    %v618 = vadd.f32 0.0, %v617
    %v619 = vpop.f32.mrb[0].mxu0
    %620 = vmatprep.mubr.bf16.mxu0 0
    %621 = vmatmul.mubr.bf16.gmra.mrb[0].mxu0 %v556
    %v622 = vpop.f32.mrb[0].mxu0
    %v623 = vadd.f32 0.0, %v622
    %v624 = vpop.f32.mrb[0].mxu0
    %v625 = vpop.f32.mrb[0].mxu0
    %v626 = vadd.f32 0.0, %v625
    %v627 = vpop.f32.mrb[0].mxu0
    %628 = vmatprep.mubr.bf16.mxu0 0
    %629 = vmatmul.mubr.bf16.gmra.mrb[0].mxu0 %v443
    %v630 = vpop.f32.mrb[0].mxu0
    %v631 = vadd.f32 0.0, %v630
    %v632 = vpop.f32.mrb[0].mxu0
    %v633 = vpop.f32.mrb[0].mxu0
    %v634 = vadd.f32 0.0, %v633
    %v635 = vpop.f32.mrb[0].mxu0
    %636 = vmatprep.mubr.bf16.mxu0 0
    %637 = vmatmul.mubr.bf16.gmra.mrb[0].mxu0 %v446
    %v638 = vpop.f32.mrb[0].mxu0
    %v639 = vadd.f32 0.0, %v638
    %v640 = vpop.f32.mrb[0].mxu0
    %v641 = vpop.f32.mrb[0].mxu0
    %v642 = vadd.f32 0.0, %v641
    %v643 = vpop.f32.mrb[0].mxu0
    %644 = vmatprep.mubr.bf16.mxu0 0
    %645 = vmatmul.mubr.bf16.gmra.mrb[0].mxu0 %v449
    %v646 = vpop.f32.mrb[0].mxu0
    %v647 = vadd.f32 0.0, %v646
    %v648 = vpop.f32.mrb[0].mxu0
    %v649 = vpop.f32.mrb[0].mxu0
    %v650 = vadd.f32 0.0, %v649
    %v651 = vpop.f32.mrb[0].mxu0
    %652 = vmatprep.mubr.bf16.mxu0 0
    %653 = vmatmul.mubr.bf16.gmra.mrb[0].mxu0 %v559
    %v654 = vpop.f32.mrb[0].mxu0
    %v655 = vadd.f32 0.0, %v654
    %v656 = vpop.f32.mrb[0].mxu0
    %v657 = vpop.f32.mrb[0].mxu0
    %v658 = vadd.f32 0.0, %v657
    %v659 = vpop.f32.mrb[0].mxu0
    %660 = vdwg.mxu0
    %v661 = vadd.f32 %v489, %v599
    %v662 = vadd.f32 %v492, %v602
    %v663 = vadd.f32 %v497, %v607
    %v664 = vadd.f32 %v500, %v610
    %v665 = vadd.f32 %v505, %v615
    %v666 = vadd.f32 %v508, %v618
    %v667 = vadd.f32 %v513, %v623
    %v668 = vadd.f32 %v516, %v626
    %v669 = vadd.f32 %v521, %v631
    %v670 = vadd.f32 %v524, %v634
    %v671 = vadd.f32 %v529, %v639
    %v672 = vadd.f32 %v532, %v642
    %v673 = vadd.f32 %v537, %v647
    %v674 = vadd.f32 %v540, %v650
    %v675 = vadd.f32 %v545, %v655
    %v676 = vadd.f32 %v548, %v658
    %v677 = vld [vmem:[#allocation2 + $0x1] sm:$0xff]
    %v678 = vld [vmem:[#allocation2 + $0x11] sm:$0xff]
    %v679 = vld [vmem:[#allocation2 + $0x21] sm:$0xff]
    %v680 = vld [vmem:[#allocation2 + $0x31] sm:$0xff]
    %v681 = vld [vmem:[#allocation2 + $0x41] sm:$0xff]
    %v682 = vld [vmem:[#allocation2 + $0x51] sm:$0xff]
    %v683 = vld [vmem:[#allocation2 + $0x61] sm:$0xff]
    %v684 = vld [vmem:[#allocation2 + $0x71] sm:$0xff]
    %v685 = vld [vmem:[#allocation2 + $0x81] sm:$0xff]
    %v686 = vld [vmem:[#allocation2 + $0x91] sm:$0xff]
    %v687 = vld [vmem:[#allocation2 + $0xa1] sm:$0xff]
    %v688 = vld [vmem:[#allocation2 + $0xb1] sm:$0xff]
    %v689 = vld [vmem:[#allocation2 + $0xc1] sm:$0xff]
    %v690 = vld [vmem:[#allocation2 + $0xd1] sm:$0xff]
    %v691 = vld [vmem:[#allocation2 + $0xe1] sm:$0xff]
    %v692 = vld [vmem:[#allocation2 + $0xf1] sm:$0xff]
    %v693 = vld [vmem:[#allocation2 + $0x101] sm:$0xff]
    %v694 = vld [vmem:[#allocation2 + $0x111] sm:$0xff]
    %v695 = vld [vmem:[#allocation2 + $0x121] sm:$0xff]
    %v696 = vld [vmem:[#allocation2 + $0x131] sm:$0xff]
    %v697 = vpack.c.bf16 %v678, %v677
    %v698 = vpack.c.bf16 %v680, %v679
    %v699 = vpack.c.bf16 %v682, %v681
    %v700 = vpack.c.bf16 %v684, %v683
    %v701 = vpack.c.bf16 %v688, %v687
    %v702 = vpack.c.bf16 %v690, %v689
    %v703 = vpack.c.bf16 %v692, %v691
    %v704 = vpack.c.bf16 %v694, %v693
    %s705 = scalar_lea.vmem [#allocation10], 4
    %v706 = vld [vmem:[%s705] sm:$0xf]
    %v708 = vsel %vm203, %v697, 0
    %v711 = vsel %vm203, %v698, 0
    %v714 = vsel %vm203, %v699, 0
    %v717 = vsel %vm203, %v700, 0
    %v720 = vsel %vm203, %v701, 0
    %v723 = vsel %vm203, %v702, 0
    %v726 = vsel %vm203, %v703, 0
    %v729 = vsel %vm203, %v704, 0
    %v732 = vsel %vm326, %v706, 0
    %734 = vmatprep.subr.bf16.mxu0 0
    %735 = vmatpush1.bf16.msra.mxu0 %v732
    %736 = vmatprep.subr.bf16.mxu0 0
    %737 = vmatpush1.bf16.msra.mxu0 0
    %738 = vmatprep.subr.bf16.mxu0 0
    %739 = vmatpush1.bf16.msra.mxu0 0
    %740 = vmatprep.subr.bf16.mxu0 0
    %741 = vmatpush1.bf16.msra.mxu0 0
    %742 = vmatprep.subr.bf16.mxu0 0
    %743 = vmatpush1.bf16.msra.mxu0 0
    %744 = vmatprep.subr.bf16.mxu0 0
    %745 = vmatpush1.bf16.msra.mxu0 0
    %746 = vmatprep.subr.bf16.mxu0 0
    %747 = vmatpush1.bf16.msra.mxu0 0
    %748 = vmatprep.subr.bf16.mxu0 0
    %749 = vmatpush1.bf16.msra.mxu0 0
    %750 = vmatprep.subr.bf16.mxu0 0
    %751 = vmatpush1.bf16.msra.mxu0 0
    %752 = vmatprep.subr.bf16.mxu0 0
    %753 = vmatpush1.bf16.msra.mxu0 0
    %754 = vmatprep.subr.bf16.mxu0 0
    %755 = vmatpush1.bf16.msra.mxu0 0
    %756 = vmatprep.subr.bf16.mxu0 0
    %757 = vmatpush1.bf16.msra.mxu0 0
    %758 = vmatprep.subr.bf16.mxu0 0
    %759 = vmatpush1.bf16.msra.mxu0 0
    %760 = vmatprep.subr.bf16.mxu0 0
    %761 = vmatpush1.bf16.msra.mxu0 0
    %762 = vmatprep.subr.bf16.mxu0 0
    %763 = vmatpush1.bf16.msra.mxu0 0
    %764 = vmatprep.subr.bf16.mxu0 0
    %765 = vmatpush1.bf16.msra.mxu0 0
    %766 = vmatprep.mubr.bf16.mxu0 0
    %767 = vmatmul.mubr.bf16.gmra.mrb[0].mxu0 %v708
    %v768 = vpop.f32.mrb[0].mxu0
    %v769 = vadd.f32 0.0, %v768
    %v770 = vpop.f32.mrb[0].mxu0
    %v771 = vpop.f32.mrb[0].mxu0
    %v772 = vadd.f32 0.0, %v771
    %v773 = vpop.f32.mrb[0].mxu0
    %774 = vmatprep.mubr.bf16.mxu0 0
    %775 = vmatmul.mubr.bf16.gmra.mrb[0].mxu0 %v711
    %v776 = vpop.f32.mrb[0].mxu0
    %v777 = vadd.f32 0.0, %v776
    %v778 = vpop.f32.mrb[0].mxu0
    %v779 = vpop.f32.mrb[0].mxu0
    %v780 = vadd.f32 0.0, %v779
    %v781 = vpop.f32.mrb[0].mxu0
    %782 = vmatprep.mubr.bf16.mxu0 0
    %783 = vmatmul.mubr.bf16.gmra.mrb[0].mxu0 %v714
    %v784 = vpop.f32.mrb[0].mxu0
    %v785 = vadd.f32 0.0, %v784
    %v786 = vpop.f32.mrb[0].mxu0
    %v787 = vpop.f32.mrb[0].mxu0
    %v788 = vadd.f32 0.0, %v787
    %v789 = vpop.f32.mrb[0].mxu0
    %790 = vmatprep.mubr.bf16.mxu0 0
    %791 = vmatmul.mubr.bf16.gmra.mrb[0].mxu0 %v717
    %v792 = vpop.f32.mrb[0].mxu0
    %v793 = vadd.f32 0.0, %v792
    %v794 = vpop.f32.mrb[0].mxu0
    %v795 = vpop.f32.mrb[0].mxu0
    %v796 = vadd.f32 0.0, %v795
    %v797 = vpop.f32.mrb[0].mxu0
    %798 = vmatprep.mubr.bf16.mxu0 0
    %799 = vmatmul.mubr.bf16.gmra.mrb[0].mxu0 %v720
    %v800 = vpop.f32.mrb[0].mxu0
    %v801 = vadd.f32 0.0, %v800
    %v802 = vpop.f32.mrb[0].mxu0
    %v803 = vpop.f32.mrb[0].mxu0
    %v804 = vadd.f32 0.0, %v803
    %v805 = vpop.f32.mrb[0].mxu0
    %806 = vmatprep.mubr.bf16.mxu0 0
    %807 = vmatmul.mubr.bf16.gmra.mrb[0].mxu0 %v723
    %v808 = vpop.f32.mrb[0].mxu0
    %v809 = vadd.f32 0.0, %v808
    %v810 = vpop.f32.mrb[0].mxu0
    %v811 = vpop.f32.mrb[0].mxu0
    %v812 = vadd.f32 0.0, %v811
    %v813 = vpop.f32.mrb[0].mxu0
    %814 = vmatprep.mubr.bf16.mxu0 0
    %815 = vmatmul.mubr.bf16.gmra.mrb[0].mxu0 %v726
    %v816 = vpop.f32.mrb[0].mxu0
    %v817 = vadd.f32 0.0, %v816
    %v818 = vpop.f32.mrb[0].mxu0
    %v819 = vpop.f32.mrb[0].mxu0
    %v820 = vadd.f32 0.0, %v819
    %v821 = vpop.f32.mrb[0].mxu0
    %822 = vmatprep.mubr.bf16.mxu0 0
    %823 = vmatmul.mubr.bf16.gmra.mrb[0].mxu0 %v729
    %v824 = vpop.f32.mrb[0].mxu0
    %v825 = vadd.f32 0.0, %v824
    %v826 = vpop.f32.mrb[0].mxu0
    %v827 = vpop.f32.mrb[0].mxu0
    %v828 = vadd.f32 0.0, %v827
    %v829 = vpop.f32.mrb[0].mxu0
    %830 = vdwg.mxu0
    %v831 = vadd.f32 %v661, %v769
    %v832 = vadd.f32 %v662, %v772
    %v833 = vadd.f32 %v663, %v777
    %v834 = vadd.f32 %v664, %v780
    %v835 = vadd.f32 %v665, %v785
    %v836 = vadd.f32 %v666, %v788
    %v837 = vadd.f32 %v667, %v793
    %v838 = vadd.f32 %v668, %v796
    %v839 = vadd.f32 %v669, %v801
    %v840 = vadd.f32 %v670, %v804
    %v841 = vadd.f32 %v671, %v809
    %v842 = vadd.f32 %v672, %v812
    %v843 = vadd.f32 %v673, %v817
    %v844 = vadd.f32 %v674, %v820
    %v845 = vadd.f32 %v675, %v825
    %v846 = vadd.f32 %v676, %v828
    %v847 = vpack.c.bf16 %v679, %v678
    %v848 = vpack.c.bf16 %v681, %v680
    %v849 = vpack.c.bf16 %v683, %v682
    %v850 = vpack.c.bf16 %v685, %v684
    %v851 = vpack.c.bf16 %v689, %v688
    %v852 = vpack.c.bf16 %v691, %v690
    %v853 = vpack.c.bf16 %v693, %v692
    %v854 = vpack.c.bf16 %v695, %v694
    %s855 = scalar_lea.vmem [#allocation10], 16
    %v856 = vld [vmem:[%s855] sm:$0xf]
    %v858 = vsel %vm203, %v847, 0
    %v861 = vsel %vm203, %v848, 0
    %v864 = vsel %vm203, %v849, 0
    %v867 = vsel %vm203, %v850, 0
    %v870 = vsel %vm203, %v851, 0
    %v873 = vsel %vm203, %v852, 0
    %v876 = vsel %vm203, %v853, 0
    %v879 = vsel %vm203, %v854, 0
    %v882 = vsel %vm326, %v856, 0
    %884 = vmatprep.subr.bf16.mxu0 0
    %885 = vmatpush1.bf16.msra.mxu0 %v882
    %886 = vmatprep.subr.bf16.mxu0 0
    %887 = vmatpush1.bf16.msra.mxu0 0
    %888 = vmatprep.subr.bf16.mxu0 0
    %889 = vmatpush1.bf16.msra.mxu0 0
    %890 = vmatprep.subr.bf16.mxu0 0
    %891 = vmatpush1.bf16.msra.mxu0 0
    %892 = vmatprep.subr.bf16.mxu0 0
    %893 = vmatpush1.bf16.msra.mxu0 0
    %894 = vmatprep.subr.bf16.mxu0 0
    %895 = vmatpush1.bf16.msra.mxu0 0
    %896 = vmatprep.subr.bf16.mxu0 0
    %897 = vmatpush1.bf16.msra.mxu0 0
    %898 = vmatprep.subr.bf16.mxu0 0
    %899 = vmatpush1.bf16.msra.mxu0 0
    %900 = vmatprep.subr.bf16.mxu0 0
    %901 = vmatpush1.bf16.msra.mxu0 0
    %902 = vmatprep.subr.bf16.mxu0 0
    %903 = vmatpush1.bf16.msra.mxu0 0
    %904 = vmatprep.subr.bf16.mxu0 0
    %905 = vmatpush1.bf16.msra.mxu0 0
    %906 = vmatprep.subr.bf16.mxu0 0
    %907 = vmatpush1.bf16.msra.mxu0 0
    %908 = vmatprep.subr.bf16.mxu0 0
    %909 = vmatpush1.bf16.msra.mxu0 0
    %910 = vmatprep.subr.bf16.mxu0 0
    %911 = vmatpush1.bf16.msra.mxu0 0
    %912 = vmatprep.subr.bf16.mxu0 0
    %913 = vmatpush1.bf16.msra.mxu0 0
    %914 = vmatprep.subr.bf16.mxu0 0
    %915 = vmatpush1.bf16.msra.mxu0 0
    %916 = vmatprep.mubr.bf16.mxu0 0
    %917 = vmatmul.mubr.bf16.gmra.mrb[0].mxu0 %v858
    %v918 = vpop.f32.mrb[0].mxu0
    %v919 = vadd.f32 0.0, %v918
    %v920 = vpop.f32.mrb[0].mxu0
    %v921 = vpop.f32.mrb[0].mxu0
    %v922 = vadd.f32 0.0, %v921
    %v923 = vpop.f32.mrb[0].mxu0
    %924 = vmatprep.mubr.bf16.mxu0 0
    %925 = vmatmul.mubr.bf16.gmra.mrb[0].mxu0 %v861
    %v926 = vpop.f32.mrb[0].mxu0
    %v927 = vadd.f32 0.0, %v926
    %v928 = vpop.f32.mrb[0].mxu0
    %v929 = vpop.f32.mrb[0].mxu0
    %v930 = vadd.f32 0.0, %v929
    %v931 = vpop.f32.mrb[0].mxu0
    %932 = vmatprep.mubr.bf16.mxu0 0
    %933 = vmatmul.mubr.bf16.gmra.mrb[0].mxu0 %v864
    %v934 = vpop.f32.mrb[0].mxu0
    %v935 = vadd.f32 0.0, %v934
    %v936 = vpop.f32.mrb[0].mxu0
    %v937 = vpop.f32.mrb[0].mxu0
    %v938 = vadd.f32 0.0, %v937
    %v939 = vpop.f32.mrb[0].mxu0
    %940 = vmatprep.mubr.bf16.mxu0 0
    %941 = vmatmul.mubr.bf16.gmra.mrb[0].mxu0 %v867
    %v942 = vpop.f32.mrb[0].mxu0
    %v943 = vadd.f32 0.0, %v942
    %v944 = vpop.f32.mrb[0].mxu0
    %v945 = vpop.f32.mrb[0].mxu0
    %v946 = vadd.f32 0.0, %v945
    %v947 = vpop.f32.mrb[0].mxu0
    %948 = vmatprep.mubr.bf16.mxu0 0
    %949 = vmatmul.mubr.bf16.gmra.mrb[0].mxu0 %v870
    %v950 = vpop.f32.mrb[0].mxu0
    %v951 = vadd.f32 0.0, %v950
    %v952 = vpop.f32.mrb[0].mxu0
    %v953 = vpop.f32.mrb[0].mxu0
    %v954 = vadd.f32 0.0, %v953
    %v955 = vpop.f32.mrb[0].mxu0
    %956 = vmatprep.mubr.bf16.mxu0 0
    %957 = vmatmul.mubr.bf16.gmra.mrb[0].mxu0 %v873
    %v958 = vpop.f32.mrb[0].mxu0
    %v959 = vadd.f32 0.0, %v958
    %v960 = vpop.f32.mrb[0].mxu0
    %v961 = vpop.f32.mrb[0].mxu0
    %v962 = vadd.f32 0.0, %v961
    %v963 = vpop.f32.mrb[0].mxu0
    %964 = vmatprep.mubr.bf16.mxu0 0
    %965 = vmatmul.mubr.bf16.gmra.mrb[0].mxu0 %v876
    %v966 = vpop.f32.mrb[0].mxu0
    %v967 = vadd.f32 0.0, %v966
    %v968 = vpop.f32.mrb[0].mxu0
    %v969 = vpop.f32.mrb[0].mxu0
    %v970 = vadd.f32 0.0, %v969
    %v971 = vpop.f32.mrb[0].mxu0
    %972 = vmatprep.mubr.bf16.mxu0 0
    %973 = vmatmul.mubr.bf16.gmra.mrb[0].mxu0 %v879
    %v974 = vpop.f32.mrb[0].mxu0
    %v975 = vadd.f32 0.0, %v974
    %v976 = vpop.f32.mrb[0].mxu0
    %v977 = vpop.f32.mrb[0].mxu0
    %v978 = vadd.f32 0.0, %v977
    %v979 = vpop.f32.mrb[0].mxu0
    %980 = vdwg.mxu0
    %v981 = vadd.f32 %v831, %v919
    %v982 = vadd.f32 %v832, %v922
    %v983 = vadd.f32 %v833, %v927
    %v984 = vadd.f32 %v834, %v930
    %v985 = vadd.f32 %v835, %v935
    %v986 = vadd.f32 %v836, %v938
    %v987 = vadd.f32 %v837, %v943
    %v988 = vadd.f32 %v838, %v946
    %v989 = vadd.f32 %v839, %v951
    %v990 = vadd.f32 %v840, %v954
    %v991 = vadd.f32 %v841, %v959
    %v992 = vadd.f32 %v842, %v962
    %v993 = vadd.f32 %v843, %v967
    %v994 = vadd.f32 %v844, %v970
    %v995 = vadd.f32 %v845, %v975
    %v996 = vadd.f32 %v846, %v978
    %v997 = vpack.c.bf16 %v686, %v685
    %v998 = vpack.c.bf16 %v696, %v695
    %s999 = scalar_lea.vmem [#allocation10], 28
    %v1000 = vld [vmem:[%s999] sm:$0xf]
    %v1002 = vsel %vm203, %v997, 0
    %v1005 = vsel %vm203, %v998, 0
    %v1008 = vsel %vm326, %v1000, 0
    %1010 = vmatprep.subr.bf16.mxu0 0
    %1011 = vmatpush1.bf16.msra.mxu0 %v1008
    %1012 = vmatprep.subr.bf16.mxu0 0
    %1013 = vmatpush1.bf16.msra.mxu0 0
    %1014 = vmatprep.subr.bf16.mxu0 0
    %1015 = vmatpush1.bf16.msra.mxu0 0
    %1016 = vmatprep.subr.bf16.mxu0 0
    %1017 = vmatpush1.bf16.msra.mxu0 0
    %1018 = vmatprep.subr.bf16.mxu0 0
    %1019 = vmatpush1.bf16.msra.mxu0 0
    %1020 = vmatprep.subr.bf16.mxu0 0
    %1021 = vmatpush1.bf16.msra.mxu0 0
    %1022 = vmatprep.subr.bf16.mxu0 0
    %1023 = vmatpush1.bf16.msra.mxu0 0
    %1024 = vmatprep.subr.bf16.mxu0 0
    %1025 = vmatpush1.bf16.msra.mxu0 0
    %1026 = vmatprep.subr.bf16.mxu0 0
    %1027 = vmatpush1.bf16.msra.mxu0 0
    %1028 = vmatprep.subr.bf16.mxu0 0
    %1029 = vmatpush1.bf16.msra.mxu0 0
    %1030 = vmatprep.subr.bf16.mxu0 0
    %1031 = vmatpush1.bf16.msra.mxu0 0
    %1032 = vmatprep.subr.bf16.mxu0 0
    %1033 = vmatpush1.bf16.msra.mxu0 0
    %1034 = vmatprep.subr.bf16.mxu0 0
    %1035 = vmatpush1.bf16.msra.mxu0 0
    %1036 = vmatprep.subr.bf16.mxu0 0
    %1037 = vmatpush1.bf16.msra.mxu0 0
    %1038 = vmatprep.subr.bf16.mxu0 0
    %1039 = vmatpush1.bf16.msra.mxu0 0
    %1040 = vmatprep.subr.bf16.mxu0 0
    %1041 = vmatpush1.bf16.msra.mxu0 0
    %1042 = vmatprep.mubr.bf16.mxu0 0
    %1043 = vmatmul.mubr.bf16.gmra.mrb[0].mxu0 %v711
    %v1044 = vpop.f32.mrb[0].mxu0
    %v1045 = vadd.f32 0.0, %v1044
    %v1046 = vpop.f32.mrb[0].mxu0
    %v1047 = vpop.f32.mrb[0].mxu0
    %v1048 = vadd.f32 0.0, %v1047
    %v1049 = vpop.f32.mrb[0].mxu0
    %1050 = vmatprep.mubr.bf16.mxu0 0
    %1051 = vmatmul.mubr.bf16.gmra.mrb[0].mxu0 %v714
    %v1052 = vpop.f32.mrb[0].mxu0
    %v1053 = vadd.f32 0.0, %v1052
    %v1054 = vpop.f32.mrb[0].mxu0
    %v1055 = vpop.f32.mrb[0].mxu0
    %v1056 = vadd.f32 0.0, %v1055
    %v1057 = vpop.f32.mrb[0].mxu0
    %1058 = vmatprep.mubr.bf16.mxu0 0
    %1059 = vmatmul.mubr.bf16.gmra.mrb[0].mxu0 %v717
    %v1060 = vpop.f32.mrb[0].mxu0
    %v1061 = vadd.f32 0.0, %v1060
    %v1062 = vpop.f32.mrb[0].mxu0
    %v1063 = vpop.f32.mrb[0].mxu0
    %v1064 = vadd.f32 0.0, %v1063
    %v1065 = vpop.f32.mrb[0].mxu0
    %1066 = vmatprep.mubr.bf16.mxu0 0
    %1067 = vmatmul.mubr.bf16.gmra.mrb[0].mxu0 %v1002
    %v1068 = vpop.f32.mrb[0].mxu0
    %v1069 = vadd.f32 0.0, %v1068
    %v1070 = vpop.f32.mrb[0].mxu0
    %v1071 = vpop.f32.mrb[0].mxu0
    %v1072 = vadd.f32 0.0, %v1071
    %v1073 = vpop.f32.mrb[0].mxu0
    %1074 = vmatprep.mubr.bf16.mxu0 0
    %1075 = vmatmul.mubr.bf16.gmra.mrb[0].mxu0 %v723
    %v1076 = vpop.f32.mrb[0].mxu0
    %v1077 = vadd.f32 0.0, %v1076
    %v1078 = vpop.f32.mrb[0].mxu0
    %v1079 = vpop.f32.mrb[0].mxu0
    %v1080 = vadd.f32 0.0, %v1079
    %v1081 = vpop.f32.mrb[0].mxu0
    %1082 = vmatprep.mubr.bf16.mxu0 0
    %1083 = vmatmul.mubr.bf16.gmra.mrb[0].mxu0 %v726
    %v1084 = vpop.f32.mrb[0].mxu0
    %v1085 = vadd.f32 0.0, %v1084
    %v1086 = vpop.f32.mrb[0].mxu0
    %v1087 = vpop.f32.mrb[0].mxu0
    %v1088 = vadd.f32 0.0, %v1087
    %v1089 = vpop.f32.mrb[0].mxu0
    %1090 = vmatprep.mubr.bf16.mxu0 0
    %1091 = vmatmul.mubr.bf16.gmra.mrb[0].mxu0 %v729
    %v1092 = vpop.f32.mrb[0].mxu0
    %v1093 = vadd.f32 0.0, %v1092
    %v1094 = vpop.f32.mrb[0].mxu0
    %v1095 = vpop.f32.mrb[0].mxu0
    %v1096 = vadd.f32 0.0, %v1095
    %v1097 = vpop.f32.mrb[0].mxu0
    %1098 = vmatprep.mubr.bf16.mxu0 0
    %1099 = vmatmul.mubr.bf16.gmra.mrb[0].mxu0 %v1005
    %v1100 = vpop.f32.mrb[0].mxu0
    %v1101 = vadd.f32 0.0, %v1100
    %v1102 = vpop.f32.mrb[0].mxu0
    %v1103 = vpop.f32.mrb[0].mxu0
    %v1104 = vadd.f32 0.0, %v1103
    %v1105 = vpop.f32.mrb[0].mxu0
    %1106 = vdwg.mxu0
    %v1107 = vadd.f32 %v981, %v1045
    %v1108 = vadd.f32 %v982, %v1048
    %v1109 = vadd.f32 %v983, %v1053
    %v1110 = vadd.f32 %v984, %v1056
    %v1111 = vadd.f32 %v985, %v1061
    %v1112 = vadd.f32 %v986, %v1064
    %v1113 = vadd.f32 %v987, %v1069
    %v1114 = vadd.f32 %v988, %v1072
    %v1115 = vadd.f32 %v989, %v1077
    %v1116 = vadd.f32 %v990, %v1080
    %v1117 = vadd.f32 %v991, %v1085
    %v1118 = vadd.f32 %v992, %v1088
    %v1119 = vadd.f32 %v993, %v1093
    %v1120 = vadd.f32 %v994, %v1096
    %v1121 = vadd.f32 %v995, %v1101
    %v1122 = vadd.f32 %v996, %v1104
    %v1123 = vld [vmem:[#allocation2 + $0x2] sm:$0xff]
    %v1124 = vld [vmem:[#allocation2 + $0x12] sm:$0xff]
    %v1125 = vld [vmem:[#allocation2 + $0x22] sm:$0xff]
    %v1126 = vld [vmem:[#allocation2 + $0x32] sm:$0xff]
    %v1127 = vld [vmem:[#allocation2 + $0x42] sm:$0xff]
    %v1128 = vld [vmem:[#allocation2 + $0x52] sm:$0xff]
    %v1129 = vld [vmem:[#allocation2 + $0x62] sm:$0xff]
    %v1130 = vld [vmem:[#allocation2 + $0x72] sm:$0xff]
    %v1131 = vld [vmem:[#allocation2 + $0x82] sm:$0xff]
    %v1132 = vld [vmem:[#allocation2 + $0x92] sm:$0xff]
    %v1133 = vld [vmem:[#allocation2 + $0xa2] sm:$0xff]
    %v1134 = vld [vmem:[#allocation2 + $0xb2] sm:$0xff]
    %v1135 = vld [vmem:[#allocation2 + $0xc2] sm:$0xff]
    %v1136 = vld [vmem:[#allocation2 + $0xd2] sm:$0xff]
    %v1137 = vld [vmem:[#allocation2 + $0xe2] sm:$0xff]
    %v1138 = vld [vmem:[#allocation2 + $0xf2] sm:$0xff]
    %v1139 = vld [vmem:[#allocation2 + $0x102] sm:$0xff]
    %v1140 = vld [vmem:[#allocation2 + $0x112] sm:$0xff]
    %v1141 = vld [vmem:[#allocation2 + $0x122] sm:$0xff]
    %v1142 = vld [vmem:[#allocation2 + $0x132] sm:$0xff]
    %v1143 = vpack.c.bf16 %v1124, %v1123
    %v1144 = vpack.c.bf16 %v1126, %v1125
    %v1145 = vpack.c.bf16 %v1128, %v1127
    %v1146 = vpack.c.bf16 %v1130, %v1129
    %v1147 = vpack.c.bf16 %v1134, %v1133
    %v1148 = vpack.c.bf16 %v1136, %v1135
    %v1149 = vpack.c.bf16 %v1138, %v1137
    %v1150 = vpack.c.bf16 %v1140, %v1139
    %s1151 = scalar_lea.vmem [#allocation10], 8
    %v1152 = vld [vmem:[%s1151] sm:$0xf]
    %v1154 = vsel %vm203, %v1143, 0
    %v1157 = vsel %vm203, %v1144, 0
    %v1160 = vsel %vm203, %v1145, 0
    %v1163 = vsel %vm203, %v1146, 0
    %v1166 = vsel %vm203, %v1147, 0
    %v1169 = vsel %vm203, %v1148, 0
    %v1172 = vsel %vm203, %v1149, 0
    %v1175 = vsel %vm203, %v1150, 0
    %v1178 = vsel %vm326, %v1152, 0
    %1180 = vmatprep.subr.bf16.mxu0 0
    %1181 = vmatpush1.bf16.msra.mxu0 %v1178
    %1182 = vmatprep.subr.bf16.mxu0 0
    %1183 = vmatpush1.bf16.msra.mxu0 0
    %1184 = vmatprep.subr.bf16.mxu0 0
    %1185 = vmatpush1.bf16.msra.mxu0 0
    %1186 = vmatprep.subr.bf16.mxu0 0
    %1187 = vmatpush1.bf16.msra.mxu0 0
    %1188 = vmatprep.subr.bf16.mxu0 0
    %1189 = vmatpush1.bf16.msra.mxu0 0
    %1190 = vmatprep.subr.bf16.mxu0 0
    %1191 = vmatpush1.bf16.msra.mxu0 0
    %1192 = vmatprep.subr.bf16.mxu0 0
    %1193 = vmatpush1.bf16.msra.mxu0 0
    %1194 = vmatprep.subr.bf16.mxu0 0
    %1195 = vmatpush1.bf16.msra.mxu0 0
    %1196 = vmatprep.subr.bf16.mxu0 0
    %1197 = vmatpush1.bf16.msra.mxu0 0
    %1198 = vmatprep.subr.bf16.mxu0 0
    %1199 = vmatpush1.bf16.msra.mxu0 0
    %1200 = vmatprep.subr.bf16.mxu0 0
    %1201 = vmatpush1.bf16.msra.mxu0 0
    %1202 = vmatprep.subr.bf16.mxu0 0
    %1203 = vmatpush1.bf16.msra.mxu0 0
    %1204 = vmatprep.subr.bf16.mxu0 0
    %1205 = vmatpush1.bf16.msra.mxu0 0
    %1206 = vmatprep.subr.bf16.mxu0 0
    %1207 = vmatpush1.bf16.msra.mxu0 0
    %1208 = vmatprep.subr.bf16.mxu0 0
    %1209 = vmatpush1.bf16.msra.mxu0 0
    %1210 = vmatprep.subr.bf16.mxu0 0
    %1211 = vmatpush1.bf16.msra.mxu0 0
    %1212 = vmatprep.mubr.bf16.mxu0 0
    %1213 = vmatmul.mubr.bf16.gmra.mrb[0].mxu0 %v1154
    %v1214 = vpop.f32.mrb[0].mxu0
    %v1215 = vadd.f32 0.0, %v1214
    %v1216 = vpop.f32.mrb[0].mxu0
    %v1217 = vpop.f32.mrb[0].mxu0
    %v1218 = vadd.f32 0.0, %v1217
    %v1219 = vpop.f32.mrb[0].mxu0
    %1220 = vmatprep.mubr.bf16.mxu0 0
    %1221 = vmatmul.mubr.bf16.gmra.mrb[0].mxu0 %v1157
    %v1222 = vpop.f32.mrb[0].mxu0
    %v1223 = vadd.f32 0.0, %v1222
    %v1224 = vpop.f32.mrb[0].mxu0
    %v1225 = vpop.f32.mrb[0].mxu0
    %v1226 = vadd.f32 0.0, %v1225
    %v1227 = vpop.f32.mrb[0].mxu0
    %1228 = vmatprep.mubr.bf16.mxu0 0
    %1229 = vmatmul.mubr.bf16.gmra.mrb[0].mxu0 %v1160
    %v1230 = vpop.f32.mrb[0].mxu0
    %v1231 = vadd.f32 0.0, %v1230
    %v1232 = vpop.f32.mrb[0].mxu0
    %v1233 = vpop.f32.mrb[0].mxu0
    %v1234 = vadd.f32 0.0, %v1233
    %v1235 = vpop.f32.mrb[0].mxu0
    %1236 = vmatprep.mubr.bf16.mxu0 0
    %1237 = vmatmul.mubr.bf16.gmra.mrb[0].mxu0 %v1163
    %v1238 = vpop.f32.mrb[0].mxu0
    %v1239 = vadd.f32 0.0, %v1238
    %v1240 = vpop.f32.mrb[0].mxu0
    %v1241 = vpop.f32.mrb[0].mxu0
    %v1242 = vadd.f32 0.0, %v1241
    %v1243 = vpop.f32.mrb[0].mxu0
    %1244 = vmatprep.mubr.bf16.mxu0 0
    %1245 = vmatmul.mubr.bf16.gmra.mrb[0].mxu0 %v1166
    %v1246 = vpop.f32.mrb[0].mxu0
    %v1247 = vadd.f32 0.0, %v1246
    %v1248 = vpop.f32.mrb[0].mxu0
    %v1249 = vpop.f32.mrb[0].mxu0
    %v1250 = vadd.f32 0.0, %v1249
    %v1251 = vpop.f32.mrb[0].mxu0
    %1252 = vmatprep.mubr.bf16.mxu0 0
    %1253 = vmatmul.mubr.bf16.gmra.mrb[0].mxu0 %v1169
    %v1254 = vpop.f32.mrb[0].mxu0
    %v1255 = vadd.f32 0.0, %v1254
    %v1256 = vpop.f32.mrb[0].mxu0
    %v1257 = vpop.f32.mrb[0].mxu0
    %v1258 = vadd.f32 0.0, %v1257
    %v1259 = vpop.f32.mrb[0].mxu0
    %1260 = vmatprep.mubr.bf16.mxu0 0
    %1261 = vmatmul.mubr.bf16.gmra.mrb[0].mxu0 %v1172
    %v1262 = vpop.f32.mrb[0].mxu0
    %v1263 = vadd.f32 0.0, %v1262
    %v1264 = vpop.f32.mrb[0].mxu0
    %v1265 = vpop.f32.mrb[0].mxu0
    %v1266 = vadd.f32 0.0, %v1265
    %v1267 = vpop.f32.mrb[0].mxu0
    %1268 = vmatprep.mubr.bf16.mxu0 0
    %1269 = vmatmul.mubr.bf16.gmra.mrb[0].mxu0 %v1175
    %v1270 = vpop.f32.mrb[0].mxu0
    %v1271 = vadd.f32 0.0, %v1270
    %v1272 = vpop.f32.mrb[0].mxu0
    %v1273 = vpop.f32.mrb[0].mxu0
    %v1274 = vadd.f32 0.0, %v1273
    %v1275 = vpop.f32.mrb[0].mxu0
    %1276 = vdwg.mxu0
    %v1277 = vadd.f32 %v1107, %v1215
    %v1278 = vadd.f32 %v1108, %v1218
    %v1279 = vadd.f32 %v1109, %v1223
    %v1280 = vadd.f32 %v1110, %v1226
    %v1281 = vadd.f32 %v1111, %v1231
    %v1282 = vadd.f32 %v1112, %v1234
    %v1283 = vadd.f32 %v1113, %v1239
    %v1284 = vadd.f32 %v1114, %v1242
    %v1285 = vadd.f32 %v1115, %v1247
    %v1286 = vadd.f32 %v1116, %v1250
    %v1287 = vadd.f32 %v1117, %v1255
    %v1288 = vadd.f32 %v1118, %v1258
    %v1289 = vadd.f32 %v1119, %v1263
    %v1290 = vadd.f32 %v1120, %v1266
    %v1291 = vadd.f32 %v1121, %v1271
    %v1292 = vadd.f32 %v1122, %v1274
    %v1293 = vpack.c.bf16 %v1125, %v1124
    %v1294 = vpack.c.bf16 %v1127, %v1126
    %v1295 = vpack.c.bf16 %v1129, %v1128
    %v1296 = vpack.c.bf16 %v1131, %v1130
    %v1297 = vpack.c.bf16 %v1135, %v1134
    %v1298 = vpack.c.bf16 %v1137, %v1136
    %v1299 = vpack.c.bf16 %v1139, %v1138
    %v1300 = vpack.c.bf16 %v1141, %v1140
    %s1301 = scalar_lea.vmem [#allocation10], 20
    %v1302 = vld [vmem:[%s1301] sm:$0xf]
    %v1304 = vsel %vm203, %v1293, 0
    %v1307 = vsel %vm203, %v1294, 0
    %v1310 = vsel %vm203, %v1295, 0
    %v1313 = vsel %vm203, %v1296, 0
    %v1316 = vsel %vm203, %v1297, 0
    %v1319 = vsel %vm203, %v1298, 0
    %v1322 = vsel %vm203, %v1299, 0
    %v1325 = vsel %vm203, %v1300, 0
    %v1328 = vsel %vm326, %v1302, 0
    %1330 = vmatprep.subr.bf16.mxu0 0
    %1331 = vmatpush1.bf16.msra.mxu0 %v1328
    %1332 = vmatprep.subr.bf16.mxu0 0
    %1333 = vmatpush1.bf16.msra.mxu0 0
    %1334 = vmatprep.subr.bf16.mxu0 0
    %1335 = vmatpush1.bf16.msra.mxu0 0
    %1336 = vmatprep.subr.bf16.mxu0 0
    %1337 = vmatpush1.bf16.msra.mxu0 0
    %1338 = vmatprep.subr.bf16.mxu0 0
    %1339 = vmatpush1.bf16.msra.mxu0 0
    %1340 = vmatprep.subr.bf16.mxu0 0
    %1341 = vmatpush1.bf16.msra.mxu0 0
    %1342 = vmatprep.subr.bf16.mxu0 0
    %1343 = vmatpush1.bf16.msra.mxu0 0
    %1344 = vmatprep.subr.bf16.mxu0 0
    %1345 = vmatpush1.bf16.msra.mxu0 0
    %1346 = vmatprep.subr.bf16.mxu0 0
    %1347 = vmatpush1.bf16.msra.mxu0 0
    %1348 = vmatprep.subr.bf16.mxu0 0
    %1349 = vmatpush1.bf16.msra.mxu0 0
    %1350 = vmatprep.subr.bf16.mxu0 0
    %1351 = vmatpush1.bf16.msra.mxu0 0
    %1352 = vmatprep.subr.bf16.mxu0 0
    %1353 = vmatpush1.bf16.msra.mxu0 0
    %1354 = vmatprep.subr.bf16.mxu0 0
    %1355 = vmatpush1.bf16.msra.mxu0 0
    %1356 = vmatprep.subr.bf16.mxu0 0
    %1357 = vmatpush1.bf16.msra.mxu0 0
    %1358 = vmatprep.subr.bf16.mxu0 0
    %1359 = vmatpush1.bf16.msra.mxu0 0
    %1360 = vmatprep.subr.bf16.mxu0 0
    %1361 = vmatpush1.bf16.msra.mxu0 0
    %1362 = vmatprep.mubr.bf16.mxu0 0
    %1363 = vmatmul.mubr.bf16.gmra.mrb[0].mxu0 %v1304
    %v1364 = vpop.f32.mrb[0].mxu0
    %v1365 = vadd.f32 0.0, %v1364
    %v1366 = vpop.f32.mrb[0].mxu0
    %v1367 = vpop.f32.mrb[0].mxu0
    %v1368 = vadd.f32 0.0, %v1367
    %v1369 = vpop.f32.mrb[0].mxu0
    %1370 = vmatprep.mubr.bf16.mxu0 0
    %1371 = vmatmul.mubr.bf16.gmra.mrb[0].mxu0 %v1307
    %v1372 = vpop.f32.mrb[0].mxu0
    %v1373 = vadd.f32 0.0, %v1372
    %v1374 = vpop.f32.mrb[0].mxu0
    %v1375 = vpop.f32.mrb[0].mxu0
    %v1376 = vadd.f32 0.0, %v1375
    %v1377 = vpop.f32.mrb[0].mxu0
    %1378 = vmatprep.mubr.bf16.mxu0 0
    %1379 = vmatmul.mubr.bf16.gmra.mrb[0].mxu0 %v1310
    %v1380 = vpop.f32.mrb[0].mxu0
    %v1381 = vadd.f32 0.0, %v1380
    %v1382 = vpop.f32.mrb[0].mxu0
    %v1383 = vpop.f32.mrb[0].mxu0
    %v1384 = vadd.f32 0.0, %v1383
    %v1385 = vpop.f32.mrb[0].mxu0
    %1386 = vmatprep.mubr.bf16.mxu0 0
    %1387 = vmatmul.mubr.bf16.gmra.mrb[0].mxu0 %v1313
    %v1388 = vpop.f32.mrb[0].mxu0
    %v1389 = vadd.f32 0.0, %v1388
    %v1390 = vpop.f32.mrb[0].mxu0
    %v1391 = vpop.f32.mrb[0].mxu0
    %v1392 = vadd.f32 0.0, %v1391
    %v1393 = vpop.f32.mrb[0].mxu0
    %1394 = vmatprep.mubr.bf16.mxu0 0
    %1395 = vmatmul.mubr.bf16.gmra.mrb[0].mxu0 %v1316
    %v1396 = vpop.f32.mrb[0].mxu0
    %v1397 = vadd.f32 0.0, %v1396
    %v1398 = vpop.f32.mrb[0].mxu0
    %v1399 = vpop.f32.mrb[0].mxu0
    %v1400 = vadd.f32 0.0, %v1399
    %v1401 = vpop.f32.mrb[0].mxu0
    %1402 = vmatprep.mubr.bf16.mxu0 0
    %1403 = vmatmul.mubr.bf16.gmra.mrb[0].mxu0 %v1319
    %v1404 = vpop.f32.mrb[0].mxu0
    %v1405 = vadd.f32 0.0, %v1404
    %v1406 = vpop.f32.mrb[0].mxu0
    %v1407 = vpop.f32.mrb[0].mxu0
    %v1408 = vadd.f32 0.0, %v1407
    %v1409 = vpop.f32.mrb[0].mxu0
    %1410 = vmatprep.mubr.bf16.mxu0 0
    %1411 = vmatmul.mubr.bf16.gmra.mrb[0].mxu0 %v1322
    %v1412 = vpop.f32.mrb[0].mxu0
    %v1413 = vadd.f32 0.0, %v1412
    %v1414 = vpop.f32.mrb[0].mxu0
    %v1415 = vpop.f32.mrb[0].mxu0
    %v1416 = vadd.f32 0.0, %v1415
    %v1417 = vpop.f32.mrb[0].mxu0
    %1418 = vmatprep.mubr.bf16.mxu0 0
    %1419 = vmatmul.mubr.bf16.gmra.mrb[0].mxu0 %v1325
    %v1420 = vpop.f32.mrb[0].mxu0
    %v1421 = vadd.f32 0.0, %v1420
    %v1422 = vpop.f32.mrb[0].mxu0
    %v1423 = vpop.f32.mrb[0].mxu0
    %v1424 = vadd.f32 0.0, %v1423
    %v1425 = vpop.f32.mrb[0].mxu0
    %1426 = vdwg.mxu0
    %v1427 = vadd.f32 %v1277, %v1365
    %v1428 = vadd.f32 %v1278, %v1368
    %v1429 = vadd.f32 %v1279, %v1373
    %v1430 = vadd.f32 %v1280, %v1376
    %v1431 = vadd.f32 %v1281, %v1381
    %v1432 = vadd.f32 %v1282, %v1384
    %v1433 = vadd.f32 %v1283, %v1389
    %v1434 = vadd.f32 %v1284, %v1392
    %v1435 = vadd.f32 %v1285, %v1397
    %v1436 = vadd.f32 %v1286, %v1400
    %v1437 = vadd.f32 %v1287, %v1405
    %v1438 = vadd.f32 %v1288, %v1408
    %v1439 = vadd.f32 %v1289, %v1413
    %v1440 = vadd.f32 %v1290, %v1416
    %v1441 = vadd.f32 %v1291, %v1421
    %v1442 = vadd.f32 %v1292, %v1424
    %v1443 = vpack.c.bf16 %v1132, %v1131
    %v1444 = vpack.c.bf16 %v1142, %v1141
    %s1445 = scalar_lea.vmem [#allocation10], 32
    %v1446 = vld [vmem:[%s1445] sm:$0xf]
    %v1448 = vsel %vm203, %v1443, 0
    %v1451 = vsel %vm203, %v1444, 0
    %v1454 = vsel %vm326, %v1446, 0
    %1456 = vmatprep.subr.bf16.mxu0 0
    %1457 = vmatpush1.bf16.msra.mxu0 %v1454
    %1458 = vmatprep.subr.bf16.mxu0 0
    %1459 = vmatpush1.bf16.msra.mxu0 0
    %1460 = vmatprep.subr.bf16.mxu0 0
    %1461 = vmatpush1.bf16.msra.mxu0 0
    %1462 = vmatprep.subr.bf16.mxu0 0
    %1463 = vmatpush1.bf16.msra.mxu0 0
    %1464 = vmatprep.subr.bf16.mxu0 0
    %1465 = vmatpush1.bf16.msra.mxu0 0
    %1466 = vmatprep.subr.bf16.mxu0 0
    %1467 = vmatpush1.bf16.msra.mxu0 0
    %1468 = vmatprep.subr.bf16.mxu0 0
    %1469 = vmatpush1.bf16.msra.mxu0 0
    %1470 = vmatprep.subr.bf16.mxu0 0
    %1471 = vmatpush1.bf16.msra.mxu0 0
    %1472 = vmatprep.subr.bf16.mxu0 0
    %1473 = vmatpush1.bf16.msra.mxu0 0
    %1474 = vmatprep.subr.bf16.mxu0 0
    %1475 = vmatpush1.bf16.msra.mxu0 0
    %1476 = vmatprep.subr.bf16.mxu0 0
    %1477 = vmatpush1.bf16.msra.mxu0 0
    %1478 = vmatprep.subr.bf16.mxu0 0
    %1479 = vmatpush1.bf16.msra.mxu0 0
    %1480 = vmatprep.subr.bf16.mxu0 0
    %1481 = vmatpush1.bf16.msra.mxu0 0
    %1482 = vmatprep.subr.bf16.mxu0 0
    %1483 = vmatpush1.bf16.msra.mxu0 0
    %1484 = vmatprep.subr.bf16.mxu0 0
    %1485 = vmatpush1.bf16.msra.mxu0 0
    %1486 = vmatprep.subr.bf16.mxu0 0
    %1487 = vmatpush1.bf16.msra.mxu0 0
    %1488 = vmatprep.mubr.bf16.mxu0 0
    %1489 = vmatmul.mubr.bf16.gmra.mrb[0].mxu0 %v1157
    %v1490 = vpop.f32.mrb[0].mxu0
    %v1491 = vadd.f32 0.0, %v1490
    %v1492 = vpop.f32.mrb[0].mxu0
    %v1493 = vpop.f32.mrb[0].mxu0
    %v1494 = vadd.f32 0.0, %v1493
    %v1495 = vpop.f32.mrb[0].mxu0
    %1496 = vmatprep.mubr.bf16.mxu0 0
    %1497 = vmatmul.mubr.bf16.gmra.mrb[0].mxu0 %v1160
    %v1498 = vpop.f32.mrb[0].mxu0
    %v1499 = vadd.f32 0.0, %v1498
    %v1500 = vpop.f32.mrb[0].mxu0
    %v1501 = vpop.f32.mrb[0].mxu0
    %v1502 = vadd.f32 0.0, %v1501
    %v1503 = vpop.f32.mrb[0].mxu0
    %1504 = vmatprep.mubr.bf16.mxu0 0
    %1505 = vmatmul.mubr.bf16.gmra.mrb[0].mxu0 %v1163
    %v1506 = vpop.f32.mrb[0].mxu0
    %v1507 = vadd.f32 0.0, %v1506
    %v1508 = vpop.f32.mrb[0].mxu0
    %v1509 = vpop.f32.mrb[0].mxu0
    %v1510 = vadd.f32 0.0, %v1509
    %v1511 = vpop.f32.mrb[0].mxu0
    %1512 = vmatprep.mubr.bf16.mxu0 0
    %1513 = vmatmul.mubr.bf16.gmra.mrb[0].mxu0 %v1448
    %v1514 = vpop.f32.mrb[0].mxu0
    %v1515 = vadd.f32 0.0, %v1514
    %v1516 = vpop.f32.mrb[0].mxu0
    %v1517 = vpop.f32.mrb[0].mxu0
    %v1518 = vadd.f32 0.0, %v1517
    %v1519 = vpop.f32.mrb[0].mxu0
    %1520 = vmatprep.mubr.bf16.mxu0 0
    %1521 = vmatmul.mubr.bf16.gmra.mrb[0].mxu0 %v1169
    %v1522 = vpop.f32.mrb[0].mxu0
    %v1523 = vadd.f32 0.0, %v1522
    %v1524 = vpop.f32.mrb[0].mxu0
    %v1525 = vpop.f32.mrb[0].mxu0
    %v1526 = vadd.f32 0.0, %v1525
    %v1527 = vpop.f32.mrb[0].mxu0
    %1528 = vmatprep.mubr.bf16.mxu0 0
    %1529 = vmatmul.mubr.bf16.gmra.mrb[0].mxu0 %v1172
    %v1530 = vpop.f32.mrb[0].mxu0
    %v1531 = vadd.f32 0.0, %v1530
    %v1532 = vpop.f32.mrb[0].mxu0
    %v1533 = vpop.f32.mrb[0].mxu0
    %v1534 = vadd.f32 0.0, %v1533
    %v1535 = vpop.f32.mrb[0].mxu0
    %1536 = vmatprep.mubr.bf16.mxu0 0
    %1537 = vmatmul.mubr.bf16.gmra.mrb[0].mxu0 %v1175
    %v1538 = vpop.f32.mrb[0].mxu0
    %v1539 = vadd.f32 0.0, %v1538
    %v1540 = vpop.f32.mrb[0].mxu0
    %v1541 = vpop.f32.mrb[0].mxu0
    %v1542 = vadd.f32 0.0, %v1541
    %v1543 = vpop.f32.mrb[0].mxu0
    %1544 = vmatprep.mubr.bf16.mxu0 0
    %1545 = vmatmul.mubr.bf16.gmra.mrb[0].mxu0 %v1451
    %v1546 = vpop.f32.mrb[0].mxu0
    %v1547 = vadd.f32 0.0, %v1546
    %v1548 = vpop.f32.mrb[0].mxu0
    %v1549 = vpop.f32.mrb[0].mxu0
    %v1550 = vadd.f32 0.0, %v1549
    %v1551 = vpop.f32.mrb[0].mxu0
    %1552 = vdwg.mxu0
    %v1553 = vadd.f32 %v1427, %v1491
    %v1554 = vadd.f32 %v1428, %v1494
    %v1555 = vadd.f32 %v1429, %v1499
    %v1556 = vadd.f32 %v1430, %v1502
    %v1557 = vadd.f32 %v1431, %v1507
    %v1558 = vadd.f32 %v1432, %v1510
    %v1559 = vadd.f32 %v1433, %v1515
    %v1560 = vadd.f32 %v1434, %v1518
    %v1561 = vadd.f32 %v1435, %v1523
    %v1562 = vadd.f32 %v1436, %v1526
    %v1563 = vadd.f32 %v1437, %v1531
    %v1564 = vadd.f32 %v1438, %v1534
    %v1565 = vadd.f32 %v1439, %v1539
    %v1566 = vadd.f32 %v1440, %v1542
    %v1567 = vadd.f32 %v1441, %v1547
    %v1568 = vadd.f32 %v1442, %v1550
    %v1569 = vpack.c.bf16 %v1554, %v1553
    %v1570 = vpack.c.bf16 %v1556, %v1555
    %v1571 = vpack.c.bf16 %v1558, %v1557
    %v1572 = vpack.c.bf16 %v1560, %v1559
    %v1573 = vpack.c.bf16 %v1562, %v1561
    %v1574 = vpack.c.bf16 %v1564, %v1563
    %v1575 = vpack.c.bf16 %v1566, %v1565
    %v1576 = vpack.c.bf16 %v1568, %v1567
    %v1577 = vld [vmem:[#allocation12] sm:$0xf]
    %v1579 = vsel %vm203, %v1569, 0
    %v1582 = vsel %vm203, %v1570, 0
    %v1585 = vsel %vm203, %v1571, 0
    %v1588 = vsel %vm203, %v1572, 0
    %v1591 = vsel %vm203, %v1573, 0
    %v1594 = vsel %vm203, %v1574, 0
    %v1597 = vsel %vm203, %v1575, 0
    %v1600 = vsel %vm203, %v1576, 0
    %v1603 = vsel %vm326, %v1577, 0
    %1605 = vmatprep.subr.bf16.mxu0 0
    %1606 = vmatpush1.bf16.msra.mxu0 %v1603
    %1607 = vmatprep.subr.bf16.mxu0 0
    %1608 = vmatpush1.bf16.msra.mxu0 0
    %1609 = vmatprep.subr.bf16.mxu0 0
    %1610 = vmatpush1.bf16.msra.mxu0 0
    %1611 = vmatprep.subr.bf16.mxu0 0
    %1612 = vmatpush1.bf16.msra.mxu0 0
    %1613 = vmatprep.subr.bf16.mxu0 0
    %1614 = vmatpush1.bf16.msra.mxu0 0
    %1615 = vmatprep.subr.bf16.mxu0 0
    %1616 = vmatpush1.bf16.msra.mxu0 0
    %1617 = vmatprep.subr.bf16.mxu0 0
    %1618 = vmatpush1.bf16.msra.mxu0 0
    %1619 = vmatprep.subr.bf16.mxu0 0
    %1620 = vmatpush1.bf16.msra.mxu0 0
    %1621 = vmatprep.subr.bf16.mxu0 0
    %1622 = vmatpush1.bf16.msra.mxu0 0
    %1623 = vmatprep.subr.bf16.mxu0 0
    %1624 = vmatpush1.bf16.msra.mxu0 0
    %1625 = vmatprep.subr.bf16.mxu0 0
    %1626 = vmatpush1.bf16.msra.mxu0 0
    %1627 = vmatprep.subr.bf16.mxu0 0
    %1628 = vmatpush1.bf16.msra.mxu0 0
    %1629 = vmatprep.subr.bf16.mxu0 0
    %1630 = vmatpush1.bf16.msra.mxu0 0
    %1631 = vmatprep.subr.bf16.mxu0 0
    %1632 = vmatpush1.bf16.msra.mxu0 0
    %1633 = vmatprep.subr.bf16.mxu0 0
    %1634 = vmatpush1.bf16.msra.mxu0 0
    %1635 = vmatprep.subr.bf16.mxu0 0
    %1636 = vmatpush1.bf16.msra.mxu0 0
    %1637 = vmatprep.mubr.bf16.mxu0 0
    %1638 = vmatmul.mubr.bf16.gmra.mrb[0].mxu0 %v1579
    %v1639 = vpop.f32.mrb[0].mxu0
    %v1640 = vadd.f32 0.0, %v1639
    %v1641 = vpop.f32.mrb[0].mxu0
    %v1642 = vpop.f32.mrb[0].mxu0
    %v1643 = vadd.f32 0.0, %v1642
    %v1644 = vpop.f32.mrb[0].mxu0
    %1645 = vmatprep.mubr.bf16.mxu0 0
    %1646 = vmatmul.mubr.bf16.gmra.mrb[0].mxu0 %v1582
    %v1647 = vpop.f32.mrb[0].mxu0
    %v1648 = vadd.f32 0.0, %v1647
    %v1649 = vpop.f32.mrb[0].mxu0
    %v1650 = vpop.f32.mrb[0].mxu0
    %v1651 = vadd.f32 0.0, %v1650
    %v1652 = vpop.f32.mrb[0].mxu0
    %1653 = vmatprep.mubr.bf16.mxu0 0
    %1654 = vmatmul.mubr.bf16.gmra.mrb[0].mxu0 %v1585
    %v1655 = vpop.f32.mrb[0].mxu0
    %v1656 = vadd.f32 0.0, %v1655
    %v1657 = vpop.f32.mrb[0].mxu0
    %v1658 = vpop.f32.mrb[0].mxu0
    %v1659 = vadd.f32 0.0, %v1658
    %v1660 = vpop.f32.mrb[0].mxu0
    %1661 = vmatprep.mubr.bf16.mxu0 0
    %1662 = vmatmul.mubr.bf16.gmra.mrb[0].mxu0 %v1588
    %v1663 = vpop.f32.mrb[0].mxu0
    %v1664 = vadd.f32 0.0, %v1663
    %v1665 = vpop.f32.mrb[0].mxu0
    %v1666 = vpop.f32.mrb[0].mxu0
    %v1667 = vadd.f32 0.0, %v1666
    %v1668 = vpop.f32.mrb[0].mxu0
    %1669 = vmatprep.mubr.bf16.mxu0 0
    %1670 = vmatmul.mubr.bf16.gmra.mrb[0].mxu0 %v1591
    %v1671 = vpop.f32.mrb[0].mxu0
    %v1672 = vadd.f32 0.0, %v1671
    %v1673 = vpop.f32.mrb[0].mxu0
    %v1674 = vpop.f32.mrb[0].mxu0
    %v1675 = vadd.f32 0.0, %v1674
    %v1676 = vpop.f32.mrb[0].mxu0
    %1677 = vmatprep.mubr.bf16.mxu0 0
    %1678 = vmatmul.mubr.bf16.gmra.mrb[0].mxu0 %v1594
    %v1679 = vpop.f32.mrb[0].mxu0
    %v1680 = vadd.f32 0.0, %v1679
    %v1681 = vpop.f32.mrb[0].mxu0
    %v1682 = vpop.f32.mrb[0].mxu0
    %v1683 = vadd.f32 0.0, %v1682
    %v1684 = vpop.f32.mrb[0].mxu0
    %1685 = vmatprep.mubr.bf16.mxu0 0
    %1686 = vmatmul.mubr.bf16.gmra.mrb[0].mxu0 %v1597
    %v1687 = vpop.f32.mrb[0].mxu0
    %v1688 = vadd.f32 0.0, %v1687
    %v1689 = vpop.f32.mrb[0].mxu0
    %v1690 = vpop.f32.mrb[0].mxu0
    %v1691 = vadd.f32 0.0, %v1690
    %v1692 = vpop.f32.mrb[0].mxu0
    %1693 = vmatprep.mubr.bf16.mxu0 0
    %1694 = vmatmul.mubr.bf16.gmra.mrb[0].mxu0 %v1600
    %v1695 = vpop.f32.mrb[0].mxu0
    %v1696 = vadd.f32 0.0, %v1695
    %v1697 = vpop.f32.mrb[0].mxu0
    %v1698 = vpop.f32.mrb[0].mxu0
    %v1699 = vadd.f32 0.0, %v1698
    %v1700 = vpop.f32.mrb[0].mxu0
    %1701 = vdwg.mxu0
    %v1702 = vld [vmem:[%s3] sm:$0x1]
    %v1703 = vld [vmem:[%s4] sm:$0x1]
    %vm1704 = vcmask 130048
    %v1705 = vsel %vm1704, %v1640, 0.0
    %v1706 = vsel %vm1704, %v1643, 0.0
    %v1707 = vadd.f32 %v1705, %v1706
    %v1708 = vsel %vm1704, %v1648, 0.0
    %v1709 = vadd.f32 %v1707, %v1708
    %v1710 = vsel %vm1704, %v1651, 0.0
    %v1711 = vadd.f32 %v1709, %v1710
    %v1712 = vsel %vm1704, %v1656, 0.0
    %v1713 = vadd.f32 %v1711, %v1712
    %v1714 = vsel %vm1704, %v1659, 0.0
    %v1715 = vadd.f32 %v1713, %v1714
    %v1716 = vsel %vm1704, %v1664, 0.0
    %v1717 = vadd.f32 %v1715, %v1716
    %v1718 = vsel %vm1704, %v1667, 0.0
    %v1719 = vadd.f32 %v1717, %v1718
    %v1720 = vsel %vm1704, %v1672, 0.0
    %v1721 = vadd.f32 %v1719, %v1720
    %v1722 = vsel %vm1704, %v1675, 0.0
    %v1723 = vadd.f32 %v1721, %v1722
    %v1724 = vsel %vm1704, %v1680, 0.0
    %v1725 = vadd.f32 %v1723, %v1724
    %v1726 = vsel %vm1704, %v1683, 0.0
    %v1727 = vadd.f32 %v1725, %v1726
    %v1728 = vsel %vm1704, %v1688, 0.0
    %v1729 = vadd.f32 %v1727, %v1728
    %v1730 = vsel %vm1704, %v1691, 0.0
    %v1731 = vadd.f32 %v1729, %v1730
    %v1732 = vsel %vm1704, %v1696, 0.0
    %v1733 = vadd.f32 %v1731, %v1732
    %v1734 = vsel %vm1704, %v1699, 0.0
    %v1735 = vadd.f32 %v1733, %v1734
    %v1736 = vrot.slane %v1735, 4
    %v1737 = vadd.f32 %v1735, %v1736
    %v1738 = vrot.slane %v1737, 2
    %v1739 = vadd.f32 %v1737, %v1738
    %v1740 = vrot.slane %v1739, 1
    %v1741 = vadd.f32 %v1739, %v1740
    %v1742 = vmul.f32 %v1741, 0.0078125
    %v1743 = vmul.f32 %v1640, %v1640
    %v1744 = vmul.f32 %v1643, %v1643
    %v1745 = vmul.f32 %v1648, %v1648
    %v1746 = vmul.f32 %v1651, %v1651
    %v1747 = vmul.f32 %v1656, %v1656
    %v1748 = vmul.f32 %v1659, %v1659
    %v1749 = vmul.f32 %v1664, %v1664
    %v1750 = vmul.f32 %v1667, %v1667
    %v1751 = vmul.f32 %v1672, %v1672
    %v1752 = vmul.f32 %v1675, %v1675
    %v1753 = vmul.f32 %v1680, %v1680
    %v1754 = vmul.f32 %v1683, %v1683
    %v1755 = vmul.f32 %v1688, %v1688
    %v1756 = vmul.f32 %v1691, %v1691
    %v1757 = vmul.f32 %v1696, %v1696
    %v1758 = vmul.f32 %v1699, %v1699
    %v1759 = vsel %vm1704, %v1743, 0.0
    %v1760 = vsel %vm1704, %v1744, 0.0
    %v1761 = vadd.f32 %v1759, %v1760
    %v1762 = vsel %vm1704, %v1745, 0.0
    %v1763 = vadd.f32 %v1761, %v1762
    %v1764 = vsel %vm1704, %v1746, 0.0
    %v1765 = vadd.f32 %v1763, %v1764
    %v1766 = vsel %vm1704, %v1747, 0.0
    %v1767 = vadd.f32 %v1765, %v1766
    %v1768 = vsel %vm1704, %v1748, 0.0
    %v1769 = vadd.f32 %v1767, %v1768
    %v1770 = vsel %vm1704, %v1749, 0.0
    %v1771 = vadd.f32 %v1769, %v1770
    %v1772 = vsel %vm1704, %v1750, 0.0
    %v1773 = vadd.f32 %v1771, %v1772
    %v1774 = vsel %vm1704, %v1751, 0.0
    %v1775 = vadd.f32 %v1773, %v1774
    %v1776 = vsel %vm1704, %v1752, 0.0
    %v1777 = vadd.f32 %v1775, %v1776
    %v1778 = vsel %vm1704, %v1753, 0.0
    %v1779 = vadd.f32 %v1777, %v1778
    %v1780 = vsel %vm1704, %v1754, 0.0
    %v1781 = vadd.f32 %v1779, %v1780
    %v1782 = vsel %vm1704, %v1755, 0.0
    %v1783 = vadd.f32 %v1781, %v1782
    %v1784 = vsel %vm1704, %v1756, 0.0
    %v1785 = vadd.f32 %v1783, %v1784
    %v1786 = vsel %vm1704, %v1757, 0.0
    %v1787 = vadd.f32 %v1785, %v1786
    %v1788 = vsel %vm1704, %v1758, 0.0
    %v1789 = vadd.f32 %v1787, %v1788
    %v1790 = vrot.slane %v1789, 4
    %v1791 = vadd.f32 %v1789, %v1790
    %v1792 = vrot.slane %v1791, 2
    %v1793 = vadd.f32 %v1791, %v1792
    %v1794 = vrot.slane %v1793, 1
    %v1795 = vadd.f32 %v1793, %v1794
    %v1796 = vmul.f32 %v1795, 0.0078125
    %v1797 = vmul.f32 %v1742, %v1742
    %v1798 = vsub.f32 %v1796, %v1797
    %v1799 = vmax.f32 %v1798, 0.0
    %v1800 = vadd.f32 %v1799, 1e-05
    %v1801 = vrsqrt.pop %v1800
    %v1802 = vmul.f32 %v1702, %v1801
    %v1803 = vmul.f32 %v1802, %v1742
    %v1804 = vsub.f32 %v1703, %v1803
    %v1806 = vlaneseq
    %v1807 = vshrl.u32 %v1806, 7
    %v1808 = vsub.s32 0, %v1807
    %v1809 = vrot.slane %v1802, %v1808
    %v1811 = vmul.f32 %v1640, %v1809
    %v1812 = vmul.f32 %v1643, %v1809
    %v1813 = vmul.f32 %v1648, %v1809
    %v1814 = vmul.f32 %v1651, %v1809
    %v1815 = vmul.f32 %v1656, %v1809
    %v1816 = vmul.f32 %v1659, %v1809
    %v1817 = vmul.f32 %v1664, %v1809
    %v1818 = vmul.f32 %v1667, %v1809
    %v1819 = vmul.f32 %v1672, %v1809
    %v1820 = vmul.f32 %v1675, %v1809
    %v1821 = vmul.f32 %v1680, %v1809
    %v1822 = vmul.f32 %v1683, %v1809
    %v1823 = vmul.f32 %v1688, %v1809
    %v1824 = vmul.f32 %v1691, %v1809
    %v1825 = vmul.f32 %v1696, %v1809
    %v1826 = vmul.f32 %v1699, %v1809
    %v1828 = vlaneseq
    %v1829 = vshrl.u32 %v1828, 7
    %v1830 = vsub.s32 0, %v1829
    %v1831 = vrot.slane %v1804, %v1830
    %v1833 = vadd.f32 %v1811, %v1831
    %v1834 = vadd.f32 %v1812, %v1831
    %v1835 = vadd.f32 %v1813, %v1831
    %v1836 = vadd.f32 %v1814, %v1831
    %v1837 = vadd.f32 %v1815, %v1831
    %v1838 = vadd.f32 %v1816, %v1831
    %v1839 = vadd.f32 %v1817, %v1831
    %v1840 = vadd.f32 %v1818, %v1831
    %v1841 = vadd.f32 %v1819, %v1831
    %v1842 = vadd.f32 %v1820, %v1831
    %v1843 = vadd.f32 %v1821, %v1831
    %v1844 = vadd.f32 %v1822, %v1831
    %v1845 = vadd.f32 %v1823, %v1831
    %v1846 = vadd.f32 %v1824, %v1831
    %v1847 = vadd.f32 %v1825, %v1831
    %v1848 = vadd.f32 %v1826, %v1831
    %v1849 = vmax.f32 %v1833, 0.0
    %v1850 = vmax.f32 %v1834, 0.0
    %v1851 = vmax.f32 %v1835, 0.0
    %v1852 = vmax.f32 %v1836, 0.0
    %v1853 = vmax.f32 %v1837, 0.0
    %v1854 = vmax.f32 %v1838, 0.0
    %v1855 = vmax.f32 %v1839, 0.0
    %v1856 = vmax.f32 %v1840, 0.0
    %v1857 = vmax.f32 %v1841, 0.0
    %v1858 = vmax.f32 %v1842, 0.0
    %v1859 = vmax.f32 %v1843, 0.0
    %v1860 = vmax.f32 %v1844, 0.0
    %v1861 = vmax.f32 %v1845, 0.0
    %v1862 = vmax.f32 %v1846, 0.0
    %v1863 = vmax.f32 %v1847, 0.0
    %v1864 = vmax.f32 %v1848, 0.0
    %s1865 = scalar_lea.vmem [#allocation3], 16
    %1866 = vst.msk [vmem:[%s1865 + $0x1] sm:$0xff] %vm1704, %v1849
    %1867 = vst.msk [vmem:[%s1865 + $0x11] sm:$0xff] %vm1704, %v1850
    %1868 = vst.msk [vmem:[%s1865 + $0x21] sm:$0xff] %vm1704, %v1851
    %1869 = vst.msk [vmem:[%s1865 + $0x31] sm:$0xff] %vm1704, %v1852
    %1870 = vst.msk [vmem:[%s1865 + $0x41] sm:$0xff] %vm1704, %v1853
    %1871 = vst.msk [vmem:[%s1865 + $0x51] sm:$0xff] %vm1704, %v1854
    %1872 = vst.msk [vmem:[%s1865 + $0x61] sm:$0xff] %vm1704, %v1855
    %1873 = vst.msk [vmem:[%s1865 + $0x71] sm:$0xff] %vm1704, %v1856
    %1874 = vst.msk [vmem:[%s1865 + $0xa1] sm:$0xff] %vm1704, %v1857
    %1875 = vst.msk [vmem:[%s1865 + $0xb1] sm:$0xff] %vm1704, %v1858
    %1876 = vst.msk [vmem:[%s1865 + $0xc1] sm:$0xff] %vm1704, %v1859
    %1877 = vst.msk [vmem:[%s1865 + $0xd1] sm:$0xff] %vm1704, %v1860
    %1878 = vst.msk [vmem:[%s1865 + $0xe1] sm:$0xff] %vm1704, %v1861
    %1879 = vst.msk [vmem:[%s1865 + $0xf1] sm:$0xff] %vm1704, %v1862
    %1880 = vst.msk [vmem:[%s1865 + $0x101] sm:$0xff] %vm1704, %v1863
    %1881 = vst.msk [vmem:[%s1865 + $0x111] sm:$0xff] %vm1704, %v1864
    %1882 = vst.msk [vmem:[#allocation3] sm:$0xff] %vm1704, 0.0
    %vm1883 = vcmask 123904
    %1884 = vst.msk [vmem:[#allocation3 + $0x8] sm:$0x3] %vm1883, 0.0
    %1885 = vst.msk [vmem:[#allocation3 + $0xa0] sm:$0xff] %vm1704, 0.0
    %1886 = vst.msk [vmem:[#allocation3 + $0xa8] sm:$0x3] %vm1883, 0.0
    %s1887 = scalar_lea.vmem [#allocation3], 144
    %1888 = vst.msk [vmem:[%s1887] sm:$0xff] %vm1704, 0.0
    %1889 = vst.msk [vmem:[%s1887 + $0x8] sm:$0x3] %vm1883, 0.0
    %1890 = vst.msk [vmem:[%s1887 + $0xa0] sm:$0xff] %vm1704, 0.0
    %1891 = vst.msk [vmem:[%s1887 + $0xa8] sm:$0x3] %vm1883, 0.0
    %vm1892 = vcmask 122880
    %1893 = vst.msk [vmem:[%s1865] sm:$0x1] %vm1892, 0.0
    %1894 = vst.msk [vmem:[%s1865 + $0x10] sm:$0x1] %vm1892, 0.0
    %1895 = vst.msk [vmem:[%s1865 + $0x20] sm:$0x1] %vm1892, 0.0
    %1896 = vst.msk [vmem:[%s1865 + $0x30] sm:$0x1] %vm1892, 0.0
    %1897 = vst.msk [vmem:[%s1865 + $0x40] sm:$0x1] %vm1892, 0.0
    %1898 = vst.msk [vmem:[%s1865 + $0x50] sm:$0x1] %vm1892, 0.0
    %1899 = vst.msk [vmem:[%s1865 + $0x60] sm:$0x1] %vm1892, 0.0
    %1900 = vst.msk [vmem:[%s1865 + $0x70] sm:$0x1] %vm1892, 0.0
    %1901 = vst.msk [vmem:[%s1865 + $0xa0] sm:$0x1] %vm1892, 0.0
    %1902 = vst.msk [vmem:[%s1865 + $0xb0] sm:$0x1] %vm1892, 0.0
    %1903 = vst.msk [vmem:[%s1865 + $0xc0] sm:$0x1] %vm1892, 0.0
    %1904 = vst.msk [vmem:[%s1865 + $0xd0] sm:$0x1] %vm1892, 0.0
    %1905 = vst.msk [vmem:[%s1865 + $0xe0] sm:$0x1] %vm1892, 0.0
    %1906 = vst.msk [vmem:[%s1865 + $0xf0] sm:$0x1] %vm1892, 0.0
    %1907 = vst.msk [vmem:[%s1865 + $0x100] sm:$0x1] %vm1892, 0.0
    %1908 = vst.msk [vmem:[%s1865 + $0x110] sm:$0x1] %vm1892, 0.0
    %1909 = vst.msk [vmem:[%s1865 + $0x9] sm:$0x1] %vm1892, 0.0
    %1910 = vst.msk [vmem:[%s1865 + $0x19] sm:$0x1] %vm1892, 0.0
    %1911 = vst.msk [vmem:[%s1865 + $0x29] sm:$0x1] %vm1892, 0.0
    %1912 = vst.msk [vmem:[%s1865 + $0x39] sm:$0x1] %vm1892, 0.0
    %1913 = vst.msk [vmem:[%s1865 + $0x49] sm:$0x1] %vm1892, 0.0
    %1914 = vst.msk [vmem:[%s1865 + $0x59] sm:$0x1] %vm1892, 0.0
    %1915 = vst.msk [vmem:[%s1865 + $0x69] sm:$0x1] %vm1892, 0.0
    %1916 = vst.msk [vmem:[%s1865 + $0x79] sm:$0x1] %vm1892, 0.0
    %1917 = vst.msk [vmem:[%s1865 + $0xa9] sm:$0x1] %vm1892, 0.0
    %1918 = vst.msk [vmem:[%s1865 + $0xb9] sm:$0x1] %vm1892, 0.0
    %1919 = vst.msk [vmem:[%s1865 + $0xc9] sm:$0x1] %vm1892, 0.0
    %1920 = vst.msk [vmem:[%s1865 + $0xd9] sm:$0x1] %vm1892, 0.0
    %1921 = vst.msk [vmem:[%s1865 + $0xe9] sm:$0x1] %vm1892, 0.0
    %1922 = vst.msk [vmem:[%s1865 + $0xf9] sm:$0x1] %vm1892, 0.0
    %1923 = vst.msk [vmem:[%s1865 + $0x109] sm:$0x1] %vm1892, 0.0
    %1924 = vst.msk [vmem:[%s1865 + $0x119] sm:$0x1] %vm1892, 0.0
    %v1925 = vld [vmem:[#allocation3] sm:$0xff]
    %v1926 = vld [vmem:[#allocation3 + $0x10] sm:$0xff]
    %v1927 = vld [vmem:[#allocation3 + $0x20] sm:$0xff]
    %v1928 = vld [vmem:[#allocation3 + $0x30] sm:$0xff]
    %v1929 = vld [vmem:[#allocation3 + $0x40] sm:$0xff]
    %v1930 = vld [vmem:[#allocation3 + $0x50] sm:$0xff]
    %v1931 = vld [vmem:[#allocation3 + $0x60] sm:$0xff]
    %v1932 = vld [vmem:[#allocation3 + $0x70] sm:$0xff]
    %v1933 = vld [vmem:[#allocation3 + $0x80] sm:$0xff]
    %v1934 = vld [vmem:[#allocation3 + $0x90] sm:$0xff]
    %v1935 = vld [vmem:[#allocation3 + $0xa0] sm:$0xff]
    %v1936 = vld [vmem:[#allocation3 + $0xb0] sm:$0xff]
    %v1937 = vld [vmem:[#allocation3 + $0xc0] sm:$0xff]
    %v1938 = vld [vmem:[#allocation3 + $0xd0] sm:$0xff]
    %v1939 = vld [vmem:[#allocation3 + $0xe0] sm:$0xff]
    %v1940 = vld [vmem:[#allocation3 + $0xf0] sm:$0xff]
    %v1941 = vld [vmem:[#allocation3 + $0x100] sm:$0xff]
    %v1942 = vld [vmem:[#allocation3 + $0x110] sm:$0xff]
    %v1943 = vld [vmem:[#allocation3 + $0x120] sm:$0xff]
    %v1944 = vld [vmem:[#allocation3 + $0x130] sm:$0xff]
    %v1945 = vpack.c.bf16 %v1926, %v1925
    %v1946 = vpack.c.bf16 %v1928, %v1927
    %v1947 = vpack.c.bf16 %v1930, %v1929
    %v1948 = vpack.c.bf16 %v1932, %v1931
    %v1949 = vpack.c.bf16 %v1936, %v1935
    %v1950 = vpack.c.bf16 %v1938, %v1937
    %v1951 = vpack.c.bf16 %v1940, %v1939
    %v1952 = vpack.c.bf16 %v1942, %v1941
    %v1953 = vld [vmem:[#allocation13] sm:$0xf]
    %v1954 = vld [vmem:[#allocation13 + $0x4] sm:$0xf]
    %v1955 = vpack.c.bf16 %v1927, %v1926
    %v1956 = vpack.c.bf16 %v1929, %v1928
    %v1957 = vpack.c.bf16 %v1931, %v1930
    %v1958 = vpack.c.bf16 %v1933, %v1932
    %v1959 = vpack.c.bf16 %v1937, %v1936
    %v1960 = vpack.c.bf16 %v1939, %v1938
    %v1961 = vpack.c.bf16 %v1941, %v1940
    %v1962 = vpack.c.bf16 %v1943, %v1942
    %s1963 = scalar_lea.vmem [#allocation13], 24
    %v1964 = vld [vmem:[%s1963] sm:$0xf]
    %v1965 = vld [vmem:[%s1963 + $0x4] sm:$0xf]
    %v1968 = vunpack.c.l.b16 %v1964
    %v1969 = vunpack.c.l.b16 %v1965
    %v1970 = vpack.c.b16 %v1969, %v1968
    %v1973 = vsel %vm1704, %v1955, 0
    %v1976 = vsel %vm1704, %v1956, 0
    %v1979 = vsel %vm1704, %v1957, 0
    %v1982 = vsel %vm1704, %v1958, 0
    %v1985 = vsel %vm1704, %v1959, 0
    %v1988 = vsel %vm1704, %v1960, 0
    %v1991 = vsel %vm1704, %v1961, 0
    %v1994 = vsel %vm1704, %v1962, 0
    %1996 = vmatprep.subr.bf16.mxu0 0
    %1997 = vmatpush1.bf16.msra.mxu0 %v1970
    %1998 = vmatprep.subr.bf16.mxu0 0
    %1999 = vmatpush1.bf16.msra.mxu0 0
    %2000 = vmatprep.subr.bf16.mxu0 0
    %2001 = vmatpush1.bf16.msra.mxu0 0
    %2002 = vmatprep.subr.bf16.mxu0 0
    %2003 = vmatpush1.bf16.msra.mxu0 0
    %2004 = vmatprep.subr.bf16.mxu0 0
    %2005 = vmatpush1.bf16.msra.mxu0 0
    %2006 = vmatprep.subr.bf16.mxu0 0
    %2007 = vmatpush1.bf16.msra.mxu0 0
    %2008 = vmatprep.subr.bf16.mxu0 0
    %2009 = vmatpush1.bf16.msra.mxu0 0
    %2010 = vmatprep.subr.bf16.mxu0 0
    %2011 = vmatpush1.bf16.msra.mxu0 0
    %2012 = vmatprep.subr.bf16.mxu0 0
    %2013 = vmatpush1.bf16.msra.mxu0 0
    %2014 = vmatprep.subr.bf16.mxu0 0
    %2015 = vmatpush1.bf16.msra.mxu0 0
    %2016 = vmatprep.subr.bf16.mxu0 0
    %2017 = vmatpush1.bf16.msra.mxu0 0
    %2018 = vmatprep.subr.bf16.mxu0 0
    %2019 = vmatpush1.bf16.msra.mxu0 0
    %2020 = vmatprep.subr.bf16.mxu0 0
    %2021 = vmatpush1.bf16.msra.mxu0 0
    %2022 = vmatprep.subr.bf16.mxu0 0
    %2023 = vmatpush1.bf16.msra.mxu0 0
    %2024 = vmatprep.subr.bf16.mxu0 0
    %2025 = vmatpush1.bf16.msra.mxu0 0
    %2026 = vmatprep.subr.bf16.mxu0 0
    %2027 = vmatpush1.bf16.msra.mxu0 0
    %2028 = vmatprep.mubr.bf16.mxu0 0
    %2029 = vmatmul.mubr.bf16.gmra.mrb[0].mxu0 %v1973
    %v2030 = vpop.f32.mrb[0].mxu0
    %v2031 = vadd.f32 0.0, %v2030
    %v2032 = vpop.f32.mrb[0].mxu0
    %v2033 = vpop.f32.mrb[0].mxu0
    %v2034 = vadd.f32 0.0, %v2033
    %v2035 = vpop.f32.mrb[0].mxu0
    %2036 = vmatprep.mubr.bf16.mxu0 0
    %2037 = vmatmul.mubr.bf16.gmra.mrb[0].mxu0 %v1976
    %v2038 = vpop.f32.mrb[0].mxu0
    %v2039 = vadd.f32 0.0, %v2038
    %v2040 = vpop.f32.mrb[0].mxu0
    %v2041 = vpop.f32.mrb[0].mxu0
    %v2042 = vadd.f32 0.0, %v2041
    %v2043 = vpop.f32.mrb[0].mxu0
    %2044 = vmatprep.mubr.bf16.mxu0 0
    %2045 = vmatmul.mubr.bf16.gmra.mrb[0].mxu0 %v1979
    %v2046 = vpop.f32.mrb[0].mxu0
    %v2047 = vadd.f32 0.0, %v2046
    %v2048 = vpop.f32.mrb[0].mxu0
    %v2049 = vpop.f32.mrb[0].mxu0
    %v2050 = vadd.f32 0.0, %v2049
    %v2051 = vpop.f32.mrb[0].mxu0
    %2052 = vmatprep.mubr.bf16.mxu0 0
    %2053 = vmatmul.mubr.bf16.gmra.mrb[0].mxu0 %v1982
    %v2054 = vpop.f32.mrb[0].mxu0
    %v2055 = vadd.f32 0.0, %v2054
    %v2056 = vpop.f32.mrb[0].mxu0
    %v2057 = vpop.f32.mrb[0].mxu0
    %v2058 = vadd.f32 0.0, %v2057
    %v2059 = vpop.f32.mrb[0].mxu0
    %2060 = vmatprep.mubr.bf16.mxu0 0
    %2061 = vmatmul.mubr.bf16.gmra.mrb[0].mxu0 %v1985
    %v2062 = vpop.f32.mrb[0].mxu0
    %v2063 = vadd.f32 0.0, %v2062
    %v2064 = vpop.f32.mrb[0].mxu0
    %v2065 = vpop.f32.mrb[0].mxu0
    %v2066 = vadd.f32 0.0, %v2065
    %v2067 = vpop.f32.mrb[0].mxu0
    %2068 = vmatprep.mubr.bf16.mxu0 0
    %2069 = vmatmul.mubr.bf16.gmra.mrb[0].mxu0 %v1988
    %v2070 = vpop.f32.mrb[0].mxu0
    %v2071 = vadd.f32 0.0, %v2070
    %v2072 = vpop.f32.mrb[0].mxu0
    %v2073 = vpop.f32.mrb[0].mxu0
    %v2074 = vadd.f32 0.0, %v2073
    %v2075 = vpop.f32.mrb[0].mxu0
    %2076 = vmatprep.mubr.bf16.mxu0 0
    %2077 = vmatmul.mubr.bf16.gmra.mrb[0].mxu0 %v1991
    %v2078 = vpop.f32.mrb[0].mxu0
    %v2079 = vadd.f32 0.0, %v2078
    %v2080 = vpop.f32.mrb[0].mxu0
    %v2081 = vpop.f32.mrb[0].mxu0
    %v2082 = vadd.f32 0.0, %v2081
    %v2083 = vpop.f32.mrb[0].mxu0
    %2084 = vmatprep.mubr.bf16.mxu0 0
    %2085 = vmatmul.mubr.bf16.gmra.mrb[0].mxu0 %v1994
    %v2086 = vpop.f32.mrb[0].mxu0
    %v2087 = vadd.f32 0.0, %v2086
    %v2088 = vpop.f32.mrb[0].mxu0
    %v2089 = vpop.f32.mrb[0].mxu0
    %v2090 = vadd.f32 0.0, %v2089
    %v2091 = vpop.f32.mrb[0].mxu0
    %2092 = vdwg.mxu0
    %v2095 = vunpack.c.l.b16 %v1953
    %v2096 = vunpack.c.l.b16 %v1954
    %v2097 = vpack.c.b16 %v2096, %v2095
    %v2100 = vsel %vm1704, %v1945, 0
    %v2103 = vsel %vm1704, %v1946, 0
    %v2106 = vsel %vm1704, %v1947, 0
    %v2109 = vsel %vm1704, %v1948, 0
    %v2112 = vsel %vm1704, %v1949, 0
    %v2115 = vsel %vm1704, %v1950, 0
    %v2118 = vsel %vm1704, %v1951, 0
    %v2121 = vsel %vm1704, %v1952, 0
    %2123 = vmatprep.subr.bf16.mxu0 0
    %2124 = vmatpush1.bf16.msra.mxu0 %v2097
    %2125 = vmatprep.subr.bf16.mxu0 0
    %2126 = vmatpush1.bf16.msra.mxu0 0
    %2127 = vmatprep.subr.bf16.mxu0 0
    %2128 = vmatpush1.bf16.msra.mxu0 0
    %2129 = vmatprep.subr.bf16.mxu0 0
    %2130 = vmatpush1.bf16.msra.mxu0 0
    %2131 = vmatprep.subr.bf16.mxu0 0
    %2132 = vmatpush1.bf16.msra.mxu0 0
    %2133 = vmatprep.subr.bf16.mxu0 0
    %2134 = vmatpush1.bf16.msra.mxu0 0
    %2135 = vmatprep.subr.bf16.mxu0 0
    %2136 = vmatpush1.bf16.msra.mxu0 0
    %2137 = vmatprep.subr.bf16.mxu0 0
    %2138 = vmatpush1.bf16.msra.mxu0 0
    %2139 = vmatprep.subr.bf16.mxu0 0
    %2140 = vmatpush1.bf16.msra.mxu0 0
    %2141 = vmatprep.subr.bf16.mxu0 0
    %2142 = vmatpush1.bf16.msra.mxu0 0
    %2143 = vmatprep.subr.bf16.mxu0 0
    %2144 = vmatpush1.bf16.msra.mxu0 0
    %2145 = vmatprep.subr.bf16.mxu0 0
    %2146 = vmatpush1.bf16.msra.mxu0 0
    %2147 = vmatprep.subr.bf16.mxu0 0
    %2148 = vmatpush1.bf16.msra.mxu0 0
    %2149 = vmatprep.subr.bf16.mxu0 0
    %2150 = vmatpush1.bf16.msra.mxu0 0
    %2151 = vmatprep.subr.bf16.mxu0 0
    %2152 = vmatpush1.bf16.msra.mxu0 0
    %2153 = vmatprep.subr.bf16.mxu0 0
    %2154 = vmatpush1.bf16.msra.mxu0 0
    %2155 = vmatprep.mubr.bf16.mxu0 0
    %2156 = vmatmul.mubr.bf16.gmra.mrb[0].mxu0 %v2100
    %v2157 = vpop.f32.mrb[0].mxu0
    %v2158 = vadd.f32 %v2031, %v2157
    %v2159 = vpop.f32.mrb[0].mxu0
    %v2160 = vpop.f32.mrb[0].mxu0
    %v2161 = vadd.f32 %v2034, %v2160
    %v2162 = vpop.f32.mrb[0].mxu0
    %2163 = vmatprep.mubr.bf16.mxu0 0
    %2164 = vmatmul.mubr.bf16.gmra.mrb[0].mxu0 %v2103
    %v2165 = vpop.f32.mrb[0].mxu0
    %v2166 = vadd.f32 %v2039, %v2165
    %v2167 = vpop.f32.mrb[0].mxu0
    %v2168 = vpop.f32.mrb[0].mxu0
    %v2169 = vadd.f32 %v2042, %v2168
    %v2170 = vpop.f32.mrb[0].mxu0
    %2171 = vmatprep.mubr.bf16.mxu0 0
    %2172 = vmatmul.mubr.bf16.gmra.mrb[0].mxu0 %v2106
    %v2173 = vpop.f32.mrb[0].mxu0
    %v2174 = vadd.f32 %v2047, %v2173
    %v2175 = vpop.f32.mrb[0].mxu0
    %v2176 = vpop.f32.mrb[0].mxu0
    %v2177 = vadd.f32 %v2050, %v2176
    %v2178 = vpop.f32.mrb[0].mxu0
    %2179 = vmatprep.mubr.bf16.mxu0 0
    %2180 = vmatmul.mubr.bf16.gmra.mrb[0].mxu0 %v2109
    %v2181 = vpop.f32.mrb[0].mxu0
    %v2182 = vadd.f32 %v2055, %v2181
    %v2183 = vpop.f32.mrb[0].mxu0
    %v2184 = vpop.f32.mrb[0].mxu0
    %v2185 = vadd.f32 %v2058, %v2184
    %v2186 = vpop.f32.mrb[0].mxu0
    %2187 = vmatprep.mubr.bf16.mxu0 0
    %2188 = vmatmul.mubr.bf16.gmra.mrb[0].mxu0 %v2112
    %v2189 = vpop.f32.mrb[0].mxu0
    %v2190 = vadd.f32 %v2063, %v2189
    %v2191 = vpop.f32.mrb[0].mxu0
    %v2192 = vpop.f32.mrb[0].mxu0
    %v2193 = vadd.f32 %v2066, %v2192
    %v2194 = vpop.f32.mrb[0].mxu0
    %2195 = vmatprep.mubr.bf16.mxu0 0
    %2196 = vmatmul.mubr.bf16.gmra.mrb[0].mxu0 %v2115
    %v2197 = vpop.f32.mrb[0].mxu0
    %v2198 = vadd.f32 %v2071, %v2197
    %v2199 = vpop.f32.mrb[0].mxu0
    %v2200 = vpop.f32.mrb[0].mxu0
    %v2201 = vadd.f32 %v2074, %v2200
    %v2202 = vpop.f32.mrb[0].mxu0
    %2203 = vmatprep.mubr.bf16.mxu0 0
    %2204 = vmatmul.mubr.bf16.gmra.mrb[0].mxu0 %v2118
    %v2205 = vpop.f32.mrb[0].mxu0
    %v2206 = vadd.f32 %v2079, %v2205
    %v2207 = vpop.f32.mrb[0].mxu0
    %v2208 = vpop.f32.mrb[0].mxu0
    %v2209 = vadd.f32 %v2082, %v2208
    %v2210 = vpop.f32.mrb[0].mxu0
    %2211 = vmatprep.mubr.bf16.mxu0 0
    %2212 = vmatmul.mubr.bf16.gmra.mrb[0].mxu0 %v2121
    %v2213 = vpop.f32.mrb[0].mxu0
    %v2214 = vadd.f32 %v2087, %v2213
    %v2215 = vpop.f32.mrb[0].mxu0
    %v2216 = vpop.f32.mrb[0].mxu0
    %v2217 = vadd.f32 %v2090, %v2216
    %v2218 = vpop.f32.mrb[0].mxu0
    %2219 = vdwg.mxu0
    %v2220 = vpack.c.bf16 %v1934, %v1933
    %v2221 = vpack.c.bf16 %v1944, %v1943
    %s2222 = scalar_lea.vmem [#allocation13], 48
    %v2223 = vld [vmem:[%s2222] sm:$0xf]
    %v2224 = vld [vmem:[%s2222 + $0x4] sm:$0xf]
    %v2227 = vunpack.c.l.b16 %v2223
    %v2228 = vunpack.c.l.b16 %v2224
    %v2229 = vpack.c.b16 %v2228, %v2227
    %v2232 = vsel %vm1704, %v2220, 0
    %v2235 = vsel %vm1704, %v2221, 0
    %2237 = vmatprep.subr.bf16.mxu0 0
    %2238 = vmatpush1.bf16.msra.mxu0 %v2229
    %2239 = vmatprep.subr.bf16.mxu0 0
    %2240 = vmatpush1.bf16.msra.mxu0 0
    %2241 = vmatprep.subr.bf16.mxu0 0
    %2242 = vmatpush1.bf16.msra.mxu0 0
    %2243 = vmatprep.subr.bf16.mxu0 0
    %2244 = vmatpush1.bf16.msra.mxu0 0
    %2245 = vmatprep.subr.bf16.mxu0 0
    %2246 = vmatpush1.bf16.msra.mxu0 0
    %2247 = vmatprep.subr.bf16.mxu0 0
    %2248 = vmatpush1.bf16.msra.mxu0 0
    %2249 = vmatprep.subr.bf16.mxu0 0
    %2250 = vmatpush1.bf16.msra.mxu0 0
    %2251 = vmatprep.subr.bf16.mxu0 0
    %2252 = vmatpush1.bf16.msra.mxu0 0
    %2253 = vmatprep.subr.bf16.mxu0 0
    %2254 = vmatpush1.bf16.msra.mxu0 0
    %2255 = vmatprep.subr.bf16.mxu0 0
    %2256 = vmatpush1.bf16.msra.mxu0 0
    %2257 = vmatprep.subr.bf16.mxu0 0
    %2258 = vmatpush1.bf16.msra.mxu0 0
    %2259 = vmatprep.subr.bf16.mxu0 0
    %2260 = vmatpush1.bf16.msra.mxu0 0
    %2261 = vmatprep.subr.bf16.mxu0 0
    %2262 = vmatpush1.bf16.msra.mxu0 0
    %2263 = vmatprep.subr.bf16.mxu0 0
    %2264 = vmatpush1.bf16.msra.mxu0 0
    %2265 = vmatprep.subr.bf16.mxu0 0
    %2266 = vmatpush1.bf16.msra.mxu0 0
    %2267 = vmatprep.subr.bf16.mxu0 0
    %2268 = vmatpush1.bf16.msra.mxu0 0
    %2269 = vmatprep.mubr.bf16.mxu0 0
    %2270 = vmatmul.mubr.bf16.gmra.mrb[0].mxu0 %v2103
    %v2271 = vpop.f32.mrb[0].mxu0
    %v2272 = vadd.f32 0.0, %v2271
    %v2273 = vpop.f32.mrb[0].mxu0
    %v2274 = vpop.f32.mrb[0].mxu0
    %v2275 = vadd.f32 0.0, %v2274
    %v2276 = vpop.f32.mrb[0].mxu0
    %2277 = vmatprep.mubr.bf16.mxu0 0
    %2278 = vmatmul.mubr.bf16.gmra.mrb[0].mxu0 %v2106
    %v2279 = vpop.f32.mrb[0].mxu0
    %v2280 = vadd.f32 0.0, %v2279
    %v2281 = vpop.f32.mrb[0].mxu0
    %v2282 = vpop.f32.mrb[0].mxu0
    %v2283 = vadd.f32 0.0, %v2282
    %v2284 = vpop.f32.mrb[0].mxu0
    %2285 = vmatprep.mubr.bf16.mxu0 0
    %2286 = vmatmul.mubr.bf16.gmra.mrb[0].mxu0 %v2109
    %v2287 = vpop.f32.mrb[0].mxu0
    %v2288 = vadd.f32 0.0, %v2287
    %v2289 = vpop.f32.mrb[0].mxu0
    %v2290 = vpop.f32.mrb[0].mxu0
    %v2291 = vadd.f32 0.0, %v2290
    %v2292 = vpop.f32.mrb[0].mxu0
    %2293 = vmatprep.mubr.bf16.mxu0 0
    %2294 = vmatmul.mubr.bf16.gmra.mrb[0].mxu0 %v2232
    %v2295 = vpop.f32.mrb[0].mxu0
    %v2296 = vadd.f32 0.0, %v2295
    %v2297 = vpop.f32.mrb[0].mxu0
    %v2298 = vpop.f32.mrb[0].mxu0
    %v2299 = vadd.f32 0.0, %v2298
    %v2300 = vpop.f32.mrb[0].mxu0
    %2301 = vmatprep.mubr.bf16.mxu0 0
    %2302 = vmatmul.mubr.bf16.gmra.mrb[0].mxu0 %v2115
    %v2303 = vpop.f32.mrb[0].mxu0
    %v2304 = vadd.f32 0.0, %v2303
    %v2305 = vpop.f32.mrb[0].mxu0
    %v2306 = vpop.f32.mrb[0].mxu0
    %v2307 = vadd.f32 0.0, %v2306
    %v2308 = vpop.f32.mrb[0].mxu0
    %2309 = vmatprep.mubr.bf16.mxu0 0
    %2310 = vmatmul.mubr.bf16.gmra.mrb[0].mxu0 %v2118
    %v2311 = vpop.f32.mrb[0].mxu0
    %v2312 = vadd.f32 0.0, %v2311
    %v2313 = vpop.f32.mrb[0].mxu0
    %v2314 = vpop.f32.mrb[0].mxu0
    %v2315 = vadd.f32 0.0, %v2314
    %v2316 = vpop.f32.mrb[0].mxu0
    %2317 = vmatprep.mubr.bf16.mxu0 0
    %2318 = vmatmul.mubr.bf16.gmra.mrb[0].mxu0 %v2121
    %v2319 = vpop.f32.mrb[0].mxu0
    %v2320 = vadd.f32 0.0, %v2319
    %v2321 = vpop.f32.mrb[0].mxu0
    %v2322 = vpop.f32.mrb[0].mxu0
    %v2323 = vadd.f32 0.0, %v2322
    %v2324 = vpop.f32.mrb[0].mxu0
    %2325 = vmatprep.mubr.bf16.mxu0 0
    %2326 = vmatmul.mubr.bf16.gmra.mrb[0].mxu0 %v2235
    %v2327 = vpop.f32.mrb[0].mxu0
    %v2328 = vadd.f32 0.0, %v2327
    %v2329 = vpop.f32.mrb[0].mxu0
    %v2330 = vpop.f32.mrb[0].mxu0
    %v2331 = vadd.f32 0.0, %v2330
    %v2332 = vpop.f32.mrb[0].mxu0
    %2333 = vdwg.mxu0
    %v2334 = vadd.f32 %v2158, %v2272
    %v2335 = vadd.f32 %v2161, %v2275
    %v2336 = vadd.f32 %v2166, %v2280
    %v2337 = vadd.f32 %v2169, %v2283
    %v2338 = vadd.f32 %v2174, %v2288
    %v2339 = vadd.f32 %v2177, %v2291
    %v2340 = vadd.f32 %v2182, %v2296
    %v2341 = vadd.f32 %v2185, %v2299
    %v2342 = vadd.f32 %v2190, %v2304
    %v2343 = vadd.f32 %v2193, %v2307
    %v2344 = vadd.f32 %v2198, %v2312
    %v2345 = vadd.f32 %v2201, %v2315
    %v2346 = vadd.f32 %v2206, %v2320
    %v2347 = vadd.f32 %v2209, %v2323
    %v2348 = vadd.f32 %v2214, %v2328
    %v2349 = vadd.f32 %v2217, %v2331
    %v2350 = vld [vmem:[#allocation3 + $0x1] sm:$0xff]
    %v2351 = vld [vmem:[#allocation3 + $0x11] sm:$0xff]
    %v2352 = vld [vmem:[#allocation3 + $0x21] sm:$0xff]
    %v2353 = vld [vmem:[#allocation3 + $0x31] sm:$0xff]
    %v2354 = vld [vmem:[#allocation3 + $0x41] sm:$0xff]
    %v2355 = vld [vmem:[#allocation3 + $0x51] sm:$0xff]
    %v2356 = vld [vmem:[#allocation3 + $0x61] sm:$0xff]
    %v2357 = vld [vmem:[#allocation3 + $0x71] sm:$0xff]
    %v2358 = vld [vmem:[#allocation3 + $0x81] sm:$0xff]
    %v2359 = vld [vmem:[#allocation3 + $0x91] sm:$0xff]
    %v2360 = vld [vmem:[#allocation3 + $0xa1] sm:$0xff]
    %v2361 = vld [vmem:[#allocation3 + $0xb1] sm:$0xff]
    %v2362 = vld [vmem:[#allocation3 + $0xc1] sm:$0xff]
    %v2363 = vld [vmem:[#allocation3 + $0xd1] sm:$0xff]
    %v2364 = vld [vmem:[#allocation3 + $0xe1] sm:$0xff]
    %v2365 = vld [vmem:[#allocation3 + $0xf1] sm:$0xff]
    %v2366 = vld [vmem:[#allocation3 + $0x101] sm:$0xff]
    %v2367 = vld [vmem:[#allocation3 + $0x111] sm:$0xff]
    %v2368 = vld [vmem:[#allocation3 + $0x121] sm:$0xff]
    %v2369 = vld [vmem:[#allocation3 + $0x131] sm:$0xff]
    %v2370 = vpack.c.bf16 %v2351, %v2350
    %v2371 = vpack.c.bf16 %v2353, %v2352
    %v2372 = vpack.c.bf16 %v2355, %v2354
    %v2373 = vpack.c.bf16 %v2357, %v2356
    %v2374 = vpack.c.bf16 %v2361, %v2360
    %v2375 = vpack.c.bf16 %v2363, %v2362
    %v2376 = vpack.c.bf16 %v2365, %v2364
    %v2377 = vpack.c.bf16 %v2367, %v2366
    %s2378 = scalar_lea.vmem [#allocation13], 8
    %v2379 = vld [vmem:[%s2378] sm:$0xf]
    %v2380 = vld [vmem:[%s2378 + $0x4] sm:$0xf]
    %v2383 = vunpack.c.l.b16 %v2379
    %v2384 = vunpack.c.l.b16 %v2380
    %v2385 = vpack.c.b16 %v2384, %v2383
    %v2388 = vsel %vm1704, %v2370, 0
    %v2391 = vsel %vm1704, %v2371, 0
    %v2394 = vsel %vm1704, %v2372, 0
    %v2397 = vsel %vm1704, %v2373, 0
    %v2400 = vsel %vm1704, %v2374, 0
    %v2403 = vsel %vm1704, %v2375, 0
    %v2406 = vsel %vm1704, %v2376, 0
    %v2409 = vsel %vm1704, %v2377, 0
    %2411 = vmatprep.subr.bf16.mxu0 0
    %2412 = vmatpush1.bf16.msra.mxu0 %v2385
    %2413 = vmatprep.subr.bf16.mxu0 0
    %2414 = vmatpush1.bf16.msra.mxu0 0
    %2415 = vmatprep.subr.bf16.mxu0 0
    %2416 = vmatpush1.bf16.msra.mxu0 0
    %2417 = vmatprep.subr.bf16.mxu0 0
    %2418 = vmatpush1.bf16.msra.mxu0 0
    %2419 = vmatprep.subr.bf16.mxu0 0
    %2420 = vmatpush1.bf16.msra.mxu0 0
    %2421 = vmatprep.subr.bf16.mxu0 0
    %2422 = vmatpush1.bf16.msra.mxu0 0
    %2423 = vmatprep.subr.bf16.mxu0 0
    %2424 = vmatpush1.bf16.msra.mxu0 0
    %2425 = vmatprep.subr.bf16.mxu0 0
    %2426 = vmatpush1.bf16.msra.mxu0 0
    %2427 = vmatprep.subr.bf16.mxu0 0
    %2428 = vmatpush1.bf16.msra.mxu0 0
    %2429 = vmatprep.subr.bf16.mxu0 0
    %2430 = vmatpush1.bf16.msra.mxu0 0
    %2431 = vmatprep.subr.bf16.mxu0 0
    %2432 = vmatpush1.bf16.msra.mxu0 0
    %2433 = vmatprep.subr.bf16.mxu0 0
    %2434 = vmatpush1.bf16.msra.mxu0 0
    %2435 = vmatprep.subr.bf16.mxu0 0
    %2436 = vmatpush1.bf16.msra.mxu0 0
    %2437 = vmatprep.subr.bf16.mxu0 0
    %2438 = vmatpush1.bf16.msra.mxu0 0
    %2439 = vmatprep.subr.bf16.mxu0 0
    %2440 = vmatpush1.bf16.msra.mxu0 0
    %2441 = vmatprep.subr.bf16.mxu0 0
    %2442 = vmatpush1.bf16.msra.mxu0 0
    %2443 = vmatprep.mubr.bf16.mxu0 0
    %2444 = vmatmul.mubr.bf16.gmra.mrb[0].mxu0 %v2388
    %v2445 = vpop.f32.mrb[0].mxu0
    %v2446 = vadd.f32 0.0, %v2445
    %v2447 = vpop.f32.mrb[0].mxu0
    %v2448 = vpop.f32.mrb[0].mxu0
    %v2449 = vadd.f32 0.0, %v2448
    %v2450 = vpop.f32.mrb[0].mxu0
    %2451 = vmatprep.mubr.bf16.mxu0 0
    %2452 = vmatmul.mubr.bf16.gmra.mrb[0].mxu0 %v2391
    %v2453 = vpop.f32.mrb[0].mxu0
    %v2454 = vadd.f32 0.0, %v2453
    %v2455 = vpop.f32.mrb[0].mxu0
    %v2456 = vpop.f32.mrb[0].mxu0
    %v2457 = vadd.f32 0.0, %v2456
    %v2458 = vpop.f32.mrb[0].mxu0
    %2459 = vmatprep.mubr.bf16.mxu0 0
    %2460 = vmatmul.mubr.bf16.gmra.mrb[0].mxu0 %v2394
    %v2461 = vpop.f32.mrb[0].mxu0
    %v2462 = vadd.f32 0.0, %v2461
    %v2463 = vpop.f32.mrb[0].mxu0
    %v2464 = vpop.f32.mrb[0].mxu0
    %v2465 = vadd.f32 0.0, %v2464
    %v2466 = vpop.f32.mrb[0].mxu0
    %2467 = vmatprep.mubr.bf16.mxu0 0
    %2468 = vmatmul.mubr.bf16.gmra.mrb[0].mxu0 %v2397
    %v2469 = vpop.f32.mrb[0].mxu0
    %v2470 = vadd.f32 0.0, %v2469
    %v2471 = vpop.f32.mrb[0].mxu0
    %v2472 = vpop.f32.mrb[0].mxu0
    %v2473 = vadd.f32 0.0, %v2472
    %v2474 = vpop.f32.mrb[0].mxu0
    %2475 = vmatprep.mubr.bf16.mxu0 0
    %2476 = vmatmul.mubr.bf16.gmra.mrb[0].mxu0 %v2400
    %v2477 = vpop.f32.mrb[0].mxu0
    %v2478 = vadd.f32 0.0, %v2477
    %v2479 = vpop.f32.mrb[0].mxu0
    %v2480 = vpop.f32.mrb[0].mxu0
    %v2481 = vadd.f32 0.0, %v2480
    %v2482 = vpop.f32.mrb[0].mxu0
    %2483 = vmatprep.mubr.bf16.mxu0 0
    %2484 = vmatmul.mubr.bf16.gmra.mrb[0].mxu0 %v2403
    %v2485 = vpop.f32.mrb[0].mxu0
    %v2486 = vadd.f32 0.0, %v2485
    %v2487 = vpop.f32.mrb[0].mxu0
    %v2488 = vpop.f32.mrb[0].mxu0
    %v2489 = vadd.f32 0.0, %v2488
    %v2490 = vpop.f32.mrb[0].mxu0
    %2491 = vmatprep.mubr.bf16.mxu0 0
    %2492 = vmatmul.mubr.bf16.gmra.mrb[0].mxu0 %v2406
    %v2493 = vpop.f32.mrb[0].mxu0
    %v2494 = vadd.f32 0.0, %v2493
    %v2495 = vpop.f32.mrb[0].mxu0
    %v2496 = vpop.f32.mrb[0].mxu0
    %v2497 = vadd.f32 0.0, %v2496
    %v2498 = vpop.f32.mrb[0].mxu0
    %2499 = vmatprep.mubr.bf16.mxu0 0
    %2500 = vmatmul.mubr.bf16.gmra.mrb[0].mxu0 %v2409
    %v2501 = vpop.f32.mrb[0].mxu0
    %v2502 = vadd.f32 0.0, %v2501
    %v2503 = vpop.f32.mrb[0].mxu0
    %v2504 = vpop.f32.mrb[0].mxu0
    %v2505 = vadd.f32 0.0, %v2504
    %v2506 = vpop.f32.mrb[0].mxu0
    %2507 = vdwg.mxu0
    %v2508 = vadd.f32 %v2334, %v2446
    %v2509 = vadd.f32 %v2335, %v2449
    %v2510 = vadd.f32 %v2336, %v2454
    %v2511 = vadd.f32 %v2337, %v2457
    %v2512 = vadd.f32 %v2338, %v2462
    %v2513 = vadd.f32 %v2339, %v2465
    %v2514 = vadd.f32 %v2340, %v2470
    %v2515 = vadd.f32 %v2341, %v2473
    %v2516 = vadd.f32 %v2342, %v2478
    %v2517 = vadd.f32 %v2343, %v2481
    %v2518 = vadd.f32 %v2344, %v2486
    %v2519 = vadd.f32 %v2345, %v2489
    %v2520 = vadd.f32 %v2346, %v2494
    %v2521 = vadd.f32 %v2347, %v2497
    %v2522 = vadd.f32 %v2348, %v2502
    %v2523 = vadd.f32 %v2349, %v2505
    %v2524 = vpack.c.bf16 %v2352, %v2351
    %v2525 = vpack.c.bf16 %v2354, %v2353
    %v2526 = vpack.c.bf16 %v2356, %v2355
    %v2527 = vpack.c.bf16 %v2358, %v2357
    %v2528 = vpack.c.bf16 %v2362, %v2361
    %v2529 = vpack.c.bf16 %v2364, %v2363
    %v2530 = vpack.c.bf16 %v2366, %v2365
    %v2531 = vpack.c.bf16 %v2368, %v2367
    %s2532 = scalar_lea.vmem [#allocation13], 32
    %v2533 = vld [vmem:[%s2532] sm:$0xf]
    %v2534 = vld [vmem:[%s2532 + $0x4] sm:$0xf]
    %v2537 = vunpack.c.l.b16 %v2533
    %v2538 = vunpack.c.l.b16 %v2534
    %v2539 = vpack.c.b16 %v2538, %v2537
    %v2542 = vsel %vm1704, %v2524, 0
    %v2545 = vsel %vm1704, %v2525, 0
    %v2548 = vsel %vm1704, %v2526, 0
    %v2551 = vsel %vm1704, %v2527, 0
    %v2554 = vsel %vm1704, %v2528, 0
    %v2557 = vsel %vm1704, %v2529, 0
    %v2560 = vsel %vm1704, %v2530, 0
    %v2563 = vsel %vm1704, %v2531, 0
    %2565 = vmatprep.subr.bf16.mxu0 0
    %2566 = vmatpush1.bf16.msra.mxu0 %v2539
    %2567 = vmatprep.subr.bf16.mxu0 0
    %2568 = vmatpush1.bf16.msra.mxu0 0
    %2569 = vmatprep.subr.bf16.mxu0 0
    %2570 = vmatpush1.bf16.msra.mxu0 0
    %2571 = vmatprep.subr.bf16.mxu0 0
    %2572 = vmatpush1.bf16.msra.mxu0 0
    %2573 = vmatprep.subr.bf16.mxu0 0
    %2574 = vmatpush1.bf16.msra.mxu0 0
    %2575 = vmatprep.subr.bf16.mxu0 0
    %2576 = vmatpush1.bf16.msra.mxu0 0
    %2577 = vmatprep.subr.bf16.mxu0 0
    %2578 = vmatpush1.bf16.msra.mxu0 0
    %2579 = vmatprep.subr.bf16.mxu0 0
    %2580 = vmatpush1.bf16.msra.mxu0 0
    %2581 = vmatprep.subr.bf16.mxu0 0
    %2582 = vmatpush1.bf16.msra.mxu0 0
    %2583 = vmatprep.subr.bf16.mxu0 0
    %2584 = vmatpush1.bf16.msra.mxu0 0
    %2585 = vmatprep.subr.bf16.mxu0 0
    %2586 = vmatpush1.bf16.msra.mxu0 0
    %2587 = vmatprep.subr.bf16.mxu0 0
    %2588 = vmatpush1.bf16.msra.mxu0 0
    %2589 = vmatprep.subr.bf16.mxu0 0
    %2590 = vmatpush1.bf16.msra.mxu0 0
    %2591 = vmatprep.subr.bf16.mxu0 0
    %2592 = vmatpush1.bf16.msra.mxu0 0
    %2593 = vmatprep.subr.bf16.mxu0 0
    %2594 = vmatpush1.bf16.msra.mxu0 0
    %2595 = vmatprep.subr.bf16.mxu0 0
    %2596 = vmatpush1.bf16.msra.mxu0 0
    %2597 = vmatprep.mubr.bf16.mxu0 0
    %2598 = vmatmul.mubr.bf16.gmra.mrb[0].mxu0 %v2542
    %v2599 = vpop.f32.mrb[0].mxu0
    %v2600 = vadd.f32 0.0, %v2599
    %v2601 = vpop.f32.mrb[0].mxu0
    %v2602 = vpop.f32.mrb[0].mxu0
    %v2603 = vadd.f32 0.0, %v2602
    %v2604 = vpop.f32.mrb[0].mxu0
    %2605 = vmatprep.mubr.bf16.mxu0 0
    %2606 = vmatmul.mubr.bf16.gmra.mrb[0].mxu0 %v2545
    %v2607 = vpop.f32.mrb[0].mxu0
    %v2608 = vadd.f32 0.0, %v2607
    %v2609 = vpop.f32.mrb[0].mxu0
    %v2610 = vpop.f32.mrb[0].mxu0
    %v2611 = vadd.f32 0.0, %v2610
    %v2612 = vpop.f32.mrb[0].mxu0
    %2613 = vmatprep.mubr.bf16.mxu0 0
    %2614 = vmatmul.mubr.bf16.gmra.mrb[0].mxu0 %v2548
    %v2615 = vpop.f32.mrb[0].mxu0
    %v2616 = vadd.f32 0.0, %v2615
    %v2617 = vpop.f32.mrb[0].mxu0
    %v2618 = vpop.f32.mrb[0].mxu0
    %v2619 = vadd.f32 0.0, %v2618
    %v2620 = vpop.f32.mrb[0].mxu0
    %2621 = vmatprep.mubr.bf16.mxu0 0
    %2622 = vmatmul.mubr.bf16.gmra.mrb[0].mxu0 %v2551
    %v2623 = vpop.f32.mrb[0].mxu0
    %v2624 = vadd.f32 0.0, %v2623
    %v2625 = vpop.f32.mrb[0].mxu0
    %v2626 = vpop.f32.mrb[0].mxu0
    %v2627 = vadd.f32 0.0, %v2626
    %v2628 = vpop.f32.mrb[0].mxu0
    %2629 = vmatprep.mubr.bf16.mxu0 0
    %2630 = vmatmul.mubr.bf16.gmra.mrb[0].mxu0 %v2554
    %v2631 = vpop.f32.mrb[0].mxu0
    %v2632 = vadd.f32 0.0, %v2631
    %v2633 = vpop.f32.mrb[0].mxu0
    %v2634 = vpop.f32.mrb[0].mxu0
    %v2635 = vadd.f32 0.0, %v2634
    %v2636 = vpop.f32.mrb[0].mxu0
    %2637 = vmatprep.mubr.bf16.mxu0 0
    %2638 = vmatmul.mubr.bf16.gmra.mrb[0].mxu0 %v2557
    %v2639 = vpop.f32.mrb[0].mxu0
    %v2640 = vadd.f32 0.0, %v2639
    %v2641 = vpop.f32.mrb[0].mxu0
    %v2642 = vpop.f32.mrb[0].mxu0
    %v2643 = vadd.f32 0.0, %v2642
    %v2644 = vpop.f32.mrb[0].mxu0
    %2645 = vmatprep.mubr.bf16.mxu0 0
    %2646 = vmatmul.mubr.bf16.gmra.mrb[0].mxu0 %v2560
    %v2647 = vpop.f32.mrb[0].mxu0
    %v2648 = vadd.f32 0.0, %v2647
    %v2649 = vpop.f32.mrb[0].mxu0
    %v2650 = vpop.f32.mrb[0].mxu0
    %v2651 = vadd.f32 0.0, %v2650
    %v2652 = vpop.f32.mrb[0].mxu0
    %2653 = vmatprep.mubr.bf16.mxu0 0
    %2654 = vmatmul.mubr.bf16.gmra.mrb[0].mxu0 %v2563
    %v2655 = vpop.f32.mrb[0].mxu0
    %v2656 = vadd.f32 0.0, %v2655
    %v2657 = vpop.f32.mrb[0].mxu0
    %v2658 = vpop.f32.mrb[0].mxu0
    %v2659 = vadd.f32 0.0, %v2658
    %v2660 = vpop.f32.mrb[0].mxu0
    %2661 = vdwg.mxu0
    %v2662 = vadd.f32 %v2508, %v2600
    %v2663 = vadd.f32 %v2509, %v2603
    %v2664 = vadd.f32 %v2510, %v2608
    %v2665 = vadd.f32 %v2511, %v2611
    %v2666 = vadd.f32 %v2512, %v2616
    %v2667 = vadd.f32 %v2513, %v2619
    %v2668 = vadd.f32 %v2514, %v2624
    %v2669 = vadd.f32 %v2515, %v2627
    %v2670 = vadd.f32 %v2516, %v2632
    %v2671 = vadd.f32 %v2517, %v2635
    %v2672 = vadd.f32 %v2518, %v2640
    %v2673 = vadd.f32 %v2519, %v2643
    %v2674 = vadd.f32 %v2520, %v2648
    %v2675 = vadd.f32 %v2521, %v2651
    %v2676 = vadd.f32 %v2522, %v2656
    %v2677 = vadd.f32 %v2523, %v2659
    %v2678 = vpack.c.bf16 %v2359, %v2358
    %v2679 = vpack.c.bf16 %v2369, %v2368
    %s2680 = scalar_lea.vmem [#allocation13], 56
    %v2681 = vld [vmem:[%s2680] sm:$0xf]
    %v2682 = vld [vmem:[%s2680 + $0x4] sm:$0xf]
    %v2685 = vunpack.c.l.b16 %v2681
    %v2686 = vunpack.c.l.b16 %v2682
    %v2687 = vpack.c.b16 %v2686, %v2685
    %v2690 = vsel %vm1704, %v2678, 0
    %v2693 = vsel %vm1704, %v2679, 0
    %2695 = vmatprep.subr.bf16.mxu0 0
    %2696 = vmatpush1.bf16.msra.mxu0 %v2687
    %2697 = vmatprep.subr.bf16.mxu0 0
    %2698 = vmatpush1.bf16.msra.mxu0 0
    %2699 = vmatprep.subr.bf16.mxu0 0
    %2700 = vmatpush1.bf16.msra.mxu0 0
    %2701 = vmatprep.subr.bf16.mxu0 0
    %2702 = vmatpush1.bf16.msra.mxu0 0
    %2703 = vmatprep.subr.bf16.mxu0 0
    %2704 = vmatpush1.bf16.msra.mxu0 0
    %2705 = vmatprep.subr.bf16.mxu0 0
    %2706 = vmatpush1.bf16.msra.mxu0 0
    %2707 = vmatprep.subr.bf16.mxu0 0
    %2708 = vmatpush1.bf16.msra.mxu0 0
    %2709 = vmatprep.subr.bf16.mxu0 0
    %2710 = vmatpush1.bf16.msra.mxu0 0
    %2711 = vmatprep.subr.bf16.mxu0 0
    %2712 = vmatpush1.bf16.msra.mxu0 0
    %2713 = vmatprep.subr.bf16.mxu0 0
    %2714 = vmatpush1.bf16.msra.mxu0 0
    %2715 = vmatprep.subr.bf16.mxu0 0
    %2716 = vmatpush1.bf16.msra.mxu0 0
    %2717 = vmatprep.subr.bf16.mxu0 0
    %2718 = vmatpush1.bf16.msra.mxu0 0
    %2719 = vmatprep.subr.bf16.mxu0 0
    %2720 = vmatpush1.bf16.msra.mxu0 0
    %2721 = vmatprep.subr.bf16.mxu0 0
    %2722 = vmatpush1.bf16.msra.mxu0 0
    %2723 = vmatprep.subr.bf16.mxu0 0
    %2724 = vmatpush1.bf16.msra.mxu0 0
    %2725 = vmatprep.subr.bf16.mxu0 0
    %2726 = vmatpush1.bf16.msra.mxu0 0
    %2727 = vmatprep.mubr.bf16.mxu0 0
    %2728 = vmatmul.mubr.bf16.gmra.mrb[0].mxu0 %v2391
    %v2729 = vpop.f32.mrb[0].mxu0
    %v2730 = vadd.f32 0.0, %v2729
    %v2731 = vpop.f32.mrb[0].mxu0
    %v2732 = vpop.f32.mrb[0].mxu0
    %v2733 = vadd.f32 0.0, %v2732
    %v2734 = vpop.f32.mrb[0].mxu0
    %2735 = vmatprep.mubr.bf16.mxu0 0
    %2736 = vmatmul.mubr.bf16.gmra.mrb[0].mxu0 %v2394
    %v2737 = vpop.f32.mrb[0].mxu0
    %v2738 = vadd.f32 0.0, %v2737
    %v2739 = vpop.f32.mrb[0].mxu0
    %v2740 = vpop.f32.mrb[0].mxu0
    %v2741 = vadd.f32 0.0, %v2740
    %v2742 = vpop.f32.mrb[0].mxu0
    %2743 = vmatprep.mubr.bf16.mxu0 0
    %2744 = vmatmul.mubr.bf16.gmra.mrb[0].mxu0 %v2397
    %v2745 = vpop.f32.mrb[0].mxu0
    %v2746 = vadd.f32 0.0, %v2745
    %v2747 = vpop.f32.mrb[0].mxu0
    %v2748 = vpop.f32.mrb[0].mxu0
    %v2749 = vadd.f32 0.0, %v2748
    %v2750 = vpop.f32.mrb[0].mxu0
    %2751 = vmatprep.mubr.bf16.mxu0 0
    %2752 = vmatmul.mubr.bf16.gmra.mrb[0].mxu0 %v2690
    %v2753 = vpop.f32.mrb[0].mxu0
    %v2754 = vadd.f32 0.0, %v2753
    %v2755 = vpop.f32.mrb[0].mxu0
    %v2756 = vpop.f32.mrb[0].mxu0
    %v2757 = vadd.f32 0.0, %v2756
    %v2758 = vpop.f32.mrb[0].mxu0
    %2759 = vmatprep.mubr.bf16.mxu0 0
    %2760 = vmatmul.mubr.bf16.gmra.mrb[0].mxu0 %v2403
    %v2761 = vpop.f32.mrb[0].mxu0
    %v2762 = vadd.f32 0.0, %v2761
    %v2763 = vpop.f32.mrb[0].mxu0
    %v2764 = vpop.f32.mrb[0].mxu0
    %v2765 = vadd.f32 0.0, %v2764
    %v2766 = vpop.f32.mrb[0].mxu0
    %2767 = vmatprep.mubr.bf16.mxu0 0
    %2768 = vmatmul.mubr.bf16.gmra.mrb[0].mxu0 %v2406
    %v2769 = vpop.f32.mrb[0].mxu0
    %v2770 = vadd.f32 0.0, %v2769
    %v2771 = vpop.f32.mrb[0].mxu0
    %v2772 = vpop.f32.mrb[0].mxu0
    %v2773 = vadd.f32 0.0, %v2772
    %v2774 = vpop.f32.mrb[0].mxu0
    %2775 = vmatprep.mubr.bf16.mxu0 0
    %2776 = vmatmul.mubr.bf16.gmra.mrb[0].mxu0 %v2409
    %v2777 = vpop.f32.mrb[0].mxu0
    %v2778 = vadd.f32 0.0, %v2777
    %v2779 = vpop.f32.mrb[0].mxu0
    %v2780 = vpop.f32.mrb[0].mxu0
    %v2781 = vadd.f32 0.0, %v2780
    %v2782 = vpop.f32.mrb[0].mxu0
    %2783 = vmatprep.mubr.bf16.mxu0 0
    %2784 = vmatmul.mubr.bf16.gmra.mrb[0].mxu0 %v2693
    %v2785 = vpop.f32.mrb[0].mxu0
    %v2786 = vadd.f32 0.0, %v2785
    %v2787 = vpop.f32.mrb[0].mxu0
    %v2788 = vpop.f32.mrb[0].mxu0
    %v2789 = vadd.f32 0.0, %v2788
    %v2790 = vpop.f32.mrb[0].mxu0
    %2791 = vdwg.mxu0
    %v2792 = vadd.f32 %v2662, %v2730
    %v2793 = vadd.f32 %v2663, %v2733
    %v2794 = vadd.f32 %v2664, %v2738
    %v2795 = vadd.f32 %v2665, %v2741
    %v2796 = vadd.f32 %v2666, %v2746
    %v2797 = vadd.f32 %v2667, %v2749
    %v2798 = vadd.f32 %v2668, %v2754
    %v2799 = vadd.f32 %v2669, %v2757
    %v2800 = vadd.f32 %v2670, %v2762
    %v2801 = vadd.f32 %v2671, %v2765
    %v2802 = vadd.f32 %v2672, %v2770
    %v2803 = vadd.f32 %v2673, %v2773
    %v2804 = vadd.f32 %v2674, %v2778
    %v2805 = vadd.f32 %v2675, %v2781
    %v2806 = vadd.f32 %v2676, %v2786
    %v2807 = vadd.f32 %v2677, %v2789
    %v2808 = vld [vmem:[#allocation3 + $0x2] sm:$0xff]
    %v2809 = vld [vmem:[#allocation3 + $0x12] sm:$0xff]
    %v2810 = vld [vmem:[#allocation3 + $0x22] sm:$0xff]
    %v2811 = vld [vmem:[#allocation3 + $0x32] sm:$0xff]
    %v2812 = vld [vmem:[#allocation3 + $0x42] sm:$0xff]
    %v2813 = vld [vmem:[#allocation3 + $0x52] sm:$0xff]
    %v2814 = vld [vmem:[#allocation3 + $0x62] sm:$0xff]
    %v2815 = vld [vmem:[#allocation3 + $0x72] sm:$0xff]
    %v2816 = vld [vmem:[#allocation3 + $0x82] sm:$0xff]
    %v2817 = vld [vmem:[#allocation3 + $0x92] sm:$0xff]
    %v2818 = vld [vmem:[#allocation3 + $0xa2] sm:$0xff]
    %v2819 = vld [vmem:[#allocation3 + $0xb2] sm:$0xff]
    %v2820 = vld [vmem:[#allocation3 + $0xc2] sm:$0xff]
    %v2821 = vld [vmem:[#allocation3 + $0xd2] sm:$0xff]
    %v2822 = vld [vmem:[#allocation3 + $0xe2] sm:$0xff]
    %v2823 = vld [vmem:[#allocation3 + $0xf2] sm:$0xff]
    %v2824 = vld [vmem:[#allocation3 + $0x102] sm:$0xff]
    %v2825 = vld [vmem:[#allocation3 + $0x112] sm:$0xff]
    %v2826 = vld [vmem:[#allocation3 + $0x122] sm:$0xff]
    %v2827 = vld [vmem:[#allocation3 + $0x132] sm:$0xff]
    %v2828 = vpack.c.bf16 %v2809, %v2808
    %v2829 = vpack.c.bf16 %v2811, %v2810
    %v2830 = vpack.c.bf16 %v2813, %v2812
    %v2831 = vpack.c.bf16 %v2815, %v2814
    %v2832 = vpack.c.bf16 %v2819, %v2818
    %v2833 = vpack.c.bf16 %v2821, %v2820
    %v2834 = vpack.c.bf16 %v2823, %v2822
    %v2835 = vpack.c.bf16 %v2825, %v2824
    %s2836 = scalar_lea.vmem [#allocation13], 16
    %v2837 = vld [vmem:[%s2836] sm:$0xf]
    %v2838 = vld [vmem:[%s2836 + $0x4] sm:$0xf]
    %v2841 = vunpack.c.l.b16 %v2837
    %v2842 = vunpack.c.l.b16 %v2838
    %v2843 = vpack.c.b16 %v2842, %v2841
    %v2846 = vsel %vm1704, %v2828, 0
    %v2849 = vsel %vm1704, %v2829, 0
    %v2852 = vsel %vm1704, %v2830, 0
    %v2855 = vsel %vm1704, %v2831, 0
    %v2858 = vsel %vm1704, %v2832, 0
    %v2861 = vsel %vm1704, %v2833, 0
    %v2864 = vsel %vm1704, %v2834, 0
    %v2867 = vsel %vm1704, %v2835, 0
    %2869 = vmatprep.subr.bf16.mxu0 0
    %2870 = vmatpush1.bf16.msra.mxu0 %v2843
    %2871 = vmatprep.subr.bf16.mxu0 0
    %2872 = vmatpush1.bf16.msra.mxu0 0
    %2873 = vmatprep.subr.bf16.mxu0 0
    %2874 = vmatpush1.bf16.msra.mxu0 0
    %2875 = vmatprep.subr.bf16.mxu0 0
    %2876 = vmatpush1.bf16.msra.mxu0 0
    %2877 = vmatprep.subr.bf16.mxu0 0
    %2878 = vmatpush1.bf16.msra.mxu0 0
    %2879 = vmatprep.subr.bf16.mxu0 0
    %2880 = vmatpush1.bf16.msra.mxu0 0
    %2881 = vmatprep.subr.bf16.mxu0 0
    %2882 = vmatpush1.bf16.msra.mxu0 0
    %2883 = vmatprep.subr.bf16.mxu0 0
    %2884 = vmatpush1.bf16.msra.mxu0 0
    %2885 = vmatprep.subr.bf16.mxu0 0
    %2886 = vmatpush1.bf16.msra.mxu0 0
    %2887 = vmatprep.subr.bf16.mxu0 0
    %2888 = vmatpush1.bf16.msra.mxu0 0
    %2889 = vmatprep.subr.bf16.mxu0 0
    %2890 = vmatpush1.bf16.msra.mxu0 0
    %2891 = vmatprep.subr.bf16.mxu0 0
    %2892 = vmatpush1.bf16.msra.mxu0 0
    %2893 = vmatprep.subr.bf16.mxu0 0
    %2894 = vmatpush1.bf16.msra.mxu0 0
    %2895 = vmatprep.subr.bf16.mxu0 0
    %2896 = vmatpush1.bf16.msra.mxu0 0
    %2897 = vmatprep.subr.bf16.mxu0 0
    %2898 = vmatpush1.bf16.msra.mxu0 0
    %2899 = vmatprep.subr.bf16.mxu0 0
    %2900 = vmatpush1.bf16.msra.mxu0 0
    %2901 = vmatprep.mubr.bf16.mxu0 0
    %2902 = vmatmul.mubr.bf16.gmra.mrb[0].mxu0 %v2846
    %v2903 = vpop.f32.mrb[0].mxu0
    %v2904 = vadd.f32 0.0, %v2903
    %v2905 = vpop.f32.mrb[0].mxu0
    %v2906 = vpop.f32.mrb[0].mxu0
    %v2907 = vadd.f32 0.0, %v2906
    %v2908 = vpop.f32.mrb[0].mxu0
    %2909 = vmatprep.mubr.bf16.mxu0 0
    %2910 = vmatmul.mubr.bf16.gmra.mrb[0].mxu0 %v2849
    %v2911 = vpop.f32.mrb[0].mxu0
    %v2912 = vadd.f32 0.0, %v2911
    %v2913 = vpop.f32.mrb[0].mxu0
    %v2914 = vpop.f32.mrb[0].mxu0
    %v2915 = vadd.f32 0.0, %v2914
    %v2916 = vpop.f32.mrb[0].mxu0
    %2917 = vmatprep.mubr.bf16.mxu0 0
    %2918 = vmatmul.mubr.bf16.gmra.mrb[0].mxu0 %v2852
    %v2919 = vpop.f32.mrb[0].mxu0
    %v2920 = vadd.f32 0.0, %v2919
    %v2921 = vpop.f32.mrb[0].mxu0
    %v2922 = vpop.f32.mrb[0].mxu0
    %v2923 = vadd.f32 0.0, %v2922
    %v2924 = vpop.f32.mrb[0].mxu0
    %2925 = vmatprep.mubr.bf16.mxu0 0
    %2926 = vmatmul.mubr.bf16.gmra.mrb[0].mxu0 %v2855
    %v2927 = vpop.f32.mrb[0].mxu0
    %v2928 = vadd.f32 0.0, %v2927
    %v2929 = vpop.f32.mrb[0].mxu0
    %v2930 = vpop.f32.mrb[0].mxu0
    %v2931 = vadd.f32 0.0, %v2930
    %v2932 = vpop.f32.mrb[0].mxu0
    %2933 = vmatprep.mubr.bf16.mxu0 0
    %2934 = vmatmul.mubr.bf16.gmra.mrb[0].mxu0 %v2858
    %v2935 = vpop.f32.mrb[0].mxu0
    %v2936 = vadd.f32 0.0, %v2935
    %v2937 = vpop.f32.mrb[0].mxu0
    %v2938 = vpop.f32.mrb[0].mxu0
    %v2939 = vadd.f32 0.0, %v2938
    %v2940 = vpop.f32.mrb[0].mxu0
    %2941 = vmatprep.mubr.bf16.mxu0 0
    %2942 = vmatmul.mubr.bf16.gmra.mrb[0].mxu0 %v2861
    %v2943 = vpop.f32.mrb[0].mxu0
    %v2944 = vadd.f32 0.0, %v2943
    %v2945 = vpop.f32.mrb[0].mxu0
    %v2946 = vpop.f32.mrb[0].mxu0
    %v2947 = vadd.f32 0.0, %v2946
    %v2948 = vpop.f32.mrb[0].mxu0
    %2949 = vmatprep.mubr.bf16.mxu0 0
    %2950 = vmatmul.mubr.bf16.gmra.mrb[0].mxu0 %v2864
    %v2951 = vpop.f32.mrb[0].mxu0
    %v2952 = vadd.f32 0.0, %v2951
    %v2953 = vpop.f32.mrb[0].mxu0
    %v2954 = vpop.f32.mrb[0].mxu0
    %v2955 = vadd.f32 0.0, %v2954
    %v2956 = vpop.f32.mrb[0].mxu0
    %2957 = vmatprep.mubr.bf16.mxu0 0
    %2958 = vmatmul.mubr.bf16.gmra.mrb[0].mxu0 %v2867
    %v2959 = vpop.f32.mrb[0].mxu0
    %v2960 = vadd.f32 0.0, %v2959
    %v2961 = vpop.f32.mrb[0].mxu0
    %v2962 = vpop.f32.mrb[0].mxu0
    %v2963 = vadd.f32 0.0, %v2962
    %v2964 = vpop.f32.mrb[0].mxu0
    %2965 = vdwg.mxu0
    %v2966 = vadd.f32 %v2792, %v2904
    %v2967 = vadd.f32 %v2793, %v2907
    %v2968 = vadd.f32 %v2794, %v2912
    %v2969 = vadd.f32 %v2795, %v2915
    %v2970 = vadd.f32 %v2796, %v2920
    %v2971 = vadd.f32 %v2797, %v2923
    %v2972 = vadd.f32 %v2798, %v2928
    %v2973 = vadd.f32 %v2799, %v2931
    %v2974 = vadd.f32 %v2800, %v2936
    %v2975 = vadd.f32 %v2801, %v2939
    %v2976 = vadd.f32 %v2802, %v2944
    %v2977 = vadd.f32 %v2803, %v2947
    %v2978 = vadd.f32 %v2804, %v2952
    %v2979 = vadd.f32 %v2805, %v2955
    %v2980 = vadd.f32 %v2806, %v2960
    %v2981 = vadd.f32 %v2807, %v2963
    %v2982 = vpack.c.bf16 %v2810, %v2809
    %v2983 = vpack.c.bf16 %v2812, %v2811
    %v2984 = vpack.c.bf16 %v2814, %v2813
    %v2985 = vpack.c.bf16 %v2816, %v2815
    %v2986 = vpack.c.bf16 %v2820, %v2819
    %v2987 = vpack.c.bf16 %v2822, %v2821
    %v2988 = vpack.c.bf16 %v2824, %v2823
    %v2989 = vpack.c.bf16 %v2826, %v2825
    %s2990 = scalar_lea.vmem [#allocation13], 40
    %v2991 = vld [vmem:[%s2990] sm:$0xf]
    %v2992 = vld [vmem:[%s2990 + $0x4] sm:$0xf]
    %v2995 = vunpack.c.l.b16 %v2991
    %v2996 = vunpack.c.l.b16 %v2992
    %v2997 = vpack.c.b16 %v2996, %v2995
    %v3000 = vsel %vm1704, %v2982, 0
    %v3003 = vsel %vm1704, %v2983, 0
    %v3006 = vsel %vm1704, %v2984, 0
    %v3009 = vsel %vm1704, %v2985, 0
    %v3012 = vsel %vm1704, %v2986, 0
    %v3015 = vsel %vm1704, %v2987, 0
    %v3018 = vsel %vm1704, %v2988, 0
    %v3021 = vsel %vm1704, %v2989, 0
    %3023 = vmatprep.subr.bf16.mxu0 0
    %3024 = vmatpush1.bf16.msra.mxu0 %v2997
    %3025 = vmatprep.subr.bf16.mxu0 0
    %3026 = vmatpush1.bf16.msra.mxu0 0
    %3027 = vmatprep.subr.bf16.mxu0 0
    %3028 = vmatpush1.bf16.msra.mxu0 0
    %3029 = vmatprep.subr.bf16.mxu0 0
    %3030 = vmatpush1.bf16.msra.mxu0 0
    %3031 = vmatprep.subr.bf16.mxu0 0
    %3032 = vmatpush1.bf16.msra.mxu0 0
    %3033 = vmatprep.subr.bf16.mxu0 0
    %3034 = vmatpush1.bf16.msra.mxu0 0
    %3035 = vmatprep.subr.bf16.mxu0 0
    %3036 = vmatpush1.bf16.msra.mxu0 0
    %3037 = vmatprep.subr.bf16.mxu0 0
    %3038 = vmatpush1.bf16.msra.mxu0 0
    %3039 = vmatprep.subr.bf16.mxu0 0
    %3040 = vmatpush1.bf16.msra.mxu0 0
    %3041 = vmatprep.subr.bf16.mxu0 0
    %3042 = vmatpush1.bf16.msra.mxu0 0
    %3043 = vmatprep.subr.bf16.mxu0 0
    %3044 = vmatpush1.bf16.msra.mxu0 0
    %3045 = vmatprep.subr.bf16.mxu0 0
    %3046 = vmatpush1.bf16.msra.mxu0 0
    %3047 = vmatprep.subr.bf16.mxu0 0
    %3048 = vmatpush1.bf16.msra.mxu0 0
    %3049 = vmatprep.subr.bf16.mxu0 0
    %3050 = vmatpush1.bf16.msra.mxu0 0
    %3051 = vmatprep.subr.bf16.mxu0 0
    %3052 = vmatpush1.bf16.msra.mxu0 0
    %3053 = vmatprep.subr.bf16.mxu0 0
    %3054 = vmatpush1.bf16.msra.mxu0 0
    %3055 = vmatprep.mubr.bf16.mxu0 0
    %3056 = vmatmul.mubr.bf16.gmra.mrb[0].mxu0 %v3000
    %v3057 = vpop.f32.mrb[0].mxu0
    %v3058 = vadd.f32 0.0, %v3057
    %v3059 = vpop.f32.mrb[0].mxu0
    %v3060 = vpop.f32.mrb[0].mxu0
    %v3061 = vadd.f32 0.0, %v3060
    %v3062 = vpop.f32.mrb[0].mxu0
    %3063 = vmatprep.mubr.bf16.mxu0 0
    %3064 = vmatmul.mubr.bf16.gmra.mrb[0].mxu0 %v3003
    %v3065 = vpop.f32.mrb[0].mxu0
    %v3066 = vadd.f32 0.0, %v3065
    %v3067 = vpop.f32.mrb[0].mxu0
    %v3068 = vpop.f32.mrb[0].mxu0
    %v3069 = vadd.f32 0.0, %v3068
    %v3070 = vpop.f32.mrb[0].mxu0
    %3071 = vmatprep.mubr.bf16.mxu0 0
    %3072 = vmatmul.mubr.bf16.gmra.mrb[0].mxu0 %v3006
    %v3073 = vpop.f32.mrb[0].mxu0
    %v3074 = vadd.f32 0.0, %v3073
    %v3075 = vpop.f32.mrb[0].mxu0
    %v3076 = vpop.f32.mrb[0].mxu0
    %v3077 = vadd.f32 0.0, %v3076
    %v3078 = vpop.f32.mrb[0].mxu0
    %3079 = vmatprep.mubr.bf16.mxu0 0
    %3080 = vmatmul.mubr.bf16.gmra.mrb[0].mxu0 %v3009
    %v3081 = vpop.f32.mrb[0].mxu0
    %v3082 = vadd.f32 0.0, %v3081
    %v3083 = vpop.f32.mrb[0].mxu0
    %v3084 = vpop.f32.mrb[0].mxu0
    %v3085 = vadd.f32 0.0, %v3084
    %v3086 = vpop.f32.mrb[0].mxu0
    %3087 = vmatprep.mubr.bf16.mxu0 0
    %3088 = vmatmul.mubr.bf16.gmra.mrb[0].mxu0 %v3012
    %v3089 = vpop.f32.mrb[0].mxu0
    %v3090 = vadd.f32 0.0, %v3089
    %v3091 = vpop.f32.mrb[0].mxu0
    %v3092 = vpop.f32.mrb[0].mxu0
    %v3093 = vadd.f32 0.0, %v3092
    %v3094 = vpop.f32.mrb[0].mxu0
    %3095 = vmatprep.mubr.bf16.mxu0 0
    %3096 = vmatmul.mubr.bf16.gmra.mrb[0].mxu0 %v3015
    %v3097 = vpop.f32.mrb[0].mxu0
    %v3098 = vadd.f32 0.0, %v3097
    %v3099 = vpop.f32.mrb[0].mxu0
    %v3100 = vpop.f32.mrb[0].mxu0
    %v3101 = vadd.f32 0.0, %v3100
    %v3102 = vpop.f32.mrb[0].mxu0
    %3103 = vmatprep.mubr.bf16.mxu0 0
    %3104 = vmatmul.mubr.bf16.gmra.mrb[0].mxu0 %v3018
    %v3105 = vpop.f32.mrb[0].mxu0
    %v3106 = vadd.f32 0.0, %v3105
    %v3107 = vpop.f32.mrb[0].mxu0
    %v3108 = vpop.f32.mrb[0].mxu0
    %v3109 = vadd.f32 0.0, %v3108
    %v3110 = vpop.f32.mrb[0].mxu0
    %3111 = vmatprep.mubr.bf16.mxu0 0
    %3112 = vmatmul.mubr.bf16.gmra.mrb[0].mxu0 %v3021
    %v3113 = vpop.f32.mrb[0].mxu0
    %v3114 = vadd.f32 0.0, %v3113
    %v3115 = vpop.f32.mrb[0].mxu0
    %v3116 = vpop.f32.mrb[0].mxu0
    %v3117 = vadd.f32 0.0, %v3116
    %v3118 = vpop.f32.mrb[0].mxu0
    %3119 = vdwg.mxu0
    %v3120 = vadd.f32 %v2966, %v3058
    %v3121 = vadd.f32 %v2967, %v3061
    %v3122 = vadd.f32 %v2968, %v3066
    %v3123 = vadd.f32 %v2969, %v3069
    %v3124 = vadd.f32 %v2970, %v3074
    %v3125 = vadd.f32 %v2971, %v3077
    %v3126 = vadd.f32 %v2972, %v3082
    %v3127 = vadd.f32 %v2973, %v3085
    %v3128 = vadd.f32 %v2974, %v3090
    %v3129 = vadd.f32 %v2975, %v3093
    %v3130 = vadd.f32 %v2976, %v3098
    %v3131 = vadd.f32 %v2977, %v3101
    %v3132 = vadd.f32 %v2978, %v3106
    %v3133 = vadd.f32 %v2979, %v3109
    %v3134 = vadd.f32 %v2980, %v3114
    %v3135 = vadd.f32 %v2981, %v3117
    %v3136 = vpack.c.bf16 %v2817, %v2816
    %v3137 = vpack.c.bf16 %v2827, %v2826
    %s3138 = scalar_lea.vmem [#allocation13], 64
    %v3139 = vld [vmem:[%s3138] sm:$0xf]
    %v3140 = vld [vmem:[%s3138 + $0x4] sm:$0xf]
    %v3143 = vunpack.c.l.b16 %v3139
    %v3144 = vunpack.c.l.b16 %v3140
    %v3145 = vpack.c.b16 %v3144, %v3143
    %v3148 = vsel %vm1704, %v3136, 0
    %v3151 = vsel %vm1704, %v3137, 0
    %3153 = vmatprep.subr.bf16.mxu0 0
    %3154 = vmatpush1.bf16.msra.mxu0 %v3145
    %3155 = vmatprep.subr.bf16.mxu0 0
    %3156 = vmatpush1.bf16.msra.mxu0 0
    %3157 = vmatprep.subr.bf16.mxu0 0
    %3158 = vmatpush1.bf16.msra.mxu0 0
    %3159 = vmatprep.subr.bf16.mxu0 0
    %3160 = vmatpush1.bf16.msra.mxu0 0
    %3161 = vmatprep.subr.bf16.mxu0 0
    %3162 = vmatpush1.bf16.msra.mxu0 0
    %3163 = vmatprep.subr.bf16.mxu0 0
    %3164 = vmatpush1.bf16.msra.mxu0 0
    %3165 = vmatprep.subr.bf16.mxu0 0
    %3166 = vmatpush1.bf16.msra.mxu0 0
    %3167 = vmatprep.subr.bf16.mxu0 0
    %3168 = vmatpush1.bf16.msra.mxu0 0
    %3169 = vmatprep.subr.bf16.mxu0 0
    %3170 = vmatpush1.bf16.msra.mxu0 0
    %3171 = vmatprep.subr.bf16.mxu0 0
    %3172 = vmatpush1.bf16.msra.mxu0 0
    %3173 = vmatprep.subr.bf16.mxu0 0
    %3174 = vmatpush1.bf16.msra.mxu0 0
    %3175 = vmatprep.subr.bf16.mxu0 0
    %3176 = vmatpush1.bf16.msra.mxu0 0
    %3177 = vmatprep.subr.bf16.mxu0 0
    %3178 = vmatpush1.bf16.msra.mxu0 0
    %3179 = vmatprep.subr.bf16.mxu0 0
    %3180 = vmatpush1.bf16.msra.mxu0 0
    %3181 = vmatprep.subr.bf16.mxu0 0
    %3182 = vmatpush1.bf16.msra.mxu0 0
    %3183 = vmatprep.subr.bf16.mxu0 0
    %3184 = vmatpush1.bf16.msra.mxu0 0
    %3185 = vmatprep.mubr.bf16.mxu0 0
    %3186 = vmatmul.mubr.bf16.gmra.mrb[0].mxu0 %v2849
    %v3187 = vpop.f32.mrb[0].mxu0
    %v3188 = vadd.f32 0.0, %v3187
    %v3189 = vpop.f32.mrb[0].mxu0
    %v3190 = vpop.f32.mrb[0].mxu0
    %v3191 = vadd.f32 0.0, %v3190
    %v3192 = vpop.f32.mrb[0].mxu0
    %3193 = vmatprep.mubr.bf16.mxu0 0
    %3194 = vmatmul.mubr.bf16.gmra.mrb[0].mxu0 %v2852
    %v3195 = vpop.f32.mrb[0].mxu0
    %v3196 = vadd.f32 0.0, %v3195
    %v3197 = vpop.f32.mrb[0].mxu0
    %v3198 = vpop.f32.mrb[0].mxu0
    %v3199 = vadd.f32 0.0, %v3198
    %v3200 = vpop.f32.mrb[0].mxu0
    %3201 = vmatprep.mubr.bf16.mxu0 0
    %3202 = vmatmul.mubr.bf16.gmra.mrb[0].mxu0 %v2855
    %v3203 = vpop.f32.mrb[0].mxu0
    %v3204 = vadd.f32 0.0, %v3203
    %v3205 = vpop.f32.mrb[0].mxu0
    %v3206 = vpop.f32.mrb[0].mxu0
    %v3207 = vadd.f32 0.0, %v3206
    %v3208 = vpop.f32.mrb[0].mxu0
    %3209 = vmatprep.mubr.bf16.mxu0 0
    %3210 = vmatmul.mubr.bf16.gmra.mrb[0].mxu0 %v3148
    %v3211 = vpop.f32.mrb[0].mxu0
    %v3212 = vadd.f32 0.0, %v3211
    %v3213 = vpop.f32.mrb[0].mxu0
    %v3214 = vpop.f32.mrb[0].mxu0
    %v3215 = vadd.f32 0.0, %v3214
    %v3216 = vpop.f32.mrb[0].mxu0
    %3217 = vmatprep.mubr.bf16.mxu0 0
    %3218 = vmatmul.mubr.bf16.gmra.mrb[0].mxu0 %v2861
    %v3219 = vpop.f32.mrb[0].mxu0
    %v3220 = vadd.f32 0.0, %v3219
    %v3221 = vpop.f32.mrb[0].mxu0
    %v3222 = vpop.f32.mrb[0].mxu0
    %v3223 = vadd.f32 0.0, %v3222
    %v3224 = vpop.f32.mrb[0].mxu0
    %3225 = vmatprep.mubr.bf16.mxu0 0
    %3226 = vmatmul.mubr.bf16.gmra.mrb[0].mxu0 %v2864
    %v3227 = vpop.f32.mrb[0].mxu0
    %v3228 = vadd.f32 0.0, %v3227
    %v3229 = vpop.f32.mrb[0].mxu0
    %v3230 = vpop.f32.mrb[0].mxu0
    %v3231 = vadd.f32 0.0, %v3230
    %v3232 = vpop.f32.mrb[0].mxu0
    %3233 = vmatprep.mubr.bf16.mxu0 0
    %3234 = vmatmul.mubr.bf16.gmra.mrb[0].mxu0 %v2867
    %v3235 = vpop.f32.mrb[0].mxu0
    %v3236 = vadd.f32 0.0, %v3235
    %v3237 = vpop.f32.mrb[0].mxu0
    %v3238 = vpop.f32.mrb[0].mxu0
    %v3239 = vadd.f32 0.0, %v3238
    %v3240 = vpop.f32.mrb[0].mxu0
    %3241 = vmatprep.mubr.bf16.mxu0 0
    %3242 = vmatmul.mubr.bf16.gmra.mrb[0].mxu0 %v3151
    %v3243 = vpop.f32.mrb[0].mxu0
    %v3244 = vadd.f32 0.0, %v3243
    %v3245 = vpop.f32.mrb[0].mxu0
    %v3246 = vpop.f32.mrb[0].mxu0
    %v3247 = vadd.f32 0.0, %v3246
    %v3248 = vpop.f32.mrb[0].mxu0
    %3249 = vdwg.mxu0
    %v3250 = vadd.f32 %v3120, %v3188
    %v3251 = vadd.f32 %v3121, %v3191
    %v3252 = vadd.f32 %v3122, %v3196
    %v3253 = vadd.f32 %v3123, %v3199
    %v3254 = vadd.f32 %v3124, %v3204
    %v3255 = vadd.f32 %v3125, %v3207
    %v3256 = vadd.f32 %v3126, %v3212
    %v3257 = vadd.f32 %v3127, %v3215
    %v3258 = vadd.f32 %v3128, %v3220
    %v3259 = vadd.f32 %v3129, %v3223
    %v3260 = vadd.f32 %v3130, %v3228
    %v3261 = vadd.f32 %v3131, %v3231
    %v3262 = vadd.f32 %v3132, %v3236
    %v3263 = vadd.f32 %v3133, %v3239
    %v3264 = vadd.f32 %v3134, %v3244
    %v3265 = vadd.f32 %v3135, %v3247
    %v3266 = vpack.c.bf16 %v3251, %v3250
    %v3267 = vpack.c.bf16 %v3253, %v3252
    %v3268 = vpack.c.bf16 %v3255, %v3254
    %v3269 = vpack.c.bf16 %v3257, %v3256
    %v3270 = vpack.c.bf16 %v3259, %v3258
    %v3271 = vpack.c.bf16 %v3261, %v3260
    %v3272 = vpack.c.bf16 %v3263, %v3262
    %v3273 = vpack.c.bf16 %v3265, %v3264
    %v3274 = vld [vmem:[%s6] sm:$0xf]
    %v3275 = vld [vmem:[%s6 + $0x4] sm:$0xf]
    %v3278 = vunpack.c.l.b16 %v3274
    %v3279 = vunpack.c.l.b16 %v3275
    %v3280 = vpack.c.b16 %v3279, %v3278
    %v3283 = vsel %vm1704, %v3266, 0
    %v3286 = vsel %vm1704, %v3267, 0
    %v3289 = vsel %vm1704, %v3268, 0
    %v3292 = vsel %vm1704, %v3269, 0
    %v3295 = vsel %vm1704, %v3270, 0
    %v3298 = vsel %vm1704, %v3271, 0
    %v3301 = vsel %vm1704, %v3272, 0
    %v3304 = vsel %vm1704, %v3273, 0
    %3306 = vmatprep.subr.bf16.mxu0 0
    %3307 = vmatpush1.bf16.msra.mxu0 %v3280
    %3308 = vmatprep.subr.bf16.mxu0 0
    %3309 = vmatpush1.bf16.msra.mxu0 0
    %3310 = vmatprep.subr.bf16.mxu0 0
    %3311 = vmatpush1.bf16.msra.mxu0 0
    %3312 = vmatprep.subr.bf16.mxu0 0
    %3313 = vmatpush1.bf16.msra.mxu0 0
    %3314 = vmatprep.subr.bf16.mxu0 0
    %3315 = vmatpush1.bf16.msra.mxu0 0
    %3316 = vmatprep.subr.bf16.mxu0 0
    %3317 = vmatpush1.bf16.msra.mxu0 0
    %3318 = vmatprep.subr.bf16.mxu0 0
    %3319 = vmatpush1.bf16.msra.mxu0 0
    %3320 = vmatprep.subr.bf16.mxu0 0
    %3321 = vmatpush1.bf16.msra.mxu0 0
    %3322 = vmatprep.subr.bf16.mxu0 0
    %3323 = vmatpush1.bf16.msra.mxu0 0
    %3324 = vmatprep.subr.bf16.mxu0 0
    %3325 = vmatpush1.bf16.msra.mxu0 0
    %3326 = vmatprep.subr.bf16.mxu0 0
    %3327 = vmatpush1.bf16.msra.mxu0 0
    %3328 = vmatprep.subr.bf16.mxu0 0
    %3329 = vmatpush1.bf16.msra.mxu0 0
    %3330 = vmatprep.subr.bf16.mxu0 0
    %3331 = vmatpush1.bf16.msra.mxu0 0
    %3332 = vmatprep.subr.bf16.mxu0 0
    %3333 = vmatpush1.bf16.msra.mxu0 0
    %3334 = vmatprep.subr.bf16.mxu0 0
    %3335 = vmatpush1.bf16.msra.mxu0 0
    %3336 = vmatprep.subr.bf16.mxu0 0
    %3337 = vmatpush1.bf16.msra.mxu0 0
    %3338 = vmatprep.mubr.bf16.mxu0 0
    %3339 = vmatmul.mubr.bf16.gmra.mrb[0].mxu0 %v3283
    %v3340 = vpop.f32.mrb[0].mxu0
    %v3341 = vadd.f32 0.0, %v3340
    %v3342 = vpop.f32.mrb[0].mxu0
    %v3343 = vpop.f32.mrb[0].mxu0
    %v3344 = vadd.f32 0.0, %v3343
    %v3345 = vpop.f32.mrb[0].mxu0
    %3346 = vmatprep.mubr.bf16.mxu0 0
    %3347 = vmatmul.mubr.bf16.gmra.mrb[0].mxu0 %v3286
    %v3348 = vpop.f32.mrb[0].mxu0
    %v3349 = vadd.f32 0.0, %v3348
    %v3350 = vpop.f32.mrb[0].mxu0
    %v3351 = vpop.f32.mrb[0].mxu0
    %v3352 = vadd.f32 0.0, %v3351
    %v3353 = vpop.f32.mrb[0].mxu0
    %3354 = vmatprep.mubr.bf16.mxu0 0
    %3355 = vmatmul.mubr.bf16.gmra.mrb[0].mxu0 %v3289
    %v3356 = vpop.f32.mrb[0].mxu0
    %v3357 = vadd.f32 0.0, %v3356
    %v3358 = vpop.f32.mrb[0].mxu0
    %v3359 = vpop.f32.mrb[0].mxu0
    %v3360 = vadd.f32 0.0, %v3359
    %v3361 = vpop.f32.mrb[0].mxu0
    %3362 = vmatprep.mubr.bf16.mxu0 0
    %3363 = vmatmul.mubr.bf16.gmra.mrb[0].mxu0 %v3292
    %v3364 = vpop.f32.mrb[0].mxu0
    %v3365 = vadd.f32 0.0, %v3364
    %v3366 = vpop.f32.mrb[0].mxu0
    %v3367 = vpop.f32.mrb[0].mxu0
    %v3368 = vadd.f32 0.0, %v3367
    %v3369 = vpop.f32.mrb[0].mxu0
    %3370 = vmatprep.mubr.bf16.mxu0 0
    %3371 = vmatmul.mubr.bf16.gmra.mrb[0].mxu0 %v3295
    %v3372 = vpop.f32.mrb[0].mxu0
    %v3373 = vadd.f32 0.0, %v3372
    %v3374 = vpop.f32.mrb[0].mxu0
    %v3375 = vpop.f32.mrb[0].mxu0
    %v3376 = vadd.f32 0.0, %v3375
    %v3377 = vpop.f32.mrb[0].mxu0
    %3378 = vmatprep.mubr.bf16.mxu0 0
    %3379 = vmatmul.mubr.bf16.gmra.mrb[0].mxu0 %v3298
    %v3380 = vpop.f32.mrb[0].mxu0
    %v3381 = vadd.f32 0.0, %v3380
    %v3382 = vpop.f32.mrb[0].mxu0
    %v3383 = vpop.f32.mrb[0].mxu0
    %v3384 = vadd.f32 0.0, %v3383
    %v3385 = vpop.f32.mrb[0].mxu0
    %3386 = vmatprep.mubr.bf16.mxu0 0
    %3387 = vmatmul.mubr.bf16.gmra.mrb[0].mxu0 %v3301
    %v3388 = vpop.f32.mrb[0].mxu0
    %v3389 = vadd.f32 0.0, %v3388
    %v3390 = vpop.f32.mrb[0].mxu0
    %v3391 = vpop.f32.mrb[0].mxu0
    %v3392 = vadd.f32 0.0, %v3391
    %v3393 = vpop.f32.mrb[0].mxu0
    %3394 = vmatprep.mubr.bf16.mxu0 0
    %3395 = vmatmul.mubr.bf16.gmra.mrb[0].mxu0 %v3304
    %v3396 = vpop.f32.mrb[0].mxu0
    %v3397 = vadd.f32 0.0, %v3396
    %v3398 = vpop.f32.mrb[0].mxu0
    %v3399 = vpop.f32.mrb[0].mxu0
    %v3400 = vadd.f32 0.0, %v3399
    %v3401 = vpop.f32.mrb[0].mxu0
    %3402 = vdwg.mxu0
    %v3403 = vld [vmem:[#allocation15] sm:$0x1]
    %v3404 = vld [vmem:[#allocation16] sm:$0x1]
    %v3405 = vsel %vm1704, %v3341, 0.0
    %v3406 = vsel %vm1704, %v3344, 0.0
    %v3407 = vadd.f32 %v3405, %v3406
    %v3408 = vsel %vm1704, %v3349, 0.0
    %v3409 = vadd.f32 %v3407, %v3408
    %v3410 = vsel %vm1704, %v3352, 0.0
    %v3411 = vadd.f32 %v3409, %v3410
    %v3412 = vsel %vm1704, %v3357, 0.0
    %v3413 = vadd.f32 %v3411, %v3412
    %v3414 = vsel %vm1704, %v3360, 0.0
    %v3415 = vadd.f32 %v3413, %v3414
    %v3416 = vsel %vm1704, %v3365, 0.0
    %v3417 = vadd.f32 %v3415, %v3416
    %v3418 = vsel %vm1704, %v3368, 0.0
    %v3419 = vadd.f32 %v3417, %v3418
    %v3420 = vsel %vm1704, %v3373, 0.0
    %v3421 = vadd.f32 %v3419, %v3420
    %v3422 = vsel %vm1704, %v3376, 0.0
    %v3423 = vadd.f32 %v3421, %v3422
    %v3424 = vsel %vm1704, %v3381, 0.0
    %v3425 = vadd.f32 %v3423, %v3424
    %v3426 = vsel %vm1704, %v3384, 0.0
    %v3427 = vadd.f32 %v3425, %v3426
    %v3428 = vsel %vm1704, %v3389, 0.0
    %v3429 = vadd.f32 %v3427, %v3428
    %v3430 = vsel %vm1704, %v3392, 0.0
    %v3431 = vadd.f32 %v3429, %v3430
    %v3432 = vsel %vm1704, %v3397, 0.0
    %v3433 = vadd.f32 %v3431, %v3432
    %v3434 = vsel %vm1704, %v3400, 0.0
    %v3435 = vadd.f32 %v3433, %v3434
    %v3436 = vrot.slane %v3435, 4
    %v3437 = vadd.f32 %v3435, %v3436
    %v3438 = vrot.slane %v3437, 2
    %v3439 = vadd.f32 %v3437, %v3438
    %v3440 = vrot.slane %v3439, 1
    %v3441 = vadd.f32 %v3439, %v3440
    %v3442 = vmul.f32 %v3441, 0.0078125
    %v3443 = vmul.f32 %v3341, %v3341
    %v3444 = vmul.f32 %v3344, %v3344
    %v3445 = vmul.f32 %v3349, %v3349
    %v3446 = vmul.f32 %v3352, %v3352
    %v3447 = vmul.f32 %v3357, %v3357
    %v3448 = vmul.f32 %v3360, %v3360
    %v3449 = vmul.f32 %v3365, %v3365
    %v3450 = vmul.f32 %v3368, %v3368
    %v3451 = vmul.f32 %v3373, %v3373
    %v3452 = vmul.f32 %v3376, %v3376
    %v3453 = vmul.f32 %v3381, %v3381
    %v3454 = vmul.f32 %v3384, %v3384
    %v3455 = vmul.f32 %v3389, %v3389
    %v3456 = vmul.f32 %v3392, %v3392
    %v3457 = vmul.f32 %v3397, %v3397
    %v3458 = vmul.f32 %v3400, %v3400
    %v3459 = vsel %vm1704, %v3443, 0.0
    %v3460 = vsel %vm1704, %v3444, 0.0
    %v3461 = vadd.f32 %v3459, %v3460
    %v3462 = vsel %vm1704, %v3445, 0.0
    %v3463 = vadd.f32 %v3461, %v3462
    %v3464 = vsel %vm1704, %v3446, 0.0
    %v3465 = vadd.f32 %v3463, %v3464
    %v3466 = vsel %vm1704, %v3447, 0.0
    %v3467 = vadd.f32 %v3465, %v3466
    %v3468 = vsel %vm1704, %v3448, 0.0
    %v3469 = vadd.f32 %v3467, %v3468
    %v3470 = vsel %vm1704, %v3449, 0.0
    %v3471 = vadd.f32 %v3469, %v3470
    %v3472 = vsel %vm1704, %v3450, 0.0
    %v3473 = vadd.f32 %v3471, %v3472
    %v3474 = vsel %vm1704, %v3451, 0.0
    %v3475 = vadd.f32 %v3473, %v3474
    %v3476 = vsel %vm1704, %v3452, 0.0
    %v3477 = vadd.f32 %v3475, %v3476
    %v3478 = vsel %vm1704, %v3453, 0.0
    %v3479 = vadd.f32 %v3477, %v3478
    %v3480 = vsel %vm1704, %v3454, 0.0
    %v3481 = vadd.f32 %v3479, %v3480
    %v3482 = vsel %vm1704, %v3455, 0.0
    %v3483 = vadd.f32 %v3481, %v3482
    %v3484 = vsel %vm1704, %v3456, 0.0
    %v3485 = vadd.f32 %v3483, %v3484
    %v3486 = vsel %vm1704, %v3457, 0.0
    %v3487 = vadd.f32 %v3485, %v3486
    %v3488 = vsel %vm1704, %v3458, 0.0
    %v3489 = vadd.f32 %v3487, %v3488
    %v3490 = vrot.slane %v3489, 4
    %v3491 = vadd.f32 %v3489, %v3490
    %v3492 = vrot.slane %v3491, 2
    %v3493 = vadd.f32 %v3491, %v3492
    %v3494 = vrot.slane %v3493, 1
    %v3495 = vadd.f32 %v3493, %v3494
    %v3496 = vmul.f32 %v3495, 0.0078125
    %v3497 = vmul.f32 %v3442, %v3442
    %v3498 = vsub.f32 %v3496, %v3497
    %v3499 = vmax.f32 %v3498, 0.0
    %v3500 = vadd.f32 %v3499, 1e-05
    %v3501 = vrsqrt.pop %v3500
    %v3502 = vmul.f32 %v3403, %v3501
    %v3503 = vmul.f32 %v3502, %v3442
    %v3504 = vsub.f32 %v3404, %v3503
    %v3506 = vlaneseq
    %v3507 = vshrl.u32 %v3506, 7
    %v3508 = vsub.s32 0, %v3507
    %v3509 = vrot.slane %v3502, %v3508
    %v3511 = vmul.f32 %v3341, %v3509
    %v3512 = vmul.f32 %v3344, %v3509
    %v3513 = vmul.f32 %v3349, %v3509
    %v3514 = vmul.f32 %v3352, %v3509
    %v3515 = vmul.f32 %v3357, %v3509
    %v3516 = vmul.f32 %v3360, %v3509
    %v3517 = vmul.f32 %v3365, %v3509
    %v3518 = vmul.f32 %v3368, %v3509
    %v3519 = vmul.f32 %v3373, %v3509
    %v3520 = vmul.f32 %v3376, %v3509
    %v3521 = vmul.f32 %v3381, %v3509
    %v3522 = vmul.f32 %v3384, %v3509
    %v3523 = vmul.f32 %v3389, %v3509
    %v3524 = vmul.f32 %v3392, %v3509
    %v3525 = vmul.f32 %v3397, %v3509
    %v3526 = vmul.f32 %v3400, %v3509
    %v3528 = vlaneseq
    %v3529 = vshrl.u32 %v3528, 7
    %v3530 = vsub.s32 0, %v3529
    %v3531 = vrot.slane %v3504, %v3530
    %v3533 = vadd.f32 %v3511, %v3531
    %v3534 = vadd.f32 %v3512, %v3531
    %v3535 = vadd.f32 %v3513, %v3531
    %v3536 = vadd.f32 %v3514, %v3531
    %v3537 = vadd.f32 %v3515, %v3531
    %v3538 = vadd.f32 %v3516, %v3531
    %v3539 = vadd.f32 %v3517, %v3531
    %v3540 = vadd.f32 %v3518, %v3531
    %v3541 = vadd.f32 %v3519, %v3531
    %v3542 = vadd.f32 %v3520, %v3531
    %v3543 = vadd.f32 %v3521, %v3531
    %v3544 = vadd.f32 %v3522, %v3531
    %v3545 = vadd.f32 %v3523, %v3531
    %v3546 = vadd.f32 %v3524, %v3531
    %v3547 = vadd.f32 %v3525, %v3531
    %v3548 = vadd.f32 %v3526, %v3531
    %s3549 = scalar_lea.vmem [#allocation4], 16
    %3550 = vst.msk [vmem:[%s3549 + $0x1] sm:$0xff] %vm1704, %v3533
    %3551 = vst.msk [vmem:[%s3549 + $0x11] sm:$0xff] %vm1704, %v3534
    %3552 = vst.msk [vmem:[%s3549 + $0x21] sm:$0xff] %vm1704, %v3535
    %3553 = vst.msk [vmem:[%s3549 + $0x31] sm:$0xff] %vm1704, %v3536
    %3554 = vst.msk [vmem:[%s3549 + $0x41] sm:$0xff] %vm1704, %v3537
    %3555 = vst.msk [vmem:[%s3549 + $0x51] sm:$0xff] %vm1704, %v3538
    %3556 = vst.msk [vmem:[%s3549 + $0x61] sm:$0xff] %vm1704, %v3539
    %3557 = vst.msk [vmem:[%s3549 + $0x71] sm:$0xff] %vm1704, %v3540
    %3558 = vst.msk [vmem:[%s3549 + $0xa1] sm:$0xff] %vm1704, %v3541
    %3559 = vst.msk [vmem:[%s3549 + $0xb1] sm:$0xff] %vm1704, %v3542
    %3560 = vst.msk [vmem:[%s3549 + $0xc1] sm:$0xff] %vm1704, %v3543
    %3561 = vst.msk [vmem:[%s3549 + $0xd1] sm:$0xff] %vm1704, %v3544
    %3562 = vst.msk [vmem:[%s3549 + $0xe1] sm:$0xff] %vm1704, %v3545
    %3563 = vst.msk [vmem:[%s3549 + $0xf1] sm:$0xff] %vm1704, %v3546
    %3564 = vst.msk [vmem:[%s3549 + $0x101] sm:$0xff] %vm1704, %v3547
    %3565 = vst.msk [vmem:[%s3549 + $0x111] sm:$0xff] %vm1704, %v3548
    %3566 = vst.msk [vmem:[#allocation4] sm:$0xff] %vm1704, -inf
    %3567 = vst.msk [vmem:[#allocation4 + $0x8] sm:$0x3] %vm1883, -inf
    %3568 = vst.msk [vmem:[#allocation4 + $0xa0] sm:$0xff] %vm1704, -inf
    %3569 = vst.msk [vmem:[#allocation4 + $0xa8] sm:$0x3] %vm1883, -inf
    %s3570 = scalar_lea.vmem [#allocation4], 144
    %3571 = vst.msk [vmem:[%s3570] sm:$0xff] %vm1704, -inf
    %3572 = vst.msk [vmem:[%s3570 + $0x8] sm:$0x3] %vm1883, -inf
    %3573 = vst.msk [vmem:[%s3570 + $0xa0] sm:$0xff] %vm1704, -inf
    %3574 = vst.msk [vmem:[%s3570 + $0xa8] sm:$0x3] %vm1883, -inf
    %3575 = vst.msk [vmem:[%s3549] sm:$0x1] %vm1892, -inf
    %3576 = vst.msk [vmem:[%s3549 + $0x10] sm:$0x1] %vm1892, -inf
    %3577 = vst.msk [vmem:[%s3549 + $0x20] sm:$0x1] %vm1892, -inf
    %3578 = vst.msk [vmem:[%s3549 + $0x30] sm:$0x1] %vm1892, -inf
    %3579 = vst.msk [vmem:[%s3549 + $0x40] sm:$0x1] %vm1892, -inf
    %3580 = vst.msk [vmem:[%s3549 + $0x50] sm:$0x1] %vm1892, -inf
    %3581 = vst.msk [vmem:[%s3549 + $0x60] sm:$0x1] %vm1892, -inf
    %3582 = vst.msk [vmem:[%s3549 + $0x70] sm:$0x1] %vm1892, -inf
    %3583 = vst.msk [vmem:[%s3549 + $0xa0] sm:$0x1] %vm1892, -inf
    %3584 = vst.msk [vmem:[%s3549 + $0xb0] sm:$0x1] %vm1892, -inf
    %3585 = vst.msk [vmem:[%s3549 + $0xc0] sm:$0x1] %vm1892, -inf
    %3586 = vst.msk [vmem:[%s3549 + $0xd0] sm:$0x1] %vm1892, -inf
    %3587 = vst.msk [vmem:[%s3549 + $0xe0] sm:$0x1] %vm1892, -inf
    %3588 = vst.msk [vmem:[%s3549 + $0xf0] sm:$0x1] %vm1892, -inf
    %3589 = vst.msk [vmem:[%s3549 + $0x100] sm:$0x1] %vm1892, -inf
    %3590 = vst.msk [vmem:[%s3549 + $0x110] sm:$0x1] %vm1892, -inf
    %3591 = vst.msk [vmem:[%s3549 + $0x9] sm:$0x1] %vm1892, -inf
    %3592 = vst.msk [vmem:[%s3549 + $0x19] sm:$0x1] %vm1892, -inf
    %3593 = vst.msk [vmem:[%s3549 + $0x29] sm:$0x1] %vm1892, -inf
    %3594 = vst.msk [vmem:[%s3549 + $0x39] sm:$0x1] %vm1892, -inf
    %3595 = vst.msk [vmem:[%s3549 + $0x49] sm:$0x1] %vm1892, -inf
    %3596 = vst.msk [vmem:[%s3549 + $0x59] sm:$0x1] %vm1892, -inf
    %3597 = vst.msk [vmem:[%s3549 + $0x69] sm:$0x1] %vm1892, -inf
    %3598 = vst.msk [vmem:[%s3549 + $0x79] sm:$0x1] %vm1892, -inf
    %3599 = vst.msk [vmem:[%s3549 + $0xa9] sm:$0x1] %vm1892, -inf
    %3600 = vst.msk [vmem:[%s3549 + $0xb9] sm:$0x1] %vm1892, -inf
    %3601 = vst.msk [vmem:[%s3549 + $0xc9] sm:$0x1] %vm1892, -inf
    %3602 = vst.msk [vmem:[%s3549 + $0xd9] sm:$0x1] %vm1892, -inf
    %3603 = vst.msk [vmem:[%s3549 + $0xe9] sm:$0x1] %vm1892, -inf
    %3604 = vst.msk [vmem:[%s3549 + $0xf9] sm:$0x1] %vm1892, -inf
    %3605 = vst.msk [vmem:[%s3549 + $0x109] sm:$0x1] %vm1892, -inf
    %3606 = vst.msk [vmem:[%s3549 + $0x119] sm:$0x1] %vm1892, -inf
    %v3607 = vld [vmem:[#allocation4] ss:$2 sm:$0xf]
    %s3608 = scalar_lea.vmem [#allocation4], 16
    %v3609 = vld [vmem:[%s3608] ss:$2 sm:$0xf]
    %s3610 = scalar_lea.vmem [#allocation4], 32
    %v3611 = vld [vmem:[%s3610] ss:$2 sm:$0xf]
    %s3612 = scalar_lea.vmem [#allocation4], 48
    %v3613 = vld [vmem:[%s3612] ss:$2 sm:$0xf]
    %s3614 = scalar_lea.vmem [#allocation4], 64
    %v3615 = vld [vmem:[%s3614] ss:$2 sm:$0xf]
    %s3616 = scalar_lea.vmem [#allocation4], 80
    %v3617 = vld [vmem:[%s3616] ss:$2 sm:$0xf]
    %s3618 = scalar_lea.vmem [#allocation4], 96
    %v3619 = vld [vmem:[%s3618] ss:$2 sm:$0xf]
    %s3620 = scalar_lea.vmem [#allocation4], 112
    %v3621 = vld [vmem:[%s3620] ss:$2 sm:$0xf]
    %s3622 = scalar_lea.vmem [#allocation4], 128
    %v3623 = vld [vmem:[%s3622] ss:$2 sm:$0xf]
    %s3624 = scalar_lea.vmem [#allocation4], 160
    %v3625 = vld [vmem:[%s3624] ss:$2 sm:$0xf]
    %s3626 = scalar_lea.vmem [#allocation4], 176
    %v3627 = vld [vmem:[%s3626] ss:$2 sm:$0xf]
    %s3628 = scalar_lea.vmem [#allocation4], 192
    %v3629 = vld [vmem:[%s3628] ss:$2 sm:$0xf]
    %s3630 = scalar_lea.vmem [#allocation4], 208
    %v3631 = vld [vmem:[%s3630] ss:$2 sm:$0xf]
    %s3632 = scalar_lea.vmem [#allocation4], 224
    %v3633 = vld [vmem:[%s3632] ss:$2 sm:$0xf]
    %s3634 = scalar_lea.vmem [#allocation4], 240
    %v3635 = vld [vmem:[%s3634] ss:$2 sm:$0xf]
    %s3636 = scalar_lea.vmem [#allocation4], 256
    %v3637 = vld [vmem:[%s3636] ss:$2 sm:$0xf]
    %s3638 = scalar_lea.vmem [#allocation4], 272
    %v3639 = vld [vmem:[%s3638] ss:$2 sm:$0xf]
    %s3640 = scalar_lea.vmem [#allocation4], 288
    %v3641 = vld [vmem:[%s3640] ss:$2 sm:$0xf]
    %v3642 = vmax.f32 %v3607, %v3609
    %v3643 = vmax.f32 %v3611, %v3613
    %v3644 = vmax.f32 %v3615, %v3617
    %v3645 = vmax.f32 %v3619, %v3621
    %v3646 = vmax.f32 %v3625, %v3627
    %v3647 = vmax.f32 %v3629, %v3631
    %v3648 = vmax.f32 %v3633, %v3635
    %v3649 = vmax.f32 %v3637, %v3639
    %v3650 = vmax.f32 %v3642, %v3611
    %v3651 = vmax.f32 %v3643, %v3615
    %v3652 = vmax.f32 %v3644, %v3619
    %v3653 = vmax.f32 %v3645, %v3623
    %v3654 = vmax.f32 %v3646, %v3629
    %v3655 = vmax.f32 %v3647, %v3633
    %v3656 = vmax.f32 %v3648, %v3637
    %v3657 = vmax.f32 %v3649, %v3641
    %s3658 = scalar_lea.vmem [#allocation4], 1
    %v3659 = vld [vmem:[%s3658] ss:$2 sm:$0xf]
    %s3660 = scalar_lea.vmem [#allocation4], 17
    %v3661 = vld [vmem:[%s3660] ss:$2 sm:$0xf]
    %s3662 = scalar_lea.vmem [#allocation4], 33
    %v3663 = vld [vmem:[%s3662] ss:$2 sm:$0xf]
    %s3664 = scalar_lea.vmem [#allocation4], 49
    %v3665 = vld [vmem:[%s3664] ss:$2 sm:$0xf]
    %s3666 = scalar_lea.vmem [#allocation4], 65
    %v3667 = vld [vmem:[%s3666] ss:$2 sm:$0xf]
    %s3668 = scalar_lea.vmem [#allocation4], 81
    %v3669 = vld [vmem:[%s3668] ss:$2 sm:$0xf]
    %s3670 = scalar_lea.vmem [#allocation4], 97
    %v3671 = vld [vmem:[%s3670] ss:$2 sm:$0xf]
    %s3672 = scalar_lea.vmem [#allocation4], 113
    %v3673 = vld [vmem:[%s3672] ss:$2 sm:$0xf]
    %s3674 = scalar_lea.vmem [#allocation4], 129
    %v3675 = vld [vmem:[%s3674] ss:$2 sm:$0xf]
    %s3676 = scalar_lea.vmem [#allocation4], 161
    %v3677 = vld [vmem:[%s3676] ss:$2 sm:$0xf]
    %s3678 = scalar_lea.vmem [#allocation4], 177
    %v3679 = vld [vmem:[%s3678] ss:$2 sm:$0xf]
    %s3680 = scalar_lea.vmem [#allocation4], 193
    %v3681 = vld [vmem:[%s3680] ss:$2 sm:$0xf]
    %s3682 = scalar_lea.vmem [#allocation4], 209
    %v3683 = vld [vmem:[%s3682] ss:$2 sm:$0xf]
    %s3684 = scalar_lea.vmem [#allocation4], 225
    %v3685 = vld [vmem:[%s3684] ss:$2 sm:$0xf]
    %s3686 = scalar_lea.vmem [#allocation4], 241
    %v3687 = vld [vmem:[%s3686] ss:$2 sm:$0xf]
    %s3688 = scalar_lea.vmem [#allocation4], 257
    %v3689 = vld [vmem:[%s3688] ss:$2 sm:$0xf]
    %s3690 = scalar_lea.vmem [#allocation4], 273
    %v3691 = vld [vmem:[%s3690] ss:$2 sm:$0xf]
    %s3692 = scalar_lea.vmem [#allocation4], 289
    %v3693 = vld [vmem:[%s3692] ss:$2 sm:$0xf]
    %v3694 = vmax.f32 %v3650, %v3659
    %v3695 = vmax.f32 %v3651, %v3663
    %v3696 = vmax.f32 %v3652, %v3667
    %v3697 = vmax.f32 %v3653, %v3671
    %v3698 = vmax.f32 %v3654, %v3677
    %v3699 = vmax.f32 %v3655, %v3681
    %v3700 = vmax.f32 %v3656, %v3685
    %v3701 = vmax.f32 %v3657, %v3689
    %v3702 = vmax.f32 %v3694, %v3661
    %v3703 = vmax.f32 %v3695, %v3665
    %v3704 = vmax.f32 %v3696, %v3669
    %v3705 = vmax.f32 %v3697, %v3673
    %v3706 = vmax.f32 %v3698, %v3679
    %v3707 = vmax.f32 %v3699, %v3683
    %v3708 = vmax.f32 %v3700, %v3687
    %v3709 = vmax.f32 %v3701, %v3691
    %v3710 = vmax.f32 %v3702, %v3663
    %v3711 = vmax.f32 %v3703, %v3667
    %v3712 = vmax.f32 %v3704, %v3671
    %v3713 = vmax.f32 %v3705, %v3675
    %v3714 = vmax.f32 %v3706, %v3681
    %v3715 = vmax.f32 %v3707, %v3685
    %v3716 = vmax.f32 %v3708, %v3689
    %v3717 = vmax.f32 %v3709, %v3693
    %s3718 = scalar_lea.vmem [#allocation4], 2
    %v3719 = vld [vmem:[%s3718] ss:$2 sm:$0xf]
    %s3720 = scalar_lea.vmem [#allocation4], 18
    %v3721 = vld [vmem:[%s3720] ss:$2 sm:$0xf]
    %s3722 = scalar_lea.vmem [#allocation4], 34
    %v3723 = vld [vmem:[%s3722] ss:$2 sm:$0xf]
    %s3724 = scalar_lea.vmem [#allocation4], 50
    %v3725 = vld [vmem:[%s3724] ss:$2 sm:$0xf]
    %s3726 = scalar_lea.vmem [#allocation4], 66
    %v3727 = vld [vmem:[%s3726] ss:$2 sm:$0xf]
    %s3728 = scalar_lea.vmem [#allocation4], 82
    %v3729 = vld [vmem:[%s3728] ss:$2 sm:$0xf]
    %s3730 = scalar_lea.vmem [#allocation4], 98
    %v3731 = vld [vmem:[%s3730] ss:$2 sm:$0xf]
    %s3732 = scalar_lea.vmem [#allocation4], 114
    %v3733 = vld [vmem:[%s3732] ss:$2 sm:$0xf]
    %s3734 = scalar_lea.vmem [#allocation4], 130
    %v3735 = vld [vmem:[%s3734] ss:$2 sm:$0xf]
    %s3736 = scalar_lea.vmem [#allocation4], 162
    %v3737 = vld [vmem:[%s3736] ss:$2 sm:$0xf]
    %s3738 = scalar_lea.vmem [#allocation4], 178
    %v3739 = vld [vmem:[%s3738] ss:$2 sm:$0xf]
    %s3740 = scalar_lea.vmem [#allocation4], 194
    %v3741 = vld [vmem:[%s3740] ss:$2 sm:$0xf]
    %s3742 = scalar_lea.vmem [#allocation4], 210
    %v3743 = vld [vmem:[%s3742] ss:$2 sm:$0xf]
    %s3744 = scalar_lea.vmem [#allocation4], 226
    %v3745 = vld [vmem:[%s3744] ss:$2 sm:$0xf]
    %s3746 = scalar_lea.vmem [#allocation4], 242
    %v3747 = vld [vmem:[%s3746] ss:$2 sm:$0xf]
    %s3748 = scalar_lea.vmem [#allocation4], 258
    %v3749 = vld [vmem:[%s3748] ss:$2 sm:$0xf]
    %s3750 = scalar_lea.vmem [#allocation4], 274
    %v3751 = vld [vmem:[%s3750] ss:$2 sm:$0xf]
    %s3752 = scalar_lea.vmem [#allocation4], 290
    %v3753 = vld [vmem:[%s3752] ss:$2 sm:$0xf]
    %v3754 = vmax.f32 %v3710, %v3719
    %v3755 = vmax.f32 %v3711, %v3723
    %v3756 = vmax.f32 %v3712, %v3727
    %v3757 = vmax.f32 %v3713, %v3731
    %v3758 = vmax.f32 %v3714, %v3737
    %v3759 = vmax.f32 %v3715, %v3741
    %v3760 = vmax.f32 %v3716, %v3745
    %v3761 = vmax.f32 %v3717, %v3749
    %v3762 = vmax.f32 %v3754, %v3721
    %v3763 = vmax.f32 %v3755, %v3725
    %v3764 = vmax.f32 %v3756, %v3729
    %v3765 = vmax.f32 %v3757, %v3733
    %v3766 = vmax.f32 %v3758, %v3739
    %v3767 = vmax.f32 %v3759, %v3743
    %v3768 = vmax.f32 %v3760, %v3747
    %v3769 = vmax.f32 %v3761, %v3751
    %v3770 = vmax.f32 %v3762, %v3723
    %v3771 = vmax.f32 %v3763, %v3727
    %v3772 = vmax.f32 %v3764, %v3731
    %v3773 = vmax.f32 %v3765, %v3735
    %v3774 = vmax.f32 %v3766, %v3741
    %v3775 = vmax.f32 %v3767, %v3745
    %v3776 = vmax.f32 %v3768, %v3749
    %v3777 = vmax.f32 %v3769, %v3753
    %v3778 = vld [vmem:[#allocation7] ss:$2 sm:$0xf]
    %s3779 = scalar_lea.vmem [#allocation7], 16
    %v3780 = vld [vmem:[%s3779] ss:$2 sm:$0xf]
    %s3781 = scalar_lea.vmem [#allocation7], 32
    %v3782 = vld [vmem:[%s3781] ss:$2 sm:$0xf]
    %s3783 = scalar_lea.vmem [#allocation7], 48
    %v3784 = vld [vmem:[%s3783] ss:$2 sm:$0xf]
    %s3785 = scalar_lea.vmem [#allocation7], 64
    %v3786 = vld [vmem:[%s3785] ss:$2 sm:$0xf]
    %s3787 = scalar_lea.vmem [#allocation7], 80
    %v3788 = vld [vmem:[%s3787] ss:$2 sm:$0xf]
    %s3789 = scalar_lea.vmem [#allocation7], 96
    %v3790 = vld [vmem:[%s3789] ss:$2 sm:$0xf]
    %s3791 = scalar_lea.vmem [#allocation7], 112
    %v3792 = vld [vmem:[%s3791] ss:$2 sm:$0xf]
    %v3801 = vcombine.low %v3778, %v3780
    %v3802 = vcombine.low %v3782, %v3784
    %v3803 = vcombine.low %v3786, %v3788
    %v3804 = vcombine.low %v3790, %v3792
    %v3809 = vpack.c.bf16 %v3802, %v3801
    %v3810 = vpack.c.bf16 %v3804, %v3803
    %v3811 = vld [vmem:[%s9] sm:$0xf]
    %v3813 = vsel %vm203, %v3809, 0
    %v3816 = vsel %vm203, %v3810, 0
    %v3819 = vsel %vm326, %v3811, 0
    %3821 = vmatprep.subr.bf16.mxu0 0
    %3822 = vmatpush1.bf16.msra.mxu0 %v3819
    %3823 = vmatprep.subr.bf16.mxu0 0
    %3824 = vmatpush1.bf16.msra.mxu0 0
    %3825 = vmatprep.subr.bf16.mxu0 0
    %3826 = vmatpush1.bf16.msra.mxu0 0
    %3827 = vmatprep.subr.bf16.mxu0 0
    %3828 = vmatpush1.bf16.msra.mxu0 0
    %3829 = vmatprep.subr.bf16.mxu0 0
    %3830 = vmatpush1.bf16.msra.mxu0 0
    %3831 = vmatprep.subr.bf16.mxu0 0
    %3832 = vmatpush1.bf16.msra.mxu0 0
    %3833 = vmatprep.subr.bf16.mxu0 0
    %3834 = vmatpush1.bf16.msra.mxu0 0
    %3835 = vmatprep.subr.bf16.mxu0 0
    %3836 = vmatpush1.bf16.msra.mxu0 0
    %3837 = vmatprep.subr.bf16.mxu0 0
    %3838 = vmatpush1.bf16.msra.mxu0 0
    %3839 = vmatprep.subr.bf16.mxu0 0
    %3840 = vmatpush1.bf16.msra.mxu0 0
    %3841 = vmatprep.subr.bf16.mxu0 0
    %3842 = vmatpush1.bf16.msra.mxu0 0
    %3843 = vmatprep.subr.bf16.mxu0 0
    %3844 = vmatpush1.bf16.msra.mxu0 0
    %3845 = vmatprep.subr.bf16.mxu0 0
    %3846 = vmatpush1.bf16.msra.mxu0 0
    %3847 = vmatprep.subr.bf16.mxu0 0
    %3848 = vmatpush1.bf16.msra.mxu0 0
    %3849 = vmatprep.subr.bf16.mxu0 0
    %3850 = vmatpush1.bf16.msra.mxu0 0
    %3851 = vmatprep.subr.bf16.mxu0 0
    %3852 = vmatpush1.bf16.msra.mxu0 0
    %3853 = vmatprep.mubr.bf16.mxu0 0
    %3854 = vmatmul.mubr.bf16.gmra.mrb[0].mxu0 %v3813
    %v3855 = vpop.f32.mrb[0].mxu0
    %v3856 = vadd.f32 0.0, %v3855
    %v3857 = vpop.f32.mrb[0].mxu0
    %v3858 = vpop.f32.mrb[0].mxu0
    %v3859 = vadd.f32 0.0, %v3858
    %v3860 = vpop.f32.mrb[0].mxu0
    %3861 = vmatprep.mubr.bf16.mxu0 0
    %3862 = vmatmul.mubr.bf16.gmra.mrb[0].mxu0 %v3816
    %v3863 = vpop.f32.mrb[0].mxu0
    %v3864 = vadd.f32 0.0, %v3863
    %v3865 = vpop.f32.mrb[0].mxu0
    %v3866 = vpop.f32.mrb[0].mxu0
    %v3867 = vadd.f32 0.0, %v3866
    %v3868 = vpop.f32.mrb[0].mxu0
    %3869 = vdwg.mxu0
    %v3870 = vld [vmem:[%s10] sm:$0x1]
    %v3871 = vld [vmem:[%s11] sm:$0x1]
    %v3872 = vsel %vm1704, %v3856, 0.0
    %v3873 = vsel %vm1704, %v3859, 0.0
    %v3874 = vadd.f32 %v3872, %v3873
    %v3875 = vsel %vm1704, %v3864, 0.0
    %v3876 = vadd.f32 %v3874, %v3875
    %v3877 = vsel %vm1704, %v3867, 0.0
    %v3878 = vadd.f32 %v3876, %v3877
    %v3879 = vrot.slane %v3878, 4
    %v3880 = vadd.f32 %v3878, %v3879
    %v3881 = vrot.slane %v3880, 2
    %v3882 = vadd.f32 %v3880, %v3881
    %v3883 = vrot.slane %v3882, 1
    %v3884 = vadd.f32 %v3882, %v3883
    %v3885 = vmul.f32 %v3884, 0.03125
    %v3886 = vmul.f32 %v3856, %v3856
    %v3887 = vmul.f32 %v3859, %v3859
    %v3888 = vmul.f32 %v3864, %v3864
    %v3889 = vmul.f32 %v3867, %v3867
    %v3890 = vsel %vm1704, %v3886, 0.0
    %v3891 = vsel %vm1704, %v3887, 0.0
    %v3892 = vadd.f32 %v3890, %v3891
    %v3893 = vsel %vm1704, %v3888, 0.0
    %v3894 = vadd.f32 %v3892, %v3893
    %v3895 = vsel %vm1704, %v3889, 0.0
    %v3896 = vadd.f32 %v3894, %v3895
    %v3897 = vrot.slane %v3896, 4
    %v3898 = vadd.f32 %v3896, %v3897
    %v3899 = vrot.slane %v3898, 2
    %v3900 = vadd.f32 %v3898, %v3899
    %v3901 = vrot.slane %v3900, 1
    %v3902 = vadd.f32 %v3900, %v3901
    %v3903 = vmul.f32 %v3902, 0.03125
    %v3904 = vmul.f32 %v3885, %v3885
    %v3905 = vsub.f32 %v3903, %v3904
    %v3906 = vmax.f32 %v3905, 0.0
    %v3907 = vadd.f32 %v3906, 1e-05
    %v3908 = vrsqrt.pop %v3907
    %v3909 = vmul.f32 %v3870, %v3908
    %v3910 = vmul.f32 %v3909, %v3885
    %v3911 = vsub.f32 %v3871, %v3910
    %v3913 = vlaneseq
    %v3914 = vshrl.u32 %v3913, 7
    %v3915 = vsub.s32 0, %v3914
    %v3916 = vrot.slane %v3909, %v3915
    %v3918 = vmul.f32 %v3856, %v3916
    %v3919 = vmul.f32 %v3859, %v3916
    %v3920 = vmul.f32 %v3864, %v3916
    %v3921 = vmul.f32 %v3867, %v3916
    %v3923 = vlaneseq
    %v3924 = vshrl.u32 %v3923, 7
    %v3925 = vsub.s32 0, %v3924
    %v3926 = vrot.slane %v3911, %v3925
    %v3928 = vadd.f32 %v3918, %v3926
    %v3929 = vadd.f32 %v3919, %v3926
    %v3930 = vadd.f32 %v3920, %v3926
    %v3931 = vadd.f32 %v3921, %v3926
    %v3936 = vcombine.high %v3928, %v3928
    %v3937 = vcombine.high %v3929, %v3929
    %v3938 = vcombine.high %v3930, %v3930
    %v3939 = vcombine.high %v3931, %v3931
    %v3944 = vadd.f32 %v3770, %v3928
    %v3945 = vadd.f32 %v3771, %v3936
    %v3946 = vadd.f32 %v3772, %v3929
    %v3947 = vadd.f32 %v3773, %v3937
    %v3948 = vadd.f32 %v3774, %v3930
    %v3949 = vadd.f32 %v3775, %v3938
    %v3950 = vadd.f32 %v3776, %v3931
    %v3951 = vadd.f32 %v3777, %v3939
    %s3952 = scalar_lea.vmem [#allocation5], 8
    %vm3953 = vcmask 125952
    %3954 = vst.msk [vmem:[%s3952 + $0x1] sm:$0xf] %vm3953, %v3944
    %3955 = vst.msk [vmem:[%s3952 + $0x9] sm:$0xf] %vm3953, %v3945
    %3956 = vst.msk [vmem:[%s3952 + $0x11] sm:$0xf] %vm3953, %v3946
    %3957 = vst.msk [vmem:[%s3952 + $0x19] sm:$0xf] %vm3953, %v3947
    %3958 = vst.msk [vmem:[%s3952 + $0x31] sm:$0xf] %vm3953, %v3948
    %3959 = vst.msk [vmem:[%s3952 + $0x39] sm:$0xf] %vm3953, %v3949
    %3960 = vst.msk [vmem:[%s3952 + $0x41] sm:$0xf] %vm3953, %v3950
    %3961 = vst.msk [vmem:[%s3952 + $0x49] sm:$0xf] %vm3953, %v3951
    %vm3962 = vcmask 128000
    %3963 = vst.msk [vmem:[#allocation5] sm:$0x3f] %vm3962, 0.0
    %3964 = vst.msk [vmem:[#allocation5 + $0x30] sm:$0x3f] %vm3962, 0.0
    %s3965 = scalar_lea.vmem [#allocation5], 40
    %3966 = vst.msk [vmem:[%s3965] sm:$0x3f] %vm3962, 0.0
    %3967 = vst.msk [vmem:[%s3965 + $0x30] sm:$0x3f] %vm3962, 0.0
    %3968 = vst.msk [vmem:[%s3952] sm:$0x1] %vm1892, 0.0
    %3969 = vst.msk [vmem:[%s3952 + $0x8] sm:$0x1] %vm1892, 0.0
    %3970 = vst.msk [vmem:[%s3952 + $0x10] sm:$0x1] %vm1892, 0.0
    %3971 = vst.msk [vmem:[%s3952 + $0x18] sm:$0x1] %vm1892, 0.0
    %3972 = vst.msk [vmem:[%s3952 + $0x30] sm:$0x1] %vm1892, 0.0
    %3973 = vst.msk [vmem:[%s3952 + $0x38] sm:$0x1] %vm1892, 0.0
    %3974 = vst.msk [vmem:[%s3952 + $0x40] sm:$0x1] %vm1892, 0.0
    %3975 = vst.msk [vmem:[%s3952 + $0x48] sm:$0x1] %vm1892, 0.0
    %3976 = vst.msk [vmem:[%s3952 + $0x5] sm:$0x1] %vm1892, 0.0
    %3977 = vst.msk [vmem:[%s3952 + $0xd] sm:$0x1] %vm1892, 0.0
    %3978 = vst.msk [vmem:[%s3952 + $0x15] sm:$0x1] %vm1892, 0.0
    %3979 = vst.msk [vmem:[%s3952 + $0x1d] sm:$0x1] %vm1892, 0.0
    %3980 = vst.msk [vmem:[%s3952 + $0x35] sm:$0x1] %vm1892, 0.0
    %3981 = vst.msk [vmem:[%s3952 + $0x3d] sm:$0x1] %vm1892, 0.0
    %3982 = vst.msk [vmem:[%s3952 + $0x45] sm:$0x1] %vm1892, 0.0
    %3983 = vst.msk [vmem:[%s3952 + $0x4d] sm:$0x1] %vm1892, 0.0
    %v3984 = vld [vmem:[#allocation5] sm:$0xf]
    %v3985 = vld [vmem:[#allocation5 + $0x8] sm:$0xf]
    %v3986 = vld [vmem:[#allocation5 + $0x10] sm:$0xf]
    %v3987 = vld [vmem:[#allocation5 + $0x18] sm:$0xf]
    %v3988 = vld [vmem:[#allocation5 + $0x20] sm:$0xf]
    %v3989 = vld [vmem:[#allocation5 + $0x28] sm:$0xf]
    %v3990 = vld [vmem:[#allocation5 + $0x30] sm:$0xf]
    %v3991 = vld [vmem:[#allocation5 + $0x38] sm:$0xf]
    %v3992 = vld [vmem:[#allocation5 + $0x40] sm:$0xf]
    %v3993 = vld [vmem:[#allocation5 + $0x48] sm:$0xf]
    %v3994 = vld [vmem:[#allocation5 + $0x50] sm:$0xf]
    %v3995 = vld [vmem:[#allocation5 + $0x58] sm:$0xf]
    %v4004 = vcombine.low %v3984, %v3985
    %v4005 = vcombine.low %v3986, %v3987
    %v4006 = vcombine.low %v3990, %v3991
    %v4007 = vcombine.low %v3992, %v3993
    %v4012 = vpack.c.bf16 %v4005, %v4004
    %v4013 = vpack.c.bf16 %v4007, %v4006
    %v4014 = vld [vmem:[#allocation18] sm:$0xf]
    %v4015 = vld [vmem:[#allocation18 + $0x4] sm:$0xf]
    %v4018 = vcombine.low %v3985, %v3986
    %v4019 = vcombine.low %v3987, %v3988
    %v4020 = vcombine.low %v3991, %v3992
    %v4021 = vcombine.low %v3993, %v3994
    %v4026 = vpack.c.bf16 %v4019, %v4018
    %v4027 = vpack.c.bf16 %v4021, %v4020
    %s4028 = scalar_lea.vmem [#allocation18], 24
    %v4029 = vld [vmem:[%s4028] sm:$0xf]
    %v4030 = vld [vmem:[%s4028 + $0x4] sm:$0xf]
    %v4033 = vunpack.c.l.b16 %v4029
    %v4034 = vunpack.c.l.b16 %v4030
    %v4035 = vpack.c.b16 %v4034, %v4033
    %v4038 = vsel %vm1704, %v4026, 0
    %v4041 = vsel %vm1704, %v4027, 0
    %4043 = vmatprep.subr.bf16.mxu0 0
    %4044 = vmatpush1.bf16.msra.mxu0 %v4035
    %4045 = vmatprep.subr.bf16.mxu0 0
    %4046 = vmatpush1.bf16.msra.mxu0 0
    %4047 = vmatprep.subr.bf16.mxu0 0
    %4048 = vmatpush1.bf16.msra.mxu0 0
    %4049 = vmatprep.subr.bf16.mxu0 0
    %4050 = vmatpush1.bf16.msra.mxu0 0
    %4051 = vmatprep.subr.bf16.mxu0 0
    %4052 = vmatpush1.bf16.msra.mxu0 0
    %4053 = vmatprep.subr.bf16.mxu0 0
    %4054 = vmatpush1.bf16.msra.mxu0 0
    %4055 = vmatprep.subr.bf16.mxu0 0
    %4056 = vmatpush1.bf16.msra.mxu0 0
    %4057 = vmatprep.subr.bf16.mxu0 0
    %4058 = vmatpush1.bf16.msra.mxu0 0
    %4059 = vmatprep.subr.bf16.mxu0 0
    %4060 = vmatpush1.bf16.msra.mxu0 0
    %4061 = vmatprep.subr.bf16.mxu0 0
    %4062 = vmatpush1.bf16.msra.mxu0 0
    %4063 = vmatprep.subr.bf16.mxu0 0
    %4064 = vmatpush1.bf16.msra.mxu0 0
    %4065 = vmatprep.subr.bf16.mxu0 0
    %4066 = vmatpush1.bf16.msra.mxu0 0
    %4067 = vmatprep.subr.bf16.mxu0 0
    %4068 = vmatpush1.bf16.msra.mxu0 0
    %4069 = vmatprep.subr.bf16.mxu0 0
    %4070 = vmatpush1.bf16.msra.mxu0 0
    %4071 = vmatprep.subr.bf16.mxu0 0
    %4072 = vmatpush1.bf16.msra.mxu0 0
    %4073 = vmatprep.subr.bf16.mxu0 0
    %4074 = vmatpush1.bf16.msra.mxu0 0
    %4075 = vmatprep.mubr.bf16.mxu0 0
    %4076 = vmatmul.mubr.bf16.gmra.mrb[0].mxu0 %v4038
    %v4077 = vpop.f32.mrb[0].mxu0
    %v4078 = vadd.f32 0.0, %v4077
    %v4079 = vpop.f32.mrb[0].mxu0
    %v4080 = vpop.f32.mrb[0].mxu0
    %v4081 = vadd.f32 0.0, %v4080
    %v4082 = vpop.f32.mrb[0].mxu0
    %4083 = vmatprep.mubr.bf16.mxu0 0
    %4084 = vmatmul.mubr.bf16.gmra.mrb[0].mxu0 %v4041
    %v4085 = vpop.f32.mrb[0].mxu0
    %v4086 = vadd.f32 0.0, %v4085
    %v4087 = vpop.f32.mrb[0].mxu0
    %v4088 = vpop.f32.mrb[0].mxu0
    %v4089 = vadd.f32 0.0, %v4088
    %v4090 = vpop.f32.mrb[0].mxu0
    %4091 = vdwg.mxu0
    %v4094 = vunpack.c.l.b16 %v4014
    %v4095 = vunpack.c.l.b16 %v4015
    %v4096 = vpack.c.b16 %v4095, %v4094
    %v4099 = vsel %vm1704, %v4012, 0
    %v4102 = vsel %vm1704, %v4013, 0
    %4104 = vmatprep.subr.bf16.mxu0 0
    %4105 = vmatpush1.bf16.msra.mxu0 %v4096
    %4106 = vmatprep.subr.bf16.mxu0 0
    %4107 = vmatpush1.bf16.msra.mxu0 0
    %4108 = vmatprep.subr.bf16.mxu0 0
    %4109 = vmatpush1.bf16.msra.mxu0 0
    %4110 = vmatprep.subr.bf16.mxu0 0
    %4111 = vmatpush1.bf16.msra.mxu0 0
    %4112 = vmatprep.subr.bf16.mxu0 0
    %4113 = vmatpush1.bf16.msra.mxu0 0
    %4114 = vmatprep.subr.bf16.mxu0 0
    %4115 = vmatpush1.bf16.msra.mxu0 0
    %4116 = vmatprep.subr.bf16.mxu0 0
    %4117 = vmatpush1.bf16.msra.mxu0 0
    %4118 = vmatprep.subr.bf16.mxu0 0
    %4119 = vmatpush1.bf16.msra.mxu0 0
    %4120 = vmatprep.subr.bf16.mxu0 0
    %4121 = vmatpush1.bf16.msra.mxu0 0
    %4122 = vmatprep.subr.bf16.mxu0 0
    %4123 = vmatpush1.bf16.msra.mxu0 0
    %4124 = vmatprep.subr.bf16.mxu0 0
    %4125 = vmatpush1.bf16.msra.mxu0 0
    %4126 = vmatprep.subr.bf16.mxu0 0
    %4127 = vmatpush1.bf16.msra.mxu0 0
    %4128 = vmatprep.subr.bf16.mxu0 0
    %4129 = vmatpush1.bf16.msra.mxu0 0
    %4130 = vmatprep.subr.bf16.mxu0 0
    %4131 = vmatpush1.bf16.msra.mxu0 0
    %4132 = vmatprep.subr.bf16.mxu0 0
    %4133 = vmatpush1.bf16.msra.mxu0 0
    %4134 = vmatprep.subr.bf16.mxu0 0
    %4135 = vmatpush1.bf16.msra.mxu0 0
    %4136 = vmatprep.mubr.bf16.mxu0 0
    %4137 = vmatmul.mubr.bf16.gmra.mrb[0].mxu0 %v4099
    %v4138 = vpop.f32.mrb[0].mxu0
    %v4139 = vadd.f32 %v4078, %v4138
    %v4140 = vpop.f32.mrb[0].mxu0
    %v4141 = vpop.f32.mrb[0].mxu0
    %v4142 = vadd.f32 %v4081, %v4141
    %v4143 = vpop.f32.mrb[0].mxu0
    %4144 = vmatprep.mubr.bf16.mxu0 0
    %4145 = vmatmul.mubr.bf16.gmra.mrb[0].mxu0 %v4102
    %v4146 = vpop.f32.mrb[0].mxu0
    %v4147 = vadd.f32 %v4086, %v4146
    %v4148 = vpop.f32.mrb[0].mxu0
    %v4149 = vpop.f32.mrb[0].mxu0
    %v4150 = vadd.f32 %v4089, %v4149
    %v4151 = vpop.f32.mrb[0].mxu0
    %4152 = vdwg.mxu0
    %v4155 = vcombine.low %v3988, %v3989
    %v4156 = vcombine.low %v3994, %v3995
    %v4159 = vpack.c.bf16 %v4155, %v4005
    %v4160 = vpack.c.bf16 %v4156, %v4007
    %s4161 = scalar_lea.vmem [#allocation18], 48
    %v4162 = vld [vmem:[%s4161] sm:$0xf]
    %v4163 = vld [vmem:[%s4161 + $0x4] sm:$0xf]
    %v4166 = vunpack.c.l.b16 %v4162
    %v4167 = vunpack.c.l.b16 %v4163
    %v4168 = vpack.c.b16 %v4167, %v4166
    %v4171 = vsel %vm1704, %v4159, 0
    %v4174 = vsel %vm1704, %v4160, 0
    %4176 = vmatprep.subr.bf16.mxu0 0
    %4177 = vmatpush1.bf16.msra.mxu0 %v4168
    %4178 = vmatprep.subr.bf16.mxu0 0
    %4179 = vmatpush1.bf16.msra.mxu0 0
    %4180 = vmatprep.subr.bf16.mxu0 0
    %4181 = vmatpush1.bf16.msra.mxu0 0
    %4182 = vmatprep.subr.bf16.mxu0 0
    %4183 = vmatpush1.bf16.msra.mxu0 0
    %4184 = vmatprep.subr.bf16.mxu0 0
    %4185 = vmatpush1.bf16.msra.mxu0 0
    %4186 = vmatprep.subr.bf16.mxu0 0
    %4187 = vmatpush1.bf16.msra.mxu0 0
    %4188 = vmatprep.subr.bf16.mxu0 0
    %4189 = vmatpush1.bf16.msra.mxu0 0
    %4190 = vmatprep.subr.bf16.mxu0 0
    %4191 = vmatpush1.bf16.msra.mxu0 0
    %4192 = vmatprep.subr.bf16.mxu0 0
    %4193 = vmatpush1.bf16.msra.mxu0 0
    %4194 = vmatprep.subr.bf16.mxu0 0
    %4195 = vmatpush1.bf16.msra.mxu0 0
    %4196 = vmatprep.subr.bf16.mxu0 0
    %4197 = vmatpush1.bf16.msra.mxu0 0
    %4198 = vmatprep.subr.bf16.mxu0 0
    %4199 = vmatpush1.bf16.msra.mxu0 0
    %4200 = vmatprep.subr.bf16.mxu0 0
    %4201 = vmatpush1.bf16.msra.mxu0 0
    %4202 = vmatprep.subr.bf16.mxu0 0
    %4203 = vmatpush1.bf16.msra.mxu0 0
    %4204 = vmatprep.subr.bf16.mxu0 0
    %4205 = vmatpush1.bf16.msra.mxu0 0
    %4206 = vmatprep.subr.bf16.mxu0 0
    %4207 = vmatpush1.bf16.msra.mxu0 0
    %4208 = vmatprep.mubr.bf16.mxu0 0
    %4209 = vmatmul.mubr.bf16.gmra.mrb[0].mxu0 %v4171
    %v4210 = vpop.f32.mrb[0].mxu0
    %v4211 = vadd.f32 0.0, %v4210
    %v4212 = vpop.f32.mrb[0].mxu0
    %v4213 = vpop.f32.mrb[0].mxu0
    %v4214 = vadd.f32 0.0, %v4213
    %v4215 = vpop.f32.mrb[0].mxu0
    %4216 = vmatprep.mubr.bf16.mxu0 0
    %4217 = vmatmul.mubr.bf16.gmra.mrb[0].mxu0 %v4174
    %v4218 = vpop.f32.mrb[0].mxu0
    %v4219 = vadd.f32 0.0, %v4218
    %v4220 = vpop.f32.mrb[0].mxu0
    %v4221 = vpop.f32.mrb[0].mxu0
    %v4222 = vadd.f32 0.0, %v4221
    %v4223 = vpop.f32.mrb[0].mxu0
    %4224 = vdwg.mxu0
    %v4225 = vadd.f32 %v4139, %v4211
    %v4226 = vadd.f32 %v4142, %v4214
    %v4227 = vadd.f32 %v4147, %v4219
    %v4228 = vadd.f32 %v4150, %v4222
    %v4229 = vld [vmem:[#allocation5 + $0x1] sm:$0xf]
    %v4230 = vld [vmem:[#allocation5 + $0x9] sm:$0xf]
    %v4231 = vld [vmem:[#allocation5 + $0x11] sm:$0xf]
    %v4232 = vld [vmem:[#allocation5 + $0x19] sm:$0xf]
    %v4233 = vld [vmem:[#allocation5 + $0x21] sm:$0xf]
    %v4234 = vld [vmem:[#allocation5 + $0x29] sm:$0xf]
    %v4235 = vld [vmem:[#allocation5 + $0x31] sm:$0xf]
    %v4236 = vld [vmem:[#allocation5 + $0x39] sm:$0xf]
    %v4237 = vld [vmem:[#allocation5 + $0x41] sm:$0xf]
    %v4238 = vld [vmem:[#allocation5 + $0x49] sm:$0xf]
    %v4239 = vld [vmem:[#allocation5 + $0x51] sm:$0xf]
    %v4240 = vld [vmem:[#allocation5 + $0x59] sm:$0xf]
    %v4249 = vcombine.low %v4229, %v4230
    %v4250 = vcombine.low %v4231, %v4232
    %v4251 = vcombine.low %v4235, %v4236
    %v4252 = vcombine.low %v4237, %v4238
    %v4257 = vpack.c.bf16 %v4250, %v4249
    %v4258 = vpack.c.bf16 %v4252, %v4251
    %s4259 = scalar_lea.vmem [#allocation18], 8
    %v4260 = vld [vmem:[%s4259] sm:$0xf]
    %v4261 = vld [vmem:[%s4259 + $0x4] sm:$0xf]
    %v4264 = vunpack.c.l.b16 %v4260
    %v4265 = vunpack.c.l.b16 %v4261
    %v4266 = vpack.c.b16 %v4265, %v4264
    %v4269 = vsel %vm1704, %v4257, 0
    %v4272 = vsel %vm1704, %v4258, 0
    %4274 = vmatprep.subr.bf16.mxu0 0
    %4275 = vmatpush1.bf16.msra.mxu0 %v4266
    %4276 = vmatprep.subr.bf16.mxu0 0
    %4277 = vmatpush1.bf16.msra.mxu0 0
    %4278 = vmatprep.subr.bf16.mxu0 0
    %4279 = vmatpush1.bf16.msra.mxu0 0
    %4280 = vmatprep.subr.bf16.mxu0 0
    %4281 = vmatpush1.bf16.msra.mxu0 0
    %4282 = vmatprep.subr.bf16.mxu0 0
    %4283 = vmatpush1.bf16.msra.mxu0 0
    %4284 = vmatprep.subr.bf16.mxu0 0
    %4285 = vmatpush1.bf16.msra.mxu0 0
    %4286 = vmatprep.subr.bf16.mxu0 0
    %4287 = vmatpush1.bf16.msra.mxu0 0
    %4288 = vmatprep.subr.bf16.mxu0 0
    %4289 = vmatpush1.bf16.msra.mxu0 0
    %4290 = vmatprep.subr.bf16.mxu0 0
    %4291 = vmatpush1.bf16.msra.mxu0 0
    %4292 = vmatprep.subr.bf16.mxu0 0
    %4293 = vmatpush1.bf16.msra.mxu0 0
    %4294 = vmatprep.subr.bf16.mxu0 0
    %4295 = vmatpush1.bf16.msra.mxu0 0
    %4296 = vmatprep.subr.bf16.mxu0 0
    %4297 = vmatpush1.bf16.msra.mxu0 0
    %4298 = vmatprep.subr.bf16.mxu0 0
    %4299 = vmatpush1.bf16.msra.mxu0 0
    %4300 = vmatprep.subr.bf16.mxu0 0
    %4301 = vmatpush1.bf16.msra.mxu0 0
    %4302 = vmatprep.subr.bf16.mxu0 0
    %4303 = vmatpush1.bf16.msra.mxu0 0
    %4304 = vmatprep.subr.bf16.mxu0 0
    %4305 = vmatpush1.bf16.msra.mxu0 0
    %4306 = vmatprep.mubr.bf16.mxu0 0
    %4307 = vmatmul.mubr.bf16.gmra.mrb[0].mxu0 %v4269
    %v4308 = vpop.f32.mrb[0].mxu0
    %v4309 = vadd.f32 0.0, %v4308
    %v4310 = vpop.f32.mrb[0].mxu0
    %v4311 = vpop.f32.mrb[0].mxu0
    %v4312 = vadd.f32 0.0, %v4311
    %v4313 = vpop.f32.mrb[0].mxu0
    %4314 = vmatprep.mubr.bf16.mxu0 0
    %4315 = vmatmul.mubr.bf16.gmra.mrb[0].mxu0 %v4272
    %v4316 = vpop.f32.mrb[0].mxu0
    %v4317 = vadd.f32 0.0, %v4316
    %v4318 = vpop.f32.mrb[0].mxu0
    %v4319 = vpop.f32.mrb[0].mxu0
    %v4320 = vadd.f32 0.0, %v4319
    %v4321 = vpop.f32.mrb[0].mxu0
    %4322 = vdwg.mxu0
    %v4323 = vadd.f32 %v4225, %v4309
    %v4324 = vadd.f32 %v4226, %v4312
    %v4325 = vadd.f32 %v4227, %v4317
    %v4326 = vadd.f32 %v4228, %v4320
    %v4329 = vcombine.low %v4230, %v4231
    %v4330 = vcombine.low %v4232, %v4233
    %v4331 = vcombine.low %v4236, %v4237
    %v4332 = vcombine.low %v4238, %v4239
    %v4337 = vpack.c.bf16 %v4330, %v4329
    %v4338 = vpack.c.bf16 %v4332, %v4331
    %s4339 = scalar_lea.vmem [#allocation18], 32
    %v4340 = vld [vmem:[%s4339] sm:$0xf]
    %v4341 = vld [vmem:[%s4339 + $0x4] sm:$0xf]
    %v4344 = vunpack.c.l.b16 %v4340
    %v4345 = vunpack.c.l.b16 %v4341
    %v4346 = vpack.c.b16 %v4345, %v4344
    %v4349 = vsel %vm1704, %v4337, 0
    %v4352 = vsel %vm1704, %v4338, 0
    %4354 = vmatprep.subr.bf16.mxu0 0
    %4355 = vmatpush1.bf16.msra.mxu0 %v4346
    %4356 = vmatprep.subr.bf16.mxu0 0
    %4357 = vmatpush1.bf16.msra.mxu0 0
    %4358 = vmatprep.subr.bf16.mxu0 0
    %4359 = vmatpush1.bf16.msra.mxu0 0
    %4360 = vmatprep.subr.bf16.mxu0 0
    %4361 = vmatpush1.bf16.msra.mxu0 0
    %4362 = vmatprep.subr.bf16.mxu0 0
    %4363 = vmatpush1.bf16.msra.mxu0 0
    %4364 = vmatprep.subr.bf16.mxu0 0
    %4365 = vmatpush1.bf16.msra.mxu0 0
    %4366 = vmatprep.subr.bf16.mxu0 0
    %4367 = vmatpush1.bf16.msra.mxu0 0
    %4368 = vmatprep.subr.bf16.mxu0 0
    %4369 = vmatpush1.bf16.msra.mxu0 0
    %4370 = vmatprep.subr.bf16.mxu0 0
    %4371 = vmatpush1.bf16.msra.mxu0 0
    %4372 = vmatprep.subr.bf16.mxu0 0
    %4373 = vmatpush1.bf16.msra.mxu0 0
    %4374 = vmatprep.subr.bf16.mxu0 0
    %4375 = vmatpush1.bf16.msra.mxu0 0
    %4376 = vmatprep.subr.bf16.mxu0 0
    %4377 = vmatpush1.bf16.msra.mxu0 0
    %4378 = vmatprep.subr.bf16.mxu0 0
    %4379 = vmatpush1.bf16.msra.mxu0 0
    %4380 = vmatprep.subr.bf16.mxu0 0
    %4381 = vmatpush1.bf16.msra.mxu0 0
    %4382 = vmatprep.subr.bf16.mxu0 0
    %4383 = vmatpush1.bf16.msra.mxu0 0
    %4384 = vmatprep.subr.bf16.mxu0 0
    %4385 = vmatpush1.bf16.msra.mxu0 0
    %4386 = vmatprep.mubr.bf16.mxu0 0
    %4387 = vmatmul.mubr.bf16.gmra.mrb[0].mxu0 %v4349
    %v4388 = vpop.f32.mrb[0].mxu0
    %v4389 = vadd.f32 0.0, %v4388
    %v4390 = vpop.f32.mrb[0].mxu0
    %v4391 = vpop.f32.mrb[0].mxu0
    %v4392 = vadd.f32 0.0, %v4391
    %v4393 = vpop.f32.mrb[0].mxu0
    %4394 = vmatprep.mubr.bf16.mxu0 0
    %4395 = vmatmul.mubr.bf16.gmra.mrb[0].mxu0 %v4352
    %v4396 = vpop.f32.mrb[0].mxu0
    %v4397 = vadd.f32 0.0, %v4396
    %v4398 = vpop.f32.mrb[0].mxu0
    %v4399 = vpop.f32.mrb[0].mxu0
    %v4400 = vadd.f32 0.0, %v4399
    %v4401 = vpop.f32.mrb[0].mxu0
    %4402 = vdwg.mxu0
    %v4403 = vadd.f32 %v4323, %v4389
    %v4404 = vadd.f32 %v4324, %v4392
    %v4405 = vadd.f32 %v4325, %v4397
    %v4406 = vadd.f32 %v4326, %v4400
    %v4409 = vcombine.low %v4233, %v4234
    %v4410 = vcombine.low %v4239, %v4240
    %v4413 = vpack.c.bf16 %v4409, %v4250
    %v4414 = vpack.c.bf16 %v4410, %v4252
    %s4415 = scalar_lea.vmem [#allocation18], 56
    %v4416 = vld [vmem:[%s4415] sm:$0xf]
    %v4417 = vld [vmem:[%s4415 + $0x4] sm:$0xf]
    %v4420 = vunpack.c.l.b16 %v4416
    %v4421 = vunpack.c.l.b16 %v4417
    %v4422 = vpack.c.b16 %v4421, %v4420
    %v4425 = vsel %vm1704, %v4413, 0
    %v4428 = vsel %vm1704, %v4414, 0
    %4430 = vmatprep.subr.bf16.mxu0 0
    %4431 = vmatpush1.bf16.msra.mxu0 %v4422
    %4432 = vmatprep.subr.bf16.mxu0 0
    %4433 = vmatpush1.bf16.msra.mxu0 0
    %4434 = vmatprep.subr.bf16.mxu0 0
    %4435 = vmatpush1.bf16.msra.mxu0 0
    %4436 = vmatprep.subr.bf16.mxu0 0
    %4437 = vmatpush1.bf16.msra.mxu0 0
    %4438 = vmatprep.subr.bf16.mxu0 0
    %4439 = vmatpush1.bf16.msra.mxu0 0
    %4440 = vmatprep.subr.bf16.mxu0 0
    %4441 = vmatpush1.bf16.msra.mxu0 0
    %4442 = vmatprep.subr.bf16.mxu0 0
    %4443 = vmatpush1.bf16.msra.mxu0 0
    %4444 = vmatprep.subr.bf16.mxu0 0
    %4445 = vmatpush1.bf16.msra.mxu0 0
    %4446 = vmatprep.subr.bf16.mxu0 0
    %4447 = vmatpush1.bf16.msra.mxu0 0
    %4448 = vmatprep.subr.bf16.mxu0 0
    %4449 = vmatpush1.bf16.msra.mxu0 0
    %4450 = vmatprep.subr.bf16.mxu0 0
    %4451 = vmatpush1.bf16.msra.mxu0 0
    %4452 = vmatprep.subr.bf16.mxu0 0
    %4453 = vmatpush1.bf16.msra.mxu0 0
    %4454 = vmatprep.subr.bf16.mxu0 0
    %4455 = vmatpush1.bf16.msra.mxu0 0
    %4456 = vmatprep.subr.bf16.mxu0 0
    %4457 = vmatpush1.bf16.msra.mxu0 0
    %4458 = vmatprep.subr.bf16.mxu0 0
    %4459 = vmatpush1.bf16.msra.mxu0 0
    %4460 = vmatprep.subr.bf16.mxu0 0
    %4461 = vmatpush1.bf16.msra.mxu0 0
    %4462 = vmatprep.mubr.bf16.mxu0 0
    %4463 = vmatmul.mubr.bf16.gmra.mrb[0].mxu0 %v4425
    %v4464 = vpop.f32.mrb[0].mxu0
    %v4465 = vadd.f32 0.0, %v4464
    %v4466 = vpop.f32.mrb[0].mxu0
    %v4467 = vpop.f32.mrb[0].mxu0
    %v4468 = vadd.f32 0.0, %v4467
    %v4469 = vpop.f32.mrb[0].mxu0
    %4470 = vmatprep.mubr.bf16.mxu0 0
    %4471 = vmatmul.mubr.bf16.gmra.mrb[0].mxu0 %v4428
    %v4472 = vpop.f32.mrb[0].mxu0
    %v4473 = vadd.f32 0.0, %v4472
    %v4474 = vpop.f32.mrb[0].mxu0
    %v4475 = vpop.f32.mrb[0].mxu0
    %v4476 = vadd.f32 0.0, %v4475
    %v4477 = vpop.f32.mrb[0].mxu0
    %4478 = vdwg.mxu0
    %v4479 = vadd.f32 %v4403, %v4465
    %v4480 = vadd.f32 %v4404, %v4468
    %v4481 = vadd.f32 %v4405, %v4473
    %v4482 = vadd.f32 %v4406, %v4476
    %v4483 = vld [vmem:[#allocation5 + $0x2] sm:$0xf]
    %v4484 = vld [vmem:[#allocation5 + $0xa] sm:$0xf]
    %v4485 = vld [vmem:[#allocation5 + $0x12] sm:$0xf]
    %v4486 = vld [vmem:[#allocation5 + $0x1a] sm:$0xf]
    %v4487 = vld [vmem:[#allocation5 + $0x22] sm:$0xf]
    %v4488 = vld [vmem:[#allocation5 + $0x2a] sm:$0xf]
    %v4489 = vld [vmem:[#allocation5 + $0x32] sm:$0xf]
    %v4490 = vld [vmem:[#allocation5 + $0x3a] sm:$0xf]
    %v4491 = vld [vmem:[#allocation5 + $0x42] sm:$0xf]
    %v4492 = vld [vmem:[#allocation5 + $0x4a] sm:$0xf]
    %v4493 = vld [vmem:[#allocation5 + $0x52] sm:$0xf]
    %v4494 = vld [vmem:[#allocation5 + $0x5a] sm:$0xf]
    %v4503 = vcombine.low %v4483, %v4484
    %v4504 = vcombine.low %v4485, %v4486
    %v4505 = vcombine.low %v4489, %v4490
    %v4506 = vcombine.low %v4491, %v4492
    %v4511 = vpack.c.bf16 %v4504, %v4503
    %v4512 = vpack.c.bf16 %v4506, %v4505
    %s4513 = scalar_lea.vmem [#allocation18], 16
    %v4514 = vld [vmem:[%s4513] sm:$0xf]
    %v4515 = vld [vmem:[%s4513 + $0x4] sm:$0xf]
    %v4518 = vunpack.c.l.b16 %v4514
    %v4519 = vunpack.c.l.b16 %v4515
    %v4520 = vpack.c.b16 %v4519, %v4518
    %v4523 = vsel %vm1704, %v4511, 0
    %v4526 = vsel %vm1704, %v4512, 0
    %4528 = vmatprep.subr.bf16.mxu0 0
    %4529 = vmatpush1.bf16.msra.mxu0 %v4520
    %4530 = vmatprep.subr.bf16.mxu0 0
    %4531 = vmatpush1.bf16.msra.mxu0 0
    %4532 = vmatprep.subr.bf16.mxu0 0
    %4533 = vmatpush1.bf16.msra.mxu0 0
    %4534 = vmatprep.subr.bf16.mxu0 0
    %4535 = vmatpush1.bf16.msra.mxu0 0
    %4536 = vmatprep.subr.bf16.mxu0 0
    %4537 = vmatpush1.bf16.msra.mxu0 0
    %4538 = vmatprep.subr.bf16.mxu0 0
    %4539 = vmatpush1.bf16.msra.mxu0 0
    %4540 = vmatprep.subr.bf16.mxu0 0
    %4541 = vmatpush1.bf16.msra.mxu0 0
    %4542 = vmatprep.subr.bf16.mxu0 0
    %4543 = vmatpush1.bf16.msra.mxu0 0
    %4544 = vmatprep.subr.bf16.mxu0 0
    %4545 = vmatpush1.bf16.msra.mxu0 0
    %4546 = vmatprep.subr.bf16.mxu0 0
    %4547 = vmatpush1.bf16.msra.mxu0 0
    %4548 = vmatprep.subr.bf16.mxu0 0
    %4549 = vmatpush1.bf16.msra.mxu0 0
    %4550 = vmatprep.subr.bf16.mxu0 0
    %4551 = vmatpush1.bf16.msra.mxu0 0
    %4552 = vmatprep.subr.bf16.mxu0 0
    %4553 = vmatpush1.bf16.msra.mxu0 0
    %4554 = vmatprep.subr.bf16.mxu0 0
    %4555 = vmatpush1.bf16.msra.mxu0 0
    %4556 = vmatprep.subr.bf16.mxu0 0
    %4557 = vmatpush1.bf16.msra.mxu0 0
    %4558 = vmatprep.subr.bf16.mxu0 0
    %4559 = vmatpush1.bf16.msra.mxu0 0
    %4560 = vmatprep.mubr.bf16.mxu0 0
    %4561 = vmatmul.mubr.bf16.gmra.mrb[0].mxu0 %v4523
    %v4562 = vpop.f32.mrb[0].mxu0
    %v4563 = vadd.f32 0.0, %v4562
    %v4564 = vpop.f32.mrb[0].mxu0
    %v4565 = vpop.f32.mrb[0].mxu0
    %v4566 = vadd.f32 0.0, %v4565
    %v4567 = vpop.f32.mrb[0].mxu0
    %4568 = vmatprep.mubr.bf16.mxu0 0
    %4569 = vmatmul.mubr.bf16.gmra.mrb[0].mxu0 %v4526
    %v4570 = vpop.f32.mrb[0].mxu0
    %v4571 = vadd.f32 0.0, %v4570
    %v4572 = vpop.f32.mrb[0].mxu0
    %v4573 = vpop.f32.mrb[0].mxu0
    %v4574 = vadd.f32 0.0, %v4573
    %v4575 = vpop.f32.mrb[0].mxu0
    %4576 = vdwg.mxu0
    %v4577 = vadd.f32 %v4479, %v4563
    %v4578 = vadd.f32 %v4480, %v4566
    %v4579 = vadd.f32 %v4481, %v4571
    %v4580 = vadd.f32 %v4482, %v4574
    %v4583 = vcombine.low %v4484, %v4485
    %v4584 = vcombine.low %v4486, %v4487
    %v4585 = vcombine.low %v4490, %v4491
    %v4586 = vcombine.low %v4492, %v4493
    %v4591 = vpack.c.bf16 %v4584, %v4583
    %v4592 = vpack.c.bf16 %v4586, %v4585
    %s4593 = scalar_lea.vmem [#allocation18], 40
    %v4594 = vld [vmem:[%s4593] sm:$0xf]
    %v4595 = vld [vmem:[%s4593 + $0x4] sm:$0xf]
    %v4598 = vunpack.c.l.b16 %v4594
    %v4599 = vunpack.c.l.b16 %v4595
    %v4600 = vpack.c.b16 %v4599, %v4598
    %v4603 = vsel %vm1704, %v4591, 0
    %v4606 = vsel %vm1704, %v4592, 0
    %4608 = vmatprep.subr.bf16.mxu0 0
    %4609 = vmatpush1.bf16.msra.mxu0 %v4600
    %4610 = vmatprep.subr.bf16.mxu0 0
    %4611 = vmatpush1.bf16.msra.mxu0 0
    %4612 = vmatprep.subr.bf16.mxu0 0
    %4613 = vmatpush1.bf16.msra.mxu0 0
    %4614 = vmatprep.subr.bf16.mxu0 0
    %4615 = vmatpush1.bf16.msra.mxu0 0
    %4616 = vmatprep.subr.bf16.mxu0 0
    %4617 = vmatpush1.bf16.msra.mxu0 0
    %4618 = vmatprep.subr.bf16.mxu0 0
    %4619 = vmatpush1.bf16.msra.mxu0 0
    %4620 = vmatprep.subr.bf16.mxu0 0
    %4621 = vmatpush1.bf16.msra.mxu0 0
    %4622 = vmatprep.subr.bf16.mxu0 0
    %4623 = vmatpush1.bf16.msra.mxu0 0
    %4624 = vmatprep.subr.bf16.mxu0 0
    %4625 = vmatpush1.bf16.msra.mxu0 0
    %4626 = vmatprep.subr.bf16.mxu0 0
    %4627 = vmatpush1.bf16.msra.mxu0 0
    %4628 = vmatprep.subr.bf16.mxu0 0
    %4629 = vmatpush1.bf16.msra.mxu0 0
    %4630 = vmatprep.subr.bf16.mxu0 0
    %4631 = vmatpush1.bf16.msra.mxu0 0
    %4632 = vmatprep.subr.bf16.mxu0 0
    %4633 = vmatpush1.bf16.msra.mxu0 0
    %4634 = vmatprep.subr.bf16.mxu0 0
    %4635 = vmatpush1.bf16.msra.mxu0 0
    %4636 = vmatprep.subr.bf16.mxu0 0
    %4637 = vmatpush1.bf16.msra.mxu0 0
    %4638 = vmatprep.subr.bf16.mxu0 0
    %4639 = vmatpush1.bf16.msra.mxu0 0
    %4640 = vmatprep.mubr.bf16.mxu0 0
    %4641 = vmatmul.mubr.bf16.gmra.mrb[0].mxu0 %v4603
    %v4642 = vpop.f32.mrb[0].mxu0
    %v4643 = vadd.f32 0.0, %v4642
    %v4644 = vpop.f32.mrb[0].mxu0
    %v4645 = vpop.f32.mrb[0].mxu0
    %v4646 = vadd.f32 0.0, %v4645
    %v4647 = vpop.f32.mrb[0].mxu0
    %4648 = vmatprep.mubr.bf16.mxu0 0
    %4649 = vmatmul.mubr.bf16.gmra.mrb[0].mxu0 %v4606
    %v4650 = vpop.f32.mrb[0].mxu0
    %v4651 = vadd.f32 0.0, %v4650
    %v4652 = vpop.f32.mrb[0].mxu0
    %v4653 = vpop.f32.mrb[0].mxu0
    %v4654 = vadd.f32 0.0, %v4653
    %v4655 = vpop.f32.mrb[0].mxu0
    %4656 = vdwg.mxu0
    %v4657 = vadd.f32 %v4577, %v4643
    %v4658 = vadd.f32 %v4578, %v4646
    %v4659 = vadd.f32 %v4579, %v4651
    %v4660 = vadd.f32 %v4580, %v4654
    %v4663 = vcombine.low %v4487, %v4488
    %v4664 = vcombine.low %v4493, %v4494
    %v4667 = vpack.c.bf16 %v4663, %v4504
    %v4668 = vpack.c.bf16 %v4664, %v4506
    %s4669 = scalar_lea.vmem [#allocation18], 64
    %v4670 = vld [vmem:[%s4669] sm:$0xf]
    %v4671 = vld [vmem:[%s4669 + $0x4] sm:$0xf]
    %v4674 = vunpack.c.l.b16 %v4670
    %v4675 = vunpack.c.l.b16 %v4671
    %v4676 = vpack.c.b16 %v4675, %v4674
    %v4679 = vsel %vm1704, %v4667, 0
    %v4682 = vsel %vm1704, %v4668, 0
    %4684 = vmatprep.subr.bf16.mxu0 0
    %4685 = vmatpush1.bf16.msra.mxu0 %v4676
    %4686 = vmatprep.subr.bf16.mxu0 0
    %4687 = vmatpush1.bf16.msra.mxu0 0
    %4688 = vmatprep.subr.bf16.mxu0 0
    %4689 = vmatpush1.bf16.msra.mxu0 0
    %4690 = vmatprep.subr.bf16.mxu0 0
    %4691 = vmatpush1.bf16.msra.mxu0 0
    %4692 = vmatprep.subr.bf16.mxu0 0
    %4693 = vmatpush1.bf16.msra.mxu0 0
    %4694 = vmatprep.subr.bf16.mxu0 0
    %4695 = vmatpush1.bf16.msra.mxu0 0
    %4696 = vmatprep.subr.bf16.mxu0 0
    %4697 = vmatpush1.bf16.msra.mxu0 0
    %4698 = vmatprep.subr.bf16.mxu0 0
    %4699 = vmatpush1.bf16.msra.mxu0 0
    %4700 = vmatprep.subr.bf16.mxu0 0
    %4701 = vmatpush1.bf16.msra.mxu0 0
    %4702 = vmatprep.subr.bf16.mxu0 0
    %4703 = vmatpush1.bf16.msra.mxu0 0
    %4704 = vmatprep.subr.bf16.mxu0 0
    %4705 = vmatpush1.bf16.msra.mxu0 0
    %4706 = vmatprep.subr.bf16.mxu0 0
    %4707 = vmatpush1.bf16.msra.mxu0 0
    %4708 = vmatprep.subr.bf16.mxu0 0
    %4709 = vmatpush1.bf16.msra.mxu0 0
    %4710 = vmatprep.subr.bf16.mxu0 0
    %4711 = vmatpush1.bf16.msra.mxu0 0
    %4712 = vmatprep.subr.bf16.mxu0 0
    %4713 = vmatpush1.bf16.msra.mxu0 0
    %4714 = vmatprep.subr.bf16.mxu0 0
    %4715 = vmatpush1.bf16.msra.mxu0 0
    %4716 = vmatprep.mubr.bf16.mxu0 0
    %4717 = vmatmul.mubr.bf16.gmra.mrb[0].mxu0 %v4679
    %v4718 = vpop.f32.mrb[0].mxu0
    %v4719 = vadd.f32 0.0, %v4718
    %v4720 = vpop.f32.mrb[0].mxu0
    %v4721 = vpop.f32.mrb[0].mxu0
    %v4722 = vadd.f32 0.0, %v4721
    %v4723 = vpop.f32.mrb[0].mxu0
    %4724 = vmatprep.mubr.bf16.mxu0 0
    %4725 = vmatmul.mubr.bf16.gmra.mrb[0].mxu0 %v4682
    %v4726 = vpop.f32.mrb[0].mxu0
    %v4727 = vadd.f32 0.0, %v4726
    %v4728 = vpop.f32.mrb[0].mxu0
    %v4729 = vpop.f32.mrb[0].mxu0
    %v4730 = vadd.f32 0.0, %v4729
    %v4731 = vpop.f32.mrb[0].mxu0
    %4732 = vdwg.mxu0
    %v4733 = vadd.f32 %v4657, %v4719
    %v4734 = vadd.f32 %v4658, %v4722
    %v4735 = vadd.f32 %v4659, %v4727
    %v4736 = vadd.f32 %v4660, %v4730
    %v4737 = vpack.c.bf16 %v4734, %v4733
    %v4738 = vpack.c.bf16 %v4736, %v4735
    %v4739 = vld [vmem:[%s13] sm:$0xf]
    %v4740 = vld [vmem:[%s13 + $0x4] sm:$0xf]
    %v4743 = vunpack.c.l.b16 %v4739
    %v4744 = vunpack.c.l.b16 %v4740
    %v4745 = vpack.c.b16 %v4744, %v4743
    %v4748 = vsel %vm1704, %v4737, 0
    %v4751 = vsel %vm1704, %v4738, 0
    %4753 = vmatprep.subr.bf16.mxu0 0
    %4754 = vmatpush1.bf16.msra.mxu0 %v4745
    %4755 = vmatprep.subr.bf16.mxu0 0
    %4756 = vmatpush1.bf16.msra.mxu0 0
    %4757 = vmatprep.subr.bf16.mxu0 0
    %4758 = vmatpush1.bf16.msra.mxu0 0
    %4759 = vmatprep.subr.bf16.mxu0 0
    %4760 = vmatpush1.bf16.msra.mxu0 0
    %4761 = vmatprep.subr.bf16.mxu0 0
    %4762 = vmatpush1.bf16.msra.mxu0 0
    %4763 = vmatprep.subr.bf16.mxu0 0
    %4764 = vmatpush1.bf16.msra.mxu0 0
    %4765 = vmatprep.subr.bf16.mxu0 0
    %4766 = vmatpush1.bf16.msra.mxu0 0
    %4767 = vmatprep.subr.bf16.mxu0 0
    %4768 = vmatpush1.bf16.msra.mxu0 0
    %4769 = vmatprep.subr.bf16.mxu0 0
    %4770 = vmatpush1.bf16.msra.mxu0 0
    %4771 = vmatprep.subr.bf16.mxu0 0
    %4772 = vmatpush1.bf16.msra.mxu0 0
    %4773 = vmatprep.subr.bf16.mxu0 0
    %4774 = vmatpush1.bf16.msra.mxu0 0
    %4775 = vmatprep.subr.bf16.mxu0 0
    %4776 = vmatpush1.bf16.msra.mxu0 0
    %4777 = vmatprep.subr.bf16.mxu0 0
    %4778 = vmatpush1.bf16.msra.mxu0 0
    %4779 = vmatprep.subr.bf16.mxu0 0
    %4780 = vmatpush1.bf16.msra.mxu0 0
    %4781 = vmatprep.subr.bf16.mxu0 0
    %4782 = vmatpush1.bf16.msra.mxu0 0
    %4783 = vmatprep.subr.bf16.mxu0 0
    %4784 = vmatpush1.bf16.msra.mxu0 0
    %4785 = vmatprep.mubr.bf16.mxu0 0
    %4786 = vmatmul.mubr.bf16.gmra.mrb[0].mxu0 %v4748
    %v4787 = vpop.f32.mrb[0].mxu0
    %v4788 = vadd.f32 0.0, %v4787
    %v4789 = vpop.f32.mrb[0].mxu0
    %v4790 = vpop.f32.mrb[0].mxu0
    %v4791 = vadd.f32 0.0, %v4790
    %v4792 = vpop.f32.mrb[0].mxu0
    %4793 = vmatprep.mubr.bf16.mxu0 0
    %4794 = vmatmul.mubr.bf16.gmra.mrb[0].mxu0 %v4751
    %v4795 = vpop.f32.mrb[0].mxu0
    %v4796 = vadd.f32 0.0, %v4795
    %v4797 = vpop.f32.mrb[0].mxu0
    %v4798 = vpop.f32.mrb[0].mxu0
    %v4799 = vadd.f32 0.0, %v4798
    %v4800 = vpop.f32.mrb[0].mxu0
    %4801 = vdwg.mxu0
    %v4802 = vld [vmem:[%s14] sm:$0x1]
    %v4803 = vld [vmem:[%s15] sm:$0x1]
    %vm4804 = vcmask 195584
    %v4805 = vsel %vm4804, %v4788, 0.0
    %v4806 = vsel %vm4804, %v4791, 0.0
    %v4807 = vadd.f32 %v4805, %v4806
    %v4808 = vsel %vm4804, %v4796, 0.0
    %v4809 = vadd.f32 %v4807, %v4808
    %v4810 = vsel %vm4804, %v4799, 0.0
    %v4811 = vadd.f32 %v4809, %v4810
    %v4812 = vrot.slane %v4811, 4
    %v4813 = vadd.f32 %v4811, %v4812
    %v4814 = vrot.slane %v4813, 2
    %v4815 = vadd.f32 %v4813, %v4814
    %v4816 = vrot.slane %v4815, 1
    %v4817 = vadd.f32 %v4815, %v4816
    %v4818 = vmul.f32 %v4817, 0.03125
    %v4819 = vmul.f32 %v4788, %v4788
    %v4820 = vmul.f32 %v4791, %v4791
    %v4821 = vmul.f32 %v4796, %v4796
    %v4822 = vmul.f32 %v4799, %v4799
    %v4823 = vsel %vm4804, %v4819, 0.0
    %v4824 = vsel %vm4804, %v4820, 0.0
    %v4825 = vadd.f32 %v4823, %v4824
    %v4826 = vsel %vm4804, %v4821, 0.0
    %v4827 = vadd.f32 %v4825, %v4826
    %v4828 = vsel %vm4804, %v4822, 0.0
    %v4829 = vadd.f32 %v4827, %v4828
    %v4830 = vrot.slane %v4829, 4
    %v4831 = vadd.f32 %v4829, %v4830
    %v4832 = vrot.slane %v4831, 2
    %v4833 = vadd.f32 %v4831, %v4832
    %v4834 = vrot.slane %v4833, 1
    %v4835 = vadd.f32 %v4833, %v4834
    %v4836 = vmul.f32 %v4835, 0.03125
    %v4837 = vmul.f32 %v4818, %v4818
    %v4838 = vsub.f32 %v4836, %v4837
    %v4839 = vmax.f32 %v4838, 0.0
    %v4840 = vadd.f32 %v4839, 1e-05
    %v4841 = vrsqrt.pop %v4840
    %v4842 = vmul.f32 %v4802, %v4841
    %v4843 = vmul.f32 %v4842, %v4818
    %v4844 = vsub.f32 %v4803, %v4843
    %v4846 = vlaneseq
    %v4847 = vshrl.u32 %v4846, 7
    %v4848 = vsub.s32 0, %v4847
    %v4849 = vrot.slane %v4842, %v4848
    %v4851 = vmul.f32 %v4788, %v4849
    %v4852 = vmul.f32 %v4791, %v4849
    %v4853 = vmul.f32 %v4796, %v4849
    %v4854 = vmul.f32 %v4799, %v4849
    %v4856 = vlaneseq
    %v4857 = vshrl.u32 %v4856, 7
    %v4858 = vsub.s32 0, %v4857
    %v4859 = vrot.slane %v4844, %v4858
    %v4861 = vadd.f32 %v4851, %v4859
    %v4862 = vadd.f32 %v4852, %v4859
    %v4863 = vadd.f32 %v4853, %v4859
    %v4864 = vadd.f32 %v4854, %v4859
    %v4865 = vmax.f32 %v4861, 0.0
    %v4866 = vmax.f32 %v4862, 0.0
    %v4867 = vmax.f32 %v4863, 0.0
    %v4868 = vmax.f32 %v4864, 0.0
    %v4873 = vcombine.high %v4865, %v4865
    %v4874 = vcombine.high %v4866, %v4866
    %v4875 = vcombine.high %v4867, %v4867
    %v4876 = vcombine.high %v4868, %v4868
    %s4881 = scalar_lea.vmem [#allocation6], 8
    %vm4882 = vcmask 191488
    %4883 = vst.msk [vmem:[%s4881 + $0x1] sm:$0xf] %vm4882, %v4865
    %4884 = vst.msk [vmem:[%s4881 + $0x9] sm:$0xf] %vm4882, %v4873
    %4885 = vst.msk [vmem:[%s4881 + $0x11] sm:$0xf] %vm4882, %v4866
    %4886 = vst.msk [vmem:[%s4881 + $0x19] sm:$0xf] %vm4882, %v4874
    %4887 = vst.msk [vmem:[%s4881 + $0x31] sm:$0xf] %vm4882, %v4867
    %4888 = vst.msk [vmem:[%s4881 + $0x39] sm:$0xf] %vm4882, %v4875
    %4889 = vst.msk [vmem:[%s4881 + $0x41] sm:$0xf] %vm4882, %v4868
    %4890 = vst.msk [vmem:[%s4881 + $0x49] sm:$0xf] %vm4882, %v4876
    %vm4891 = vcmask 193536
    %4892 = vst.msk [vmem:[#allocation6] sm:$0x3f] %vm4891, 0.0
    %4893 = vst.msk [vmem:[#allocation6 + $0x30] sm:$0x3f] %vm4891, 0.0
    %s4894 = scalar_lea.vmem [#allocation6], 40
    %4895 = vst.msk [vmem:[%s4894] sm:$0x3f] %vm4891, 0.0
    %4896 = vst.msk [vmem:[%s4894 + $0x30] sm:$0x3f] %vm4891, 0.0
    %vm4897 = vcmask 188416
    %4898 = vst.msk [vmem:[%s4881] sm:$0x1] %vm4897, 0.0
    %4899 = vst.msk [vmem:[%s4881 + $0x8] sm:$0x1] %vm4897, 0.0
    %4900 = vst.msk [vmem:[%s4881 + $0x10] sm:$0x1] %vm4897, 0.0
    %4901 = vst.msk [vmem:[%s4881 + $0x18] sm:$0x1] %vm4897, 0.0
    %4902 = vst.msk [vmem:[%s4881 + $0x30] sm:$0x1] %vm4897, 0.0
    %4903 = vst.msk [vmem:[%s4881 + $0x38] sm:$0x1] %vm4897, 0.0
    %4904 = vst.msk [vmem:[%s4881 + $0x40] sm:$0x1] %vm4897, 0.0
    %4905 = vst.msk [vmem:[%s4881 + $0x48] sm:$0x1] %vm4897, 0.0
    %4906 = vst.msk [vmem:[%s4881 + $0x5] sm:$0x1] %vm4897, 0.0
    %4907 = vst.msk [vmem:[%s4881 + $0xd] sm:$0x1] %vm4897, 0.0
    %4908 = vst.msk [vmem:[%s4881 + $0x15] sm:$0x1] %vm4897, 0.0
    %4909 = vst.msk [vmem:[%s4881 + $0x1d] sm:$0x1] %vm4897, 0.0
    %4910 = vst.msk [vmem:[%s4881 + $0x35] sm:$0x1] %vm4897, 0.0
    %4911 = vst.msk [vmem:[%s4881 + $0x3d] sm:$0x1] %vm4897, 0.0
    %4912 = vst.msk [vmem:[%s4881 + $0x45] sm:$0x1] %vm4897, 0.0
    %4913 = vst.msk [vmem:[%s4881 + $0x4d] sm:$0x1] %vm4897, 0.0
    %v4914 = vld [vmem:[#allocation6] sm:$0xf]
    %v4915 = vld [vmem:[#allocation6 + $0x8] sm:$0xf]
    %v4916 = vld [vmem:[#allocation6 + $0x10] sm:$0xf]
    %v4917 = vld [vmem:[#allocation6 + $0x18] sm:$0xf]
    %v4918 = vld [vmem:[#allocation6 + $0x20] sm:$0xf]
    %v4919 = vld [vmem:[#allocation6 + $0x28] sm:$0xf]
    %v4920 = vld [vmem:[#allocation6 + $0x30] sm:$0xf]
    %v4921 = vld [vmem:[#allocation6 + $0x38] sm:$0xf]
    %v4922 = vld [vmem:[#allocation6 + $0x40] sm:$0xf]
    %v4923 = vld [vmem:[#allocation6 + $0x48] sm:$0xf]
    %v4924 = vld [vmem:[#allocation6 + $0x50] sm:$0xf]
    %v4925 = vld [vmem:[#allocation6 + $0x58] sm:$0xf]
    %v4934 = vcombine.low %v4914, %v4915
    %v4935 = vcombine.low %v4916, %v4917
    %v4936 = vcombine.low %v4920, %v4921
    %v4937 = vcombine.low %v4922, %v4923
    %v4942 = vpack.c.bf16 %v4935, %v4934
    %v4943 = vpack.c.bf16 %v4937, %v4936
    %v4944 = vld [vmem:[#allocation19] sm:$0xf]
    %v4945 = vld [vmem:[#allocation19 + $0x4] sm:$0xf]
    %v4946 = vld [vmem:[#allocation19 + $0x8] sm:$0xf]
    %v4949 = vcombine.low %v4915, %v4916
    %v4950 = vcombine.low %v4917, %v4918
    %v4951 = vcombine.low %v4921, %v4922
    %v4952 = vcombine.low %v4923, %v4924
    %v4957 = vpack.c.bf16 %v4950, %v4949
    %v4958 = vpack.c.bf16 %v4952, %v4951
    %s4959 = scalar_lea.vmem [#allocation19], 36
    %v4960 = vld [vmem:[%s4959] sm:$0xf]
    %v4961 = vld [vmem:[%s4959 + $0x4] sm:$0xf]
    %v4962 = vld [vmem:[%s4959 + $0x8] sm:$0xf]
    %v4966 = vunpack.c.l.b16 %v4960
    %v4967 = vunpack.c.l.b16 %v4961
    %v4968 = vunpack.c.l.b16 %v4962
    %v4969 = vpack.c.b16 %v4967, %v4966
    %v4970 = vpack.c.b16 %v4968, %v4968
    %v4973 = vsel %vm4804, %v4957, 0
    %v4976 = vsel %vm4804, %v4958, 0
    %v4979 = vsel %vm326, %v4970, 0
    %4981 = vmatprep.subr.bf16.mxu0 0
    %4982 = vmatpush1.bf16.msra.mxu0 %v4969
    %4983 = vmatprep.subr.bf16.mxu0 0
    %4984 = vmatpush1.bf16.msra.mxu0 %v4979
    %4985 = vmatprep.subr.bf16.mxu0 0
    %4986 = vmatpush1.bf16.msra.mxu0 0
    %4987 = vmatprep.subr.bf16.mxu0 0
    %4988 = vmatpush1.bf16.msra.mxu0 0
    %4989 = vmatprep.subr.bf16.mxu0 0
    %4990 = vmatpush1.bf16.msra.mxu0 0
    %4991 = vmatprep.subr.bf16.mxu0 0
    %4992 = vmatpush1.bf16.msra.mxu0 0
    %4993 = vmatprep.subr.bf16.mxu0 0
    %4994 = vmatpush1.bf16.msra.mxu0 0
    %4995 = vmatprep.subr.bf16.mxu0 0
    %4996 = vmatpush1.bf16.msra.mxu0 0
    %4997 = vmatprep.subr.bf16.mxu0 0
    %4998 = vmatpush1.bf16.msra.mxu0 0
    %4999 = vmatprep.subr.bf16.mxu0 0
    %5000 = vmatpush1.bf16.msra.mxu0 0
    %5001 = vmatprep.subr.bf16.mxu0 0
    %5002 = vmatpush1.bf16.msra.mxu0 0
    %5003 = vmatprep.subr.bf16.mxu0 0
    %5004 = vmatpush1.bf16.msra.mxu0 0
    %5005 = vmatprep.subr.bf16.mxu0 0
    %5006 = vmatpush1.bf16.msra.mxu0 0
    %5007 = vmatprep.subr.bf16.mxu0 0
    %5008 = vmatpush1.bf16.msra.mxu0 0
    %5009 = vmatprep.subr.bf16.mxu0 0
    %5010 = vmatpush1.bf16.msra.mxu0 0
    %5011 = vmatprep.subr.bf16.mxu0 0
    %5012 = vmatpush1.bf16.msra.mxu0 0
    %5013 = vmatprep.mubr.bf16.mxu0 0
    %5014 = vmatmul.mubr.bf16.gmra.mrb[0].mxu0 %v4973
    %v5015 = vpop.f32.mrb[0].mxu0
    %v5016 = vadd.f32 0.0, %v5015
    %v5017 = vpop.f32.mrb[0].mxu0
    %v5018 = vpop.f32.mrb[0].mxu0
    %v5019 = vadd.f32 0.0, %v5018
    %v5020 = vpop.f32.mrb[0].mxu0
    %5021 = vmatprep.mubr.bf16.mxu0 0
    %5022 = vmatmul.mubr.bf16.gmra.mrb[0].mxu0 %v4976
    %v5023 = vpop.f32.mrb[0].mxu0
    %v5024 = vadd.f32 0.0, %v5023
    %v5025 = vpop.f32.mrb[0].mxu0
    %v5026 = vpop.f32.mrb[0].mxu0
    %v5027 = vadd.f32 0.0, %v5026
    %v5028 = vpop.f32.mrb[0].mxu0
    %5029 = vdwg.mxu0
    %v5033 = vunpack.c.l.b16 %v4944
    %v5034 = vunpack.c.l.b16 %v4945
    %v5035 = vunpack.c.l.b16 %v4946
    %v5036 = vpack.c.b16 %v5034, %v5033
    %v5037 = vpack.c.b16 %v5035, %v5035
    %v5040 = vsel %vm4804, %v4942, 0
    %v5043 = vsel %vm4804, %v4943, 0
    %v5046 = vsel %vm326, %v5037, 0
    %5048 = vmatprep.subr.bf16.mxu0 0
    %5049 = vmatpush1.bf16.msra.mxu0 %v5036
    %5050 = vmatprep.subr.bf16.mxu0 0
    %5051 = vmatpush1.bf16.msra.mxu0 %v5046
    %5052 = vmatprep.subr.bf16.mxu0 0
    %5053 = vmatpush1.bf16.msra.mxu0 0
    %5054 = vmatprep.subr.bf16.mxu0 0
    %5055 = vmatpush1.bf16.msra.mxu0 0
    %5056 = vmatprep.subr.bf16.mxu0 0
    %5057 = vmatpush1.bf16.msra.mxu0 0
    %5058 = vmatprep.subr.bf16.mxu0 0
    %5059 = vmatpush1.bf16.msra.mxu0 0
    %5060 = vmatprep.subr.bf16.mxu0 0
    %5061 = vmatpush1.bf16.msra.mxu0 0
    %5062 = vmatprep.subr.bf16.mxu0 0
    %5063 = vmatpush1.bf16.msra.mxu0 0
    %5064 = vmatprep.subr.bf16.mxu0 0
    %5065 = vmatpush1.bf16.msra.mxu0 0
    %5066 = vmatprep.subr.bf16.mxu0 0
    %5067 = vmatpush1.bf16.msra.mxu0 0
    %5068 = vmatprep.subr.bf16.mxu0 0
    %5069 = vmatpush1.bf16.msra.mxu0 0
    %5070 = vmatprep.subr.bf16.mxu0 0
    %5071 = vmatpush1.bf16.msra.mxu0 0
    %5072 = vmatprep.subr.bf16.mxu0 0
    %5073 = vmatpush1.bf16.msra.mxu0 0
    %5074 = vmatprep.subr.bf16.mxu0 0
    %5075 = vmatpush1.bf16.msra.mxu0 0
    %5076 = vmatprep.subr.bf16.mxu0 0
    %5077 = vmatpush1.bf16.msra.mxu0 0
    %5078 = vmatprep.subr.bf16.mxu0 0
    %5079 = vmatpush1.bf16.msra.mxu0 0
    %5080 = vmatprep.mubr.bf16.mxu0 0
    %5081 = vmatmul.mubr.bf16.gmra.mrb[0].mxu0 %v5040
    %v5082 = vpop.f32.mrb[0].mxu0
    %v5083 = vadd.f32 %v5016, %v5082
    %v5084 = vpop.f32.mrb[0].mxu0
    %v5085 = vpop.f32.mrb[0].mxu0
    %v5086 = vadd.f32 %v5019, %v5085
    %v5087 = vpop.f32.mrb[0].mxu0
    %5088 = vmatprep.mubr.bf16.mxu0 0
    %5089 = vmatmul.mubr.bf16.gmra.mrb[0].mxu0 %v5043
    %v5090 = vpop.f32.mrb[0].mxu0
    %v5091 = vadd.f32 %v5024, %v5090
    %v5092 = vpop.f32.mrb[0].mxu0
    %v5093 = vpop.f32.mrb[0].mxu0
    %v5094 = vadd.f32 %v5027, %v5093
    %v5095 = vpop.f32.mrb[0].mxu0
    %5096 = vdwg.mxu0
    %v5099 = vcombine.low %v4918, %v4919
    %v5100 = vcombine.low %v4924, %v4925
    %v5103 = vpack.c.bf16 %v5099, %v4935
    %v5104 = vpack.c.bf16 %v5100, %v4937
    %s5105 = scalar_lea.vmem [#allocation19], 72
    %v5106 = vld [vmem:[%s5105] sm:$0xf]
    %v5107 = vld [vmem:[%s5105 + $0x4] sm:$0xf]
    %v5108 = vld [vmem:[%s5105 + $0x8] sm:$0xf]
    %v5112 = vunpack.c.l.b16 %v5106
    %v5113 = vunpack.c.l.b16 %v5107
    %v5114 = vunpack.c.l.b16 %v5108
    %v5115 = vpack.c.b16 %v5113, %v5112
    %v5116 = vpack.c.b16 %v5114, %v5114
    %v5119 = vsel %vm4804, %v5103, 0
    %v5122 = vsel %vm4804, %v5104, 0
    %v5125 = vsel %vm326, %v5116, 0
    %5127 = vmatprep.subr.bf16.mxu0 0
    %5128 = vmatpush1.bf16.msra.mxu0 %v5115
    %5129 = vmatprep.subr.bf16.mxu0 0
    %5130 = vmatpush1.bf16.msra.mxu0 %v5125
    %5131 = vmatprep.subr.bf16.mxu0 0
    %5132 = vmatpush1.bf16.msra.mxu0 0
    %5133 = vmatprep.subr.bf16.mxu0 0
    %5134 = vmatpush1.bf16.msra.mxu0 0
    %5135 = vmatprep.subr.bf16.mxu0 0
    %5136 = vmatpush1.bf16.msra.mxu0 0
    %5137 = vmatprep.subr.bf16.mxu0 0
    %5138 = vmatpush1.bf16.msra.mxu0 0
    %5139 = vmatprep.subr.bf16.mxu0 0
    %5140 = vmatpush1.bf16.msra.mxu0 0
    %5141 = vmatprep.subr.bf16.mxu0 0
    %5142 = vmatpush1.bf16.msra.mxu0 0
    %5143 = vmatprep.subr.bf16.mxu0 0
    %5144 = vmatpush1.bf16.msra.mxu0 0
    %5145 = vmatprep.subr.bf16.mxu0 0
    %5146 = vmatpush1.bf16.msra.mxu0 0
    %5147 = vmatprep.subr.bf16.mxu0 0
    %5148 = vmatpush1.bf16.msra.mxu0 0
    %5149 = vmatprep.subr.bf16.mxu0 0
    %5150 = vmatpush1.bf16.msra.mxu0 0
    %5151 = vmatprep.subr.bf16.mxu0 0
    %5152 = vmatpush1.bf16.msra.mxu0 0
    %5153 = vmatprep.subr.bf16.mxu0 0
    %5154 = vmatpush1.bf16.msra.mxu0 0
    %5155 = vmatprep.subr.bf16.mxu0 0
    %5156 = vmatpush1.bf16.msra.mxu0 0
    %5157 = vmatprep.subr.bf16.mxu0 0
    %5158 = vmatpush1.bf16.msra.mxu0 0
    %5159 = vmatprep.mubr.bf16.mxu0 0
    %5160 = vmatmul.mubr.bf16.gmra.mrb[0].mxu0 %v5119
    %v5161 = vpop.f32.mrb[0].mxu0
    %v5162 = vadd.f32 0.0, %v5161
    %v5163 = vpop.f32.mrb[0].mxu0
    %v5164 = vpop.f32.mrb[0].mxu0
    %v5165 = vadd.f32 0.0, %v5164
    %v5166 = vpop.f32.mrb[0].mxu0
    %5167 = vmatprep.mubr.bf16.mxu0 0
    %5168 = vmatmul.mubr.bf16.gmra.mrb[0].mxu0 %v5122
    %v5169 = vpop.f32.mrb[0].mxu0
    %v5170 = vadd.f32 0.0, %v5169
    %v5171 = vpop.f32.mrb[0].mxu0
    %v5172 = vpop.f32.mrb[0].mxu0
    %v5173 = vadd.f32 0.0, %v5172
    %v5174 = vpop.f32.mrb[0].mxu0
    %5175 = vdwg.mxu0
    %v5176 = vadd.f32 %v5083, %v5162
    %v5177 = vadd.f32 %v5086, %v5165
    %v5178 = vadd.f32 %v5091, %v5170
    %v5179 = vadd.f32 %v5094, %v5173
    %v5180 = vld [vmem:[#allocation6 + $0x1] sm:$0xf]
    %v5181 = vld [vmem:[#allocation6 + $0x9] sm:$0xf]
    %v5182 = vld [vmem:[#allocation6 + $0x11] sm:$0xf]
    %v5183 = vld [vmem:[#allocation6 + $0x19] sm:$0xf]
    %v5184 = vld [vmem:[#allocation6 + $0x21] sm:$0xf]
    %v5185 = vld [vmem:[#allocation6 + $0x29] sm:$0xf]
    %v5186 = vld [vmem:[#allocation6 + $0x31] sm:$0xf]
    %v5187 = vld [vmem:[#allocation6 + $0x39] sm:$0xf]
    %v5188 = vld [vmem:[#allocation6 + $0x41] sm:$0xf]
    %v5189 = vld [vmem:[#allocation6 + $0x49] sm:$0xf]
    %v5190 = vld [vmem:[#allocation6 + $0x51] sm:$0xf]
    %v5191 = vld [vmem:[#allocation6 + $0x59] sm:$0xf]
    %v5200 = vcombine.low %v5180, %v5181
    %v5201 = vcombine.low %v5182, %v5183
    %v5202 = vcombine.low %v5186, %v5187
    %v5203 = vcombine.low %v5188, %v5189
    %v5208 = vpack.c.bf16 %v5201, %v5200
    %v5209 = vpack.c.bf16 %v5203, %v5202
    %s5210 = scalar_lea.vmem [#allocation19], 12
    %v5211 = vld [vmem:[%s5210] sm:$0xf]
    %v5212 = vld [vmem:[%s5210 + $0x4] sm:$0xf]
    %v5213 = vld [vmem:[%s5210 + $0x8] sm:$0xf]
    %v5217 = vunpack.c.l.b16 %v5211
    %v5218 = vunpack.c.l.b16 %v5212
    %v5219 = vunpack.c.l.b16 %v5213
    %v5220 = vpack.c.b16 %v5218, %v5217
    %v5221 = vpack.c.b16 %v5219, %v5219
    %v5224 = vsel %vm4804, %v5208, 0
    %v5227 = vsel %vm4804, %v5209, 0
    %v5230 = vsel %vm326, %v5221, 0
    %5232 = vmatprep.subr.bf16.mxu0 0
    %5233 = vmatpush1.bf16.msra.mxu0 %v5220
    %5234 = vmatprep.subr.bf16.mxu0 0
    %5235 = vmatpush1.bf16.msra.mxu0 %v5230
    %5236 = vmatprep.subr.bf16.mxu0 0
    %5237 = vmatpush1.bf16.msra.mxu0 0
    %5238 = vmatprep.subr.bf16.mxu0 0
    %5239 = vmatpush1.bf16.msra.mxu0 0
    %5240 = vmatprep.subr.bf16.mxu0 0
    %5241 = vmatpush1.bf16.msra.mxu0 0
    %5242 = vmatprep.subr.bf16.mxu0 0
    %5243 = vmatpush1.bf16.msra.mxu0 0
    %5244 = vmatprep.subr.bf16.mxu0 0
    %5245 = vmatpush1.bf16.msra.mxu0 0
    %5246 = vmatprep.subr.bf16.mxu0 0
    %5247 = vmatpush1.bf16.msra.mxu0 0
    %5248 = vmatprep.subr.bf16.mxu0 0
    %5249 = vmatpush1.bf16.msra.mxu0 0
    %5250 = vmatprep.subr.bf16.mxu0 0
    %5251 = vmatpush1.bf16.msra.mxu0 0
    %5252 = vmatprep.subr.bf16.mxu0 0
    %5253 = vmatpush1.bf16.msra.mxu0 0
    %5254 = vmatprep.subr.bf16.mxu0 0
    %5255 = vmatpush1.bf16.msra.mxu0 0
    %5256 = vmatprep.subr.bf16.mxu0 0
    %5257 = vmatpush1.bf16.msra.mxu0 0
    %5258 = vmatprep.subr.bf16.mxu0 0
    %5259 = vmatpush1.bf16.msra.mxu0 0
    %5260 = vmatprep.subr.bf16.mxu0 0
    %5261 = vmatpush1.bf16.msra.mxu0 0
    %5262 = vmatprep.subr.bf16.mxu0 0
    %5263 = vmatpush1.bf16.msra.mxu0 0
    %5264 = vmatprep.mubr.bf16.mxu0 0
    %5265 = vmatmul.mubr.bf16.gmra.mrb[0].mxu0 %v5224
    %v5266 = vpop.f32.mrb[0].mxu0
    %v5267 = vadd.f32 0.0, %v5266
    %v5268 = vpop.f32.mrb[0].mxu0
    %v5269 = vpop.f32.mrb[0].mxu0
    %v5270 = vadd.f32 0.0, %v5269
    %v5271 = vpop.f32.mrb[0].mxu0
    %5272 = vmatprep.mubr.bf16.mxu0 0
    %5273 = vmatmul.mubr.bf16.gmra.mrb[0].mxu0 %v5227
    %v5274 = vpop.f32.mrb[0].mxu0
    %v5275 = vadd.f32 0.0, %v5274
    %v5276 = vpop.f32.mrb[0].mxu0
    %v5277 = vpop.f32.mrb[0].mxu0
    %v5278 = vadd.f32 0.0, %v5277
    %v5279 = vpop.f32.mrb[0].mxu0
    %5280 = vdwg.mxu0
    %v5281 = vadd.f32 %v5176, %v5267
    %v5282 = vadd.f32 %v5177, %v5270
    %v5283 = vadd.f32 %v5178, %v5275
    %v5284 = vadd.f32 %v5179, %v5278
    %v5287 = vcombine.low %v5181, %v5182
    %v5288 = vcombine.low %v5183, %v5184
    %v5289 = vcombine.low %v5187, %v5188
    %v5290 = vcombine.low %v5189, %v5190
    %v5295 = vpack.c.bf16 %v5288, %v5287
    %v5296 = vpack.c.bf16 %v5290, %v5289
    %s5297 = scalar_lea.vmem [#allocation19], 48
    %v5298 = vld [vmem:[%s5297] sm:$0xf]
    %v5299 = vld [vmem:[%s5297 + $0x4] sm:$0xf]
    %v5300 = vld [vmem:[%s5297 + $0x8] sm:$0xf]
    %v5304 = vunpack.c.l.b16 %v5298
    %v5305 = vunpack.c.l.b16 %v5299
    %v5306 = vunpack.c.l.b16 %v5300
    %v5307 = vpack.c.b16 %v5305, %v5304
    %v5308 = vpack.c.b16 %v5306, %v5306
    %v5311 = vsel %vm4804, %v5295, 0
    %v5314 = vsel %vm4804, %v5296, 0
    %v5317 = vsel %vm326, %v5308, 0
    %5319 = vmatprep.subr.bf16.mxu0 0
    %5320 = vmatpush1.bf16.msra.mxu0 %v5307
    %5321 = vmatprep.subr.bf16.mxu0 0
    %5322 = vmatpush1.bf16.msra.mxu0 %v5317
    %5323 = vmatprep.subr.bf16.mxu0 0
    %5324 = vmatpush1.bf16.msra.mxu0 0
    %5325 = vmatprep.subr.bf16.mxu0 0
    %5326 = vmatpush1.bf16.msra.mxu0 0
    %5327 = vmatprep.subr.bf16.mxu0 0
    %5328 = vmatpush1.bf16.msra.mxu0 0
    %5329 = vmatprep.subr.bf16.mxu0 0
    %5330 = vmatpush1.bf16.msra.mxu0 0
    %5331 = vmatprep.subr.bf16.mxu0 0
    %5332 = vmatpush1.bf16.msra.mxu0 0
    %5333 = vmatprep.subr.bf16.mxu0 0
    %5334 = vmatpush1.bf16.msra.mxu0 0
    %5335 = vmatprep.subr.bf16.mxu0 0
    %5336 = vmatpush1.bf16.msra.mxu0 0
    %5337 = vmatprep.subr.bf16.mxu0 0
    %5338 = vmatpush1.bf16.msra.mxu0 0
    %5339 = vmatprep.subr.bf16.mxu0 0
    %5340 = vmatpush1.bf16.msra.mxu0 0
    %5341 = vmatprep.subr.bf16.mxu0 0
    %5342 = vmatpush1.bf16.msra.mxu0 0
    %5343 = vmatprep.subr.bf16.mxu0 0
    %5344 = vmatpush1.bf16.msra.mxu0 0
    %5345 = vmatprep.subr.bf16.mxu0 0
    %5346 = vmatpush1.bf16.msra.mxu0 0
    %5347 = vmatprep.subr.bf16.mxu0 0
    %5348 = vmatpush1.bf16.msra.mxu0 0
    %5349 = vmatprep.subr.bf16.mxu0 0
    %5350 = vmatpush1.bf16.msra.mxu0 0
    %5351 = vmatprep.mubr.bf16.mxu0 0
    %5352 = vmatmul.mubr.bf16.gmra.mrb[0].mxu0 %v5311
    %v5353 = vpop.f32.mrb[0].mxu0
    %v5354 = vadd.f32 0.0, %v5353
    %v5355 = vpop.f32.mrb[0].mxu0
    %v5356 = vpop.f32.mrb[0].mxu0
    %v5357 = vadd.f32 0.0, %v5356
    %v5358 = vpop.f32.mrb[0].mxu0
    %5359 = vmatprep.mubr.bf16.mxu0 0
    %5360 = vmatmul.mubr.bf16.gmra.mrb[0].mxu0 %v5314
    %v5361 = vpop.f32.mrb[0].mxu0
    %v5362 = vadd.f32 0.0, %v5361
    %v5363 = vpop.f32.mrb[0].mxu0
    %v5364 = vpop.f32.mrb[0].mxu0
    %v5365 = vadd.f32 0.0, %v5364
    %v5366 = vpop.f32.mrb[0].mxu0
    %5367 = vdwg.mxu0
    %v5368 = vadd.f32 %v5281, %v5354
    %v5369 = vadd.f32 %v5282, %v5357
    %v5370 = vadd.f32 %v5283, %v5362
    %v5371 = vadd.f32 %v5284, %v5365
    %v5374 = vcombine.low %v5184, %v5185
    %v5375 = vcombine.low %v5190, %v5191
    %v5378 = vpack.c.bf16 %v5374, %v5201
    %v5379 = vpack.c.bf16 %v5375, %v5203
    %s5380 = scalar_lea.vmem [#allocation19], 84
    %v5381 = vld [vmem:[%s5380] sm:$0xf]
    %v5382 = vld [vmem:[%s5380 + $0x4] sm:$0xf]
    %v5383 = vld [vmem:[%s5380 + $0x8] sm:$0xf]
    %v5387 = vunpack.c.l.b16 %v5381
    %v5388 = vunpack.c.l.b16 %v5382
    %v5389 = vunpack.c.l.b16 %v5383
    %v5390 = vpack.c.b16 %v5388, %v5387
    %v5391 = vpack.c.b16 %v5389, %v5389
    %v5394 = vsel %vm4804, %v5378, 0
    %v5397 = vsel %vm4804, %v5379, 0
    %v5400 = vsel %vm326, %v5391, 0
    %5402 = vmatprep.subr.bf16.mxu0 0
    %5403 = vmatpush1.bf16.msra.mxu0 %v5390
    %5404 = vmatprep.subr.bf16.mxu0 0
    %5405 = vmatpush1.bf16.msra.mxu0 %v5400
    %5406 = vmatprep.subr.bf16.mxu0 0
    %5407 = vmatpush1.bf16.msra.mxu0 0
    %5408 = vmatprep.subr.bf16.mxu0 0
    %5409 = vmatpush1.bf16.msra.mxu0 0
    %5410 = vmatprep.subr.bf16.mxu0 0
    %5411 = vmatpush1.bf16.msra.mxu0 0
    %5412 = vmatprep.subr.bf16.mxu0 0
    %5413 = vmatpush1.bf16.msra.mxu0 0
    %5414 = vmatprep.subr.bf16.mxu0 0
    %5415 = vmatpush1.bf16.msra.mxu0 0
    %5416 = vmatprep.subr.bf16.mxu0 0
    %5417 = vmatpush1.bf16.msra.mxu0 0
    %5418 = vmatprep.subr.bf16.mxu0 0
    %5419 = vmatpush1.bf16.msra.mxu0 0
    %5420 = vmatprep.subr.bf16.mxu0 0
    %5421 = vmatpush1.bf16.msra.mxu0 0
    %5422 = vmatprep.subr.bf16.mxu0 0
    %5423 = vmatpush1.bf16.msra.mxu0 0
    %5424 = vmatprep.subr.bf16.mxu0 0
    %5425 = vmatpush1.bf16.msra.mxu0 0
    %5426 = vmatprep.subr.bf16.mxu0 0
    %5427 = vmatpush1.bf16.msra.mxu0 0
    %5428 = vmatprep.subr.bf16.mxu0 0
    %5429 = vmatpush1.bf16.msra.mxu0 0
    %5430 = vmatprep.subr.bf16.mxu0 0
    %5431 = vmatpush1.bf16.msra.mxu0 0
    %5432 = vmatprep.subr.bf16.mxu0 0
    %5433 = vmatpush1.bf16.msra.mxu0 0
    %5434 = vmatprep.mubr.bf16.mxu0 0
    %5435 = vmatmul.mubr.bf16.gmra.mrb[0].mxu0 %v5394
    %v5436 = vpop.f32.mrb[0].mxu0
    %v5437 = vadd.f32 0.0, %v5436
    %v5438 = vpop.f32.mrb[0].mxu0
    %v5439 = vpop.f32.mrb[0].mxu0
    %v5440 = vadd.f32 0.0, %v5439
    %v5441 = vpop.f32.mrb[0].mxu0
    %5442 = vmatprep.mubr.bf16.mxu0 0
    %5443 = vmatmul.mubr.bf16.gmra.mrb[0].mxu0 %v5397
    %v5444 = vpop.f32.mrb[0].mxu0
    %v5445 = vadd.f32 0.0, %v5444
    %v5446 = vpop.f32.mrb[0].mxu0
    %v5447 = vpop.f32.mrb[0].mxu0
    %v5448 = vadd.f32 0.0, %v5447
    %v5449 = vpop.f32.mrb[0].mxu0
    %5450 = vdwg.mxu0
    %v5451 = vadd.f32 %v5368, %v5437
    %v5452 = vadd.f32 %v5369, %v5440
    %v5453 = vadd.f32 %v5370, %v5445
    %v5454 = vadd.f32 %v5371, %v5448
    %v5455 = vld [vmem:[#allocation6 + $0x2] sm:$0xf]
    %v5456 = vld [vmem:[#allocation6 + $0xa] sm:$0xf]
    %v5457 = vld [vmem:[#allocation6 + $0x12] sm:$0xf]
    %v5458 = vld [vmem:[#allocation6 + $0x1a] sm:$0xf]
    %v5459 = vld [vmem:[#allocation6 + $0x22] sm:$0xf]
    %v5460 = vld [vmem:[#allocation6 + $0x2a] sm:$0xf]
    %v5461 = vld [vmem:[#allocation6 + $0x32] sm:$0xf]
    %v5462 = vld [vmem:[#allocation6 + $0x3a] sm:$0xf]
    %v5463 = vld [vmem:[#allocation6 + $0x42] sm:$0xf]
    %v5464 = vld [vmem:[#allocation6 + $0x4a] sm:$0xf]
    %v5465 = vld [vmem:[#allocation6 + $0x52] sm:$0xf]
    %v5466 = vld [vmem:[#allocation6 + $0x5a] sm:$0xf]
    %v5475 = vcombine.low %v5455, %v5456
    %v5476 = vcombine.low %v5457, %v5458
    %v5477 = vcombine.low %v5461, %v5462
    %v5478 = vcombine.low %v5463, %v5464
    %v5483 = vpack.c.bf16 %v5476, %v5475
    %v5484 = vpack.c.bf16 %v5478, %v5477
    %s5485 = scalar_lea.vmem [#allocation19], 24
    %v5486 = vld [vmem:[%s5485] sm:$0xf]
    %v5487 = vld [vmem:[%s5485 + $0x4] sm:$0xf]
    %v5488 = vld [vmem:[%s5485 + $0x8] sm:$0xf]
    %v5492 = vunpack.c.l.b16 %v5486
    %v5493 = vunpack.c.l.b16 %v5487
    %v5494 = vunpack.c.l.b16 %v5488
    %v5495 = vpack.c.b16 %v5493, %v5492
    %v5496 = vpack.c.b16 %v5494, %v5494
    %v5499 = vsel %vm4804, %v5483, 0
    %v5502 = vsel %vm4804, %v5484, 0
    %v5505 = vsel %vm326, %v5496, 0
    %5507 = vmatprep.subr.bf16.mxu0 0
    %5508 = vmatpush1.bf16.msra.mxu0 %v5495
    %5509 = vmatprep.subr.bf16.mxu0 0
    %5510 = vmatpush1.bf16.msra.mxu0 %v5505
    %5511 = vmatprep.subr.bf16.mxu0 0
    %5512 = vmatpush1.bf16.msra.mxu0 0
    %5513 = vmatprep.subr.bf16.mxu0 0
    %5514 = vmatpush1.bf16.msra.mxu0 0
    %5515 = vmatprep.subr.bf16.mxu0 0
    %5516 = vmatpush1.bf16.msra.mxu0 0
    %5517 = vmatprep.subr.bf16.mxu0 0
    %5518 = vmatpush1.bf16.msra.mxu0 0
    %5519 = vmatprep.subr.bf16.mxu0 0
    %5520 = vmatpush1.bf16.msra.mxu0 0
    %5521 = vmatprep.subr.bf16.mxu0 0
    %5522 = vmatpush1.bf16.msra.mxu0 0
    %5523 = vmatprep.subr.bf16.mxu0 0
    %5524 = vmatpush1.bf16.msra.mxu0 0
    %5525 = vmatprep.subr.bf16.mxu0 0
    %5526 = vmatpush1.bf16.msra.mxu0 0
    %5527 = vmatprep.subr.bf16.mxu0 0
    %5528 = vmatpush1.bf16.msra.mxu0 0
    %5529 = vmatprep.subr.bf16.mxu0 0
    %5530 = vmatpush1.bf16.msra.mxu0 0
    %5531 = vmatprep.subr.bf16.mxu0 0
    %5532 = vmatpush1.bf16.msra.mxu0 0
    %5533 = vmatprep.subr.bf16.mxu0 0
    %5534 = vmatpush1.bf16.msra.mxu0 0
    %5535 = vmatprep.subr.bf16.mxu0 0
    %5536 = vmatpush1.bf16.msra.mxu0 0
    %5537 = vmatprep.subr.bf16.mxu0 0
    %5538 = vmatpush1.bf16.msra.mxu0 0
    %5539 = vmatprep.mubr.bf16.mxu0 0
    %5540 = vmatmul.mubr.bf16.gmra.mrb[0].mxu0 %v5499
    %v5541 = vpop.f32.mrb[0].mxu0
    %v5542 = vadd.f32 0.0, %v5541
    %v5543 = vpop.f32.mrb[0].mxu0
    %v5544 = vpop.f32.mrb[0].mxu0
    %v5545 = vadd.f32 0.0, %v5544
    %v5546 = vpop.f32.mrb[0].mxu0
    %5547 = vmatprep.mubr.bf16.mxu0 0
    %5548 = vmatmul.mubr.bf16.gmra.mrb[0].mxu0 %v5502
    %v5549 = vpop.f32.mrb[0].mxu0
    %v5550 = vadd.f32 0.0, %v5549
    %v5551 = vpop.f32.mrb[0].mxu0
    %v5552 = vpop.f32.mrb[0].mxu0
    %v5553 = vadd.f32 0.0, %v5552
    %v5554 = vpop.f32.mrb[0].mxu0
    %5555 = vdwg.mxu0
    %v5556 = vadd.f32 %v5451, %v5542
    %v5557 = vadd.f32 %v5452, %v5545
    %v5558 = vadd.f32 %v5453, %v5550
    %v5559 = vadd.f32 %v5454, %v5553
    %v5562 = vcombine.low %v5456, %v5457
    %v5563 = vcombine.low %v5458, %v5459
    %v5564 = vcombine.low %v5462, %v5463
    %v5565 = vcombine.low %v5464, %v5465
    %v5570 = vpack.c.bf16 %v5563, %v5562
    %v5571 = vpack.c.bf16 %v5565, %v5564
    %s5572 = scalar_lea.vmem [#allocation19], 60
    %v5573 = vld [vmem:[%s5572] sm:$0xf]
    %v5574 = vld [vmem:[%s5572 + $0x4] sm:$0xf]
    %v5575 = vld [vmem:[%s5572 + $0x8] sm:$0xf]
    %v5579 = vunpack.c.l.b16 %v5573
    %v5580 = vunpack.c.l.b16 %v5574
    %v5581 = vunpack.c.l.b16 %v5575
    %v5582 = vpack.c.b16 %v5580, %v5579
    %v5583 = vpack.c.b16 %v5581, %v5581
    %v5586 = vsel %vm4804, %v5570, 0
    %v5589 = vsel %vm4804, %v5571, 0
    %v5592 = vsel %vm326, %v5583, 0
    %5594 = vmatprep.subr.bf16.mxu0 0
    %5595 = vmatpush1.bf16.msra.mxu0 %v5582
    %5596 = vmatprep.subr.bf16.mxu0 0
    %5597 = vmatpush1.bf16.msra.mxu0 %v5592
    %5598 = vmatprep.subr.bf16.mxu0 0
    %5599 = vmatpush1.bf16.msra.mxu0 0
    %5600 = vmatprep.subr.bf16.mxu0 0
    %5601 = vmatpush1.bf16.msra.mxu0 0
    %5602 = vmatprep.subr.bf16.mxu0 0
    %5603 = vmatpush1.bf16.msra.mxu0 0
    %5604 = vmatprep.subr.bf16.mxu0 0
    %5605 = vmatpush1.bf16.msra.mxu0 0
    %5606 = vmatprep.subr.bf16.mxu0 0
    %5607 = vmatpush1.bf16.msra.mxu0 0
    %5608 = vmatprep.subr.bf16.mxu0 0
    %5609 = vmatpush1.bf16.msra.mxu0 0
    %5610 = vmatprep.subr.bf16.mxu0 0
    %5611 = vmatpush1.bf16.msra.mxu0 0
    %5612 = vmatprep.subr.bf16.mxu0 0
    %5613 = vmatpush1.bf16.msra.mxu0 0
    %5614 = vmatprep.subr.bf16.mxu0 0
    %5615 = vmatpush1.bf16.msra.mxu0 0
    %5616 = vmatprep.subr.bf16.mxu0 0
    %5617 = vmatpush1.bf16.msra.mxu0 0
    %5618 = vmatprep.subr.bf16.mxu0 0
    %5619 = vmatpush1.bf16.msra.mxu0 0
    %5620 = vmatprep.subr.bf16.mxu0 0
    %5621 = vmatpush1.bf16.msra.mxu0 0
    %5622 = vmatprep.subr.bf16.mxu0 0
    %5623 = vmatpush1.bf16.msra.mxu0 0
    %5624 = vmatprep.subr.bf16.mxu0 0
    %5625 = vmatpush1.bf16.msra.mxu0 0
    %5626 = vmatprep.mubr.bf16.mxu0 0
    %5627 = vmatmul.mubr.bf16.gmra.mrb[0].mxu0 %v5586
    %v5628 = vpop.f32.mrb[0].mxu0
    %v5629 = vadd.f32 0.0, %v5628
    %v5630 = vpop.f32.mrb[0].mxu0
    %v5631 = vpop.f32.mrb[0].mxu0
    %v5632 = vadd.f32 0.0, %v5631
    %v5633 = vpop.f32.mrb[0].mxu0
    %5634 = vmatprep.mubr.bf16.mxu0 0
    %5635 = vmatmul.mubr.bf16.gmra.mrb[0].mxu0 %v5589
    %v5636 = vpop.f32.mrb[0].mxu0
    %v5637 = vadd.f32 0.0, %v5636
    %v5638 = vpop.f32.mrb[0].mxu0
    %v5639 = vpop.f32.mrb[0].mxu0
    %v5640 = vadd.f32 0.0, %v5639
    %v5641 = vpop.f32.mrb[0].mxu0
    %5642 = vdwg.mxu0
    %v5643 = vadd.f32 %v5556, %v5629
    %v5644 = vadd.f32 %v5557, %v5632
    %v5645 = vadd.f32 %v5558, %v5637
    %v5646 = vadd.f32 %v5559, %v5640
    %v5649 = vcombine.low %v5459, %v5460
    %v5650 = vcombine.low %v5465, %v5466
    %v5653 = vpack.c.bf16 %v5649, %v5476
    %v5654 = vpack.c.bf16 %v5650, %v5478
    %s5655 = scalar_lea.vmem [#allocation19], 96
    %v5656 = vld [vmem:[%s5655] sm:$0xf]
    %v5657 = vld [vmem:[%s5655 + $0x4] sm:$0xf]
    %v5658 = vld [vmem:[%s5655 + $0x8] sm:$0xf]
    %v5662 = vunpack.c.l.b16 %v5656
    %v5663 = vunpack.c.l.b16 %v5657
    %v5664 = vunpack.c.l.b16 %v5658
    %v5665 = vpack.c.b16 %v5663, %v5662
    %v5666 = vpack.c.b16 %v5664, %v5664
    %v5669 = vsel %vm4804, %v5653, 0
    %v5672 = vsel %vm4804, %v5654, 0
    %v5675 = vsel %vm326, %v5666, 0
    %5677 = vmatprep.subr.bf16.mxu0 0
    %5678 = vmatpush1.bf16.msra.mxu0 %v5665
    %5679 = vmatprep.subr.bf16.mxu0 0
    %5680 = vmatpush1.bf16.msra.mxu0 %v5675
    %5681 = vmatprep.subr.bf16.mxu0 0
    %5682 = vmatpush1.bf16.msra.mxu0 0
    %5683 = vmatprep.subr.bf16.mxu0 0
    %5684 = vmatpush1.bf16.msra.mxu0 0
    %5685 = vmatprep.subr.bf16.mxu0 0
    %5686 = vmatpush1.bf16.msra.mxu0 0
    %5687 = vmatprep.subr.bf16.mxu0 0
    %5688 = vmatpush1.bf16.msra.mxu0 0
    %5689 = vmatprep.subr.bf16.mxu0 0
    %5690 = vmatpush1.bf16.msra.mxu0 0
    %5691 = vmatprep.subr.bf16.mxu0 0
    %5692 = vmatpush1.bf16.msra.mxu0 0
    %5693 = vmatprep.subr.bf16.mxu0 0
    %5694 = vmatpush1.bf16.msra.mxu0 0
    %5695 = vmatprep.subr.bf16.mxu0 0
    %5696 = vmatpush1.bf16.msra.mxu0 0
    %5697 = vmatprep.subr.bf16.mxu0 0
    %5698 = vmatpush1.bf16.msra.mxu0 0
    %5699 = vmatprep.subr.bf16.mxu0 0
    %5700 = vmatpush1.bf16.msra.mxu0 0
    %5701 = vmatprep.subr.bf16.mxu0 0
    %5702 = vmatpush1.bf16.msra.mxu0 0
    %5703 = vmatprep.subr.bf16.mxu0 0
    %5704 = vmatpush1.bf16.msra.mxu0 0
    %5705 = vmatprep.subr.bf16.mxu0 0
    %5706 = vmatpush1.bf16.msra.mxu0 0
    %5707 = vmatprep.subr.bf16.mxu0 0
    %5708 = vmatpush1.bf16.msra.mxu0 0
    %5709 = vmatprep.mubr.bf16.mxu0 0
    %5710 = vmatmul.mubr.bf16.gmra.mrb[0].mxu0 %v5669
    %v5711 = vpop.f32.mrb[0].mxu0
    %v5712 = vadd.f32 0.0, %v5711
    %v5713 = vpop.f32.mrb[0].mxu0
    %v5714 = vpop.f32.mrb[0].mxu0
    %v5715 = vadd.f32 0.0, %v5714
    %v5716 = vpop.f32.mrb[0].mxu0
    %5717 = vmatprep.mubr.bf16.mxu0 0
    %5718 = vmatmul.mubr.bf16.gmra.mrb[0].mxu0 %v5672
    %v5719 = vpop.f32.mrb[0].mxu0
    %v5720 = vadd.f32 0.0, %v5719
    %v5721 = vpop.f32.mrb[0].mxu0
    %v5722 = vpop.f32.mrb[0].mxu0
    %v5723 = vadd.f32 0.0, %v5722
    %v5724 = vpop.f32.mrb[0].mxu0
    %5725 = vdwg.mxu0
    %v5726 = vadd.f32 %v5643, %v5712
    %v5727 = vadd.f32 %v5644, %v5715
    %v5728 = vadd.f32 %v5645, %v5720
    %v5729 = vadd.f32 %v5646, %v5723
    %v5730 = vpack.c.bf16 %v5727, %v5726
    %v5731 = vpack.c.bf16 %v5729, %v5728
    %v5732 = vld [vmem:[%s17] sm:$0xf]
    %v5733 = vld [vmem:[%s17 + $0x4] sm:$0xf]
    %v5734 = vld [vmem:[%s17 + $0x8] sm:$0xf]
    %v5738 = vunpack.c.l.b16 %v5732
    %v5739 = vunpack.c.l.b16 %v5733
    %v5740 = vunpack.c.l.b16 %v5734
    %v5741 = vpack.c.b16 %v5739, %v5738
    %v5742 = vpack.c.b16 %v5740, %v5740
    %v5745 = vsel %vm4804, %v5730, 0
    %v5748 = vsel %vm4804, %v5731, 0
    %v5751 = vsel %vm326, %v5742, 0
    %5753 = vmatprep.subr.bf16.mxu0 0
    %5754 = vmatpush1.bf16.msra.mxu0 %v5741
    %5755 = vmatprep.subr.bf16.mxu0 0
    %5756 = vmatpush1.bf16.msra.mxu0 %v5751
    %5757 = vmatprep.subr.bf16.mxu0 0
    %5758 = vmatpush1.bf16.msra.mxu0 0
    %5759 = vmatprep.subr.bf16.mxu0 0
    %5760 = vmatpush1.bf16.msra.mxu0 0
    %5761 = vmatprep.subr.bf16.mxu0 0
    %5762 = vmatpush1.bf16.msra.mxu0 0
    %5763 = vmatprep.subr.bf16.mxu0 0
    %5764 = vmatpush1.bf16.msra.mxu0 0
    %5765 = vmatprep.subr.bf16.mxu0 0
    %5766 = vmatpush1.bf16.msra.mxu0 0
    %5767 = vmatprep.subr.bf16.mxu0 0
    %5768 = vmatpush1.bf16.msra.mxu0 0
    %5769 = vmatprep.subr.bf16.mxu0 0
    %5770 = vmatpush1.bf16.msra.mxu0 0
    %5771 = vmatprep.subr.bf16.mxu0 0
    %5772 = vmatpush1.bf16.msra.mxu0 0
    %5773 = vmatprep.subr.bf16.mxu0 0
    %5774 = vmatpush1.bf16.msra.mxu0 0
    %5775 = vmatprep.subr.bf16.mxu0 0
    %5776 = vmatpush1.bf16.msra.mxu0 0
    %5777 = vmatprep.subr.bf16.mxu0 0
    %5778 = vmatpush1.bf16.msra.mxu0 0
    %5779 = vmatprep.subr.bf16.mxu0 0
    %5780 = vmatpush1.bf16.msra.mxu0 0
    %5781 = vmatprep.subr.bf16.mxu0 0
    %5782 = vmatpush1.bf16.msra.mxu0 0
    %5783 = vmatprep.subr.bf16.mxu0 0
    %5784 = vmatpush1.bf16.msra.mxu0 0
    %5785 = vmatprep.mubr.bf16.mxu0 0
    %5786 = vmatmul.mubr.bf16.gmra.mrb[0].mxu0 %v5745
    %v5787 = vpop.f32.mrb[0].mxu0
    %v5788 = vadd.f32 0.0, %v5787
    %v5789 = vpop.f32.mrb[0].mxu0
    %v5790 = vpop.f32.mrb[0].mxu0
    %v5791 = vadd.f32 0.0, %v5790
    %v5792 = vpop.f32.mrb[0].mxu0
    %5793 = vmatprep.mubr.bf16.mxu0 0
    %5794 = vmatmul.mubr.bf16.gmra.mrb[0].mxu0 %v5748
    %v5795 = vpop.f32.mrb[0].mxu0
    %v5796 = vadd.f32 0.0, %v5795
    %v5797 = vpop.f32.mrb[0].mxu0
    %v5798 = vpop.f32.mrb[0].mxu0
    %v5799 = vadd.f32 0.0, %v5798
    %v5800 = vpop.f32.mrb[0].mxu0
    %5801 = vdwg.mxu0
    %v5802 = vld [vmem:[%s18] sm:$0x1]
    %v5803 = vld [vmem:[%s19] sm:$0x1]
    %vm5804 = vcmask 261120
    %v5805 = vsel %vm5804, %v5788, 0.0
    %v5806 = vsel %vm5804, %v5791, 0.0
    %v5807 = vadd.f32 %v5805, %v5806
    %v5808 = vsel %vm5804, %v5796, 0.0
    %v5809 = vadd.f32 %v5807, %v5808
    %v5810 = vsel %vm5804, %v5799, 0.0
    %v5811 = vadd.f32 %v5809, %v5810
    %v5812 = vrot.slane %v5811, 4
    %v5813 = vadd.f32 %v5811, %v5812
    %v5814 = vrot.slane %v5813, 2
    %v5815 = vadd.f32 %v5813, %v5814
    %v5816 = vrot.slane %v5815, 1
    %v5817 = vadd.f32 %v5815, %v5816
    %v5818 = vmul.f32 %v5817, 0.03125
    %v5819 = vmul.f32 %v5788, %v5788
    %v5820 = vmul.f32 %v5791, %v5791
    %v5821 = vmul.f32 %v5796, %v5796
    %v5822 = vmul.f32 %v5799, %v5799
    %v5823 = vsel %vm5804, %v5819, 0.0
    %v5824 = vsel %vm5804, %v5820, 0.0
    %v5825 = vadd.f32 %v5823, %v5824
    %v5826 = vsel %vm5804, %v5821, 0.0
    %v5827 = vadd.f32 %v5825, %v5826
    %v5828 = vsel %vm5804, %v5822, 0.0
    %v5829 = vadd.f32 %v5827, %v5828
    %v5830 = vrot.slane %v5829, 4
    %v5831 = vadd.f32 %v5829, %v5830
    %v5832 = vrot.slane %v5831, 2
    %v5833 = vadd.f32 %v5831, %v5832
    %v5834 = vrot.slane %v5833, 1
    %v5835 = vadd.f32 %v5833, %v5834
    %v5836 = vmul.f32 %v5835, 0.03125
    %v5837 = vmul.f32 %v5818, %v5818
    %v5838 = vsub.f32 %v5836, %v5837
    %v5839 = vmax.f32 %v5838, 0.0
    %v5840 = vadd.f32 %v5839, 1e-05
    %v5841 = vrsqrt.pop %v5840
    %v5842 = vmul.f32 %v5802, %v5841
    %v5843 = vmul.f32 %v5842, %v5818
    %v5844 = vsub.f32 %v5803, %v5843
    %v5846 = vlaneseq
    %v5847 = vshrl.u32 %v5846, 7
    %v5848 = vsub.s32 0, %v5847
    %v5849 = vrot.slane %v5842, %v5848
    %v5851 = vmul.f32 %v5788, %v5849
    %v5852 = vmul.f32 %v5791, %v5849
    %v5853 = vmul.f32 %v5796, %v5849
    %v5854 = vmul.f32 %v5799, %v5849
    %v5856 = vlaneseq
    %v5857 = vshrl.u32 %v5856, 7
    %v5858 = vsub.s32 0, %v5857
    %v5859 = vrot.slane %v5844, %v5858
    %v5861 = vadd.f32 %v5851, %v5859
    %v5862 = vadd.f32 %v5852, %v5859
    %v5863 = vadd.f32 %v5853, %v5859
    %v5864 = vadd.f32 %v5854, %v5859
    %v5865 = vmax.f32 %v5861, 0.0
    %v5866 = vmax.f32 %v5862, 0.0
    %v5867 = vmax.f32 %v5863, 0.0
    %v5868 = vmax.f32 %v5864, 0.0
    %v5869 = vsel %vm5804, %v5865, 0.0
    %v5870 = vsel %vm5804, %v5866, 0.0
    %v5871 = vadd.f32 %v5869, %v5870
    %v5872 = vrot.slane %v5871, 4
    %v5873 = vadd.f32 %v5871, %v5872
    %v5874 = vrot.slane %v5873, 2
    %v5875 = vadd.f32 %v5873, %v5874
    %v5876 = vrot.slane %v5875, 1
    %v5877 = vadd.f32 %v5875, %v5876
    %v5878 = vsel %vm5804, %v5867, 0.0
    %v5879 = vsel %vm5804, %v5868, 0.0
    %v5880 = vadd.f32 %v5878, %v5879
    %v5881 = vrot.slane %v5880, 4
    %v5882 = vadd.f32 %v5880, %v5881
    %v5883 = vrot.slane %v5882, 2
    %v5884 = vadd.f32 %v5882, %v5883
    %v5885 = vrot.slane %v5884, 1
    %v5886 = vadd.f32 %v5884, %v5885
    %v5887 = vrcp.pop 16.0
    %v5888 = vmul.f32 %v5877, %v5887
    %v5889 = vmul.f32 %v5886, %v5887
    %vm5892 = vcmask 1041409
    %v5893 = vsel %vm5892, %v5889, %v5888
    %vm5895 = vcmask 254976
    %5896 = vst.msk [vmem:[#allocation21] sm:$0x3] %vm5895, %v5893
    // Predicated region
    $region114: #{tpu_custom_call.1} parent=1 // pred_check
      _
    $region115: #{tpu_custom_call.1} parent=1 // pred_check_branch
      %5898 = sbr.rel (0) target = $region117
    $region116: #{tpu_custom_call.1} parent=1 // pred_region
      %s5900 = ssub.s32 32, 32
      %5901 = vsyncadd [#allocation9], %s5900
      %s5903 = sshll.u32 [#allocation21], 4
      %s5904 = int_to_ptr.vmem [resolvable:$true] %s5903
      %5906 = dma.vmem_to_hbm [thread:$0]  %s5904, 32, %s20, [#allocation9]
    $region117: #{tpu_custom_call.1} parent=1 // pred_fallthru
      _
    // Predicated region
    $region118: #{tpu_custom_call.1} parent=1 // pred_check
      _
    $region119: #{tpu_custom_call.1} parent=1 // pred_check_branch
      %5908 = sbr.rel (0) target = $region121
    $region120: #{tpu_custom_call.1} parent=1 // pred_region
      %5909 = dma.done [#allocation9], 32
    $region121: #{tpu_custom_call.1} parent=1 // pred_fallthru
      _
    %5910 = vsyncpa [#allocation8], 1
    %5911 = vsyncpa [#allocation11], 1
    %5912 = vsyncpa [#allocation14], 1
    %5913 = vsyncpa [#allocation17], 1
    %5914 = vsyncpa [#allocation20], 1
    %5915 = vsyncpa [#allocation9], 1

</llo_original>
